<compile_context>
chip_gen: v7x
topology: tpu7x:2x2x1
jax: 0.10.0
libtpu: 0.0.40
codegen_flags: <defaults>
</compile_context>

<pallas_src>
import functools

import jax
import jax.numpy as jnp
from jax.experimental import pallas as pl
from jax.experimental.pallas import tpu as pltpu


def group_attn_kernel(x_ref, wqkv_ref, wproj_ref, bproj_ref, o_ref, *,
                      num_heads, windows_per_step, tokens_per_window):
    # x_ref:    (Wb*S, C)  Wb windows of S tokens each, stacked along rows
    # wqkv_ref: (C, 3C)    qkv weight, (in, out), scale pre-folded into Q cols
    # wproj_ref:(C, C)     proj weight, (in, out)
    # bproj_ref:(1, C)     proj bias
    Wb = windows_per_step
    S = tokens_per_window

    x = x_ref[...]                                                   # (Wb*S, C)
    C = x.shape[-1]
    hd = C // num_heads

    # One big MXU matmul for all Wb windows at once.
    qkv = jnp.dot(x, wqkv_ref[...], preferred_element_type=jnp.float32)  # (Wb*S, 3C)

    head_outs = []
    for h in range(num_heads):                       # small static loop
        q = qkv[:, h * hd:(h + 1) * hd].reshape(Wb, S, hd)
        k = qkv[:, C + h * hd:C + (h + 1) * hd].reshape(Wb, S, hd)
        v = qkv[:, 2 * C + h * hd:2 * C + (h + 1) * hd].reshape(Wb, S, hd)

        # scale already folded into wqkv's Q columns.
        s = jnp.einsum('bqd,bkd->bqk', q, k,
                       preferred_element_type=jnp.float32)           # (Wb, S, S)
        s = s - jnp.max(s, axis=-1, keepdims=True)
        p = jnp.exp(s)
        p = p * pl.reciprocal(jnp.sum(p, axis=-1, keepdims=True), approx=True)
        o = jnp.einsum('bqk,bkd->bqd', p, v,
                       preferred_element_type=jnp.float32)           # (Wb, S, hd)
        head_outs.append(o.reshape(Wb * S, hd))

    attn_out = jnp.concatenate(head_outs, axis=-1)                   # (Wb*S, C)
    out = jnp.dot(attn_out, wproj_ref[...],
                  preferred_element_type=jnp.float32) + bproj_ref[...]
    o_ref[...] = out.astype(o_ref.dtype)


def _pick_window_batch(num_windows, tokens_per_window, channels, *,
                       target_tokens=512, min_steps=2,
                       vmem_budget_bytes=6 << 20):
    """Largest divisor of num_windows that keeps VMEM tiles modest and >=2 steps."""
    lane_c = max(channels, 128)          # lane padding to 128
    best = 1
    for wb in range(1, num_windows + 1):
        if num_windows % wb:
            continue
        steps = num_windows // wb
        if num_windows >= min_steps and steps < min_steps:
            continue                      # keep >=2 grid steps (v7x megacore)
        tokens = wb * tokens_per_window
        if tokens > 2 * target_tokens:
            continue
        if (tokens % 8) != 0 and wb != num_windows:
            continue                      # keep sublane-aligned block rows
        # rough f32 footprint: double-buffered in/out tiles + qkv intermediate
        approx_bytes = tokens * lane_c * 4 * 7
        if approx_bytes > vmem_budget_bytes:
            continue
        best = wb
    return best


def group_attention(x, H, W, w_qkv_t, w_proj_t, b_proj, *, num_heads, ws):
    """x: (B, N, C) with N = H*W (row-major spatial tokens). Returns (B, N, C)."""
    B, N, C = x.shape
    assert N == H * W and H % ws == 0 and W % ws == 0 and C % num_heads == 0
    hg, wg = H // ws, W // ws
    G = hg * wg
    S = ws * ws
    BG = B * G
    scale = (C // num_heads) ** (-0.5)

    # Fold the attention scale into the Q columns of the qkv weight
    # (zero-cost vs. an in-kernel multiply on every (S,S) score tile).
    w_qkv_eff = jnp.concatenate([w_qkv_t[:, :C] * scale, w_qkv_t[:, C:]], axis=1)

    # Window regroup (plain XLA):
    # (B, hg, ws, wg, ws, C) -> (B, hg, wg, ws, ws, C) -> (B*G*S, C)
    # TODO(synk): fold this gather into the BlockSpec index_map (strided window
    # DMA); with ws < 8 the in-kernel window de-interleave would need
    # sub-8-sublane relayouts, so the XLA permute is kept for robustness.
    xg = (x.reshape(B, hg, ws, wg, ws, C)
           .transpose(0, 1, 3, 2, 4, 5)
           .reshape(BG * S, C))

    Wb = _pick_window_batch(BG, S, C)
    steps = BG // Wb

    kernel = functools.partial(group_attn_kernel, num_heads=num_heads,
                               windows_per_step=Wb, tokens_per_window=S)

    def build(single_buffer_weights):
        wkw = ({'pipeline_mode': pl.Buffered(1)} if single_buffer_weights else {})
        grid_spec = pltpu.PrefetchScalarGridSpec(
            num_scalar_prefetch=0,
            grid=(steps,),
            in_specs=[
                pl.BlockSpec((Wb * S, C), lambda g: (g, 0)),
                pl.BlockSpec((C, 3 * C), lambda g: (0, 0), **wkw),
                pl.BlockSpec((C, C), lambda g: (0, 0), **wkw),
                pl.BlockSpec((1, C), lambda g: (0, 0), **wkw),
            ],
            out_specs=pl.BlockSpec((Wb * S, C), lambda g: (g, 0)),
        )
        return pl.pallas_call(
            kernel,
            out_shape=jax.ShapeDtypeStruct((BG * S, C), x.dtype),
            grid_spec=grid_spec,
            compiler_params=pltpu.CompilerParams(
                dimension_semantics=("parallel",),
                vmem_limit_bytes=32 * 1024 * 1024),
        )

    try:
        out_flat = build(True)(xg, w_qkv_eff, w_proj_t, b_proj)
    except Exception:
        # pipeline_mode=pl.Buffered(1) not supported on this build -> default specs.
        out_flat = build(False)(xg, w_qkv_eff, w_proj_t, b_proj)

    # Ungroup windows back to (B, N, C).
    out = (out_flat.reshape(B, hg, wg, ws, ws, C)
                   .transpose(0, 1, 3, 2, 4, 5)
                   .reshape(B, N, C))
    return out


def reference_group_attention(x, H, W, w_qkv_t, w_proj_t, b_proj, *, num_heads, ws):
    """Pure-JAX mirror of the PyTorch forward (for verification)."""
    B, N, C = x.shape
    hg, wg = H // ws, W // ws
    G = hg * wg
    S = ws * ws
    hd = C // num_heads
    scale = hd ** (-0.5)

    xg = (x.reshape(B, hg, ws, wg, ws, C)
           .transpose(0, 1, 3, 2, 4, 5)
           .reshape(B, G, S, C))
    qkv = jnp.einsum('bgsc,cd->bgsd', xg, w_qkv_t)                 # (B,G,S,3C)
    qkv = qkv.reshape(B, G, S, 3, num_heads, hd).transpose(3, 0, 1, 4, 2, 5)
    q, k, v = qkv[0], qkv[1], qkv[2]                               # (B,G,nH,S,hd)
    attn = jnp.einsum('bghsd,bghtd->bghst', q, k) * scale
    attn = jax.nn.softmax(attn, axis=-1)
    o = jnp.einsum('bghst,bghtd->bghsd', attn, v)                  # (B,G,nH,S,hd)
    o = o.transpose(0, 1, 3, 2, 4).reshape(B, hg, wg, ws, ws, C)
    o = o.transpose(0, 1, 3, 2, 4, 5).reshape(B, N, C)
    o = jnp.einsum('bnc,cd->bnd', o, w_proj_t) + b_proj[0]
    return o


if __name__ == "__main__":
    # Small shapes consistent with the module:
    #   dim C = 32, num_heads = 4 (head_dim = 8), window ws = 4,
    #   spatial H = W = 8  ->  N = 64, groups = 4, tokens/group = 16.
    B, H, W = 2, 8, 8
    C, num_heads, ws = 32, 4, 4
    N = H * W

    key = jax.random.PRNGKey(0)
    kx, kq, kp, kb = jax.random.split(key, 4)

    x = jax.random.normal(kx, (B, N, C), dtype=jnp.float32)

    # nn.Linear-shaped params, pre-transposed to (in, out).
    # qkv: Linear(C, 3C, bias=False); proj: Linear(C, C, bias=True).
    w_qkv_t = jax.random.normal(kq, (C, 3 * C), dtype=jnp.float32) * 0.05
    w_proj_t = jax.random.normal(kp, (C, C), dtype=jnp.float32) * 0.05
    b_proj = jax.random.normal(kb, (1, C), dtype=jnp.float32) * 0.05

    out = group_attention(x, H, W, w_qkv_t, w_proj_t, b_proj,
                          num_heads=num_heads, ws=ws)
    out = jax.block_until_ready(out)

    ref = reference_group_attention(x, H, W, w_qkv_t, w_proj_t, b_proj,
                                    num_heads=num_heads, ws=ws)
    assert out.shape == (B, N, C)
    # approx reciprocal in the softmax -> slightly looser tolerance than 1e-4.
    assert jnp.allclose(out, ref, atol=2e-3, rtol=2e-3), "mismatch vs reference"

    print("KERNEL_OK")
</pallas_src>

<mosaic_0001>
module attributes {stable_mosaic.version = 11 : i64} {
  func.func @group_attn_kernel(%arg0: i32, %arg1: memref<64x32xf32, #tpu.memory_space<vmem>>, %arg2: memref<32x96xf32, #tpu.memory_space<vmem>>, %arg3: memref<32x32xf32, #tpu.memory_space<vmem>>, %arg4: memref<1x32xf32, #tpu.memory_space<vmem>>, %arg5: memref<64x32xf32, #tpu.memory_space<vmem>>) attributes {dimension_semantics = [#tpu.dimension_semantics<parallel>], iteration_bounds = array<i64: 2>, scalar_prefetch = 0 : i64, scratch_operands = 0 : i64, tpu.core_type = #tpu.core_type<tc>, window_params = [{transform_indices = @transform_0, window_bounds = array<i64: 64, 32>}, {pipeline_mode = #tpu.pipeline_mode<synchronous>, transform_indices = @transform_1, window_bounds = array<i64: 32, 96>}, {pipeline_mode = #tpu.pipeline_mode<synchronous>, transform_indices = @transform_2, window_bounds = array<i64: 32, 32>}, {pipeline_mode = #tpu.pipeline_mode<synchronous>, transform_indices = @transform_3, window_bounds = array<i64: 1, 32>}, {transform_indices = @transform_4, window_bounds = array<i64: 64, 32>}]} {
    %c0 = arith.constant 0 : index
    %c0_0 = arith.constant 0 : index
    %0 = vector.load %arg1[%c0, %c0_0] : memref<64x32xf32, #tpu.memory_space<vmem>>, vector<64x32xf32>
    %c0_1 = arith.constant 0 : index
    %c0_2 = arith.constant 0 : index
    %1 = vector.load %arg2[%c0_1, %c0_2] : memref<32x96xf32, #tpu.memory_space<vmem>>, vector<32x96xf32>
    %cst = arith.constant dense<0.000000e+00> : vector<64x96xf32>
    %2 = tpu.matmul %0, %1, %cst {dimension_numbers = #tpu.dot_dimension_numbers<[1], [0], [0], [1], [0, 0, 1, 1], [], []>} : vector<64x32xf32>, vector<32x96xf32>, vector<64x96xf32> -> vector<64x96xf32>
    %3 = vector.extract_strided_slice %2 {offsets = [0, 0], sizes = [64, 8], strides = [1, 1]} : vector<64x96xf32> to vector<64x8xf32>
    %4 = vector.shape_cast %3 : vector<64x8xf32> to vector<4x16x8xf32>
    %5 = vector.extract_strided_slice %2 {offsets = [0, 32], sizes = [64, 8], strides = [1, 1]} : vector<64x96xf32> to vector<64x8xf32>
    %6 = vector.shape_cast %5 : vector<64x8xf32> to vector<4x16x8xf32>
    %7 = vector.extract_strided_slice %2 {offsets = [0, 64], sizes = [64, 8], strides = [1, 1]} : vector<64x96xf32> to vector<64x8xf32>
    %8 = vector.shape_cast %7 : vector<64x8xf32> to vector<4x16x8xf32>
    "tpu.trace_start"() <{level = 10 : i32, message = "bqd,bkd->bqk"}> : () -> ()
    %cst_3 = arith.constant dense<0.000000e+00> : vector<4x16x16xf32>
    %9 = tpu.matmul %4, %6, %cst_3 {dimension_numbers = #tpu.dot_dimension_numbers<[2], [2], [1], [1], [0, 0, 0, 1, 1, 1], [0], [0]>} : vector<4x16x8xf32>, vector<4x16x8xf32>, vector<4x16x16xf32> -> vector<4x16x16xf32>
    "tpu.trace_stop"() : () -> ()
    %cst_4 = arith.constant dense<0xFF800000> : vector<4x16xf32>
    %10 = vector.multi_reduction <maximumf>, %9, %cst_4 [2] : vector<4x16x16xf32> to vector<4x16xf32>
    %11 = vector.shape_cast %10 : vector<4x16xf32> to vector<4x16x1xf32>
    %12 = vector.broadcast %11 : vector<4x16x1xf32> to vector<4x16x16xf32>
    %13 = arith.subf %9, %12 : vector<4x16x16xf32>
    %14 = math.exp %13 : vector<4x16x16xf32>
    %cst_5 = arith.constant dense<0.000000e+00> : vector<4x16xf32>
    %15 = vector.multi_reduction <add>, %14, %cst_5 [2] : vector<4x16x16xf32> to vector<4x16xf32>
    %16 = vector.shape_cast %15 : vector<4x16xf32> to vector<4x16x1xf32>
    %17 = tpu.reciprocal %16 {approx = true} : vector<4x16x1xf32> -> vector<4x16x1xf32>
    %18 = vector.broadcast %17 : vector<4x16x1xf32> to vector<4x16x16xf32>
    %19 = arith.mulf %14, %18 : vector<4x16x16xf32>
    "tpu.trace_start"() <{level = 10 : i32, message = "bqk,bkd->bqd"}> : () -> ()
    %cst_6 = arith.constant dense<0.000000e+00> : vector<4x16x8xf32>
    %20 = tpu.matmul %19, %8, %cst_6 {dimension_numbers = #tpu.dot_dimension_numbers<[2], [1], [1], [2], [0, 0, 0, 1, 1, 2], [0], [0]>} : vector<4x16x16xf32>, vector<4x16x8xf32>, vector<4x16x8xf32> -> vector<4x16x8xf32>
    "tpu.trace_stop"() : () -> ()
    %21 = vector.shape_cast %20 : vector<4x16x8xf32> to vector<64x8xf32>
    %22 = vector.extract_strided_slice %2 {offsets = [0, 8], sizes = [64, 8], strides = [1, 1]} : vector<64x96xf32> to vector<64x8xf32>
    %23 = vector.shape_cast %22 : vector<64x8xf32> to vector<4x16x8xf32>
    %24 = vector.extract_strided_slice %2 {offsets = [0, 40], sizes = [64, 8], strides = [1, 1]} : vector<64x96xf32> to vector<64x8xf32>
    %25 = vector.shape_cast %24 : vector<64x8xf32> to vector<4x16x8xf32>
    %26 = vector.extract_strided_slice %2 {offsets = [0, 72], sizes = [64, 8], strides = [1, 1]} : vector<64x96xf32> to vector<64x8xf32>
    %27 = vector.shape_cast %26 : vector<64x8xf32> to vector<4x16x8xf32>
    "tpu.trace_start"() <{level = 10 : i32, message = "bqd,bkd->bqk"}> : () -> ()
    %cst_7 = arith.constant dense<0.000000e+00> : vector<4x16x16xf32>
    %28 = tpu.matmul %23, %25, %cst_7 {dimension_numbers = #tpu.dot_dimension_numbers<[2], [2], [1], [1], [0, 0, 0, 1, 1, 1], [0], [0]>} : vector<4x16x8xf32>, vector<4x16x8xf32>, vector<4x16x16xf32> -> vector<4x16x16xf32>
    "tpu.trace_stop"() : () -> ()
    %cst_8 = arith.constant dense<0xFF800000> : vector<4x16xf32>
    %29 = vector.multi_reduction <maximumf>, %28, %cst_8 [2] : vector<4x16x16xf32> to vector<4x16xf32>
    %30 = vector.shape_cast %29 : vector<4x16xf32> to vector<4x16x1xf32>
    %31 = vector.broadcast %30 : vector<4x16x1xf32> to vector<4x16x16xf32>
    %32 = arith.subf %28, %31 : vector<4x16x16xf32>
    %33 = math.exp %32 : vector<4x16x16xf32>
    %cst_9 = arith.constant dense<0.000000e+00> : vector<4x16xf32>
    %34 = vector.multi_reduction <add>, %33, %cst_9 [2] : vector<4x16x16xf32> to vector<4x16xf32>
    %35 = vector.shape_cast %34 : vector<4x16xf32> to vector<4x16x1xf32>
    %36 = tpu.reciprocal %35 {approx = true} : vector<4x16x1xf32> -> vector<4x16x1xf32>
    %37 = vector.broadcast %36 : vector<4x16x1xf32> to vector<4x16x16xf32>
    %38 = arith.mulf %33, %37 : vector<4x16x16xf32>
    "tpu.trace_start"() <{level = 10 : i32, message = "bqk,bkd->bqd"}> : () -> ()
    %cst_10 = arith.constant dense<0.000000e+00> : vector<4x16x8xf32>
    %39 = tpu.matmul %38, %27, %cst_10 {dimension_numbers = #tpu.dot_dimension_numbers<[2], [1], [1], [2], [0, 0, 0, 1, 1, 2], [0], [0]>} : vector<4x16x16xf32>, vector<4x16x8xf32>, vector<4x16x8xf32> -> vector<4x16x8xf32>
    "tpu.trace_stop"() : () -> ()
    %40 = vector.shape_cast %39 : vector<4x16x8xf32> to vector<64x8xf32>
    %41 = vector.extract_strided_slice %2 {offsets = [0, 16], sizes = [64, 8], strides = [1, 1]} : vector<64x96xf32> to vector<64x8xf32>
    %42 = vector.shape_cast %41 : vector<64x8xf32> to vector<4x16x8xf32>
    %43 = vector.extract_strided_slice %2 {offsets = [0, 48], sizes = [64, 8], strides = [1, 1]} : vector<64x96xf32> to vector<64x8xf32>
    %44 = vector.shape_cast %43 : vector<64x8xf32> to vector<4x16x8xf32>
    %45 = vector.extract_strided_slice %2 {offsets = [0, 80], sizes = [64, 8], strides = [1, 1]} : vector<64x96xf32> to vector<64x8xf32>
    %46 = vector.shape_cast %45 : vector<64x8xf32> to vector<4x16x8xf32>
    "tpu.trace_start"() <{level = 10 : i32, message = "bqd,bkd->bqk"}> : () -> ()
    %cst_11 = arith.constant dense<0.000000e+00> : vector<4x16x16xf32>
    %47 = tpu.matmul %42, %44, %cst_11 {dimension_numbers = #tpu.dot_dimension_numbers<[2], [2], [1], [1], [0, 0, 0, 1, 1, 1], [0], [0]>} : vector<4x16x8xf32>, vector<4x16x8xf32>, vector<4x16x16xf32> -> vector<4x16x16xf32>
    "tpu.trace_stop"() : () -> ()
    %cst_12 = arith.constant dense<0xFF800000> : vector<4x16xf32>
    %48 = vector.multi_reduction <maximumf>, %47, %cst_12 [2] : vector<4x16x16xf32> to vector<4x16xf32>
    %49 = vector.shape_cast %48 : vector<4x16xf32> to vector<4x16x1xf32>
    %50 = vector.broadcast %49 : vector<4x16x1xf32> to vector<4x16x16xf32>
    %51 = arith.subf %47, %50 : vector<4x16x16xf32>
    %52 = math.exp %51 : vector<4x16x16xf32>
    %cst_13 = arith.constant dense<0.000000e+00> : vector<4x16xf32>
    %53 = vector.multi_reduction <add>, %52, %cst_13 [2] : vector<4x16x16xf32> to vector<4x16xf32>
    %54 = vector.shape_cast %53 : vector<4x16xf32> to vector<4x16x1xf32>
    %55 = tpu.reciprocal %54 {approx = true} : vector<4x16x1xf32> -> vector<4x16x1xf32>
    %56 = vector.broadcast %55 : vector<4x16x1xf32> to vector<4x16x16xf32>
    %57 = arith.mulf %52, %56 : vector<4x16x16xf32>
    "tpu.trace_start"() <{level = 10 : i32, message = "bqk,bkd->bqd"}> : () -> ()
    %cst_14 = arith.constant dense<0.000000e+00> : vector<4x16x8xf32>
    %58 = tpu.matmul %57, %46, %cst_14 {dimension_numbers = #tpu.dot_dimension_numbers<[2], [1], [1], [2], [0, 0, 0, 1, 1, 2], [0], [0]>} : vector<4x16x16xf32>, vector<4x16x8xf32>, vector<4x16x8xf32> -> vector<4x16x8xf32>
    "tpu.trace_stop"() : () -> ()
    %59 = vector.shape_cast %58 : vector<4x16x8xf32> to vector<64x8xf32>
    %60 = vector.extract_strided_slice %2 {offsets = [0, 24], sizes = [64, 8], strides = [1, 1]} : vector<64x96xf32> to vector<64x8xf32>
    %61 = vector.shape_cast %60 : vector<64x8xf32> to vector<4x16x8xf32>
    %62 = vector.extract_strided_slice %2 {offsets = [0, 56], sizes = [64, 8], strides = [1, 1]} : vector<64x96xf32> to vector<64x8xf32>
    %63 = vector.shape_cast %62 : vector<64x8xf32> to vector<4x16x8xf32>
    %64 = vector.extract_strided_slice %2 {offsets = [0, 88], sizes = [64, 8], strides = [1, 1]} : vector<64x96xf32> to vector<64x8xf32>
    %65 = vector.shape_cast %64 : vector<64x8xf32> to vector<4x16x8xf32>
    "tpu.trace_start"() <{level = 10 : i32, message = "bqd,bkd->bqk"}> : () -> ()
    %cst_15 = arith.constant dense<0.000000e+00> : vector<4x16x16xf32>
    %66 = tpu.matmul %61, %63, %cst_15 {dimension_numbers = #tpu.dot_dimension_numbers<[2], [2], [1], [1], [0, 0, 0, 1, 1, 1], [0], [0]>} : vector<4x16x8xf32>, vector<4x16x8xf32>, vector<4x16x16xf32> -> vector<4x16x16xf32>
    "tpu.trace_stop"() : () -> ()
    %cst_16 = arith.constant dense<0xFF800000> : vector<4x16xf32>
    %67 = vector.multi_reduction <maximumf>, %66, %cst_16 [2] : vector<4x16x16xf32> to vector<4x16xf32>
    %68 = vector.shape_cast %67 : vector<4x16xf32> to vector<4x16x1xf32>
    %69 = vector.broadcast %68 : vector<4x16x1xf32> to vector<4x16x16xf32>
    %70 = arith.subf %66, %69 : vector<4x16x16xf32>
    %71 = math.exp %70 : vector<4x16x16xf32>
    %cst_17 = arith.constant dense<0.000000e+00> : vector<4x16xf32>
    %72 = vector.multi_reduction <add>, %71, %cst_17 [2] : vector<4x16x16xf32> to vector<4x16xf32>
    %73 = vector.shape_cast %72 : vector<4x16xf32> to vector<4x16x1xf32>
    %74 = tpu.reciprocal %73 {approx = true} : vector<4x16x1xf32> -> vector<4x16x1xf32>
    %75 = vector.broadcast %74 : vector<4x16x1xf32> to vector<4x16x16xf32>
    %76 = arith.mulf %71, %75 : vector<4x16x16xf32>
    "tpu.trace_start"() <{level = 10 : i32, message = "bqk,bkd->bqd"}> : () -> ()
    %cst_18 = arith.constant dense<0.000000e+00> : vector<4x16x8xf32>
    %77 = tpu.matmul %76, %65, %cst_18 {dimension_numbers = #tpu.dot_dimension_numbers<[2], [1], [1], [2], [0, 0, 0, 1, 1, 2], [0], [0]>} : vector<4x16x16xf32>, vector<4x16x8xf32>, vector<4x16x8xf32> -> vector<4x16x8xf32>
    "tpu.trace_stop"() : () -> ()
    %78 = vector.shape_cast %77 : vector<4x16x8xf32> to vector<64x8xf32>
    %79 = tpu.concatenate %21, %40, %59, %78 in 1 : vector<64x8xf32>, vector<64x8xf32>, vector<64x8xf32>, vector<64x8xf32> -> vector<64x32xf32>
    %c0_19 = arith.constant 0 : index
    %c0_20 = arith.constant 0 : index
    %80 = vector.load %arg3[%c0_19, %c0_20] : memref<32x32xf32, #tpu.memory_space<vmem>>, vector<32x32xf32>
    %cst_21 = arith.constant dense<0.000000e+00> : vector<64x32xf32>
    %81 = tpu.matmul %79, %80, %cst_21 {dimension_numbers = #tpu.dot_dimension_numbers<[1], [0], [0], [1], [0, 0, 1, 1], [], []>} : vector<64x32xf32>, vector<32x32xf32>, vector<64x32xf32> -> vector<64x32xf32>
    %c0_22 = arith.constant 0 : index
    %c0_23 = arith.constant 0 : index
    %82 = vector.load %arg4[%c0_22, %c0_23] : memref<1x32xf32, #tpu.memory_space<vmem>>, vector<1x32xf32>
    %83 = vector.broadcast %82 : vector<1x32xf32> to vector<64x32xf32>
    %84 = arith.addf %81, %83 : vector<64x32xf32>
    %c0_24 = arith.constant 0 : index
    %c0_25 = arith.constant 0 : index
    %85 = vector.load %arg5[%c0_24, %c0_25] : memref<64x32xf32, #tpu.memory_space<vmem>>, vector<64x32xf32>
    tpu.vector_store %arg5[%c0_24, %c0_25], %84 {strides = array<i32>} : memref<64x32xf32, #tpu.memory_space<vmem>>, vector<64x32xf32>,
    return
  }
  func.func @transform_0(%arg0: i32) -> (i32, i32) {
    %c0_i32 = arith.constant 0 : i32
    %c0_i32_0 = arith.constant 0 : i32
    return %arg0, %c0_i32 : i32, i32
  }
  func.func @transform_1(%arg0: i32) -> (i32, i32) {
    %c0_i32 = arith.constant 0 : i32
    %c0_i32_0 = arith.constant 0 : i32
    %c0_i32_1 = arith.constant 0 : i32
    return %c0_i32, %c0_i32_0 : i32, i32
  }
  func.func @transform_2(%arg0: i32) -> (i32, i32) {
    %c0_i32 = arith.constant 0 : i32
    %c0_i32_0 = arith.constant 0 : i32
    %c0_i32_1 = arith.constant 0 : i32
    return %c0_i32, %c0_i32_0 : i32, i32
  }
  func.func @transform_3(%arg0: i32) -> (i32, i32) {
    %c0_i32 = arith.constant 0 : i32
    %c0_i32_0 = arith.constant 0 : i32
    %c0_i32_1 = arith.constant 0 : i32
    return %c0_i32, %c0_i32_0 : i32, i32
  }
  func.func @transform_4(%arg0: i32) -> (i32, i32) {
    %c0_i32 = arith.constant 0 : i32
    %c0_i32_0 = arith.constant 0 : i32
    return %arg0, %c0_i32 : i32, i32
  }
}

module attributes {stable_mosaic.version = 11 : i64} {
  func.func @group_attn_kernel(%arg0: i32, %arg1: memref<64x32xf32, #tpu.memory_space<vmem>>, %arg2: memref<32x96xf32, #tpu.memory_space<vmem>>, %arg3: memref<32x32xf32, #tpu.memory_space<vmem>>, %arg4: memref<1x32xf32, #tpu.memory_space<vmem>>, %arg5: memref<64x32xf32, #tpu.memory_space<vmem>>) attributes {dimension_semantics = [#tpu.dimension_semantics<parallel>], iteration_bounds = array<i64: 2>, scalar_prefetch = 0 : i64, scratch_operands = 0 : i64, tpu.core_type = #tpu.core_type<tc>, window_params = [{transform_indices = @transform_0, window_bounds = array<i64: 64, 32>}, {pipeline_mode = #tpu.pipeline_mode<synchronous>, transform_indices = @transform_1, window_bounds = array<i64: 32, 96>}, {pipeline_mode = #tpu.pipeline_mode<synchronous>, transform_indices = @transform_2, window_bounds = array<i64: 32, 32>}, {pipeline_mode = #tpu.pipeline_mode<synchronous>, transform_indices = @transform_3, window_bounds = array<i64: 1, 32>}, {transform_indices = @transform_4, window_bounds = array<i64: 64, 32>}]} {
    %c0 = arith.constant 0 : index
    %c0_0 = arith.constant 0 : index
    %0 = vector.load %arg1[%c0, %c0_0] : memref<64x32xf32, #tpu.memory_space<vmem>>, vector<64x32xf32>
    %c0_1 = arith.constant 0 : index
    %c0_2 = arith.constant 0 : index
    %1 = vector.load %arg2[%c0_1, %c0_2] : memref<32x96xf32, #tpu.memory_space<vmem>>, vector<32x96xf32>
    %cst = arith.constant dense<0.000000e+00> : vector<64x96xf32>
    %2 = tpu.matmul %0, %1, %cst {dimension_numbers = #tpu.dot_dimension_numbers<[1], [0], [0], [1], [0, 0, 1, 1], [], []>} : vector<64x32xf32>, vector<32x96xf32>, vector<64x96xf32> -> vector<64x96xf32>
    %3 = vector.extract_strided_slice %2 {offsets = [0, 0], sizes = [64, 8], strides = [1, 1]} : vector<64x96xf32> to vector<64x8xf32>
    %4 = vector.shape_cast %3 : vector<64x8xf32> to vector<4x16x8xf32>
    %5 = vector.extract_strided_slice %2 {offsets = [0, 32], sizes = [64, 8], strides = [1, 1]} : vector<64x96xf32> to vector<64x8xf32>
    %6 = vector.shape_cast %5 : vector<64x8xf32> to vector<4x16x8xf32>
    %7 = vector.extract_strided_slice %2 {offsets = [0, 64], sizes = [64, 8], strides = [1, 1]} : vector<64x96xf32> to vector<64x8xf32>
    %8 = vector.shape_cast %7 : vector<64x8xf32> to vector<4x16x8xf32>
    "tpu.trace_start"() <{level = 10 : i32, message = "bqd,bkd->bqk"}> : () -> ()
    %cst_3 = arith.constant dense<0.000000e+00> : vector<4x16x16xf32>
    %9 = tpu.matmul %4, %6, %cst_3 {dimension_numbers = #tpu.dot_dimension_numbers<[2], [2], [1], [1], [0, 0, 0, 1, 1, 1], [0], [0]>} : vector<4x16x8xf32>, vector<4x16x8xf32>, vector<4x16x16xf32> -> vector<4x16x16xf32>
    "tpu.trace_stop"() : () -> ()
    %cst_4 = arith.constant dense<0xFF800000> : vector<4x16xf32>
    %10 = vector.multi_reduction <maximumf>, %9, %cst_4 [2] : vector<4x16x16xf32> to vector<4x16xf32>
    %11 = vector.shape_cast %10 : vector<4x16xf32> to vector<4x16x1xf32>
    %12 = vector.broadcast %11 : vector<4x16x1xf32> to vector<4x16x16xf32>
    %13 = arith.subf %9, %12 : vector<4x16x16xf32>
    %14 = math.exp %13 : vector<4x16x16xf32>
    %cst_5 = arith.constant dense<0.000000e+00> : vector<4x16xf32>
    %15 = vector.multi_reduction <add>, %14, %cst_5 [2] : vector<4x16x16xf32> to vector<4x16xf32>
    %16 = vector.shape_cast %15 : vector<4x16xf32> to vector<4x16x1xf32>
    %17 = tpu.reciprocal %16 {approx = true} : vector<4x16x1xf32> -> vector<4x16x1xf32>
    %18 = vector.broadcast %17 : vector<4x16x1xf32> to vector<4x16x16xf32>
    %19 = arith.mulf %14, %18 : vector<4x16x16xf32>
    "tpu.trace_start"() <{level = 10 : i32, message = "bqk,bkd->bqd"}> : () -> ()
    %cst_6 = arith.constant dense<0.000000e+00> : vector<4x16x8xf32>
    %20 = tpu.matmul %19, %8, %cst_6 {dimension_numbers = #tpu.dot_dimension_numbers<[2], [1], [1], [2], [0, 0, 0, 1, 1, 2], [0], [0]>} : vector<4x16x16xf32>, vector<4x16x8xf32>, vector<4x16x8xf32> -> vector<4x16x8xf32>
    "tpu.trace_stop"() : () -> ()
    %21 = vector.shape_cast %20 : vector<4x16x8xf32> to vector<64x8xf32>
    %22 = vector.extract_strided_slice %2 {offsets = [0, 8], sizes = [64, 8], strides = [1, 1]} : vector<64x96xf32> to vector<64x8xf32>
    %23 = vector.shape_cast %22 : vector<64x8xf32> to vector<4x16x8xf32>
    %24 = vector.extract_strided_slice %2 {offsets = [0, 40], sizes = [64, 8], strides = [1, 1]} : vector<64x96xf32> to vector<64x8xf32>
    %25 = vector.shape_cast %24 : vector<64x8xf32> to vector<4x16x8xf32>
    %26 = vector.extract_strided_slice %2 {offsets = [0, 72], sizes = [64, 8], strides = [1, 1]} : vector<64x96xf32> to vector<64x8xf32>
    %27 = vector.shape_cast %26 : vector<64x8xf32> to vector<4x16x8xf32>
    "tpu.trace_start"() <{level = 10 : i32, message = "bqd,bkd->bqk"}> : () -> ()
    %cst_7 = arith.constant dense<0.000000e+00> : vector<4x16x16xf32>
    %28 = tpu.matmul %23, %25, %cst_7 {dimension_numbers = #tpu.dot_dimension_numbers<[2], [2], [1], [1], [0, 0, 0, 1, 1, 1], [0], [0]>} : vector<4x16x8xf32>, vector<4x16x8xf32>, vector<4x16x16xf32> -> vector<4x16x16xf32>
    "tpu.trace_stop"() : () -> ()
    %cst_8 = arith.constant dense<0xFF800000> : vector<4x16xf32>
    %29 = vector.multi_reduction <maximumf>, %28, %cst_8 [2] : vector<4x16x16xf32> to vector<4x16xf32>
    %30 = vector.shape_cast %29 : vector<4x16xf32> to vector<4x16x1xf32>
    %31 = vector.broadcast %30 : vector<4x16x1xf32> to vector<4x16x16xf32>
    %32 = arith.subf %28, %31 : vector<4x16x16xf32>
    %33 = math.exp %32 : vector<4x16x16xf32>
    %cst_9 = arith.constant dense<0.000000e+00> : vector<4x16xf32>
    %34 = vector.multi_reduction <add>, %33, %cst_9 [2] : vector<4x16x16xf32> to vector<4x16xf32>
    %35 = vector.shape_cast %34 : vector<4x16xf32> to vector<4x16x1xf32>
    %36 = tpu.reciprocal %35 {approx = true} : vector<4x16x1xf32> -> vector<4x16x1xf32>
    %37 = vector.broadcast %36 : vector<4x16x1xf32> to vector<4x16x16xf32>
    %38 = arith.mulf %33, %37 : vector<4x16x16xf32>
    "tpu.trace_start"() <{level = 10 : i32, message = "bqk,bkd->bqd"}> : () -> ()
    %cst_10 = arith.constant dense<0.000000e+00> : vector<4x16x8xf32>
    %39 = tpu.matmul %38, %27, %cst_10 {dimension_numbers = #tpu.dot_dimension_numbers<[2], [1], [1], [2], [0, 0, 0, 1, 1, 2], [0], [0]>} : vector<4x16x16xf32>, vector<4x16x8xf32>, vector<4x16x8xf32> -> vector<4x16x8xf32>
    "tpu.trace_stop"() : () -> ()
    %40 = vector.shape_cast %39 : vector<4x16x8xf32> to vector<64x8xf32>
    %41 = vector.extract_strided_slice %2 {offsets = [0, 16], sizes = [64, 8], strides = [1, 1]} : vector<64x96xf32> to vector<64x8xf32>
    %42 = vector.shape_cast %41 : vector<64x8xf32> to vector<4x16x8xf32>
    %43 = vector.extract_strided_slice %2 {offsets = [0, 48], sizes = [64, 8], strides = [1, 1]} : vector<64x96xf32> to vector<64x8xf32>
    %44 = vector.shape_cast %43 : vector<64x8xf32> to vector<4x16x8xf32>
    %45 = vector.extract_strided_slice %2 {offsets = [0, 80], sizes = [64, 8], strides = [1, 1]} : vector<64x96xf32> to vector<64x8xf32>
    %46 = vector.shape_cast %45 : vector<64x8xf32> to vector<4x16x8xf32>
    "tpu.trace_start"() <{level = 10 : i32, message = "bqd,bkd->bqk"}> : () -> ()
    %cst_11 = arith.constant dense<0.000000e+00> : vector<4x16x16xf32>
    %47 = tpu.matmul %42, %44, %cst_11 {dimension_numbers = #tpu.dot_dimension_numbers<[2], [2], [1], [1], [0, 0, 0, 1, 1, 1], [0], [0]>} : vector<4x16x8xf32>, vector<4x16x8xf32>, vector<4x16x16xf32> -> vector<4x16x16xf32>
    "tpu.trace_stop"() : () -> ()
    %cst_12 = arith.constant dense<0xFF800000> : vector<4x16xf32>
    %48 = vector.multi_reduction <maximumf>, %47, %cst_12 [2] : vector<4x16x16xf32> to vector<4x16xf32>
    %49 = vector.shape_cast %48 : vector<4x16xf32> to vector<4x16x1xf32>
    %50 = vector.broadcast %49 : vector<4x16x1xf32> to vector<4x16x16xf32>
    %51 = arith.subf %47, %50 : vector<4x16x16xf32>
    %52 = math.exp %51 : vector<4x16x16xf32>
    %cst_13 = arith.constant dense<0.000000e+00> : vector<4x16xf32>
    %53 = vector.multi_reduction <add>, %52, %cst_13 [2] : vector<4x16x16xf32> to vector<4x16xf32>
    %54 = vector.shape_cast %53 : vector<4x16xf32> to vector<4x16x1xf32>
    %55 = tpu.reciprocal %54 {approx = true} : vector<4x16x1xf32> -> vector<4x16x1xf32>
    %56 = vector.broadcast %55 : vector<4x16x1xf32> to vector<4x16x16xf32>
    %57 = arith.mulf %52, %56 : vector<4x16x16xf32>
    "tpu.trace_start"() <{level = 10 : i32, message = "bqk,bkd->bqd"}> : () -> ()
    %cst_14 = arith.constant dense<0.000000e+00> : vector<4x16x8xf32>
    %58 = tpu.matmul %57, %46, %cst_14 {dimension_numbers = #tpu.dot_dimension_numbers<[2], [1], [1], [2], [0, 0, 0, 1, 1, 2], [0], [0]>} : vector<4x16x16xf32>, vector<4x16x8xf32>, vector<4x16x8xf32> -> vector<4x16x8xf32>
    "tpu.trace_stop"() : () -> ()
    %59 = vector.shape_cast %58 : vector<4x16x8xf32> to vector<64x8xf32>
    %60 = vector.extract_strided_slice %2 {offsets = [0, 24], sizes = [64, 8], strides = [1, 1]} : vector<64x96xf32> to vector<64x8xf32>
    %61 = vector.shape_cast %60 : vector<64x8xf32> to vector<4x16x8xf32>
    %62 = vector.extract_strided_slice %2 {offsets = [0, 56], sizes = [64, 8], strides = [1, 1]} : vector<64x96xf32> to vector<64x8xf32>
    %63 = vector.shape_cast %62 : vector<64x8xf32> to vector<4x16x8xf32>
    %64 = vector.extract_strided_slice %2 {offsets = [0, 88], sizes = [64, 8], strides = [1, 1]} : vector<64x96xf32> to vector<64x8xf32>
    %65 = vector.shape_cast %64 : vector<64x8xf32> to vector<4x16x8xf32>
    "tpu.trace_start"() <{level = 10 : i32, message = "bqd,bkd->bqk"}> : () -> ()
    %cst_15 = arith.constant dense<0.000000e+00> : vector<4x16x16xf32>
    %66 = tpu.matmul %61, %63, %cst_15 {dimension_numbers = #tpu.dot_dimension_numbers<[2], [2], [1], [1], [0, 0, 0, 1, 1, 1], [0], [0]>} : vector<4x16x8xf32>, vector<4x16x8xf32>, vector<4x16x16xf32> -> vector<4x16x16xf32>
    "tpu.trace_stop"() : () -> ()
    %cst_16 = arith.constant dense<0xFF800000> : vector<4x16xf32>
    %67 = vector.multi_reduction <maximumf>, %66, %cst_16 [2] : vector<4x16x16xf32> to vector<4x16xf32>
    %68 = vector.shape_cast %67 : vector<4x16xf32> to vector<4x16x1xf32>
    %69 = vector.broadcast %68 : vector<4x16x1xf32> to vector<4x16x16xf32>
    %70 = arith.subf %66, %69 : vector<4x16x16xf32>
    %71 = math.exp %70 : vector<4x16x16xf32>
    %cst_17 = arith.constant dense<0.000000e+00> : vector<4x16xf32>
    %72 = vector.multi_reduction <add>, %71, %cst_17 [2] : vector<4x16x16xf32> to vector<4x16xf32>
    %73 = vector.shape_cast %72 : vector<4x16xf32> to vector<4x16x1xf32>
    %74 = tpu.reciprocal %73 {approx = true} : vector<4x16x1xf32> -> vector<4x16x1xf32>
    %75 = vector.broadcast %74 : vector<4x16x1xf32> to vector<4x16x16xf32>
    %76 = arith.mulf %71, %75 : vector<4x16x16xf32>
    "tpu.trace_start"() <{level = 10 : i32, message = "bqk,bkd->bqd"}> : () -> ()
    %cst_18 = arith.constant dense<0.000000e+00> : vector<4x16x8xf32>
    %77 = tpu.matmul %76, %65, %cst_18 {dimension_numbers = #tpu.dot_dimension_numbers<[2], [1], [1], [2], [0, 0, 0, 1, 1, 2], [0], [0]>} : vector<4x16x16xf32>, vector<4x16x8xf32>, vector<4x16x8xf32> -> vector<4x16x8xf32>
    "tpu.trace_stop"() : () -> ()
    %78 = vector.shape_cast %77 : vector<4x16x8xf32> to vector<64x8xf32>
    %79 = tpu.concatenate %21, %40, %59, %78 in 1 : vector<64x8xf32>, vector<64x8xf32>, vector<64x8xf32>, vector<64x8xf32> -> vector<64x32xf32>
    %c0_19 = arith.constant 0 : index
    %c0_20 = arith.constant 0 : index
    %80 = vector.load %arg3[%c0_19, %c0_20] : memref<32x32xf32, #tpu.memory_space<vmem>>, vector<32x32xf32>
    %cst_21 = arith.constant dense<0.000000e+00> : vector<64x32xf32>
    %81 = tpu.matmul %79, %80, %cst_21 {dimension_numbers = #tpu.dot_dimension_numbers<[1], [0], [0], [1], [0, 0, 1, 1], [], []>} : vector<64x32xf32>, vector<32x32xf32>, vector<64x32xf32> -> vector<64x32xf32>
    %c0_22 = arith.constant 0 : index
    %c0_23 = arith.constant 0 : index
    %82 = vector.load %arg4[%c0_22, %c0_23] : memref<1x32xf32, #tpu.memory_space<vmem>>, vector<1x32xf32>
    %83 = vector.broadcast %82 : vector<1x32xf32> to vector<64x32xf32>
    %84 = arith.addf %81, %83 : vector<64x32xf32>
    %c0_24 = arith.constant 0 : index
    %c0_25 = arith.constant 0 : index
    %85 = vector.load %arg5[%c0_24, %c0_25] : memref<64x32xf32, #tpu.memory_space<vmem>>, vector<64x32xf32>
    tpu.vector_store %arg5[%c0_24, %c0_25], %84 {strides = array<i32>} : memref<64x32xf32, #tpu.memory_space<vmem>>, vector<64x32xf32>,
    return
  }
  func.func @transform_0(%arg0: i32) -> (i32, i32) {
    %c0_i32 = arith.constant 0 : i32
    %c0_i32_0 = arith.constant 0 : i32
    return %arg0, %c0_i32 : i32, i32
  }
  func.func @transform_1(%arg0: i32) -> (i32, i32) {
    %c0_i32 = arith.constant 0 : i32
    %c0_i32_0 = arith.constant 0 : i32
    %c0_i32_1 = arith.constant 0 : i32
    return %c0_i32, %c0_i32_0 : i32, i32
  }
  func.func @transform_2(%arg0: i32) -> (i32, i32) {
    %c0_i32 = arith.constant 0 : i32
    %c0_i32_0 = arith.constant 0 : i32
    %c0_i32_1 = arith.constant 0 : i32
    return %c0_i32, %c0_i32_0 : i32, i32
  }
  func.func @transform_3(%arg0: i32) -> (i32, i32) {
    %c0_i32 = arith.constant 0 : i32
    %c0_i32_0 = arith.constant 0 : i32
    %c0_i32_1 = arith.constant 0 : i32
    return %c0_i32, %c0_i32_0 : i32, i32
  }
  func.func @transform_4(%arg0: i32) -> (i32, i32) {
    %c0_i32 = arith.constant 0 : i32
    %c0_i32_0 = arith.constant 0 : i32
    return %arg0, %c0_i32 : i32, i32
  }
}

</mosaic_0001>

<llo_original>
// kernel: tpu_custom_call.1
$region0: #{tpu_custom_call.1}
  #allocation0 [shape = 'u32[]', space=smem, size = 0x4, offset = 0x4, fixed_abs, tag = 'smem constant byte address 0x4 - core index']
  #allocation1 [shape = 'u32[144,128]{1,0:T(1,128)}', space=vmem, size = 0x12000, scoped, tag = 'internal scratch']
  %s0 = inlined_call_operand.vmem [shape: f32[128,32], index: 0, kind: input, shape index: {}]
  %s1 = inlined_call_operand.vmem [shape: f32[32,96], index: 1, kind: input, shape index: {}]
  %s2 = inlined_call_operand.vmem [shape: f32[32,32], index: 2, kind: input, shape index: {}]
  %s3 = inlined_call_operand.vmem [shape: f32[1,32], index: 3, kind: input, shape index: {}]
  %s4 = inlined_call_operand.vmem [shape: f32[128,32], index: 4, kind: output, shape index: {}]
  %s5 = sld [smem:[#allocation0]]
  $region49: #{tpu_custom_call.1} parent=0
    _
  %s7 = ssub.s32 1, %s5
  %s8 = scalar_select 0, %s7, %s5
  loop: start=0, step=1, limit=4
  $region2: #{tpu_custom_call.1} parent=0 // loop_pre_header
    _
  $region3: #{tpu_custom_call.1} parent=0 // loop_header
    %s10 = sphi 0, %s14
    %p11 = scmp.ge.s32.totalorder %s10, 4
    %s20 = sphi 0, %s22
    %s23 = sphi 0, %s20
    %s24 = sphi 0, %s23
    %s40 = sphi 0, %s24
    %s44 = sphi 0, %s44
    %s46 = sphi 0, %s44
    %s47 = sphi 0, %s46
    %s61 = sphi 0, %s47
    %s65 = sphi 0, %s65
    %s67 = sphi 0, %s65
    %s68 = sphi 0, %s67
    %s82 = sphi 0, %s68
    %s86 = sphi 0, %s86
    %s88 = sphi 0, %s86
    %s89 = sphi 0, %s88
    %s103 = sphi 0, %s89
    %s109 = sphi 0, %s111
    %s112 = sphi 0, %s109
    %s113 = sphi 0, %s112
    %s129 = sphi 0, %s113
  $region4: #{tpu_custom_call.1} parent=0 // loop_header_branch
    %13 = sbr.rel (%p11) target = $region8
  $region5: #{tpu_custom_call.1} parent=0 // loop_body
    %s15 = ssub.s32 %s10, 1
    %s16 = ssub.s32 %s10, 2
    %s17 = sadd.s32 %s10, 1
    %s18 = ssub.s32 %s10, %s17
    %p19 = scmp.eq.s32.totalorder %s18, 0
    %s21 = sadd.s32 %s20, 1
    %s22 = scalar_select %p19, %s20, %s21
    %p25 = pneg %p19
    %p26 = scmp.eq.s32.totalorder %s10, 1
    %p27 = por %p25, %p26
    %p28 = scmp.ne.s32.totalorder %s20, %s23
    %p29 = scmp.eq.s32.totalorder %s10, 0
    %p30 = por %p28, %p29
    %p31 = scmp.ne.s32.totalorder %s20, %s23
    %p32 = scmp.eq.s32.totalorder %s15, 1
    %p33 = por %p31, %p32
    %p34 = scmp.ne.s32.totalorder %s23, %s24
    %p35 = scmp.eq.s32.totalorder %s15, 0
    %p36 = por %p34, %p35
    %p37 = scmp.ne.s32.totalorder %s23, %s24
    %p38 = scmp.eq.s32.totalorder %s16, 1
    %p39 = por %p37, %p38
    %p41 = scmp.ne.s32.totalorder %s24, %s40
    %p42 = scmp.eq.s32.totalorder %s16, 0
    %p43 = por %p41, %p42
    %s45 = sadd.s32 %s44, 1
    %p48 = scmp.eq.s32.totalorder %s10, 1
    %p49 = scmp.ne.s32.totalorder %s44, %s46
    %p50 = scmp.eq.s32.totalorder %s10, 0
    %p51 = por %p49, %p50
    %p52 = scmp.ne.s32.totalorder %s44, %s46
    %p53 = scmp.eq.s32.totalorder %s15, 1
    %p54 = por %p52, %p53
    %p55 = scmp.ne.s32.totalorder %s46, %s47
    %p56 = scmp.eq.s32.totalorder %s15, 0
    %p57 = por %p55, %p56
    %p58 = scmp.ne.s32.totalorder %s46, %s47
    %p59 = scmp.eq.s32.totalorder %s16, 1
    %p60 = por %p58, %p59
    %p62 = scmp.ne.s32.totalorder %s47, %s61
    %p63 = scmp.eq.s32.totalorder %s16, 0
    %p64 = por %p62, %p63
    %s66 = sadd.s32 %s65, 1
    %p69 = scmp.eq.s32.totalorder %s10, 1
    %p70 = scmp.ne.s32.totalorder %s65, %s67
    %p71 = scmp.eq.s32.totalorder %s10, 0
    %p72 = por %p70, %p71
    %p73 = scmp.ne.s32.totalorder %s65, %s67
    %p74 = scmp.eq.s32.totalorder %s15, 1
    %p75 = por %p73, %p74
    %p76 = scmp.ne.s32.totalorder %s67, %s68
    %p77 = scmp.eq.s32.totalorder %s15, 0
    %p78 = por %p76, %p77
    %p79 = scmp.ne.s32.totalorder %s67, %s68
    %p80 = scmp.eq.s32.totalorder %s16, 1
    %p81 = por %p79, %p80
    %p83 = scmp.ne.s32.totalorder %s68, %s82
    %p84 = scmp.eq.s32.totalorder %s16, 0
    %p85 = por %p83, %p84
    %s87 = sadd.s32 %s86, 1
    %p90 = scmp.eq.s32.totalorder %s10, 1
    %p91 = scmp.ne.s32.totalorder %s86, %s88
    %p92 = scmp.eq.s32.totalorder %s10, 0
    %p93 = por %p91, %p92
    %p94 = scmp.ne.s32.totalorder %s86, %s88
    %p95 = scmp.eq.s32.totalorder %s15, 1
    %p96 = por %p94, %p95
    %p97 = scmp.ne.s32.totalorder %s88, %s89
    %p98 = scmp.eq.s32.totalorder %s15, 0
    %p99 = por %p97, %p98
    %p100 = scmp.ne.s32.totalorder %s88, %s89
    %p101 = scmp.eq.s32.totalorder %s16, 1
    %p102 = por %p100, %p101
    %p104 = scmp.ne.s32.totalorder %s89, %s103
    %p105 = scmp.eq.s32.totalorder %s16, 0
    %p106 = por %p104, %p105
    %s107 = ssub.s32 %s10, %s17
    %p108 = scmp.eq.s32.totalorder %s107, 0
    %s110 = sadd.s32 %s109, 1
    %s111 = scalar_select %p108, %s109, %s110
    %p114 = pneg %p108
    %p115 = scmp.eq.s32.totalorder %s10, 1
    %p116 = por %p114, %p115
    %p117 = scmp.ne.s32.totalorder %s109, %s112
    %p118 = scmp.eq.s32.totalorder %s10, 0
    %p119 = por %p117, %p118
    %p120 = scmp.ne.s32.totalorder %s109, %s112
    %p121 = scmp.eq.s32.totalorder %s15, 1
    %p122 = por %p120, %p121
    %p123 = scmp.ne.s32.totalorder %s112, %s113
    %p124 = scmp.eq.s32.totalorder %s15, 0
    %p125 = por %p123, %p124
    %p126 = scmp.ne.s32.totalorder %s112, %s113
    %p127 = scmp.eq.s32.totalorder %s16, 1
    %p128 = por %p126, %p127
    %p130 = scmp.ne.s32.totalorder %s113, %s129
    %p131 = scmp.eq.s32.totalorder %s16, 0
    %p132 = por %p130, %p131
    %p133 = scmp.le.s32.totalorder 1, %s10
    %p134 = scmp.lt.s32.totalorder %s10, 3
    %p135 = pnand %p133, %p134
    %p136 = pneg %p135
    // Predicated region
    $region9: #{tpu_custom_call.1} parent=5 // pred_check
      _
    $region10: #{tpu_custom_call.1} parent=5 // pred_check_branch
      %138 = sbr.rel (%p135) target = $region12
    $region11: #{tpu_custom_call.1} parent=5 // pred_region
      %s139 = ssub.s32 %s10, 1
      // Predicated region
      $region13: #{tpu_custom_call.1} parent=11 // pred_check
        %p140 = pneg %p57
      $region14: #{tpu_custom_call.1} parent=11 // pred_check_branch
        %142 = sbr.rel (%p140) target = $region16
      $region15: #{tpu_custom_call.1} parent=11 // pred_region
        _
      $region16: #{tpu_custom_call.1} parent=11 // pred_fallthru
        _
      // Predicated region
      $region17: #{tpu_custom_call.1} parent=11 // pred_check
        %p143 = pneg %p78
      $region18: #{tpu_custom_call.1} parent=11 // pred_check_branch
        %145 = sbr.rel (%p143) target = $region20
      $region19: #{tpu_custom_call.1} parent=11 // pred_region
        _
      $region20: #{tpu_custom_call.1} parent=11 // pred_fallthru
        _
      // Predicated region
      $region21: #{tpu_custom_call.1} parent=11 // pred_check
        %p146 = pneg %p99
      $region22: #{tpu_custom_call.1} parent=11 // pred_check_branch
        %148 = sbr.rel (%p146) target = $region24
      $region23: #{tpu_custom_call.1} parent=11 // pred_region
        _
      $region24: #{tpu_custom_call.1} parent=11 // pred_fallthru
        _
    $region12: #{tpu_custom_call.1} parent=5 // pred_fallthru
      _
    %p149 = scmp.lt.s32.totalorder %s10, 2
    // Predicated region
    $region25: #{tpu_custom_call.1} parent=5 // pred_check
      %p150 = pneg %p149
    $region26: #{tpu_custom_call.1} parent=5 // pred_check_branch
      %152 = sbr.rel (%p150) target = $region28
    $region27: #{tpu_custom_call.1} parent=5 // pred_region
      // Predicated region
      $region29: #{tpu_custom_call.1} parent=27 // pred_check
        %p153 = pneg %p30
      $region30: #{tpu_custom_call.1} parent=27 // pred_check_branch
        %155 = sbr.rel (%p153) target = $region32
      $region31: #{tpu_custom_call.1} parent=27 // pred_region
        %s156 = smul.u32 8, %s10
        %p157 = scmp.lt.s32.totalorder %s156, 15
        %s158 = scalar_select %p157, %s156, 15
        %s159 = smul.addr %s158, 8
        %s160 = scalar_lea.vmem %s0, %s159
        %s161 = smul.u32 8, %s10
      $region32: #{tpu_custom_call.1} parent=27 // pred_fallthru
        _
    $region28: #{tpu_custom_call.1} parent=5 // pred_fallthru
      _
    %p162 = scmp.le.s32.totalorder 1, %s10
    %p163 = scmp.lt.s32.totalorder %s10, 3
    %p164 = pnand %p162, %p163
    %p165 = pneg %p164
    // Predicated region
    $region33: #{tpu_custom_call.1} parent=5 // pred_check
      _
    $region34: #{tpu_custom_call.1} parent=5 // pred_check_branch
      %167 = sbr.rel (%p164) target = $region36
    $region35: #{tpu_custom_call.1} parent=5 // pred_region
      %s168 = ssub.s32 %s10, 1
      %s169 = smul.u32 8, %s15
      %p170 = scmp.lt.s32.totalorder %s169, 15
      %s171 = scalar_select %p170, %s169, 15
      %s172 = smul.addr %s171, 8
      %s173 = scalar_lea.vmem %s0, %s172
      %p174 = pneg %p36
      %p175 = pneg %p33
      %p176 = pneg %p57
      %p177 = pneg %p54
      %p178 = pneg %p78
      %p179 = pneg %p75
      %p180 = pneg %p99
      %p181 = pneg %p96
      %p182 = pneg %p125
      %p183 = pneg %p122
      %s184 = smul.u32 8, %s15
      %p185 = scmp.lt.s32.totalorder %s184, 15
      %s186 = scalar_select %p185, %s184, 15
      %s187 = smul.addr %s186, 8
      %s188 = scalar_lea.vmem %s4, %s187
      %s189 = smul.u32 8, %s15
      %p190 = scmp.lt.s32.totalorder %s189, 15
      %s191 = scalar_select %p190, %s189, 15
      %s192 = smul.addr %s191, 8
      %s193 = scalar_lea.vmem %s0, %s192
      %s194 = smul.u32 8, %s15
      %s195 = smul.u32 8, %s15
      %p196 = scmp.lt.s32.totalorder %s195, 15
      %s197 = scalar_select %p196, %s195, 15
      %s198 = smul.addr %s197, 8
      %s199 = scalar_lea.vmem %s4, %s198
      %s200 = smul.u32 8, %s15
      %v201 = vld [vmem:[%s193] sm:$0xff]
      %v202 = vld [vmem:[%s193 + $0x8] sm:$0xff]
      %v203 = vld [vmem:[%s193 + $0x10] sm:$0xff]
      %v204 = vld [vmem:[%s193 + $0x18] sm:$0xff]
      %v205 = vld [vmem:[%s193 + $0x20] sm:$0xff]
      %v206 = vld [vmem:[%s193 + $0x28] sm:$0xff]
      %v207 = vld [vmem:[%s193 + $0x30] sm:$0xff]
      %v208 = vld [vmem:[%s193 + $0x38] sm:$0xff]
      %v209 = vld [vmem:[%s1] sm:$0xff]
      %v210 = vld [vmem:[%s1 + $0x8] sm:$0xff]
      %v211 = vld [vmem:[%s1 + $0x10] sm:$0xff]
      %v212 = vld [vmem:[%s1 + $0x18] sm:$0xff]
      %vm213 = vcmask 261120
      %v215 = vsel %vm213, %v201, 0
      %v218 = vsel %vm213, %v202, 0
      %v221 = vsel %vm213, %v203, 0
      %v224 = vsel %vm213, %v204, 0
      %v227 = vsel %vm213, %v205, 0
      %v230 = vsel %vm213, %v206, 0
      %v233 = vsel %vm213, %v207, 0
      %v236 = vsel %vm213, %v208, 0
      %238 = vmatprep.subr.mxu0 0.0
      %239 = vmatpush1.msra.mxu0 %v209
      %240 = vmatprep.subr.mxu0 0.0
      %241 = vmatpush1.msra.mxu0 %v210
      %242 = vmatprep.subr.mxu0 0.0
      %243 = vmatpush1.msra.mxu0 %v211
      %244 = vmatprep.subr.mxu0 0.0
      %245 = vmatpush1.msra.mxu0 %v212
      %246 = vmatprep.subr.mxu0 0.0
      %247 = vmatpush1.msra.mxu0 0.0
      %248 = vmatprep.subr.mxu0 0.0
      %249 = vmatpush1.msra.mxu0 0.0
      %250 = vmatprep.subr.mxu0 0.0
      %251 = vmatpush1.msra.mxu0 0.0
      %252 = vmatprep.subr.mxu0 0.0
      %253 = vmatpush1.msra.mxu0 0.0
      %254 = vmatprep.subr.mxu0 0.0
      %255 = vmatpush1.msra.mxu0 0.0
      %256 = vmatprep.subr.mxu0 0.0
      %257 = vmatpush1.msra.mxu0 0.0
      %258 = vmatprep.subr.mxu0 0.0
      %259 = vmatpush1.msra.mxu0 0.0
      %260 = vmatprep.subr.mxu0 0.0
      %261 = vmatpush1.msra.mxu0 0.0
      %262 = vmatprep.subr.mxu0 0.0
      %263 = vmatpush1.msra.mxu0 0.0
      %264 = vmatprep.subr.mxu0 0.0
      %265 = vmatpush1.msra.mxu0 0.0
      %266 = vmatprep.subr.mxu0 0.0
      %267 = vmatpush1.msra.mxu0 0.0
      %268 = vmatprep.subr.mxu0 0.0
      %269 = vmatpush1.msra.mxu0 0.0
      %270 = vmatprep.subr.mxu0 0.0
      %271 = vmatpush1.msra.mxu0 0.0
      %272 = vmatprep.subr.mxu0 0.0
      %273 = vmatpush1.msra.mxu0 0.0
      %274 = vmatprep.subr.mxu0 0.0
      %275 = vmatpush1.msra.mxu0 0.0
      %276 = vmatprep.subr.mxu0 0.0
      %277 = vmatpush1.msra.mxu0 0.0
      %278 = vmatprep.subr.mxu0 0.0
      %279 = vmatpush1.msra.mxu0 0.0
      %280 = vmatprep.subr.mxu0 0.0
      %281 = vmatpush1.msra.mxu0 0.0
      %282 = vmatprep.subr.mxu0 0.0
      %283 = vmatpush1.msra.mxu0 0.0
      %284 = vmatprep.subr.mxu0 0.0
      %285 = vmatpush1.msra.mxu0 0.0
      %286 = vmatprep.subr.mxu0 0.0
      %287 = vmatpush1.msra.mxu0 0.0
      %288 = vmatprep.subr.mxu0 0.0
      %289 = vmatpush1.msra.mxu0 0.0
      %290 = vmatprep.subr.mxu0 0.0
      %291 = vmatpush1.msra.mxu0 0.0
      %292 = vmatprep.subr.mxu0 0.0
      %293 = vmatpush1.msra.mxu0 0.0
      %294 = vmatprep.subr.mxu0 0.0
      %295 = vmatpush1.msra.mxu0 0.0
      %296 = vmatprep.subr.mxu0 0.0
      %297 = vmatpush1.msra.mxu0 0.0
      %298 = vmatprep.subr.mxu0 0.0
      %299 = vmatpush1.msra.mxu0 0.0
      %300 = vmatprep.subr.mxu0 0.0
      %301 = vmatpush1.msra.mxu0 0.0
      %302 = vmatprep.mubr.f32.mxu0 0.0
      %303 = vmatmul.mubr.f32.gmra.mrb[0].mxu0 %v215
      %v304 = vpop.f32.mrb[0].mxu0
      %v305 = vadd.f32 0.0, %v304
      %v306 = vpop.f32.mrb[0].mxu0
      %307 = vmatprep.mubr.f32.mxu0 0.0
      %308 = vmatmul.mubr.f32.gmra.mrb[0].mxu0 %v218
      %v309 = vpop.f32.mrb[0].mxu0
      %v310 = vadd.f32 0.0, %v309
      %v311 = vpop.f32.mrb[0].mxu0
      %312 = vmatprep.mubr.f32.mxu0 0.0
      %313 = vmatmul.mubr.f32.gmra.mrb[0].mxu0 %v221
      %v314 = vpop.f32.mrb[0].mxu0
      %v315 = vadd.f32 0.0, %v314
      %v316 = vpop.f32.mrb[0].mxu0
      %317 = vmatprep.mubr.f32.mxu0 0.0
      %318 = vmatmul.mubr.f32.gmra.mrb[0].mxu0 %v224
      %v319 = vpop.f32.mrb[0].mxu0
      %v320 = vadd.f32 0.0, %v319
      %v321 = vpop.f32.mrb[0].mxu0
      %322 = vmatprep.mubr.f32.mxu0 0.0
      %323 = vmatmul.mubr.f32.gmra.mrb[0].mxu0 %v227
      %v324 = vpop.f32.mrb[0].mxu0
      %v325 = vadd.f32 0.0, %v324
      %v326 = vpop.f32.mrb[0].mxu0
      %327 = vmatprep.mubr.f32.mxu0 0.0
      %328 = vmatmul.mubr.f32.gmra.mrb[0].mxu0 %v230
      %v329 = vpop.f32.mrb[0].mxu0
      %v330 = vadd.f32 0.0, %v329
      %v331 = vpop.f32.mrb[0].mxu0
      %332 = vmatprep.mubr.f32.mxu0 0.0
      %333 = vmatmul.mubr.f32.gmra.mrb[0].mxu0 %v233
      %v334 = vpop.f32.mrb[0].mxu0
      %v335 = vadd.f32 0.0, %v334
      %v336 = vpop.f32.mrb[0].mxu0
      %337 = vmatprep.mubr.f32.mxu0 0.0
      %338 = vmatmul.mubr.f32.gmra.mrb[0].mxu0 %v236
      %v339 = vpop.f32.mrb[0].mxu0
      %v340 = vadd.f32 0.0, %v339
      %v341 = vpop.f32.mrb[0].mxu0
      %342 = vdwg.mxu0
      %345 = vrot.lane.b32.xlu0 %v305, 96
      %v346 = vpop.permute.xlu0 %345
      %347 = vrot.lane.b32.xlu0 %v310, 96
      %v348 = vpop.permute.xlu0 %347
      %vm349 = vcmask 64512
      %v350 = vsel %vm349, %v305, 0
      %v352 = vsel %vm349, %v310, 0
      %v354 = vsel %vm349, %v346, 0
      %v356 = vsel %vm349, %v348, 0
      %358 = vmatprep.subr.mxu0 0.0
      %359 = vmatpush1.xpose.msra.mxu0 %v354
      %360 = vmatprep.subr.mxu0 0.0
      %361 = vmatpush1.xpose.msra.mxu0 %v356
      %362 = vmatprep.subr.mxu0 0.0
      %363 = vmatpush1.xpose.msra.mxu0 0.0
      %364 = vmatprep.subr.mxu0 0.0
      %365 = vmatpush1.xpose.msra.mxu0 0.0
      %366 = vmatprep.subr.mxu0 0.0
      %367 = vmatpush1.xpose.msra.mxu0 0.0
      %368 = vmatprep.subr.mxu0 0.0
      %369 = vmatpush1.xpose.msra.mxu0 0.0
      %370 = vmatprep.subr.mxu0 0.0
      %371 = vmatpush1.xpose.msra.mxu0 0.0
      %372 = vmatprep.subr.mxu0 0.0
      %373 = vmatpush1.xpose.msra.mxu0 0.0
      %374 = vmatprep.subr.mxu0 0.0
      %375 = vmatpush1.xpose.msra.mxu0 0.0
      %376 = vmatprep.subr.mxu0 0.0
      %377 = vmatpush1.xpose.msra.mxu0 0.0
      %378 = vmatprep.subr.mxu0 0.0
      %379 = vmatpush1.xpose.msra.mxu0 0.0
      %380 = vmatprep.subr.mxu0 0.0
      %381 = vmatpush1.xpose.msra.mxu0 0.0
      %382 = vmatprep.subr.mxu0 0.0
      %383 = vmatpush1.xpose.msra.mxu0 0.0
      %384 = vmatprep.subr.mxu0 0.0
      %385 = vmatpush1.xpose.msra.mxu0 0.0
      %386 = vmatprep.subr.mxu0 0.0
      %387 = vmatpush1.xpose.msra.mxu0 0.0
      %388 = vmatprep.subr.mxu0 0.0
      %389 = vmatpush1.xpose.msra.mxu0 0.0
      %390 = vmatprep.subr.mxu0 0.0
      %391 = vmatpush1.xpose.msra.mxu0 0.0
      %392 = vmatprep.subr.mxu0 0.0
      %393 = vmatpush1.xpose.msra.mxu0 0.0
      %394 = vmatprep.subr.mxu0 0.0
      %395 = vmatpush1.xpose.msra.mxu0 0.0
      %396 = vmatprep.subr.mxu0 0.0
      %397 = vmatpush1.xpose.msra.mxu0 0.0
      %398 = vmatprep.subr.mxu0 0.0
      %399 = vmatpush1.xpose.msra.mxu0 0.0
      %400 = vmatprep.subr.mxu0 0.0
      %401 = vmatpush1.xpose.msra.mxu0 0.0
      %402 = vmatprep.subr.mxu0 0.0
      %403 = vmatpush1.xpose.msra.mxu0 0.0
      %404 = vmatprep.subr.mxu0 0.0
      %405 = vmatpush1.xpose.msra.mxu0 0.0
      %406 = vmatprep.subr.mxu0 0.0
      %407 = vmatpush1.xpose.msra.mxu0 0.0
      %408 = vmatprep.subr.mxu0 0.0
      %409 = vmatpush1.xpose.msra.mxu0 0.0
      %410 = vmatprep.subr.mxu0 0.0
      %411 = vmatpush1.xpose.msra.mxu0 0.0
      %412 = vmatprep.subr.mxu0 0.0
      %413 = vmatpush1.xpose.msra.mxu0 0.0
      %414 = vmatprep.subr.mxu0 0.0
      %415 = vmatpush1.xpose.msra.mxu0 0.0
      %416 = vmatprep.subr.mxu0 0.0
      %417 = vmatpush1.xpose.msra.mxu0 0.0
      %418 = vmatprep.subr.mxu0 0.0
      %419 = vmatpush1.xpose.msra.mxu0 0.0
      %420 = vmatprep.subr.mxu0 0.0
      %421 = vmatpush1.xpose.msra.mxu0 0.0
      %422 = vmatprep.mubr.f32.mxu0 0.0
      %423 = vmatmul.mubr.f32.gmra.mrb[0].mxu0 %v350
      %v424 = vpop.f32.mrb[0].mxu0
      %v425 = vadd.f32 0.0, %v424
      %v426 = vpop.f32.mrb[0].mxu0
      %427 = vmatprep.mubr.f32.mxu0 0.0
      %428 = vmatmul.mubr.f32.gmra.mrb[0].mxu0 %v352
      %v429 = vpop.f32.mrb[0].mxu0
      %v430 = vadd.f32 0.0, %v429
      %v431 = vpop.f32.mrb[0].mxu0
      %432 = vdwg.mxu0
      %435 = vrot.lane.b32.xlu0 %v315, 96
      %v436 = vpop.permute.xlu0 %435
      %437 = vrot.lane.b32.xlu0 %v320, 96
      %v438 = vpop.permute.xlu0 %437
      %v439 = vsel %vm349, %v315, 0
      %v441 = vsel %vm349, %v320, 0
      %v443 = vsel %vm349, %v436, 0
      %v445 = vsel %vm349, %v438, 0
      %447 = vmatprep.subr.mxu0 0.0
      %448 = vmatpush1.xpose.msra.mxu0 %v443
      %449 = vmatprep.subr.mxu0 0.0
      %450 = vmatpush1.xpose.msra.mxu0 %v445
      %451 = vmatprep.subr.mxu0 0.0
      %452 = vmatpush1.xpose.msra.mxu0 0.0
      %453 = vmatprep.subr.mxu0 0.0
      %454 = vmatpush1.xpose.msra.mxu0 0.0
      %455 = vmatprep.subr.mxu0 0.0
      %456 = vmatpush1.xpose.msra.mxu0 0.0
      %457 = vmatprep.subr.mxu0 0.0
      %458 = vmatpush1.xpose.msra.mxu0 0.0
      %459 = vmatprep.subr.mxu0 0.0
      %460 = vmatpush1.xpose.msra.mxu0 0.0
      %461 = vmatprep.subr.mxu0 0.0
      %462 = vmatpush1.xpose.msra.mxu0 0.0
      %463 = vmatprep.subr.mxu0 0.0
      %464 = vmatpush1.xpose.msra.mxu0 0.0
      %465 = vmatprep.subr.mxu0 0.0
      %466 = vmatpush1.xpose.msra.mxu0 0.0
      %467 = vmatprep.subr.mxu0 0.0
      %468 = vmatpush1.xpose.msra.mxu0 0.0
      %469 = vmatprep.subr.mxu0 0.0
      %470 = vmatpush1.xpose.msra.mxu0 0.0
      %471 = vmatprep.subr.mxu0 0.0
      %472 = vmatpush1.xpose.msra.mxu0 0.0
      %473 = vmatprep.subr.mxu0 0.0
      %474 = vmatpush1.xpose.msra.mxu0 0.0
      %475 = vmatprep.subr.mxu0 0.0
      %476 = vmatpush1.xpose.msra.mxu0 0.0
      %477 = vmatprep.subr.mxu0 0.0
      %478 = vmatpush1.xpose.msra.mxu0 0.0
      %479 = vmatprep.subr.mxu0 0.0
      %480 = vmatpush1.xpose.msra.mxu0 0.0
      %481 = vmatprep.subr.mxu0 0.0
      %482 = vmatpush1.xpose.msra.mxu0 0.0
      %483 = vmatprep.subr.mxu0 0.0
      %484 = vmatpush1.xpose.msra.mxu0 0.0
      %485 = vmatprep.subr.mxu0 0.0
      %486 = vmatpush1.xpose.msra.mxu0 0.0
      %487 = vmatprep.subr.mxu0 0.0
      %488 = vmatpush1.xpose.msra.mxu0 0.0
      %489 = vmatprep.subr.mxu0 0.0
      %490 = vmatpush1.xpose.msra.mxu0 0.0
      %491 = vmatprep.subr.mxu0 0.0
      %492 = vmatpush1.xpose.msra.mxu0 0.0
      %493 = vmatprep.subr.mxu0 0.0
      %494 = vmatpush1.xpose.msra.mxu0 0.0
      %495 = vmatprep.subr.mxu0 0.0
      %496 = vmatpush1.xpose.msra.mxu0 0.0
      %497 = vmatprep.subr.mxu0 0.0
      %498 = vmatpush1.xpose.msra.mxu0 0.0
      %499 = vmatprep.subr.mxu0 0.0
      %500 = vmatpush1.xpose.msra.mxu0 0.0
      %501 = vmatprep.subr.mxu0 0.0
      %502 = vmatpush1.xpose.msra.mxu0 0.0
      %503 = vmatprep.subr.mxu0 0.0
      %504 = vmatpush1.xpose.msra.mxu0 0.0
      %505 = vmatprep.subr.mxu0 0.0
      %506 = vmatpush1.xpose.msra.mxu0 0.0
      %507 = vmatprep.subr.mxu0 0.0
      %508 = vmatpush1.xpose.msra.mxu0 0.0
      %509 = vmatprep.subr.mxu0 0.0
      %510 = vmatpush1.xpose.msra.mxu0 0.0
      %511 = vmatprep.mubr.f32.mxu0 0.0
      %512 = vmatmul.mubr.f32.gmra.mrb[0].mxu0 %v439
      %v513 = vpop.f32.mrb[0].mxu0
      %v514 = vadd.f32 0.0, %v513
      %v515 = vpop.f32.mrb[0].mxu0
      %516 = vmatprep.mubr.f32.mxu0 0.0
      %517 = vmatmul.mubr.f32.gmra.mrb[0].mxu0 %v441
      %v518 = vpop.f32.mrb[0].mxu0
      %v519 = vadd.f32 0.0, %v518
      %v520 = vpop.f32.mrb[0].mxu0
      %521 = vdwg.mxu0
      %524 = vrot.lane.b32.xlu0 %v325, 96
      %v525 = vpop.permute.xlu0 %524
      %526 = vrot.lane.b32.xlu0 %v330, 96
      %v527 = vpop.permute.xlu0 %526
      %v528 = vsel %vm349, %v325, 0
      %v530 = vsel %vm349, %v330, 0
      %v532 = vsel %vm349, %v525, 0
      %v534 = vsel %vm349, %v527, 0
      %536 = vmatprep.subr.mxu0 0.0
      %537 = vmatpush1.xpose.msra.mxu0 %v532
      %538 = vmatprep.subr.mxu0 0.0
      %539 = vmatpush1.xpose.msra.mxu0 %v534
      %540 = vmatprep.subr.mxu0 0.0
      %541 = vmatpush1.xpose.msra.mxu0 0.0
      %542 = vmatprep.subr.mxu0 0.0
      %543 = vmatpush1.xpose.msra.mxu0 0.0
      %544 = vmatprep.subr.mxu0 0.0
      %545 = vmatpush1.xpose.msra.mxu0 0.0
      %546 = vmatprep.subr.mxu0 0.0
      %547 = vmatpush1.xpose.msra.mxu0 0.0
      %548 = vmatprep.subr.mxu0 0.0
      %549 = vmatpush1.xpose.msra.mxu0 0.0
      %550 = vmatprep.subr.mxu0 0.0
      %551 = vmatpush1.xpose.msra.mxu0 0.0
      %552 = vmatprep.subr.mxu0 0.0
      %553 = vmatpush1.xpose.msra.mxu0 0.0
      %554 = vmatprep.subr.mxu0 0.0
      %555 = vmatpush1.xpose.msra.mxu0 0.0
      %556 = vmatprep.subr.mxu0 0.0
      %557 = vmatpush1.xpose.msra.mxu0 0.0
      %558 = vmatprep.subr.mxu0 0.0
      %559 = vmatpush1.xpose.msra.mxu0 0.0
      %560 = vmatprep.subr.mxu0 0.0
      %561 = vmatpush1.xpose.msra.mxu0 0.0
      %562 = vmatprep.subr.mxu0 0.0
      %563 = vmatpush1.xpose.msra.mxu0 0.0
      %564 = vmatprep.subr.mxu0 0.0
      %565 = vmatpush1.xpose.msra.mxu0 0.0
      %566 = vmatprep.subr.mxu0 0.0
      %567 = vmatpush1.xpose.msra.mxu0 0.0
      %568 = vmatprep.subr.mxu0 0.0
      %569 = vmatpush1.xpose.msra.mxu0 0.0
      %570 = vmatprep.subr.mxu0 0.0
      %571 = vmatpush1.xpose.msra.mxu0 0.0
      %572 = vmatprep.subr.mxu0 0.0
      %573 = vmatpush1.xpose.msra.mxu0 0.0
      %574 = vmatprep.subr.mxu0 0.0
      %575 = vmatpush1.xpose.msra.mxu0 0.0
      %576 = vmatprep.subr.mxu0 0.0
      %577 = vmatpush1.xpose.msra.mxu0 0.0
      %578 = vmatprep.subr.mxu0 0.0
      %579 = vmatpush1.xpose.msra.mxu0 0.0
      %580 = vmatprep.subr.mxu0 0.0
      %581 = vmatpush1.xpose.msra.mxu0 0.0
      %582 = vmatprep.subr.mxu0 0.0
      %583 = vmatpush1.xpose.msra.mxu0 0.0
      %584 = vmatprep.subr.mxu0 0.0
      %585 = vmatpush1.xpose.msra.mxu0 0.0
      %586 = vmatprep.subr.mxu0 0.0
      %587 = vmatpush1.xpose.msra.mxu0 0.0
      %588 = vmatprep.subr.mxu0 0.0
      %589 = vmatpush1.xpose.msra.mxu0 0.0
      %590 = vmatprep.subr.mxu0 0.0
      %591 = vmatpush1.xpose.msra.mxu0 0.0
      %592 = vmatprep.subr.mxu0 0.0
      %593 = vmatpush1.xpose.msra.mxu0 0.0
      %594 = vmatprep.subr.mxu0 0.0
      %595 = vmatpush1.xpose.msra.mxu0 0.0
      %596 = vmatprep.subr.mxu0 0.0
      %597 = vmatpush1.xpose.msra.mxu0 0.0
      %598 = vmatprep.subr.mxu0 0.0
      %599 = vmatpush1.xpose.msra.mxu0 0.0
      %600 = vmatprep.mubr.f32.mxu0 0.0
      %601 = vmatmul.mubr.f32.gmra.mrb[0].mxu0 %v528
      %v602 = vpop.f32.mrb[0].mxu0
      %v603 = vadd.f32 0.0, %v602
      %v604 = vpop.f32.mrb[0].mxu0
      %605 = vmatprep.mubr.f32.mxu0 0.0
      %606 = vmatmul.mubr.f32.gmra.mrb[0].mxu0 %v530
      %v607 = vpop.f32.mrb[0].mxu0
      %v608 = vadd.f32 0.0, %v607
      %v609 = vpop.f32.mrb[0].mxu0
      %610 = vdwg.mxu0
      %613 = vrot.lane.b32.xlu0 %v335, 96
      %v614 = vpop.permute.xlu0 %613
      %615 = vrot.lane.b32.xlu0 %v340, 96
      %v616 = vpop.permute.xlu0 %615
      %v617 = vsel %vm349, %v335, 0
      %v619 = vsel %vm349, %v340, 0
      %v621 = vsel %vm349, %v614, 0
      %v623 = vsel %vm349, %v616, 0
      %625 = vmatprep.subr.mxu0 0.0
      %626 = vmatpush1.xpose.msra.mxu0 %v621
      %627 = vmatprep.subr.mxu0 0.0
      %628 = vmatpush1.xpose.msra.mxu0 %v623
      %629 = vmatprep.subr.mxu0 0.0
      %630 = vmatpush1.xpose.msra.mxu0 0.0
      %631 = vmatprep.subr.mxu0 0.0
      %632 = vmatpush1.xpose.msra.mxu0 0.0
      %633 = vmatprep.subr.mxu0 0.0
      %634 = vmatpush1.xpose.msra.mxu0 0.0
      %635 = vmatprep.subr.mxu0 0.0
      %636 = vmatpush1.xpose.msra.mxu0 0.0
      %637 = vmatprep.subr.mxu0 0.0
      %638 = vmatpush1.xpose.msra.mxu0 0.0
      %639 = vmatprep.subr.mxu0 0.0
      %640 = vmatpush1.xpose.msra.mxu0 0.0
      %641 = vmatprep.subr.mxu0 0.0
      %642 = vmatpush1.xpose.msra.mxu0 0.0
      %643 = vmatprep.subr.mxu0 0.0
      %644 = vmatpush1.xpose.msra.mxu0 0.0
      %645 = vmatprep.subr.mxu0 0.0
      %646 = vmatpush1.xpose.msra.mxu0 0.0
      %647 = vmatprep.subr.mxu0 0.0
      %648 = vmatpush1.xpose.msra.mxu0 0.0
      %649 = vmatprep.subr.mxu0 0.0
      %650 = vmatpush1.xpose.msra.mxu0 0.0
      %651 = vmatprep.subr.mxu0 0.0
      %652 = vmatpush1.xpose.msra.mxu0 0.0
      %653 = vmatprep.subr.mxu0 0.0
      %654 = vmatpush1.xpose.msra.mxu0 0.0
      %655 = vmatprep.subr.mxu0 0.0
      %656 = vmatpush1.xpose.msra.mxu0 0.0
      %657 = vmatprep.subr.mxu0 0.0
      %658 = vmatpush1.xpose.msra.mxu0 0.0
      %659 = vmatprep.subr.mxu0 0.0
      %660 = vmatpush1.xpose.msra.mxu0 0.0
      %661 = vmatprep.subr.mxu0 0.0
      %662 = vmatpush1.xpose.msra.mxu0 0.0
      %663 = vmatprep.subr.mxu0 0.0
      %664 = vmatpush1.xpose.msra.mxu0 0.0
      %665 = vmatprep.subr.mxu0 0.0
      %666 = vmatpush1.xpose.msra.mxu0 0.0
      %667 = vmatprep.subr.mxu0 0.0
      %668 = vmatpush1.xpose.msra.mxu0 0.0
      %669 = vmatprep.subr.mxu0 0.0
      %670 = vmatpush1.xpose.msra.mxu0 0.0
      %671 = vmatprep.subr.mxu0 0.0
      %672 = vmatpush1.xpose.msra.mxu0 0.0
      %673 = vmatprep.subr.mxu0 0.0
      %674 = vmatpush1.xpose.msra.mxu0 0.0
      %675 = vmatprep.subr.mxu0 0.0
      %676 = vmatpush1.xpose.msra.mxu0 0.0
      %677 = vmatprep.subr.mxu0 0.0
      %678 = vmatpush1.xpose.msra.mxu0 0.0
      %679 = vmatprep.subr.mxu0 0.0
      %680 = vmatpush1.xpose.msra.mxu0 0.0
      %681 = vmatprep.subr.mxu0 0.0
      %682 = vmatpush1.xpose.msra.mxu0 0.0
      %683 = vmatprep.subr.mxu0 0.0
      %684 = vmatpush1.xpose.msra.mxu0 0.0
      %685 = vmatprep.subr.mxu0 0.0
      %686 = vmatpush1.xpose.msra.mxu0 0.0
      %687 = vmatprep.subr.mxu0 0.0
      %688 = vmatpush1.xpose.msra.mxu0 0.0
      %689 = vmatprep.mubr.f32.mxu0 0.0
      %690 = vmatmul.mubr.f32.gmra.mrb[0].mxu0 %v617
      %v691 = vpop.f32.mrb[0].mxu0
      %v692 = vadd.f32 0.0, %v691
      %v693 = vpop.f32.mrb[0].mxu0
      %694 = vmatprep.mubr.f32.mxu0 0.0
      %695 = vmatmul.mubr.f32.gmra.mrb[0].mxu0 %v619
      %v696 = vpop.f32.mrb[0].mxu0
      %v697 = vadd.f32 0.0, %v696
      %v698 = vpop.f32.mrb[0].mxu0
      %699 = vdwg.mxu0
      %vm700 = vcmask 130048
      %v701 = vsel %vm700, %v425, -inf
      %702 = vmax.xlane.f32.xlu0 %v701
      %v703 = vpop.xlane.xlu0 %702
      %v704 = vsel %vm700, %v430, -inf
      %705 = vmax.xlane.f32.xlu0 %v704
      %v706 = vpop.xlane.xlu0 %705
      %v707 = vsel %vm700, %v514, -inf
      %708 = vmax.xlane.f32.xlu0 %v707
      %v709 = vpop.xlane.xlu0 %708
      %v710 = vsel %vm700, %v519, -inf
      %711 = vmax.xlane.f32.xlu0 %v710
      %v712 = vpop.xlane.xlu0 %711
      %v713 = vsel %vm700, %v603, -inf
      %714 = vmax.xlane.f32.xlu0 %v713
      %v715 = vpop.xlane.xlu0 %714
      %v716 = vsel %vm700, %v608, -inf
      %717 = vmax.xlane.f32.xlu0 %v716
      %v718 = vpop.xlane.xlu0 %717
      %v719 = vsel %vm700, %v692, -inf
      %720 = vmax.xlane.f32.xlu0 %v719
      %v721 = vpop.xlane.xlu0 %720
      %v722 = vsel %vm700, %v697, -inf
      %723 = vmax.xlane.f32.xlu0 %v722
      %v724 = vpop.xlane.xlu0 %723
      %v725 = vsub.f32 %v425, %v703
      %v726 = vsub.f32 %v430, %v706
      %v727 = vsub.f32 %v514, %v709
      %v728 = vsub.f32 %v519, %v712
      %v729 = vsub.f32 %v603, %v715
      %v730 = vsub.f32 %v608, %v718
      %v731 = vsub.f32 %v692, %v721
      %v732 = vsub.f32 %v697, %v724
      %v733 = vmul.f32 %v725, 1.442695
      %v734 = vpow.pop %v733
      %v735 = vmul.f32 %v726, 1.442695
      %v736 = vpow.pop %v735
      %v737 = vmul.f32 %v727, 1.442695
      %v738 = vpow.pop %v737
      %v739 = vmul.f32 %v728, 1.442695
      %v740 = vpow.pop %v739
      %v741 = vmul.f32 %v729, 1.442695
      %v742 = vpow.pop %v741
      %v743 = vmul.f32 %v730, 1.442695
      %v744 = vpow.pop %v743
      %v745 = vmul.f32 %v731, 1.442695
      %v746 = vpow.pop %v745
      %v747 = vmul.f32 %v732, 1.442695
      %v748 = vpow.pop %v747
      %v749 = vsel %vm700, %v734, 0.0
      %750 = vadd.xlane.f32.xlu0 %v749
      %v751 = vpop.xlane.xlu0 %750
      %v752 = vsel %vm700, %v736, 0.0
      %753 = vadd.xlane.f32.xlu0 %v752
      %v754 = vpop.xlane.xlu0 %753
      %v755 = vsel %vm700, %v738, 0.0
      %756 = vadd.xlane.f32.xlu0 %v755
      %v757 = vpop.xlane.xlu0 %756
      %v758 = vsel %vm700, %v740, 0.0
      %759 = vadd.xlane.f32.xlu0 %v758
      %v760 = vpop.xlane.xlu0 %759
      %v761 = vsel %vm700, %v742, 0.0
      %762 = vadd.xlane.f32.xlu0 %v761
      %v763 = vpop.xlane.xlu0 %762
      %v764 = vsel %vm700, %v744, 0.0
      %765 = vadd.xlane.f32.xlu0 %v764
      %v766 = vpop.xlane.xlu0 %765
      %v767 = vsel %vm700, %v746, 0.0
      %768 = vadd.xlane.f32.xlu0 %v767
      %v769 = vpop.xlane.xlu0 %768
      %v770 = vsel %vm700, %v748, 0.0
      %771 = vadd.xlane.f32.xlu0 %v770
      %v772 = vpop.xlane.xlu0 %771
      %v773 = vrcp.pop %v751
      %v774 = vrcp.pop %v754
      %v775 = vrcp.pop %v757
      %v776 = vrcp.pop %v760
      %v777 = vrcp.pop %v763
      %v778 = vrcp.pop %v766
      %v779 = vrcp.pop %v769
      %v780 = vrcp.pop %v772
      %v781 = vmul.f32 %v734, %v773
      %v782 = vmul.f32 %v736, %v774
      %v783 = vmul.f32 %v738, %v775
      %v784 = vmul.f32 %v740, %v776
      %v785 = vmul.f32 %v742, %v777
      %v786 = vmul.f32 %v744, %v778
      %v787 = vmul.f32 %v746, %v779
      %v788 = vmul.f32 %v748, %v780
      %789 = vrot.lane.b32.xlu0 %v305, 64
      %v790 = vpop.permute.xlu0 %789
      %791 = vrot.lane.b32.xlu0 %v310, 64
      %v792 = vpop.permute.xlu0 %791
      %v796 = vsel %vm700, %v781, 0
      %v799 = vsel %vm700, %v782, 0
      %801 = vmatprep.subr.mxu0 0.0
      %802 = vmatpush1.msra.mxu0 %v790
      %803 = vmatprep.subr.mxu0 0.0
      %804 = vmatpush1.msra.mxu0 %v792
      %805 = vmatprep.subr.mxu0 0.0
      %806 = vmatpush1.msra.mxu0 0.0
      %807 = vmatprep.subr.mxu0 0.0
      %808 = vmatpush1.msra.mxu0 0.0
      %809 = vmatprep.subr.mxu0 0.0
      %810 = vmatpush1.msra.mxu0 0.0
      %811 = vmatprep.subr.mxu0 0.0
      %812 = vmatpush1.msra.mxu0 0.0
      %813 = vmatprep.subr.mxu0 0.0
      %814 = vmatpush1.msra.mxu0 0.0
      %815 = vmatprep.subr.mxu0 0.0
      %816 = vmatpush1.msra.mxu0 0.0
      %817 = vmatprep.subr.mxu0 0.0
      %818 = vmatpush1.msra.mxu0 0.0
      %819 = vmatprep.subr.mxu0 0.0
      %820 = vmatpush1.msra.mxu0 0.0
      %821 = vmatprep.subr.mxu0 0.0
      %822 = vmatpush1.msra.mxu0 0.0
      %823 = vmatprep.subr.mxu0 0.0
      %824 = vmatpush1.msra.mxu0 0.0
      %825 = vmatprep.subr.mxu0 0.0
      %826 = vmatpush1.msra.mxu0 0.0
      %827 = vmatprep.subr.mxu0 0.0
      %828 = vmatpush1.msra.mxu0 0.0
      %829 = vmatprep.subr.mxu0 0.0
      %830 = vmatpush1.msra.mxu0 0.0
      %831 = vmatprep.subr.mxu0 0.0
      %832 = vmatpush1.msra.mxu0 0.0
      %833 = vmatprep.subr.mxu0 0.0
      %834 = vmatpush1.msra.mxu0 0.0
      %835 = vmatprep.subr.mxu0 0.0
      %836 = vmatpush1.msra.mxu0 0.0
      %837 = vmatprep.subr.mxu0 0.0
      %838 = vmatpush1.msra.mxu0 0.0
      %839 = vmatprep.subr.mxu0 0.0
      %840 = vmatpush1.msra.mxu0 0.0
      %841 = vmatprep.subr.mxu0 0.0
      %842 = vmatpush1.msra.mxu0 0.0
      %843 = vmatprep.subr.mxu0 0.0
      %844 = vmatpush1.msra.mxu0 0.0
      %845 = vmatprep.subr.mxu0 0.0
      %846 = vmatpush1.msra.mxu0 0.0
      %847 = vmatprep.subr.mxu0 0.0
      %848 = vmatpush1.msra.mxu0 0.0
      %849 = vmatprep.subr.mxu0 0.0
      %850 = vmatpush1.msra.mxu0 0.0
      %851 = vmatprep.subr.mxu0 0.0
      %852 = vmatpush1.msra.mxu0 0.0
      %853 = vmatprep.subr.mxu0 0.0
      %854 = vmatpush1.msra.mxu0 0.0
      %855 = vmatprep.subr.mxu0 0.0
      %856 = vmatpush1.msra.mxu0 0.0
      %857 = vmatprep.subr.mxu0 0.0
      %858 = vmatpush1.msra.mxu0 0.0
      %859 = vmatprep.subr.mxu0 0.0
      %860 = vmatpush1.msra.mxu0 0.0
      %861 = vmatprep.subr.mxu0 0.0
      %862 = vmatpush1.msra.mxu0 0.0
      %863 = vmatprep.subr.mxu0 0.0
      %864 = vmatpush1.msra.mxu0 0.0
      %865 = vmatprep.mubr.f32.mxu0 0.0
      %866 = vmatmul.mubr.f32.gmra.mrb[0].mxu0 %v796
      %v867 = vpop.f32.mrb[0].mxu0
      %v868 = vadd.f32 0.0, %v867
      %v869 = vpop.f32.mrb[0].mxu0
      %870 = vmatprep.mubr.f32.mxu0 0.0
      %871 = vmatmul.mubr.f32.gmra.mrb[0].mxu0 %v799
      %v872 = vpop.f32.mrb[0].mxu0
      %v873 = vadd.f32 0.0, %v872
      %v874 = vpop.f32.mrb[0].mxu0
      %875 = vdwg.mxu0
      %876 = vrot.lane.b32.xlu0 %v315, 64
      %v877 = vpop.permute.xlu0 %876
      %878 = vrot.lane.b32.xlu0 %v320, 64
      %v879 = vpop.permute.xlu0 %878
      %v883 = vsel %vm700, %v783, 0
      %v886 = vsel %vm700, %v784, 0
      %888 = vmatprep.subr.mxu0 0.0
      %889 = vmatpush1.msra.mxu0 %v877
      %890 = vmatprep.subr.mxu0 0.0
      %891 = vmatpush1.msra.mxu0 %v879
      %892 = vmatprep.subr.mxu0 0.0
      %893 = vmatpush1.msra.mxu0 0.0
      %894 = vmatprep.subr.mxu0 0.0
      %895 = vmatpush1.msra.mxu0 0.0
      %896 = vmatprep.subr.mxu0 0.0
      %897 = vmatpush1.msra.mxu0 0.0
      %898 = vmatprep.subr.mxu0 0.0
      %899 = vmatpush1.msra.mxu0 0.0
      %900 = vmatprep.subr.mxu0 0.0
      %901 = vmatpush1.msra.mxu0 0.0
      %902 = vmatprep.subr.mxu0 0.0
      %903 = vmatpush1.msra.mxu0 0.0
      %904 = vmatprep.subr.mxu0 0.0
      %905 = vmatpush1.msra.mxu0 0.0
      %906 = vmatprep.subr.mxu0 0.0
      %907 = vmatpush1.msra.mxu0 0.0
      %908 = vmatprep.subr.mxu0 0.0
      %909 = vmatpush1.msra.mxu0 0.0
      %910 = vmatprep.subr.mxu0 0.0
      %911 = vmatpush1.msra.mxu0 0.0
      %912 = vmatprep.subr.mxu0 0.0
      %913 = vmatpush1.msra.mxu0 0.0
      %914 = vmatprep.subr.mxu0 0.0
      %915 = vmatpush1.msra.mxu0 0.0
      %916 = vmatprep.subr.mxu0 0.0
      %917 = vmatpush1.msra.mxu0 0.0
      %918 = vmatprep.subr.mxu0 0.0
      %919 = vmatpush1.msra.mxu0 0.0
      %920 = vmatprep.subr.mxu0 0.0
      %921 = vmatpush1.msra.mxu0 0.0
      %922 = vmatprep.subr.mxu0 0.0
      %923 = vmatpush1.msra.mxu0 0.0
      %924 = vmatprep.subr.mxu0 0.0
      %925 = vmatpush1.msra.mxu0 0.0
      %926 = vmatprep.subr.mxu0 0.0
      %927 = vmatpush1.msra.mxu0 0.0
      %928 = vmatprep.subr.mxu0 0.0
      %929 = vmatpush1.msra.mxu0 0.0
      %930 = vmatprep.subr.mxu0 0.0
      %931 = vmatpush1.msra.mxu0 0.0
      %932 = vmatprep.subr.mxu0 0.0
      %933 = vmatpush1.msra.mxu0 0.0
      %934 = vmatprep.subr.mxu0 0.0
      %935 = vmatpush1.msra.mxu0 0.0
      %936 = vmatprep.subr.mxu0 0.0
      %937 = vmatpush1.msra.mxu0 0.0
      %938 = vmatprep.subr.mxu0 0.0
      %939 = vmatpush1.msra.mxu0 0.0
      %940 = vmatprep.subr.mxu0 0.0
      %941 = vmatpush1.msra.mxu0 0.0
      %942 = vmatprep.subr.mxu0 0.0
      %943 = vmatpush1.msra.mxu0 0.0
      %944 = vmatprep.subr.mxu0 0.0
      %945 = vmatpush1.msra.mxu0 0.0
      %946 = vmatprep.subr.mxu0 0.0
      %947 = vmatpush1.msra.mxu0 0.0
      %948 = vmatprep.subr.mxu0 0.0
      %949 = vmatpush1.msra.mxu0 0.0
      %950 = vmatprep.subr.mxu0 0.0
      %951 = vmatpush1.msra.mxu0 0.0
      %952 = vmatprep.mubr.f32.mxu0 0.0
      %953 = vmatmul.mubr.f32.gmra.mrb[0].mxu0 %v883
      %v954 = vpop.f32.mrb[0].mxu0
      %v955 = vadd.f32 0.0, %v954
      %v956 = vpop.f32.mrb[0].mxu0
      %957 = vmatprep.mubr.f32.mxu0 0.0
      %958 = vmatmul.mubr.f32.gmra.mrb[0].mxu0 %v886
      %v959 = vpop.f32.mrb[0].mxu0
      %v960 = vadd.f32 0.0, %v959
      %v961 = vpop.f32.mrb[0].mxu0
      %962 = vdwg.mxu0
      %963 = vrot.lane.b32.xlu0 %v325, 64
      %v964 = vpop.permute.xlu0 %963
      %965 = vrot.lane.b32.xlu0 %v330, 64
      %v966 = vpop.permute.xlu0 %965
      %v970 = vsel %vm700, %v785, 0
      %v973 = vsel %vm700, %v786, 0
      %975 = vmatprep.subr.mxu0 0.0
      %976 = vmatpush1.msra.mxu0 %v964
      %977 = vmatprep.subr.mxu0 0.0
      %978 = vmatpush1.msra.mxu0 %v966
      %979 = vmatprep.subr.mxu0 0.0
      %980 = vmatpush1.msra.mxu0 0.0
      %981 = vmatprep.subr.mxu0 0.0
      %982 = vmatpush1.msra.mxu0 0.0
      %983 = vmatprep.subr.mxu0 0.0
      %984 = vmatpush1.msra.mxu0 0.0
      %985 = vmatprep.subr.mxu0 0.0
      %986 = vmatpush1.msra.mxu0 0.0
      %987 = vmatprep.subr.mxu0 0.0
      %988 = vmatpush1.msra.mxu0 0.0
      %989 = vmatprep.subr.mxu0 0.0
      %990 = vmatpush1.msra.mxu0 0.0
      %991 = vmatprep.subr.mxu0 0.0
      %992 = vmatpush1.msra.mxu0 0.0
      %993 = vmatprep.subr.mxu0 0.0
      %994 = vmatpush1.msra.mxu0 0.0
      %995 = vmatprep.subr.mxu0 0.0
      %996 = vmatpush1.msra.mxu0 0.0
      %997 = vmatprep.subr.mxu0 0.0
      %998 = vmatpush1.msra.mxu0 0.0
      %999 = vmatprep.subr.mxu0 0.0
      %1000 = vmatpush1.msra.mxu0 0.0
      %1001 = vmatprep.subr.mxu0 0.0
      %1002 = vmatpush1.msra.mxu0 0.0
      %1003 = vmatprep.subr.mxu0 0.0
      %1004 = vmatpush1.msra.mxu0 0.0
      %1005 = vmatprep.subr.mxu0 0.0
      %1006 = vmatpush1.msra.mxu0 0.0
      %1007 = vmatprep.subr.mxu0 0.0
      %1008 = vmatpush1.msra.mxu0 0.0
      %1009 = vmatprep.subr.mxu0 0.0
      %1010 = vmatpush1.msra.mxu0 0.0
      %1011 = vmatprep.subr.mxu0 0.0
      %1012 = vmatpush1.msra.mxu0 0.0
      %1013 = vmatprep.subr.mxu0 0.0
      %1014 = vmatpush1.msra.mxu0 0.0
      %1015 = vmatprep.subr.mxu0 0.0
      %1016 = vmatpush1.msra.mxu0 0.0
      %1017 = vmatprep.subr.mxu0 0.0
      %1018 = vmatpush1.msra.mxu0 0.0
      %1019 = vmatprep.subr.mxu0 0.0
      %1020 = vmatpush1.msra.mxu0 0.0
      %1021 = vmatprep.subr.mxu0 0.0
      %1022 = vmatpush1.msra.mxu0 0.0
      %1023 = vmatprep.subr.mxu0 0.0
      %1024 = vmatpush1.msra.mxu0 0.0
      %1025 = vmatprep.subr.mxu0 0.0
      %1026 = vmatpush1.msra.mxu0 0.0
      %1027 = vmatprep.subr.mxu0 0.0
      %1028 = vmatpush1.msra.mxu0 0.0
      %1029 = vmatprep.subr.mxu0 0.0
      %1030 = vmatpush1.msra.mxu0 0.0
      %1031 = vmatprep.subr.mxu0 0.0
      %1032 = vmatpush1.msra.mxu0 0.0
      %1033 = vmatprep.subr.mxu0 0.0
      %1034 = vmatpush1.msra.mxu0 0.0
      %1035 = vmatprep.subr.mxu0 0.0
      %1036 = vmatpush1.msra.mxu0 0.0
      %1037 = vmatprep.subr.mxu0 0.0
      %1038 = vmatpush1.msra.mxu0 0.0
      %1039 = vmatprep.mubr.f32.mxu0 0.0
      %1040 = vmatmul.mubr.f32.gmra.mrb[0].mxu0 %v970
      %v1041 = vpop.f32.mrb[0].mxu0
      %v1042 = vadd.f32 0.0, %v1041
      %v1043 = vpop.f32.mrb[0].mxu0
      %1044 = vmatprep.mubr.f32.mxu0 0.0
      %1045 = vmatmul.mubr.f32.gmra.mrb[0].mxu0 %v973
      %v1046 = vpop.f32.mrb[0].mxu0
      %v1047 = vadd.f32 0.0, %v1046
      %v1048 = vpop.f32.mrb[0].mxu0
      %1049 = vdwg.mxu0
      %1050 = vrot.lane.b32.xlu0 %v335, 64
      %v1051 = vpop.permute.xlu0 %1050
      %1052 = vrot.lane.b32.xlu0 %v340, 64
      %v1053 = vpop.permute.xlu0 %1052
      %v1057 = vsel %vm700, %v787, 0
      %v1060 = vsel %vm700, %v788, 0
      %1062 = vmatprep.subr.mxu0 0.0
      %1063 = vmatpush1.msra.mxu0 %v1051
      %1064 = vmatprep.subr.mxu0 0.0
      %1065 = vmatpush1.msra.mxu0 %v1053
      %1066 = vmatprep.subr.mxu0 0.0
      %1067 = vmatpush1.msra.mxu0 0.0
      %1068 = vmatprep.subr.mxu0 0.0
      %1069 = vmatpush1.msra.mxu0 0.0
      %1070 = vmatprep.subr.mxu0 0.0
      %1071 = vmatpush1.msra.mxu0 0.0
      %1072 = vmatprep.subr.mxu0 0.0
      %1073 = vmatpush1.msra.mxu0 0.0
      %1074 = vmatprep.subr.mxu0 0.0
      %1075 = vmatpush1.msra.mxu0 0.0
      %1076 = vmatprep.subr.mxu0 0.0
      %1077 = vmatpush1.msra.mxu0 0.0
      %1078 = vmatprep.subr.mxu0 0.0
      %1079 = vmatpush1.msra.mxu0 0.0
      %1080 = vmatprep.subr.mxu0 0.0
      %1081 = vmatpush1.msra.mxu0 0.0
      %1082 = vmatprep.subr.mxu0 0.0
      %1083 = vmatpush1.msra.mxu0 0.0
      %1084 = vmatprep.subr.mxu0 0.0
      %1085 = vmatpush1.msra.mxu0 0.0
      %1086 = vmatprep.subr.mxu0 0.0
      %1087 = vmatpush1.msra.mxu0 0.0
      %1088 = vmatprep.subr.mxu0 0.0
      %1089 = vmatpush1.msra.mxu0 0.0
      %1090 = vmatprep.subr.mxu0 0.0
      %1091 = vmatpush1.msra.mxu0 0.0
      %1092 = vmatprep.subr.mxu0 0.0
      %1093 = vmatpush1.msra.mxu0 0.0
      %1094 = vmatprep.subr.mxu0 0.0
      %1095 = vmatpush1.msra.mxu0 0.0
      %1096 = vmatprep.subr.mxu0 0.0
      %1097 = vmatpush1.msra.mxu0 0.0
      %1098 = vmatprep.subr.mxu0 0.0
      %1099 = vmatpush1.msra.mxu0 0.0
      %1100 = vmatprep.subr.mxu0 0.0
      %1101 = vmatpush1.msra.mxu0 0.0
      %1102 = vmatprep.subr.mxu0 0.0
      %1103 = vmatpush1.msra.mxu0 0.0
      %1104 = vmatprep.subr.mxu0 0.0
      %1105 = vmatpush1.msra.mxu0 0.0
      %1106 = vmatprep.subr.mxu0 0.0
      %1107 = vmatpush1.msra.mxu0 0.0
      %1108 = vmatprep.subr.mxu0 0.0
      %1109 = vmatpush1.msra.mxu0 0.0
      %1110 = vmatprep.subr.mxu0 0.0
      %1111 = vmatpush1.msra.mxu0 0.0
      %1112 = vmatprep.subr.mxu0 0.0
      %1113 = vmatpush1.msra.mxu0 0.0
      %1114 = vmatprep.subr.mxu0 0.0
      %1115 = vmatpush1.msra.mxu0 0.0
      %1116 = vmatprep.subr.mxu0 0.0
      %1117 = vmatpush1.msra.mxu0 0.0
      %1118 = vmatprep.subr.mxu0 0.0
      %1119 = vmatpush1.msra.mxu0 0.0
      %1120 = vmatprep.subr.mxu0 0.0
      %1121 = vmatpush1.msra.mxu0 0.0
      %1122 = vmatprep.subr.mxu0 0.0
      %1123 = vmatpush1.msra.mxu0 0.0
      %1124 = vmatprep.subr.mxu0 0.0
      %1125 = vmatpush1.msra.mxu0 0.0
      %1126 = vmatprep.mubr.f32.mxu0 0.0
      %1127 = vmatmul.mubr.f32.gmra.mrb[0].mxu0 %v1057
      %v1128 = vpop.f32.mrb[0].mxu0
      %v1129 = vadd.f32 0.0, %v1128
      %v1130 = vpop.f32.mrb[0].mxu0
      %1131 = vmatprep.mubr.f32.mxu0 0.0
      %1132 = vmatmul.mubr.f32.gmra.mrb[0].mxu0 %v1060
      %v1133 = vpop.f32.mrb[0].mxu0
      %v1134 = vadd.f32 0.0, %v1133
      %v1135 = vpop.f32.mrb[0].mxu0
      %1136 = vdwg.mxu0
      %1137 = vrot.lane.b32.xlu0 %v305, 120
      %v1138 = vpop.permute.xlu0 %1137
      %1139 = vrot.lane.b32.xlu0 %v310, 120
      %v1140 = vpop.permute.xlu0 %1139
      %1141 = vrot.lane.b32.xlu0 %v305, 88
      %v1142 = vpop.permute.xlu0 %1141
      %1143 = vrot.lane.b32.xlu0 %v310, 88
      %v1144 = vpop.permute.xlu0 %1143
      %v1145 = vsel %vm349, %v1138, 0
      %v1147 = vsel %vm349, %v1140, 0
      %v1149 = vsel %vm349, %v1142, 0
      %v1151 = vsel %vm349, %v1144, 0
      %1153 = vmatprep.subr.mxu0 0.0
      %1154 = vmatpush1.xpose.msra.mxu0 %v1149
      %1155 = vmatprep.subr.mxu0 0.0
      %1156 = vmatpush1.xpose.msra.mxu0 %v1151
      %1157 = vmatprep.subr.mxu0 0.0
      %1158 = vmatpush1.xpose.msra.mxu0 0.0
      %1159 = vmatprep.subr.mxu0 0.0
      %1160 = vmatpush1.xpose.msra.mxu0 0.0
      %1161 = vmatprep.subr.mxu0 0.0
      %1162 = vmatpush1.xpose.msra.mxu0 0.0
      %1163 = vmatprep.subr.mxu0 0.0
      %1164 = vmatpush1.xpose.msra.mxu0 0.0
      %1165 = vmatprep.subr.mxu0 0.0
      %1166 = vmatpush1.xpose.msra.mxu0 0.0
      %1167 = vmatprep.subr.mxu0 0.0
      %1168 = vmatpush1.xpose.msra.mxu0 0.0
      %1169 = vmatprep.subr.mxu0 0.0
      %1170 = vmatpush1.xpose.msra.mxu0 0.0
      %1171 = vmatprep.subr.mxu0 0.0
      %1172 = vmatpush1.xpose.msra.mxu0 0.0
      %1173 = vmatprep.subr.mxu0 0.0
      %1174 = vmatpush1.xpose.msra.mxu0 0.0
      %1175 = vmatprep.subr.mxu0 0.0
      %1176 = vmatpush1.xpose.msra.mxu0 0.0
      %1177 = vmatprep.subr.mxu0 0.0
      %1178 = vmatpush1.xpose.msra.mxu0 0.0
      %1179 = vmatprep.subr.mxu0 0.0
      %1180 = vmatpush1.xpose.msra.mxu0 0.0
      %1181 = vmatprep.subr.mxu0 0.0
      %1182 = vmatpush1.xpose.msra.mxu0 0.0
      %1183 = vmatprep.subr.mxu0 0.0
      %1184 = vmatpush1.xpose.msra.mxu0 0.0
      %1185 = vmatprep.subr.mxu0 0.0
      %1186 = vmatpush1.xpose.msra.mxu0 0.0
      %1187 = vmatprep.subr.mxu0 0.0
      %1188 = vmatpush1.xpose.msra.mxu0 0.0
      %1189 = vmatprep.subr.mxu0 0.0
      %1190 = vmatpush1.xpose.msra.mxu0 0.0
      %1191 = vmatprep.subr.mxu0 0.0
      %1192 = vmatpush1.xpose.msra.mxu0 0.0
      %1193 = vmatprep.subr.mxu0 0.0
      %1194 = vmatpush1.xpose.msra.mxu0 0.0
      %1195 = vmatprep.subr.mxu0 0.0
      %1196 = vmatpush1.xpose.msra.mxu0 0.0
      %1197 = vmatprep.subr.mxu0 0.0
      %1198 = vmatpush1.xpose.msra.mxu0 0.0
      %1199 = vmatprep.subr.mxu0 0.0
      %1200 = vmatpush1.xpose.msra.mxu0 0.0
      %1201 = vmatprep.subr.mxu0 0.0
      %1202 = vmatpush1.xpose.msra.mxu0 0.0
      %1203 = vmatprep.subr.mxu0 0.0
      %1204 = vmatpush1.xpose.msra.mxu0 0.0
      %1205 = vmatprep.subr.mxu0 0.0
      %1206 = vmatpush1.xpose.msra.mxu0 0.0
      %1207 = vmatprep.subr.mxu0 0.0
      %1208 = vmatpush1.xpose.msra.mxu0 0.0
      %1209 = vmatprep.subr.mxu0 0.0
      %1210 = vmatpush1.xpose.msra.mxu0 0.0
      %1211 = vmatprep.subr.mxu0 0.0
      %1212 = vmatpush1.xpose.msra.mxu0 0.0
      %1213 = vmatprep.subr.mxu0 0.0
      %1214 = vmatpush1.xpose.msra.mxu0 0.0
      %1215 = vmatprep.subr.mxu0 0.0
      %1216 = vmatpush1.xpose.msra.mxu0 0.0
      %1217 = vmatprep.mubr.f32.mxu0 0.0
      %1218 = vmatmul.mubr.f32.gmra.mrb[0].mxu0 %v1145
      %v1219 = vpop.f32.mrb[0].mxu0
      %v1220 = vadd.f32 0.0, %v1219
      %v1221 = vpop.f32.mrb[0].mxu0
      %1222 = vmatprep.mubr.f32.mxu0 0.0
      %1223 = vmatmul.mubr.f32.gmra.mrb[0].mxu0 %v1147
      %v1224 = vpop.f32.mrb[0].mxu0
      %v1225 = vadd.f32 0.0, %v1224
      %v1226 = vpop.f32.mrb[0].mxu0
      %1227 = vdwg.mxu0
      %1228 = vrot.lane.b32.xlu0 %v315, 120
      %v1229 = vpop.permute.xlu0 %1228
      %1230 = vrot.lane.b32.xlu0 %v320, 120
      %v1231 = vpop.permute.xlu0 %1230
      %1232 = vrot.lane.b32.xlu0 %v315, 88
      %v1233 = vpop.permute.xlu0 %1232
      %1234 = vrot.lane.b32.xlu0 %v320, 88
      %v1235 = vpop.permute.xlu0 %1234
      %v1236 = vsel %vm349, %v1229, 0
      %v1238 = vsel %vm349, %v1231, 0
      %v1240 = vsel %vm349, %v1233, 0
      %v1242 = vsel %vm349, %v1235, 0
      %1244 = vmatprep.subr.mxu0 0.0
      %1245 = vmatpush1.xpose.msra.mxu0 %v1240
      %1246 = vmatprep.subr.mxu0 0.0
      %1247 = vmatpush1.xpose.msra.mxu0 %v1242
      %1248 = vmatprep.subr.mxu0 0.0
      %1249 = vmatpush1.xpose.msra.mxu0 0.0
      %1250 = vmatprep.subr.mxu0 0.0
      %1251 = vmatpush1.xpose.msra.mxu0 0.0
      %1252 = vmatprep.subr.mxu0 0.0
      %1253 = vmatpush1.xpose.msra.mxu0 0.0
      %1254 = vmatprep.subr.mxu0 0.0
      %1255 = vmatpush1.xpose.msra.mxu0 0.0
      %1256 = vmatprep.subr.mxu0 0.0
      %1257 = vmatpush1.xpose.msra.mxu0 0.0
      %1258 = vmatprep.subr.mxu0 0.0
      %1259 = vmatpush1.xpose.msra.mxu0 0.0
      %1260 = vmatprep.subr.mxu0 0.0
      %1261 = vmatpush1.xpose.msra.mxu0 0.0
      %1262 = vmatprep.subr.mxu0 0.0
      %1263 = vmatpush1.xpose.msra.mxu0 0.0
      %1264 = vmatprep.subr.mxu0 0.0
      %1265 = vmatpush1.xpose.msra.mxu0 0.0
      %1266 = vmatprep.subr.mxu0 0.0
      %1267 = vmatpush1.xpose.msra.mxu0 0.0
      %1268 = vmatprep.subr.mxu0 0.0
      %1269 = vmatpush1.xpose.msra.mxu0 0.0
      %1270 = vmatprep.subr.mxu0 0.0
      %1271 = vmatpush1.xpose.msra.mxu0 0.0
      %1272 = vmatprep.subr.mxu0 0.0
      %1273 = vmatpush1.xpose.msra.mxu0 0.0
      %1274 = vmatprep.subr.mxu0 0.0
      %1275 = vmatpush1.xpose.msra.mxu0 0.0
      %1276 = vmatprep.subr.mxu0 0.0
      %1277 = vmatpush1.xpose.msra.mxu0 0.0
      %1278 = vmatprep.subr.mxu0 0.0
      %1279 = vmatpush1.xpose.msra.mxu0 0.0
      %1280 = vmatprep.subr.mxu0 0.0
      %1281 = vmatpush1.xpose.msra.mxu0 0.0
      %1282 = vmatprep.subr.mxu0 0.0
      %1283 = vmatpush1.xpose.msra.mxu0 0.0
      %1284 = vmatprep.subr.mxu0 0.0
      %1285 = vmatpush1.xpose.msra.mxu0 0.0
      %1286 = vmatprep.subr.mxu0 0.0
      %1287 = vmatpush1.xpose.msra.mxu0 0.0
      %1288 = vmatprep.subr.mxu0 0.0
      %1289 = vmatpush1.xpose.msra.mxu0 0.0
      %1290 = vmatprep.subr.mxu0 0.0
      %1291 = vmatpush1.xpose.msra.mxu0 0.0
      %1292 = vmatprep.subr.mxu0 0.0
      %1293 = vmatpush1.xpose.msra.mxu0 0.0
      %1294 = vmatprep.subr.mxu0 0.0
      %1295 = vmatpush1.xpose.msra.mxu0 0.0
      %1296 = vmatprep.subr.mxu0 0.0
      %1297 = vmatpush1.xpose.msra.mxu0 0.0
      %1298 = vmatprep.subr.mxu0 0.0
      %1299 = vmatpush1.xpose.msra.mxu0 0.0
      %1300 = vmatprep.subr.mxu0 0.0
      %1301 = vmatpush1.xpose.msra.mxu0 0.0
      %1302 = vmatprep.subr.mxu0 0.0
      %1303 = vmatpush1.xpose.msra.mxu0 0.0
      %1304 = vmatprep.subr.mxu0 0.0
      %1305 = vmatpush1.xpose.msra.mxu0 0.0
      %1306 = vmatprep.subr.mxu0 0.0
      %1307 = vmatpush1.xpose.msra.mxu0 0.0
      %1308 = vmatprep.mubr.f32.mxu0 0.0
      %1309 = vmatmul.mubr.f32.gmra.mrb[0].mxu0 %v1236
      %v1310 = vpop.f32.mrb[0].mxu0
      %v1311 = vadd.f32 0.0, %v1310
      %v1312 = vpop.f32.mrb[0].mxu0
      %1313 = vmatprep.mubr.f32.mxu0 0.0
      %1314 = vmatmul.mubr.f32.gmra.mrb[0].mxu0 %v1238
      %v1315 = vpop.f32.mrb[0].mxu0
      %v1316 = vadd.f32 0.0, %v1315
      %v1317 = vpop.f32.mrb[0].mxu0
      %1318 = vdwg.mxu0
      %1319 = vrot.lane.b32.xlu0 %v325, 120
      %v1320 = vpop.permute.xlu0 %1319
      %1321 = vrot.lane.b32.xlu0 %v330, 120
      %v1322 = vpop.permute.xlu0 %1321
      %1323 = vrot.lane.b32.xlu0 %v325, 88
      %v1324 = vpop.permute.xlu0 %1323
      %1325 = vrot.lane.b32.xlu0 %v330, 88
      %v1326 = vpop.permute.xlu0 %1325
      %v1327 = vsel %vm349, %v1320, 0
      %v1329 = vsel %vm349, %v1322, 0
      %v1331 = vsel %vm349, %v1324, 0
      %v1333 = vsel %vm349, %v1326, 0
      %1335 = vmatprep.subr.mxu0 0.0
      %1336 = vmatpush1.xpose.msra.mxu0 %v1331
      %1337 = vmatprep.subr.mxu0 0.0
      %1338 = vmatpush1.xpose.msra.mxu0 %v1333
      %1339 = vmatprep.subr.mxu0 0.0
      %1340 = vmatpush1.xpose.msra.mxu0 0.0
      %1341 = vmatprep.subr.mxu0 0.0
      %1342 = vmatpush1.xpose.msra.mxu0 0.0
      %1343 = vmatprep.subr.mxu0 0.0
      %1344 = vmatpush1.xpose.msra.mxu0 0.0
      %1345 = vmatprep.subr.mxu0 0.0
      %1346 = vmatpush1.xpose.msra.mxu0 0.0
      %1347 = vmatprep.subr.mxu0 0.0
      %1348 = vmatpush1.xpose.msra.mxu0 0.0
      %1349 = vmatprep.subr.mxu0 0.0
      %1350 = vmatpush1.xpose.msra.mxu0 0.0
      %1351 = vmatprep.subr.mxu0 0.0
      %1352 = vmatpush1.xpose.msra.mxu0 0.0
      %1353 = vmatprep.subr.mxu0 0.0
      %1354 = vmatpush1.xpose.msra.mxu0 0.0
      %1355 = vmatprep.subr.mxu0 0.0
      %1356 = vmatpush1.xpose.msra.mxu0 0.0
      %1357 = vmatprep.subr.mxu0 0.0
      %1358 = vmatpush1.xpose.msra.mxu0 0.0
      %1359 = vmatprep.subr.mxu0 0.0
      %1360 = vmatpush1.xpose.msra.mxu0 0.0
      %1361 = vmatprep.subr.mxu0 0.0
      %1362 = vmatpush1.xpose.msra.mxu0 0.0
      %1363 = vmatprep.subr.mxu0 0.0
      %1364 = vmatpush1.xpose.msra.mxu0 0.0
      %1365 = vmatprep.subr.mxu0 0.0
      %1366 = vmatpush1.xpose.msra.mxu0 0.0
      %1367 = vmatprep.subr.mxu0 0.0
      %1368 = vmatpush1.xpose.msra.mxu0 0.0
      %1369 = vmatprep.subr.mxu0 0.0
      %1370 = vmatpush1.xpose.msra.mxu0 0.0
      %1371 = vmatprep.subr.mxu0 0.0
      %1372 = vmatpush1.xpose.msra.mxu0 0.0
      %1373 = vmatprep.subr.mxu0 0.0
      %1374 = vmatpush1.xpose.msra.mxu0 0.0
      %1375 = vmatprep.subr.mxu0 0.0
      %1376 = vmatpush1.xpose.msra.mxu0 0.0
      %1377 = vmatprep.subr.mxu0 0.0
      %1378 = vmatpush1.xpose.msra.mxu0 0.0
      %1379 = vmatprep.subr.mxu0 0.0
      %1380 = vmatpush1.xpose.msra.mxu0 0.0
      %1381 = vmatprep.subr.mxu0 0.0
      %1382 = vmatpush1.xpose.msra.mxu0 0.0
      %1383 = vmatprep.subr.mxu0 0.0
      %1384 = vmatpush1.xpose.msra.mxu0 0.0
      %1385 = vmatprep.subr.mxu0 0.0
      %1386 = vmatpush1.xpose.msra.mxu0 0.0
      %1387 = vmatprep.subr.mxu0 0.0
      %1388 = vmatpush1.xpose.msra.mxu0 0.0
      %1389 = vmatprep.subr.mxu0 0.0
      %1390 = vmatpush1.xpose.msra.mxu0 0.0
      %1391 = vmatprep.subr.mxu0 0.0
      %1392 = vmatpush1.xpose.msra.mxu0 0.0
      %1393 = vmatprep.subr.mxu0 0.0
      %1394 = vmatpush1.xpose.msra.mxu0 0.0
      %1395 = vmatprep.subr.mxu0 0.0
      %1396 = vmatpush1.xpose.msra.mxu0 0.0
      %1397 = vmatprep.subr.mxu0 0.0
      %1398 = vmatpush1.xpose.msra.mxu0 0.0
      %1399 = vmatprep.mubr.f32.mxu0 0.0
      %1400 = vmatmul.mubr.f32.gmra.mrb[0].mxu0 %v1327
      %v1401 = vpop.f32.mrb[0].mxu0
      %v1402 = vadd.f32 0.0, %v1401
      %v1403 = vpop.f32.mrb[0].mxu0
      %1404 = vmatprep.mubr.f32.mxu0 0.0
      %1405 = vmatmul.mubr.f32.gmra.mrb[0].mxu0 %v1329
      %v1406 = vpop.f32.mrb[0].mxu0
      %v1407 = vadd.f32 0.0, %v1406
      %v1408 = vpop.f32.mrb[0].mxu0
      %1409 = vdwg.mxu0
      %1410 = vrot.lane.b32.xlu0 %v335, 120
      %v1411 = vpop.permute.xlu0 %1410
      %1412 = vrot.lane.b32.xlu0 %v340, 120
      %v1413 = vpop.permute.xlu0 %1412
      %1414 = vrot.lane.b32.xlu0 %v335, 88
      %v1415 = vpop.permute.xlu0 %1414
      %1416 = vrot.lane.b32.xlu0 %v340, 88
      %v1417 = vpop.permute.xlu0 %1416
      %v1418 = vsel %vm349, %v1411, 0
      %v1420 = vsel %vm349, %v1413, 0
      %v1422 = vsel %vm349, %v1415, 0
      %v1424 = vsel %vm349, %v1417, 0
      %1426 = vmatprep.subr.mxu0 0.0
      %1427 = vmatpush1.xpose.msra.mxu0 %v1422
      %1428 = vmatprep.subr.mxu0 0.0
      %1429 = vmatpush1.xpose.msra.mxu0 %v1424
      %1430 = vmatprep.subr.mxu0 0.0
      %1431 = vmatpush1.xpose.msra.mxu0 0.0
      %1432 = vmatprep.subr.mxu0 0.0
      %1433 = vmatpush1.xpose.msra.mxu0 0.0
      %1434 = vmatprep.subr.mxu0 0.0
      %1435 = vmatpush1.xpose.msra.mxu0 0.0
      %1436 = vmatprep.subr.mxu0 0.0
      %1437 = vmatpush1.xpose.msra.mxu0 0.0
      %1438 = vmatprep.subr.mxu0 0.0
      %1439 = vmatpush1.xpose.msra.mxu0 0.0
      %1440 = vmatprep.subr.mxu0 0.0
      %1441 = vmatpush1.xpose.msra.mxu0 0.0
      %1442 = vmatprep.subr.mxu0 0.0
      %1443 = vmatpush1.xpose.msra.mxu0 0.0
      %1444 = vmatprep.subr.mxu0 0.0
      %1445 = vmatpush1.xpose.msra.mxu0 0.0
      %1446 = vmatprep.subr.mxu0 0.0
      %1447 = vmatpush1.xpose.msra.mxu0 0.0
      %1448 = vmatprep.subr.mxu0 0.0
      %1449 = vmatpush1.xpose.msra.mxu0 0.0
      %1450 = vmatprep.subr.mxu0 0.0
      %1451 = vmatpush1.xpose.msra.mxu0 0.0
      %1452 = vmatprep.subr.mxu0 0.0
      %1453 = vmatpush1.xpose.msra.mxu0 0.0
      %1454 = vmatprep.subr.mxu0 0.0
      %1455 = vmatpush1.xpose.msra.mxu0 0.0
      %1456 = vmatprep.subr.mxu0 0.0
      %1457 = vmatpush1.xpose.msra.mxu0 0.0
      %1458 = vmatprep.subr.mxu0 0.0
      %1459 = vmatpush1.xpose.msra.mxu0 0.0
      %1460 = vmatprep.subr.mxu0 0.0
      %1461 = vmatpush1.xpose.msra.mxu0 0.0
      %1462 = vmatprep.subr.mxu0 0.0
      %1463 = vmatpush1.xpose.msra.mxu0 0.0
      %1464 = vmatprep.subr.mxu0 0.0
      %1465 = vmatpush1.xpose.msra.mxu0 0.0
      %1466 = vmatprep.subr.mxu0 0.0
      %1467 = vmatpush1.xpose.msra.mxu0 0.0
      %1468 = vmatprep.subr.mxu0 0.0
      %1469 = vmatpush1.xpose.msra.mxu0 0.0
      %1470 = vmatprep.subr.mxu0 0.0
      %1471 = vmatpush1.xpose.msra.mxu0 0.0
      %1472 = vmatprep.subr.mxu0 0.0
      %1473 = vmatpush1.xpose.msra.mxu0 0.0
      %1474 = vmatprep.subr.mxu0 0.0
      %1475 = vmatpush1.xpose.msra.mxu0 0.0
      %1476 = vmatprep.subr.mxu0 0.0
      %1477 = vmatpush1.xpose.msra.mxu0 0.0
      %1478 = vmatprep.subr.mxu0 0.0
      %1479 = vmatpush1.xpose.msra.mxu0 0.0
      %1480 = vmatprep.subr.mxu0 0.0
      %1481 = vmatpush1.xpose.msra.mxu0 0.0
      %1482 = vmatprep.subr.mxu0 0.0
      %1483 = vmatpush1.xpose.msra.mxu0 0.0
      %1484 = vmatprep.subr.mxu0 0.0
      %1485 = vmatpush1.xpose.msra.mxu0 0.0
      %1486 = vmatprep.subr.mxu0 0.0
      %1487 = vmatpush1.xpose.msra.mxu0 0.0
      %1488 = vmatprep.subr.mxu0 0.0
      %1489 = vmatpush1.xpose.msra.mxu0 0.0
      %1490 = vmatprep.mubr.f32.mxu0 0.0
      %1491 = vmatmul.mubr.f32.gmra.mrb[0].mxu0 %v1418
      %v1492 = vpop.f32.mrb[0].mxu0
      %v1493 = vadd.f32 0.0, %v1492
      %v1494 = vpop.f32.mrb[0].mxu0
      %1495 = vmatprep.mubr.f32.mxu0 0.0
      %1496 = vmatmul.mubr.f32.gmra.mrb[0].mxu0 %v1420
      %v1497 = vpop.f32.mrb[0].mxu0
      %v1498 = vadd.f32 0.0, %v1497
      %v1499 = vpop.f32.mrb[0].mxu0
      %1500 = vdwg.mxu0
      %v1501 = vsel %vm700, %v1220, -inf
      %1502 = vmax.xlane.f32.xlu0 %v1501
      %v1503 = vpop.xlane.xlu0 %1502
      %v1504 = vsel %vm700, %v1225, -inf
      %1505 = vmax.xlane.f32.xlu0 %v1504
      %v1506 = vpop.xlane.xlu0 %1505
      %v1507 = vsel %vm700, %v1311, -inf
      %1508 = vmax.xlane.f32.xlu0 %v1507
      %v1509 = vpop.xlane.xlu0 %1508
      %v1510 = vsel %vm700, %v1316, -inf
      %1511 = vmax.xlane.f32.xlu0 %v1510
      %v1512 = vpop.xlane.xlu0 %1511
      %v1513 = vsel %vm700, %v1402, -inf
      %1514 = vmax.xlane.f32.xlu0 %v1513
      %v1515 = vpop.xlane.xlu0 %1514
      %v1516 = vsel %vm700, %v1407, -inf
      %1517 = vmax.xlane.f32.xlu0 %v1516
      %v1518 = vpop.xlane.xlu0 %1517
      %v1519 = vsel %vm700, %v1493, -inf
      %1520 = vmax.xlane.f32.xlu0 %v1519
      %v1521 = vpop.xlane.xlu0 %1520
      %v1522 = vsel %vm700, %v1498, -inf
      %1523 = vmax.xlane.f32.xlu0 %v1522
      %v1524 = vpop.xlane.xlu0 %1523
      %v1525 = vsub.f32 %v1220, %v1503
      %v1526 = vsub.f32 %v1225, %v1506
      %v1527 = vsub.f32 %v1311, %v1509
      %v1528 = vsub.f32 %v1316, %v1512
      %v1529 = vsub.f32 %v1402, %v1515
      %v1530 = vsub.f32 %v1407, %v1518
      %v1531 = vsub.f32 %v1493, %v1521
      %v1532 = vsub.f32 %v1498, %v1524
      %v1533 = vmul.f32 %v1525, 1.442695
      %v1534 = vpow.pop %v1533
      %v1535 = vmul.f32 %v1526, 1.442695
      %v1536 = vpow.pop %v1535
      %v1537 = vmul.f32 %v1527, 1.442695
      %v1538 = vpow.pop %v1537
      %v1539 = vmul.f32 %v1528, 1.442695
      %v1540 = vpow.pop %v1539
      %v1541 = vmul.f32 %v1529, 1.442695
      %v1542 = vpow.pop %v1541
      %v1543 = vmul.f32 %v1530, 1.442695
      %v1544 = vpow.pop %v1543
      %v1545 = vmul.f32 %v1531, 1.442695
      %v1546 = vpow.pop %v1545
      %v1547 = vmul.f32 %v1532, 1.442695
      %v1548 = vpow.pop %v1547
      %v1549 = vsel %vm700, %v1534, 0.0
      %1550 = vadd.xlane.f32.xlu0 %v1549
      %v1551 = vpop.xlane.xlu0 %1550
      %v1552 = vsel %vm700, %v1536, 0.0
      %1553 = vadd.xlane.f32.xlu0 %v1552
      %v1554 = vpop.xlane.xlu0 %1553
      %v1555 = vsel %vm700, %v1538, 0.0
      %1556 = vadd.xlane.f32.xlu0 %v1555
      %v1557 = vpop.xlane.xlu0 %1556
      %v1558 = vsel %vm700, %v1540, 0.0
      %1559 = vadd.xlane.f32.xlu0 %v1558
      %v1560 = vpop.xlane.xlu0 %1559
      %v1561 = vsel %vm700, %v1542, 0.0
      %1562 = vadd.xlane.f32.xlu0 %v1561
      %v1563 = vpop.xlane.xlu0 %1562
      %v1564 = vsel %vm700, %v1544, 0.0
      %1565 = vadd.xlane.f32.xlu0 %v1564
      %v1566 = vpop.xlane.xlu0 %1565
      %v1567 = vsel %vm700, %v1546, 0.0
      %1568 = vadd.xlane.f32.xlu0 %v1567
      %v1569 = vpop.xlane.xlu0 %1568
      %v1570 = vsel %vm700, %v1548, 0.0
      %1571 = vadd.xlane.f32.xlu0 %v1570
      %v1572 = vpop.xlane.xlu0 %1571
      %v1573 = vrcp.pop %v1551
      %v1574 = vrcp.pop %v1554
      %v1575 = vrcp.pop %v1557
      %v1576 = vrcp.pop %v1560
      %v1577 = vrcp.pop %v1563
      %v1578 = vrcp.pop %v1566
      %v1579 = vrcp.pop %v1569
      %v1580 = vrcp.pop %v1572
      %v1581 = vmul.f32 %v1534, %v1573
      %v1582 = vmul.f32 %v1536, %v1574
      %v1583 = vmul.f32 %v1538, %v1575
      %v1584 = vmul.f32 %v1540, %v1576
      %v1585 = vmul.f32 %v1542, %v1577
      %v1586 = vmul.f32 %v1544, %v1578
      %v1587 = vmul.f32 %v1546, %v1579
      %v1588 = vmul.f32 %v1548, %v1580
      %1589 = vrot.lane.b32.xlu0 %v305, 56
      %v1590 = vpop.permute.xlu0 %1589
      %1591 = vrot.lane.b32.xlu0 %v310, 56
      %v1592 = vpop.permute.xlu0 %1591
      %v1596 = vsel %vm700, %v1581, 0
      %v1599 = vsel %vm700, %v1582, 0
      %1601 = vmatprep.subr.mxu0 0.0
      %1602 = vmatpush1.msra.mxu0 %v1590
      %1603 = vmatprep.subr.mxu0 0.0
      %1604 = vmatpush1.msra.mxu0 %v1592
      %1605 = vmatprep.subr.mxu0 0.0
      %1606 = vmatpush1.msra.mxu0 0.0
      %1607 = vmatprep.subr.mxu0 0.0
      %1608 = vmatpush1.msra.mxu0 0.0
      %1609 = vmatprep.subr.mxu0 0.0
      %1610 = vmatpush1.msra.mxu0 0.0
      %1611 = vmatprep.subr.mxu0 0.0
      %1612 = vmatpush1.msra.mxu0 0.0
      %1613 = vmatprep.subr.mxu0 0.0
      %1614 = vmatpush1.msra.mxu0 0.0
      %1615 = vmatprep.subr.mxu0 0.0
      %1616 = vmatpush1.msra.mxu0 0.0
      %1617 = vmatprep.subr.mxu0 0.0
      %1618 = vmatpush1.msra.mxu0 0.0
      %1619 = vmatprep.subr.mxu0 0.0
      %1620 = vmatpush1.msra.mxu0 0.0
      %1621 = vmatprep.subr.mxu0 0.0
      %1622 = vmatpush1.msra.mxu0 0.0
      %1623 = vmatprep.subr.mxu0 0.0
      %1624 = vmatpush1.msra.mxu0 0.0
      %1625 = vmatprep.subr.mxu0 0.0
      %1626 = vmatpush1.msra.mxu0 0.0
      %1627 = vmatprep.subr.mxu0 0.0
      %1628 = vmatpush1.msra.mxu0 0.0
      %1629 = vmatprep.subr.mxu0 0.0
      %1630 = vmatpush1.msra.mxu0 0.0
      %1631 = vmatprep.subr.mxu0 0.0
      %1632 = vmatpush1.msra.mxu0 0.0
      %1633 = vmatprep.subr.mxu0 0.0
      %1634 = vmatpush1.msra.mxu0 0.0
      %1635 = vmatprep.subr.mxu0 0.0
      %1636 = vmatpush1.msra.mxu0 0.0
      %1637 = vmatprep.subr.mxu0 0.0
      %1638 = vmatpush1.msra.mxu0 0.0
      %1639 = vmatprep.subr.mxu0 0.0
      %1640 = vmatpush1.msra.mxu0 0.0
      %1641 = vmatprep.subr.mxu0 0.0
      %1642 = vmatpush1.msra.mxu0 0.0
      %1643 = vmatprep.subr.mxu0 0.0
      %1644 = vmatpush1.msra.mxu0 0.0
      %1645 = vmatprep.subr.mxu0 0.0
      %1646 = vmatpush1.msra.mxu0 0.0
      %1647 = vmatprep.subr.mxu0 0.0
      %1648 = vmatpush1.msra.mxu0 0.0
      %1649 = vmatprep.subr.mxu0 0.0
      %1650 = vmatpush1.msra.mxu0 0.0
      %1651 = vmatprep.subr.mxu0 0.0
      %1652 = vmatpush1.msra.mxu0 0.0
      %1653 = vmatprep.subr.mxu0 0.0
      %1654 = vmatpush1.msra.mxu0 0.0
      %1655 = vmatprep.subr.mxu0 0.0
      %1656 = vmatpush1.msra.mxu0 0.0
      %1657 = vmatprep.subr.mxu0 0.0
      %1658 = vmatpush1.msra.mxu0 0.0
      %1659 = vmatprep.subr.mxu0 0.0
      %1660 = vmatpush1.msra.mxu0 0.0
      %1661 = vmatprep.subr.mxu0 0.0
      %1662 = vmatpush1.msra.mxu0 0.0
      %1663 = vmatprep.subr.mxu0 0.0
      %1664 = vmatpush1.msra.mxu0 0.0
      %1665 = vmatprep.mubr.f32.mxu0 0.0
      %1666 = vmatmul.mubr.f32.gmra.mrb[0].mxu0 %v1596
      %v1667 = vpop.f32.mrb[0].mxu0
      %v1668 = vadd.f32 0.0, %v1667
      %v1669 = vpop.f32.mrb[0].mxu0
      %1670 = vmatprep.mubr.f32.mxu0 0.0
      %1671 = vmatmul.mubr.f32.gmra.mrb[0].mxu0 %v1599
      %v1672 = vpop.f32.mrb[0].mxu0
      %v1673 = vadd.f32 0.0, %v1672
      %v1674 = vpop.f32.mrb[0].mxu0
      %1675 = vdwg.mxu0
      %1676 = vrot.lane.b32.xlu0 %v315, 56
      %v1677 = vpop.permute.xlu0 %1676
      %1678 = vrot.lane.b32.xlu0 %v320, 56
      %v1679 = vpop.permute.xlu0 %1678
      %v1683 = vsel %vm700, %v1583, 0
      %v1686 = vsel %vm700, %v1584, 0
      %1688 = vmatprep.subr.mxu0 0.0
      %1689 = vmatpush1.msra.mxu0 %v1677
      %1690 = vmatprep.subr.mxu0 0.0
      %1691 = vmatpush1.msra.mxu0 %v1679
      %1692 = vmatprep.subr.mxu0 0.0
      %1693 = vmatpush1.msra.mxu0 0.0
      %1694 = vmatprep.subr.mxu0 0.0
      %1695 = vmatpush1.msra.mxu0 0.0
      %1696 = vmatprep.subr.mxu0 0.0
      %1697 = vmatpush1.msra.mxu0 0.0
      %1698 = vmatprep.subr.mxu0 0.0
      %1699 = vmatpush1.msra.mxu0 0.0
      %1700 = vmatprep.subr.mxu0 0.0
      %1701 = vmatpush1.msra.mxu0 0.0
      %1702 = vmatprep.subr.mxu0 0.0
      %1703 = vmatpush1.msra.mxu0 0.0
      %1704 = vmatprep.subr.mxu0 0.0
      %1705 = vmatpush1.msra.mxu0 0.0
      %1706 = vmatprep.subr.mxu0 0.0
      %1707 = vmatpush1.msra.mxu0 0.0
      %1708 = vmatprep.subr.mxu0 0.0
      %1709 = vmatpush1.msra.mxu0 0.0
      %1710 = vmatprep.subr.mxu0 0.0
      %1711 = vmatpush1.msra.mxu0 0.0
      %1712 = vmatprep.subr.mxu0 0.0
      %1713 = vmatpush1.msra.mxu0 0.0
      %1714 = vmatprep.subr.mxu0 0.0
      %1715 = vmatpush1.msra.mxu0 0.0
      %1716 = vmatprep.subr.mxu0 0.0
      %1717 = vmatpush1.msra.mxu0 0.0
      %1718 = vmatprep.subr.mxu0 0.0
      %1719 = vmatpush1.msra.mxu0 0.0
      %1720 = vmatprep.subr.mxu0 0.0
      %1721 = vmatpush1.msra.mxu0 0.0
      %1722 = vmatprep.subr.mxu0 0.0
      %1723 = vmatpush1.msra.mxu0 0.0
      %1724 = vmatprep.subr.mxu0 0.0
      %1725 = vmatpush1.msra.mxu0 0.0
      %1726 = vmatprep.subr.mxu0 0.0
      %1727 = vmatpush1.msra.mxu0 0.0
      %1728 = vmatprep.subr.mxu0 0.0
      %1729 = vmatpush1.msra.mxu0 0.0
      %1730 = vmatprep.subr.mxu0 0.0
      %1731 = vmatpush1.msra.mxu0 0.0
      %1732 = vmatprep.subr.mxu0 0.0
      %1733 = vmatpush1.msra.mxu0 0.0
      %1734 = vmatprep.subr.mxu0 0.0
      %1735 = vmatpush1.msra.mxu0 0.0
      %1736 = vmatprep.subr.mxu0 0.0
      %1737 = vmatpush1.msra.mxu0 0.0
      %1738 = vmatprep.subr.mxu0 0.0
      %1739 = vmatpush1.msra.mxu0 0.0
      %1740 = vmatprep.subr.mxu0 0.0
      %1741 = vmatpush1.msra.mxu0 0.0
      %1742 = vmatprep.subr.mxu0 0.0
      %1743 = vmatpush1.msra.mxu0 0.0
      %1744 = vmatprep.subr.mxu0 0.0
      %1745 = vmatpush1.msra.mxu0 0.0
      %1746 = vmatprep.subr.mxu0 0.0
      %1747 = vmatpush1.msra.mxu0 0.0
      %1748 = vmatprep.subr.mxu0 0.0
      %1749 = vmatpush1.msra.mxu0 0.0
      %1750 = vmatprep.subr.mxu0 0.0
      %1751 = vmatpush1.msra.mxu0 0.0
      %1752 = vmatprep.mubr.f32.mxu0 0.0
      %1753 = vmatmul.mubr.f32.gmra.mrb[0].mxu0 %v1683
      %v1754 = vpop.f32.mrb[0].mxu0
      %v1755 = vadd.f32 0.0, %v1754
      %v1756 = vpop.f32.mrb[0].mxu0
      %1757 = vmatprep.mubr.f32.mxu0 0.0
      %1758 = vmatmul.mubr.f32.gmra.mrb[0].mxu0 %v1686
      %v1759 = vpop.f32.mrb[0].mxu0
      %v1760 = vadd.f32 0.0, %v1759
      %v1761 = vpop.f32.mrb[0].mxu0
      %1762 = vdwg.mxu0
      %1763 = vrot.lane.b32.xlu0 %v325, 56
      %v1764 = vpop.permute.xlu0 %1763
      %1765 = vrot.lane.b32.xlu0 %v330, 56
      %v1766 = vpop.permute.xlu0 %1765
      %v1770 = vsel %vm700, %v1585, 0
      %v1773 = vsel %vm700, %v1586, 0
      %1775 = vmatprep.subr.mxu0 0.0
      %1776 = vmatpush1.msra.mxu0 %v1764
      %1777 = vmatprep.subr.mxu0 0.0
      %1778 = vmatpush1.msra.mxu0 %v1766
      %1779 = vmatprep.subr.mxu0 0.0
      %1780 = vmatpush1.msra.mxu0 0.0
      %1781 = vmatprep.subr.mxu0 0.0
      %1782 = vmatpush1.msra.mxu0 0.0
      %1783 = vmatprep.subr.mxu0 0.0
      %1784 = vmatpush1.msra.mxu0 0.0
      %1785 = vmatprep.subr.mxu0 0.0
      %1786 = vmatpush1.msra.mxu0 0.0
      %1787 = vmatprep.subr.mxu0 0.0
      %1788 = vmatpush1.msra.mxu0 0.0
      %1789 = vmatprep.subr.mxu0 0.0
      %1790 = vmatpush1.msra.mxu0 0.0
      %1791 = vmatprep.subr.mxu0 0.0
      %1792 = vmatpush1.msra.mxu0 0.0
      %1793 = vmatprep.subr.mxu0 0.0
      %1794 = vmatpush1.msra.mxu0 0.0
      %1795 = vmatprep.subr.mxu0 0.0
      %1796 = vmatpush1.msra.mxu0 0.0
      %1797 = vmatprep.subr.mxu0 0.0
      %1798 = vmatpush1.msra.mxu0 0.0
      %1799 = vmatprep.subr.mxu0 0.0
      %1800 = vmatpush1.msra.mxu0 0.0
      %1801 = vmatprep.subr.mxu0 0.0
      %1802 = vmatpush1.msra.mxu0 0.0
      %1803 = vmatprep.subr.mxu0 0.0
      %1804 = vmatpush1.msra.mxu0 0.0
      %1805 = vmatprep.subr.mxu0 0.0
      %1806 = vmatpush1.msra.mxu0 0.0
      %1807 = vmatprep.subr.mxu0 0.0
      %1808 = vmatpush1.msra.mxu0 0.0
      %1809 = vmatprep.subr.mxu0 0.0
      %1810 = vmatpush1.msra.mxu0 0.0
      %1811 = vmatprep.subr.mxu0 0.0
      %1812 = vmatpush1.msra.mxu0 0.0
      %1813 = vmatprep.subr.mxu0 0.0
      %1814 = vmatpush1.msra.mxu0 0.0
      %1815 = vmatprep.subr.mxu0 0.0
      %1816 = vmatpush1.msra.mxu0 0.0
      %1817 = vmatprep.subr.mxu0 0.0
      %1818 = vmatpush1.msra.mxu0 0.0
      %1819 = vmatprep.subr.mxu0 0.0
      %1820 = vmatpush1.msra.mxu0 0.0
      %1821 = vmatprep.subr.mxu0 0.0
      %1822 = vmatpush1.msra.mxu0 0.0
      %1823 = vmatprep.subr.mxu0 0.0
      %1824 = vmatpush1.msra.mxu0 0.0
      %1825 = vmatprep.subr.mxu0 0.0
      %1826 = vmatpush1.msra.mxu0 0.0
      %1827 = vmatprep.subr.mxu0 0.0
      %1828 = vmatpush1.msra.mxu0 0.0
      %1829 = vmatprep.subr.mxu0 0.0
      %1830 = vmatpush1.msra.mxu0 0.0
      %1831 = vmatprep.subr.mxu0 0.0
      %1832 = vmatpush1.msra.mxu0 0.0
      %1833 = vmatprep.subr.mxu0 0.0
      %1834 = vmatpush1.msra.mxu0 0.0
      %1835 = vmatprep.subr.mxu0 0.0
      %1836 = vmatpush1.msra.mxu0 0.0
      %1837 = vmatprep.subr.mxu0 0.0
      %1838 = vmatpush1.msra.mxu0 0.0
      %1839 = vmatprep.mubr.f32.mxu0 0.0
      %1840 = vmatmul.mubr.f32.gmra.mrb[0].mxu0 %v1770
      %v1841 = vpop.f32.mrb[0].mxu0
      %v1842 = vadd.f32 0.0, %v1841
      %v1843 = vpop.f32.mrb[0].mxu0
      %1844 = vmatprep.mubr.f32.mxu0 0.0
      %1845 = vmatmul.mubr.f32.gmra.mrb[0].mxu0 %v1773
      %v1846 = vpop.f32.mrb[0].mxu0
      %v1847 = vadd.f32 0.0, %v1846
      %v1848 = vpop.f32.mrb[0].mxu0
      %1849 = vdwg.mxu0
      %1850 = vrot.lane.b32.xlu0 %v335, 56
      %v1851 = vpop.permute.xlu0 %1850
      %1852 = vrot.lane.b32.xlu0 %v340, 56
      %v1853 = vpop.permute.xlu0 %1852
      %v1857 = vsel %vm700, %v1587, 0
      %v1860 = vsel %vm700, %v1588, 0
      %1862 = vmatprep.subr.mxu0 0.0
      %1863 = vmatpush1.msra.mxu0 %v1851
      %1864 = vmatprep.subr.mxu0 0.0
      %1865 = vmatpush1.msra.mxu0 %v1853
      %1866 = vmatprep.subr.mxu0 0.0
      %1867 = vmatpush1.msra.mxu0 0.0
      %1868 = vmatprep.subr.mxu0 0.0
      %1869 = vmatpush1.msra.mxu0 0.0
      %1870 = vmatprep.subr.mxu0 0.0
      %1871 = vmatpush1.msra.mxu0 0.0
      %1872 = vmatprep.subr.mxu0 0.0
      %1873 = vmatpush1.msra.mxu0 0.0
      %1874 = vmatprep.subr.mxu0 0.0
      %1875 = vmatpush1.msra.mxu0 0.0
      %1876 = vmatprep.subr.mxu0 0.0
      %1877 = vmatpush1.msra.mxu0 0.0
      %1878 = vmatprep.subr.mxu0 0.0
      %1879 = vmatpush1.msra.mxu0 0.0
      %1880 = vmatprep.subr.mxu0 0.0
      %1881 = vmatpush1.msra.mxu0 0.0
      %1882 = vmatprep.subr.mxu0 0.0
      %1883 = vmatpush1.msra.mxu0 0.0
      %1884 = vmatprep.subr.mxu0 0.0
      %1885 = vmatpush1.msra.mxu0 0.0
      %1886 = vmatprep.subr.mxu0 0.0
      %1887 = vmatpush1.msra.mxu0 0.0
      %1888 = vmatprep.subr.mxu0 0.0
      %1889 = vmatpush1.msra.mxu0 0.0
      %1890 = vmatprep.subr.mxu0 0.0
      %1891 = vmatpush1.msra.mxu0 0.0
      %1892 = vmatprep.subr.mxu0 0.0
      %1893 = vmatpush1.msra.mxu0 0.0
      %1894 = vmatprep.subr.mxu0 0.0
      %1895 = vmatpush1.msra.mxu0 0.0
      %1896 = vmatprep.subr.mxu0 0.0
      %1897 = vmatpush1.msra.mxu0 0.0
      %1898 = vmatprep.subr.mxu0 0.0
      %1899 = vmatpush1.msra.mxu0 0.0
      %1900 = vmatprep.subr.mxu0 0.0
      %1901 = vmatpush1.msra.mxu0 0.0
      %1902 = vmatprep.subr.mxu0 0.0
      %1903 = vmatpush1.msra.mxu0 0.0
      %1904 = vmatprep.subr.mxu0 0.0
      %1905 = vmatpush1.msra.mxu0 0.0
      %1906 = vmatprep.subr.mxu0 0.0
      %1907 = vmatpush1.msra.mxu0 0.0
      %1908 = vmatprep.subr.mxu0 0.0
      %1909 = vmatpush1.msra.mxu0 0.0
      %1910 = vmatprep.subr.mxu0 0.0
      %1911 = vmatpush1.msra.mxu0 0.0
      %1912 = vmatprep.subr.mxu0 0.0
      %1913 = vmatpush1.msra.mxu0 0.0
      %1914 = vmatprep.subr.mxu0 0.0
      %1915 = vmatpush1.msra.mxu0 0.0
      %1916 = vmatprep.subr.mxu0 0.0
      %1917 = vmatpush1.msra.mxu0 0.0
      %1918 = vmatprep.subr.mxu0 0.0
      %1919 = vmatpush1.msra.mxu0 0.0
      %1920 = vmatprep.subr.mxu0 0.0
      %1921 = vmatpush1.msra.mxu0 0.0
      %1922 = vmatprep.subr.mxu0 0.0
      %1923 = vmatpush1.msra.mxu0 0.0
      %1924 = vmatprep.subr.mxu0 0.0
      %1925 = vmatpush1.msra.mxu0 0.0
      %1926 = vmatprep.mubr.f32.mxu0 0.0
      %1927 = vmatmul.mubr.f32.gmra.mrb[0].mxu0 %v1857
      %v1928 = vpop.f32.mrb[0].mxu0
      %v1929 = vadd.f32 0.0, %v1928
      %v1930 = vpop.f32.mrb[0].mxu0
      %1931 = vmatprep.mubr.f32.mxu0 0.0
      %1932 = vmatmul.mubr.f32.gmra.mrb[0].mxu0 %v1860
      %v1933 = vpop.f32.mrb[0].mxu0
      %v1934 = vadd.f32 0.0, %v1933
      %v1935 = vpop.f32.mrb[0].mxu0
      %1936 = vdwg.mxu0
      %1937 = vrot.lane.b32.xlu0 %v305, 112
      %v1938 = vpop.permute.xlu0 %1937
      %1939 = vrot.lane.b32.xlu0 %v310, 112
      %v1940 = vpop.permute.xlu0 %1939
      %1941 = vrot.lane.b32.xlu0 %v305, 80
      %v1942 = vpop.permute.xlu0 %1941
      %1943 = vrot.lane.b32.xlu0 %v310, 80
      %v1944 = vpop.permute.xlu0 %1943
      %v1945 = vsel %vm349, %v1938, 0
      %v1947 = vsel %vm349, %v1940, 0
      %v1949 = vsel %vm349, %v1942, 0
      %v1951 = vsel %vm349, %v1944, 0
      %1953 = vmatprep.subr.mxu0 0.0
      %1954 = vmatpush1.xpose.msra.mxu0 %v1949
      %1955 = vmatprep.subr.mxu0 0.0
      %1956 = vmatpush1.xpose.msra.mxu0 %v1951
      %1957 = vmatprep.subr.mxu0 0.0
      %1958 = vmatpush1.xpose.msra.mxu0 0.0
      %1959 = vmatprep.subr.mxu0 0.0
      %1960 = vmatpush1.xpose.msra.mxu0 0.0
      %1961 = vmatprep.subr.mxu0 0.0
      %1962 = vmatpush1.xpose.msra.mxu0 0.0
      %1963 = vmatprep.subr.mxu0 0.0
      %1964 = vmatpush1.xpose.msra.mxu0 0.0
      %1965 = vmatprep.subr.mxu0 0.0
      %1966 = vmatpush1.xpose.msra.mxu0 0.0
      %1967 = vmatprep.subr.mxu0 0.0
      %1968 = vmatpush1.xpose.msra.mxu0 0.0
      %1969 = vmatprep.subr.mxu0 0.0
      %1970 = vmatpush1.xpose.msra.mxu0 0.0
      %1971 = vmatprep.subr.mxu0 0.0
      %1972 = vmatpush1.xpose.msra.mxu0 0.0
      %1973 = vmatprep.subr.mxu0 0.0
      %1974 = vmatpush1.xpose.msra.mxu0 0.0
      %1975 = vmatprep.subr.mxu0 0.0
      %1976 = vmatpush1.xpose.msra.mxu0 0.0
      %1977 = vmatprep.subr.mxu0 0.0
      %1978 = vmatpush1.xpose.msra.mxu0 0.0
      %1979 = vmatprep.subr.mxu0 0.0
      %1980 = vmatpush1.xpose.msra.mxu0 0.0
      %1981 = vmatprep.subr.mxu0 0.0
      %1982 = vmatpush1.xpose.msra.mxu0 0.0
      %1983 = vmatprep.subr.mxu0 0.0
      %1984 = vmatpush1.xpose.msra.mxu0 0.0
      %1985 = vmatprep.subr.mxu0 0.0
      %1986 = vmatpush1.xpose.msra.mxu0 0.0
      %1987 = vmatprep.subr.mxu0 0.0
      %1988 = vmatpush1.xpose.msra.mxu0 0.0
      %1989 = vmatprep.subr.mxu0 0.0
      %1990 = vmatpush1.xpose.msra.mxu0 0.0
      %1991 = vmatprep.subr.mxu0 0.0
      %1992 = vmatpush1.xpose.msra.mxu0 0.0
      %1993 = vmatprep.subr.mxu0 0.0
      %1994 = vmatpush1.xpose.msra.mxu0 0.0
      %1995 = vmatprep.subr.mxu0 0.0
      %1996 = vmatpush1.xpose.msra.mxu0 0.0
      %1997 = vmatprep.subr.mxu0 0.0
      %1998 = vmatpush1.xpose.msra.mxu0 0.0
      %1999 = vmatprep.subr.mxu0 0.0
      %2000 = vmatpush1.xpose.msra.mxu0 0.0
      %2001 = vmatprep.subr.mxu0 0.0
      %2002 = vmatpush1.xpose.msra.mxu0 0.0
      %2003 = vmatprep.subr.mxu0 0.0
      %2004 = vmatpush1.xpose.msra.mxu0 0.0
      %2005 = vmatprep.subr.mxu0 0.0
      %2006 = vmatpush1.xpose.msra.mxu0 0.0
      %2007 = vmatprep.subr.mxu0 0.0
      %2008 = vmatpush1.xpose.msra.mxu0 0.0
      %2009 = vmatprep.subr.mxu0 0.0
      %2010 = vmatpush1.xpose.msra.mxu0 0.0
      %2011 = vmatprep.subr.mxu0 0.0
      %2012 = vmatpush1.xpose.msra.mxu0 0.0
      %2013 = vmatprep.subr.mxu0 0.0
      %2014 = vmatpush1.xpose.msra.mxu0 0.0
      %2015 = vmatprep.subr.mxu0 0.0
      %2016 = vmatpush1.xpose.msra.mxu0 0.0
      %2017 = vmatprep.mubr.f32.mxu0 0.0
      %2018 = vmatmul.mubr.f32.gmra.mrb[0].mxu0 %v1945
      %v2019 = vpop.f32.mrb[0].mxu0
      %v2020 = vadd.f32 0.0, %v2019
      %v2021 = vpop.f32.mrb[0].mxu0
      %2022 = vmatprep.mubr.f32.mxu0 0.0
      %2023 = vmatmul.mubr.f32.gmra.mrb[0].mxu0 %v1947
      %v2024 = vpop.f32.mrb[0].mxu0
      %v2025 = vadd.f32 0.0, %v2024
      %v2026 = vpop.f32.mrb[0].mxu0
      %2027 = vdwg.mxu0
      %2028 = vrot.lane.b32.xlu0 %v315, 112
      %v2029 = vpop.permute.xlu0 %2028
      %2030 = vrot.lane.b32.xlu0 %v320, 112
      %v2031 = vpop.permute.xlu0 %2030
      %2032 = vrot.lane.b32.xlu0 %v315, 80
      %v2033 = vpop.permute.xlu0 %2032
      %2034 = vrot.lane.b32.xlu0 %v320, 80
      %v2035 = vpop.permute.xlu0 %2034
      %v2036 = vsel %vm349, %v2029, 0
      %v2038 = vsel %vm349, %v2031, 0
      %v2040 = vsel %vm349, %v2033, 0
      %v2042 = vsel %vm349, %v2035, 0
      %2044 = vmatprep.subr.mxu0 0.0
      %2045 = vmatpush1.xpose.msra.mxu0 %v2040
      %2046 = vmatprep.subr.mxu0 0.0
      %2047 = vmatpush1.xpose.msra.mxu0 %v2042
      %2048 = vmatprep.subr.mxu0 0.0
      %2049 = vmatpush1.xpose.msra.mxu0 0.0
      %2050 = vmatprep.subr.mxu0 0.0
      %2051 = vmatpush1.xpose.msra.mxu0 0.0
      %2052 = vmatprep.subr.mxu0 0.0
      %2053 = vmatpush1.xpose.msra.mxu0 0.0
      %2054 = vmatprep.subr.mxu0 0.0
      %2055 = vmatpush1.xpose.msra.mxu0 0.0
      %2056 = vmatprep.subr.mxu0 0.0
      %2057 = vmatpush1.xpose.msra.mxu0 0.0
      %2058 = vmatprep.subr.mxu0 0.0
      %2059 = vmatpush1.xpose.msra.mxu0 0.0
      %2060 = vmatprep.subr.mxu0 0.0
      %2061 = vmatpush1.xpose.msra.mxu0 0.0
      %2062 = vmatprep.subr.mxu0 0.0
      %2063 = vmatpush1.xpose.msra.mxu0 0.0
      %2064 = vmatprep.subr.mxu0 0.0
      %2065 = vmatpush1.xpose.msra.mxu0 0.0
      %2066 = vmatprep.subr.mxu0 0.0
      %2067 = vmatpush1.xpose.msra.mxu0 0.0
      %2068 = vmatprep.subr.mxu0 0.0
      %2069 = vmatpush1.xpose.msra.mxu0 0.0
      %2070 = vmatprep.subr.mxu0 0.0
      %2071 = vmatpush1.xpose.msra.mxu0 0.0
      %2072 = vmatprep.subr.mxu0 0.0
      %2073 = vmatpush1.xpose.msra.mxu0 0.0
      %2074 = vmatprep.subr.mxu0 0.0
      %2075 = vmatpush1.xpose.msra.mxu0 0.0
      %2076 = vmatprep.subr.mxu0 0.0
      %2077 = vmatpush1.xpose.msra.mxu0 0.0
      %2078 = vmatprep.subr.mxu0 0.0
      %2079 = vmatpush1.xpose.msra.mxu0 0.0
      %2080 = vmatprep.subr.mxu0 0.0
      %2081 = vmatpush1.xpose.msra.mxu0 0.0
      %2082 = vmatprep.subr.mxu0 0.0
      %2083 = vmatpush1.xpose.msra.mxu0 0.0
      %2084 = vmatprep.subr.mxu0 0.0
      %2085 = vmatpush1.xpose.msra.mxu0 0.0
      %2086 = vmatprep.subr.mxu0 0.0
      %2087 = vmatpush1.xpose.msra.mxu0 0.0
      %2088 = vmatprep.subr.mxu0 0.0
      %2089 = vmatpush1.xpose.msra.mxu0 0.0
      %2090 = vmatprep.subr.mxu0 0.0
      %2091 = vmatpush1.xpose.msra.mxu0 0.0
      %2092 = vmatprep.subr.mxu0 0.0
      %2093 = vmatpush1.xpose.msra.mxu0 0.0
      %2094 = vmatprep.subr.mxu0 0.0
      %2095 = vmatpush1.xpose.msra.mxu0 0.0
      %2096 = vmatprep.subr.mxu0 0.0
      %2097 = vmatpush1.xpose.msra.mxu0 0.0
      %2098 = vmatprep.subr.mxu0 0.0
      %2099 = vmatpush1.xpose.msra.mxu0 0.0
      %2100 = vmatprep.subr.mxu0 0.0
      %2101 = vmatpush1.xpose.msra.mxu0 0.0
      %2102 = vmatprep.subr.mxu0 0.0
      %2103 = vmatpush1.xpose.msra.mxu0 0.0
      %2104 = vmatprep.subr.mxu0 0.0
      %2105 = vmatpush1.xpose.msra.mxu0 0.0
      %2106 = vmatprep.subr.mxu0 0.0
      %2107 = vmatpush1.xpose.msra.mxu0 0.0
      %2108 = vmatprep.mubr.f32.mxu0 0.0
      %2109 = vmatmul.mubr.f32.gmra.mrb[0].mxu0 %v2036
      %v2110 = vpop.f32.mrb[0].mxu0
      %v2111 = vadd.f32 0.0, %v2110
      %v2112 = vpop.f32.mrb[0].mxu0
      %2113 = vmatprep.mubr.f32.mxu0 0.0
      %2114 = vmatmul.mubr.f32.gmra.mrb[0].mxu0 %v2038
      %v2115 = vpop.f32.mrb[0].mxu0
      %v2116 = vadd.f32 0.0, %v2115
      %v2117 = vpop.f32.mrb[0].mxu0
      %2118 = vdwg.mxu0
      %2119 = vrot.lane.b32.xlu0 %v325, 112
      %v2120 = vpop.permute.xlu0 %2119
      %2121 = vrot.lane.b32.xlu0 %v330, 112
      %v2122 = vpop.permute.xlu0 %2121
      %2123 = vrot.lane.b32.xlu0 %v325, 80
      %v2124 = vpop.permute.xlu0 %2123
      %2125 = vrot.lane.b32.xlu0 %v330, 80
      %v2126 = vpop.permute.xlu0 %2125
      %v2127 = vsel %vm349, %v2120, 0
      %v2129 = vsel %vm349, %v2122, 0
      %v2131 = vsel %vm349, %v2124, 0
      %v2133 = vsel %vm349, %v2126, 0
      %2135 = vmatprep.subr.mxu0 0.0
      %2136 = vmatpush1.xpose.msra.mxu0 %v2131
      %2137 = vmatprep.subr.mxu0 0.0
      %2138 = vmatpush1.xpose.msra.mxu0 %v2133
      %2139 = vmatprep.subr.mxu0 0.0
      %2140 = vmatpush1.xpose.msra.mxu0 0.0
      %2141 = vmatprep.subr.mxu0 0.0
      %2142 = vmatpush1.xpose.msra.mxu0 0.0
      %2143 = vmatprep.subr.mxu0 0.0
      %2144 = vmatpush1.xpose.msra.mxu0 0.0
      %2145 = vmatprep.subr.mxu0 0.0
      %2146 = vmatpush1.xpose.msra.mxu0 0.0
      %2147 = vmatprep.subr.mxu0 0.0
      %2148 = vmatpush1.xpose.msra.mxu0 0.0
      %2149 = vmatprep.subr.mxu0 0.0
      %2150 = vmatpush1.xpose.msra.mxu0 0.0
      %2151 = vmatprep.subr.mxu0 0.0
      %2152 = vmatpush1.xpose.msra.mxu0 0.0
      %2153 = vmatprep.subr.mxu0 0.0
      %2154 = vmatpush1.xpose.msra.mxu0 0.0
      %2155 = vmatprep.subr.mxu0 0.0
      %2156 = vmatpush1.xpose.msra.mxu0 0.0
      %2157 = vmatprep.subr.mxu0 0.0
      %2158 = vmatpush1.xpose.msra.mxu0 0.0
      %2159 = vmatprep.subr.mxu0 0.0
      %2160 = vmatpush1.xpose.msra.mxu0 0.0
      %2161 = vmatprep.subr.mxu0 0.0
      %2162 = vmatpush1.xpose.msra.mxu0 0.0
      %2163 = vmatprep.subr.mxu0 0.0
      %2164 = vmatpush1.xpose.msra.mxu0 0.0
      %2165 = vmatprep.subr.mxu0 0.0
      %2166 = vmatpush1.xpose.msra.mxu0 0.0
      %2167 = vmatprep.subr.mxu0 0.0
      %2168 = vmatpush1.xpose.msra.mxu0 0.0
      %2169 = vmatprep.subr.mxu0 0.0
      %2170 = vmatpush1.xpose.msra.mxu0 0.0
      %2171 = vmatprep.subr.mxu0 0.0
      %2172 = vmatpush1.xpose.msra.mxu0 0.0
      %2173 = vmatprep.subr.mxu0 0.0
      %2174 = vmatpush1.xpose.msra.mxu0 0.0
      %2175 = vmatprep.subr.mxu0 0.0
      %2176 = vmatpush1.xpose.msra.mxu0 0.0
      %2177 = vmatprep.subr.mxu0 0.0
      %2178 = vmatpush1.xpose.msra.mxu0 0.0
      %2179 = vmatprep.subr.mxu0 0.0
      %2180 = vmatpush1.xpose.msra.mxu0 0.0
      %2181 = vmatprep.subr.mxu0 0.0
      %2182 = vmatpush1.xpose.msra.mxu0 0.0
      %2183 = vmatprep.subr.mxu0 0.0
      %2184 = vmatpush1.xpose.msra.mxu0 0.0
      %2185 = vmatprep.subr.mxu0 0.0
      %2186 = vmatpush1.xpose.msra.mxu0 0.0
      %2187 = vmatprep.subr.mxu0 0.0
      %2188 = vmatpush1.xpose.msra.mxu0 0.0
      %2189 = vmatprep.subr.mxu0 0.0
      %2190 = vmatpush1.xpose.msra.mxu0 0.0
      %2191 = vmatprep.subr.mxu0 0.0
      %2192 = vmatpush1.xpose.msra.mxu0 0.0
      %2193 = vmatprep.subr.mxu0 0.0
      %2194 = vmatpush1.xpose.msra.mxu0 0.0
      %2195 = vmatprep.subr.mxu0 0.0
      %2196 = vmatpush1.xpose.msra.mxu0 0.0
      %2197 = vmatprep.subr.mxu0 0.0
      %2198 = vmatpush1.xpose.msra.mxu0 0.0
      %2199 = vmatprep.mubr.f32.mxu0 0.0
      %2200 = vmatmul.mubr.f32.gmra.mrb[0].mxu0 %v2127
      %v2201 = vpop.f32.mrb[0].mxu0
      %v2202 = vadd.f32 0.0, %v2201
      %v2203 = vpop.f32.mrb[0].mxu0
      %2204 = vmatprep.mubr.f32.mxu0 0.0
      %2205 = vmatmul.mubr.f32.gmra.mrb[0].mxu0 %v2129
      %v2206 = vpop.f32.mrb[0].mxu0
      %v2207 = vadd.f32 0.0, %v2206
      %v2208 = vpop.f32.mrb[0].mxu0
      %2209 = vdwg.mxu0
      %2210 = vrot.lane.b32.xlu0 %v335, 112
      %v2211 = vpop.permute.xlu0 %2210
      %2212 = vrot.lane.b32.xlu0 %v340, 112
      %v2213 = vpop.permute.xlu0 %2212
      %2214 = vrot.lane.b32.xlu0 %v335, 80
      %v2215 = vpop.permute.xlu0 %2214
      %2216 = vrot.lane.b32.xlu0 %v340, 80
      %v2217 = vpop.permute.xlu0 %2216
      %v2218 = vsel %vm349, %v2211, 0
      %v2220 = vsel %vm349, %v2213, 0
      %v2222 = vsel %vm349, %v2215, 0
      %v2224 = vsel %vm349, %v2217, 0
      %2226 = vmatprep.subr.mxu0 0.0
      %2227 = vmatpush1.xpose.msra.mxu0 %v2222
      %2228 = vmatprep.subr.mxu0 0.0
      %2229 = vmatpush1.xpose.msra.mxu0 %v2224
      %2230 = vmatprep.subr.mxu0 0.0
      %2231 = vmatpush1.xpose.msra.mxu0 0.0
      %2232 = vmatprep.subr.mxu0 0.0
      %2233 = vmatpush1.xpose.msra.mxu0 0.0
      %2234 = vmatprep.subr.mxu0 0.0
      %2235 = vmatpush1.xpose.msra.mxu0 0.0
      %2236 = vmatprep.subr.mxu0 0.0
      %2237 = vmatpush1.xpose.msra.mxu0 0.0
      %2238 = vmatprep.subr.mxu0 0.0
      %2239 = vmatpush1.xpose.msra.mxu0 0.0
      %2240 = vmatprep.subr.mxu0 0.0
      %2241 = vmatpush1.xpose.msra.mxu0 0.0
      %2242 = vmatprep.subr.mxu0 0.0
      %2243 = vmatpush1.xpose.msra.mxu0 0.0
      %2244 = vmatprep.subr.mxu0 0.0
      %2245 = vmatpush1.xpose.msra.mxu0 0.0
      %2246 = vmatprep.subr.mxu0 0.0
      %2247 = vmatpush1.xpose.msra.mxu0 0.0
      %2248 = vmatprep.subr.mxu0 0.0
      %2249 = vmatpush1.xpose.msra.mxu0 0.0
      %2250 = vmatprep.subr.mxu0 0.0
      %2251 = vmatpush1.xpose.msra.mxu0 0.0
      %2252 = vmatprep.subr.mxu0 0.0
      %2253 = vmatpush1.xpose.msra.mxu0 0.0
      %2254 = vmatprep.subr.mxu0 0.0
      %2255 = vmatpush1.xpose.msra.mxu0 0.0
      %2256 = vmatprep.subr.mxu0 0.0
      %2257 = vmatpush1.xpose.msra.mxu0 0.0
      %2258 = vmatprep.subr.mxu0 0.0
      %2259 = vmatpush1.xpose.msra.mxu0 0.0
      %2260 = vmatprep.subr.mxu0 0.0
      %2261 = vmatpush1.xpose.msra.mxu0 0.0
      %2262 = vmatprep.subr.mxu0 0.0
      %2263 = vmatpush1.xpose.msra.mxu0 0.0
      %2264 = vmatprep.subr.mxu0 0.0
      %2265 = vmatpush1.xpose.msra.mxu0 0.0
      %2266 = vmatprep.subr.mxu0 0.0
      %2267 = vmatpush1.xpose.msra.mxu0 0.0
      %2268 = vmatprep.subr.mxu0 0.0
      %2269 = vmatpush1.xpose.msra.mxu0 0.0
      %2270 = vmatprep.subr.mxu0 0.0
      %2271 = vmatpush1.xpose.msra.mxu0 0.0
      %2272 = vmatprep.subr.mxu0 0.0
      %2273 = vmatpush1.xpose.msra.mxu0 0.0
      %2274 = vmatprep.subr.mxu0 0.0
      %2275 = vmatpush1.xpose.msra.mxu0 0.0
      %2276 = vmatprep.subr.mxu0 0.0
      %2277 = vmatpush1.xpose.msra.mxu0 0.0
      %2278 = vmatprep.subr.mxu0 0.0
      %2279 = vmatpush1.xpose.msra.mxu0 0.0
      %2280 = vmatprep.subr.mxu0 0.0
      %2281 = vmatpush1.xpose.msra.mxu0 0.0
      %2282 = vmatprep.subr.mxu0 0.0
      %2283 = vmatpush1.xpose.msra.mxu0 0.0
      %2284 = vmatprep.subr.mxu0 0.0
      %2285 = vmatpush1.xpose.msra.mxu0 0.0
      %2286 = vmatprep.subr.mxu0 0.0
      %2287 = vmatpush1.xpose.msra.mxu0 0.0
      %2288 = vmatprep.subr.mxu0 0.0
      %2289 = vmatpush1.xpose.msra.mxu0 0.0
      %2290 = vmatprep.mubr.f32.mxu0 0.0
      %2291 = vmatmul.mubr.f32.gmra.mrb[0].mxu0 %v2218
      %v2292 = vpop.f32.mrb[0].mxu0
      %v2293 = vadd.f32 0.0, %v2292
      %v2294 = vpop.f32.mrb[0].mxu0
      %2295 = vmatprep.mubr.f32.mxu0 0.0
      %2296 = vmatmul.mubr.f32.gmra.mrb[0].mxu0 %v2220
      %v2297 = vpop.f32.mrb[0].mxu0
      %v2298 = vadd.f32 0.0, %v2297
      %v2299 = vpop.f32.mrb[0].mxu0
      %2300 = vdwg.mxu0
      %v2301 = vsel %vm700, %v2020, -inf
      %2302 = vmax.xlane.f32.xlu0 %v2301
      %v2303 = vpop.xlane.xlu0 %2302
      %v2304 = vsel %vm700, %v2025, -inf
      %2305 = vmax.xlane.f32.xlu0 %v2304
      %v2306 = vpop.xlane.xlu0 %2305
      %v2307 = vsel %vm700, %v2111, -inf
      %2308 = vmax.xlane.f32.xlu0 %v2307
      %v2309 = vpop.xlane.xlu0 %2308
      %v2310 = vsel %vm700, %v2116, -inf
      %2311 = vmax.xlane.f32.xlu0 %v2310
      %v2312 = vpop.xlane.xlu0 %2311
      %v2313 = vsel %vm700, %v2202, -inf
      %2314 = vmax.xlane.f32.xlu0 %v2313
      %v2315 = vpop.xlane.xlu0 %2314
      %v2316 = vsel %vm700, %v2207, -inf
      %2317 = vmax.xlane.f32.xlu0 %v2316
      %v2318 = vpop.xlane.xlu0 %2317
      %v2319 = vsel %vm700, %v2293, -inf
      %2320 = vmax.xlane.f32.xlu0 %v2319
      %v2321 = vpop.xlane.xlu0 %2320
      %v2322 = vsel %vm700, %v2298, -inf
      %2323 = vmax.xlane.f32.xlu0 %v2322
      %v2324 = vpop.xlane.xlu0 %2323
      %v2325 = vsub.f32 %v2020, %v2303
      %v2326 = vsub.f32 %v2025, %v2306
      %v2327 = vsub.f32 %v2111, %v2309
      %v2328 = vsub.f32 %v2116, %v2312
      %v2329 = vsub.f32 %v2202, %v2315
      %v2330 = vsub.f32 %v2207, %v2318
      %v2331 = vsub.f32 %v2293, %v2321
      %v2332 = vsub.f32 %v2298, %v2324
      %v2333 = vmul.f32 %v2325, 1.442695
      %v2334 = vpow.pop %v2333
      %v2335 = vmul.f32 %v2326, 1.442695
      %v2336 = vpow.pop %v2335
      %v2337 = vmul.f32 %v2327, 1.442695
      %v2338 = vpow.pop %v2337
      %v2339 = vmul.f32 %v2328, 1.442695
      %v2340 = vpow.pop %v2339
      %v2341 = vmul.f32 %v2329, 1.442695
      %v2342 = vpow.pop %v2341
      %v2343 = vmul.f32 %v2330, 1.442695
      %v2344 = vpow.pop %v2343
      %v2345 = vmul.f32 %v2331, 1.442695
      %v2346 = vpow.pop %v2345
      %v2347 = vmul.f32 %v2332, 1.442695
      %v2348 = vpow.pop %v2347
      %v2349 = vsel %vm700, %v2334, 0.0
      %2350 = vadd.xlane.f32.xlu0 %v2349
      %v2351 = vpop.xlane.xlu0 %2350
      %v2352 = vsel %vm700, %v2336, 0.0
      %2353 = vadd.xlane.f32.xlu0 %v2352
      %v2354 = vpop.xlane.xlu0 %2353
      %v2355 = vsel %vm700, %v2338, 0.0
      %2356 = vadd.xlane.f32.xlu0 %v2355
      %v2357 = vpop.xlane.xlu0 %2356
      %v2358 = vsel %vm700, %v2340, 0.0
      %2359 = vadd.xlane.f32.xlu0 %v2358
      %v2360 = vpop.xlane.xlu0 %2359
      %v2361 = vsel %vm700, %v2342, 0.0
      %2362 = vadd.xlane.f32.xlu0 %v2361
      %v2363 = vpop.xlane.xlu0 %2362
      %v2364 = vsel %vm700, %v2344, 0.0
      %2365 = vadd.xlane.f32.xlu0 %v2364
      %v2366 = vpop.xlane.xlu0 %2365
      %v2367 = vsel %vm700, %v2346, 0.0
      %2368 = vadd.xlane.f32.xlu0 %v2367
      %v2369 = vpop.xlane.xlu0 %2368
      %v2370 = vsel %vm700, %v2348, 0.0
      %2371 = vadd.xlane.f32.xlu0 %v2370
      %v2372 = vpop.xlane.xlu0 %2371
      %v2373 = vrcp.pop %v2351
      %v2374 = vrcp.pop %v2354
      %v2375 = vrcp.pop %v2357
      %v2376 = vrcp.pop %v2360
      %v2377 = vrcp.pop %v2363
      %v2378 = vrcp.pop %v2366
      %v2379 = vrcp.pop %v2369
      %v2380 = vrcp.pop %v2372
      %v2381 = vmul.f32 %v2334, %v2373
      %v2382 = vmul.f32 %v2336, %v2374
      %v2383 = vmul.f32 %v2338, %v2375
      %v2384 = vmul.f32 %v2340, %v2376
      %v2385 = vmul.f32 %v2342, %v2377
      %v2386 = vmul.f32 %v2344, %v2378
      %v2387 = vmul.f32 %v2346, %v2379
      %v2388 = vmul.f32 %v2348, %v2380
      %2389 = vrot.lane.b32.xlu0 %v305, 48
      %v2390 = vpop.permute.xlu0 %2389
      %2391 = vrot.lane.b32.xlu0 %v310, 48
      %v2392 = vpop.permute.xlu0 %2391
      %v2396 = vsel %vm700, %v2381, 0
      %v2399 = vsel %vm700, %v2382, 0
      %2401 = vmatprep.subr.mxu0 0.0
      %2402 = vmatpush1.msra.mxu0 %v2390
      %2403 = vmatprep.subr.mxu0 0.0
      %2404 = vmatpush1.msra.mxu0 %v2392
      %2405 = vmatprep.subr.mxu0 0.0
      %2406 = vmatpush1.msra.mxu0 0.0
      %2407 = vmatprep.subr.mxu0 0.0
      %2408 = vmatpush1.msra.mxu0 0.0
      %2409 = vmatprep.subr.mxu0 0.0
      %2410 = vmatpush1.msra.mxu0 0.0
      %2411 = vmatprep.subr.mxu0 0.0
      %2412 = vmatpush1.msra.mxu0 0.0
      %2413 = vmatprep.subr.mxu0 0.0
      %2414 = vmatpush1.msra.mxu0 0.0
      %2415 = vmatprep.subr.mxu0 0.0
      %2416 = vmatpush1.msra.mxu0 0.0
      %2417 = vmatprep.subr.mxu0 0.0
      %2418 = vmatpush1.msra.mxu0 0.0
      %2419 = vmatprep.subr.mxu0 0.0
      %2420 = vmatpush1.msra.mxu0 0.0
      %2421 = vmatprep.subr.mxu0 0.0
      %2422 = vmatpush1.msra.mxu0 0.0
      %2423 = vmatprep.subr.mxu0 0.0
      %2424 = vmatpush1.msra.mxu0 0.0
      %2425 = vmatprep.subr.mxu0 0.0
      %2426 = vmatpush1.msra.mxu0 0.0
      %2427 = vmatprep.subr.mxu0 0.0
      %2428 = vmatpush1.msra.mxu0 0.0
      %2429 = vmatprep.subr.mxu0 0.0
      %2430 = vmatpush1.msra.mxu0 0.0
      %2431 = vmatprep.subr.mxu0 0.0
      %2432 = vmatpush1.msra.mxu0 0.0
      %2433 = vmatprep.subr.mxu0 0.0
      %2434 = vmatpush1.msra.mxu0 0.0
      %2435 = vmatprep.subr.mxu0 0.0
      %2436 = vmatpush1.msra.mxu0 0.0
      %2437 = vmatprep.subr.mxu0 0.0
      %2438 = vmatpush1.msra.mxu0 0.0
      %2439 = vmatprep.subr.mxu0 0.0
      %2440 = vmatpush1.msra.mxu0 0.0
      %2441 = vmatprep.subr.mxu0 0.0
      %2442 = vmatpush1.msra.mxu0 0.0
      %2443 = vmatprep.subr.mxu0 0.0
      %2444 = vmatpush1.msra.mxu0 0.0
      %2445 = vmatprep.subr.mxu0 0.0
      %2446 = vmatpush1.msra.mxu0 0.0
      %2447 = vmatprep.subr.mxu0 0.0
      %2448 = vmatpush1.msra.mxu0 0.0
      %2449 = vmatprep.subr.mxu0 0.0
      %2450 = vmatpush1.msra.mxu0 0.0
      %2451 = vmatprep.subr.mxu0 0.0
      %2452 = vmatpush1.msra.mxu0 0.0
      %2453 = vmatprep.subr.mxu0 0.0
      %2454 = vmatpush1.msra.mxu0 0.0
      %2455 = vmatprep.subr.mxu0 0.0
      %2456 = vmatpush1.msra.mxu0 0.0
      %2457 = vmatprep.subr.mxu0 0.0
      %2458 = vmatpush1.msra.mxu0 0.0
      %2459 = vmatprep.subr.mxu0 0.0
      %2460 = vmatpush1.msra.mxu0 0.0
      %2461 = vmatprep.subr.mxu0 0.0
      %2462 = vmatpush1.msra.mxu0 0.0
      %2463 = vmatprep.subr.mxu0 0.0
      %2464 = vmatpush1.msra.mxu0 0.0
      %2465 = vmatprep.mubr.f32.mxu0 0.0
      %2466 = vmatmul.mubr.f32.gmra.mrb[0].mxu0 %v2396
      %v2467 = vpop.f32.mrb[0].mxu0
      %v2468 = vadd.f32 0.0, %v2467
      %v2469 = vpop.f32.mrb[0].mxu0
      %2470 = vmatprep.mubr.f32.mxu0 0.0
      %2471 = vmatmul.mubr.f32.gmra.mrb[0].mxu0 %v2399
      %v2472 = vpop.f32.mrb[0].mxu0
      %v2473 = vadd.f32 0.0, %v2472
      %v2474 = vpop.f32.mrb[0].mxu0
      %2475 = vdwg.mxu0
      %2476 = vrot.lane.b32.xlu0 %v315, 48
      %v2477 = vpop.permute.xlu0 %2476
      %2478 = vrot.lane.b32.xlu0 %v320, 48
      %v2479 = vpop.permute.xlu0 %2478
      %v2483 = vsel %vm700, %v2383, 0
      %v2486 = vsel %vm700, %v2384, 0
      %2488 = vmatprep.subr.mxu0 0.0
      %2489 = vmatpush1.msra.mxu0 %v2477
      %2490 = vmatprep.subr.mxu0 0.0
      %2491 = vmatpush1.msra.mxu0 %v2479
      %2492 = vmatprep.subr.mxu0 0.0
      %2493 = vmatpush1.msra.mxu0 0.0
      %2494 = vmatprep.subr.mxu0 0.0
      %2495 = vmatpush1.msra.mxu0 0.0
      %2496 = vmatprep.subr.mxu0 0.0
      %2497 = vmatpush1.msra.mxu0 0.0
      %2498 = vmatprep.subr.mxu0 0.0
      %2499 = vmatpush1.msra.mxu0 0.0
      %2500 = vmatprep.subr.mxu0 0.0
      %2501 = vmatpush1.msra.mxu0 0.0
      %2502 = vmatprep.subr.mxu0 0.0
      %2503 = vmatpush1.msra.mxu0 0.0
      %2504 = vmatprep.subr.mxu0 0.0
      %2505 = vmatpush1.msra.mxu0 0.0
      %2506 = vmatprep.subr.mxu0 0.0
      %2507 = vmatpush1.msra.mxu0 0.0
      %2508 = vmatprep.subr.mxu0 0.0
      %2509 = vmatpush1.msra.mxu0 0.0
      %2510 = vmatprep.subr.mxu0 0.0
      %2511 = vmatpush1.msra.mxu0 0.0
      %2512 = vmatprep.subr.mxu0 0.0
      %2513 = vmatpush1.msra.mxu0 0.0
      %2514 = vmatprep.subr.mxu0 0.0
      %2515 = vmatpush1.msra.mxu0 0.0
      %2516 = vmatprep.subr.mxu0 0.0
      %2517 = vmatpush1.msra.mxu0 0.0
      %2518 = vmatprep.subr.mxu0 0.0
      %2519 = vmatpush1.msra.mxu0 0.0
      %2520 = vmatprep.subr.mxu0 0.0
      %2521 = vmatpush1.msra.mxu0 0.0
      %2522 = vmatprep.subr.mxu0 0.0
      %2523 = vmatpush1.msra.mxu0 0.0
      %2524 = vmatprep.subr.mxu0 0.0
      %2525 = vmatpush1.msra.mxu0 0.0
      %2526 = vmatprep.subr.mxu0 0.0
      %2527 = vmatpush1.msra.mxu0 0.0
      %2528 = vmatprep.subr.mxu0 0.0
      %2529 = vmatpush1.msra.mxu0 0.0
      %2530 = vmatprep.subr.mxu0 0.0
      %2531 = vmatpush1.msra.mxu0 0.0
      %2532 = vmatprep.subr.mxu0 0.0
      %2533 = vmatpush1.msra.mxu0 0.0
      %2534 = vmatprep.subr.mxu0 0.0
      %2535 = vmatpush1.msra.mxu0 0.0
      %2536 = vmatprep.subr.mxu0 0.0
      %2537 = vmatpush1.msra.mxu0 0.0
      %2538 = vmatprep.subr.mxu0 0.0
      %2539 = vmatpush1.msra.mxu0 0.0
      %2540 = vmatprep.subr.mxu0 0.0
      %2541 = vmatpush1.msra.mxu0 0.0
      %2542 = vmatprep.subr.mxu0 0.0
      %2543 = vmatpush1.msra.mxu0 0.0
      %2544 = vmatprep.subr.mxu0 0.0
      %2545 = vmatpush1.msra.mxu0 0.0
      %2546 = vmatprep.subr.mxu0 0.0
      %2547 = vmatpush1.msra.mxu0 0.0
      %2548 = vmatprep.subr.mxu0 0.0
      %2549 = vmatpush1.msra.mxu0 0.0
      %2550 = vmatprep.subr.mxu0 0.0
      %2551 = vmatpush1.msra.mxu0 0.0
      %2552 = vmatprep.mubr.f32.mxu0 0.0
      %2553 = vmatmul.mubr.f32.gmra.mrb[0].mxu0 %v2483
      %v2554 = vpop.f32.mrb[0].mxu0
      %v2555 = vadd.f32 0.0, %v2554
      %v2556 = vpop.f32.mrb[0].mxu0
      %2557 = vmatprep.mubr.f32.mxu0 0.0
      %2558 = vmatmul.mubr.f32.gmra.mrb[0].mxu0 %v2486
      %v2559 = vpop.f32.mrb[0].mxu0
      %v2560 = vadd.f32 0.0, %v2559
      %v2561 = vpop.f32.mrb[0].mxu0
      %2562 = vdwg.mxu0
      %2563 = vrot.lane.b32.xlu0 %v325, 48
      %v2564 = vpop.permute.xlu0 %2563
      %2565 = vrot.lane.b32.xlu0 %v330, 48
      %v2566 = vpop.permute.xlu0 %2565
      %v2570 = vsel %vm700, %v2385, 0
      %v2573 = vsel %vm700, %v2386, 0
      %2575 = vmatprep.subr.mxu0 0.0
      %2576 = vmatpush1.msra.mxu0 %v2564
      %2577 = vmatprep.subr.mxu0 0.0
      %2578 = vmatpush1.msra.mxu0 %v2566
      %2579 = vmatprep.subr.mxu0 0.0
      %2580 = vmatpush1.msra.mxu0 0.0
      %2581 = vmatprep.subr.mxu0 0.0
      %2582 = vmatpush1.msra.mxu0 0.0
      %2583 = vmatprep.subr.mxu0 0.0
      %2584 = vmatpush1.msra.mxu0 0.0
      %2585 = vmatprep.subr.mxu0 0.0
      %2586 = vmatpush1.msra.mxu0 0.0
      %2587 = vmatprep.subr.mxu0 0.0
      %2588 = vmatpush1.msra.mxu0 0.0
      %2589 = vmatprep.subr.mxu0 0.0
      %2590 = vmatpush1.msra.mxu0 0.0
      %2591 = vmatprep.subr.mxu0 0.0
      %2592 = vmatpush1.msra.mxu0 0.0
      %2593 = vmatprep.subr.mxu0 0.0
      %2594 = vmatpush1.msra.mxu0 0.0
      %2595 = vmatprep.subr.mxu0 0.0
      %2596 = vmatpush1.msra.mxu0 0.0
      %2597 = vmatprep.subr.mxu0 0.0
      %2598 = vmatpush1.msra.mxu0 0.0
      %2599 = vmatprep.subr.mxu0 0.0
      %2600 = vmatpush1.msra.mxu0 0.0
      %2601 = vmatprep.subr.mxu0 0.0
      %2602 = vmatpush1.msra.mxu0 0.0
      %2603 = vmatprep.subr.mxu0 0.0
      %2604 = vmatpush1.msra.mxu0 0.0
      %2605 = vmatprep.subr.mxu0 0.0
      %2606 = vmatpush1.msra.mxu0 0.0
      %2607 = vmatprep.subr.mxu0 0.0
      %2608 = vmatpush1.msra.mxu0 0.0
      %2609 = vmatprep.subr.mxu0 0.0
      %2610 = vmatpush1.msra.mxu0 0.0
      %2611 = vmatprep.subr.mxu0 0.0
      %2612 = vmatpush1.msra.mxu0 0.0
      %2613 = vmatprep.subr.mxu0 0.0
      %2614 = vmatpush1.msra.mxu0 0.0
      %2615 = vmatprep.subr.mxu0 0.0
      %2616 = vmatpush1.msra.mxu0 0.0
      %2617 = vmatprep.subr.mxu0 0.0
      %2618 = vmatpush1.msra.mxu0 0.0
      %2619 = vmatprep.subr.mxu0 0.0
      %2620 = vmatpush1.msra.mxu0 0.0
      %2621 = vmatprep.subr.mxu0 0.0
      %2622 = vmatpush1.msra.mxu0 0.0
      %2623 = vmatprep.subr.mxu0 0.0
      %2624 = vmatpush1.msra.mxu0 0.0
      %2625 = vmatprep.subr.mxu0 0.0
      %2626 = vmatpush1.msra.mxu0 0.0
      %2627 = vmatprep.subr.mxu0 0.0
      %2628 = vmatpush1.msra.mxu0 0.0
      %2629 = vmatprep.subr.mxu0 0.0
      %2630 = vmatpush1.msra.mxu0 0.0
      %2631 = vmatprep.subr.mxu0 0.0
      %2632 = vmatpush1.msra.mxu0 0.0
      %2633 = vmatprep.subr.mxu0 0.0
      %2634 = vmatpush1.msra.mxu0 0.0
      %2635 = vmatprep.subr.mxu0 0.0
      %2636 = vmatpush1.msra.mxu0 0.0
      %2637 = vmatprep.subr.mxu0 0.0
      %2638 = vmatpush1.msra.mxu0 0.0
      %2639 = vmatprep.mubr.f32.mxu0 0.0
      %2640 = vmatmul.mubr.f32.gmra.mrb[0].mxu0 %v2570
      %v2641 = vpop.f32.mrb[0].mxu0
      %v2642 = vadd.f32 0.0, %v2641
      %v2643 = vpop.f32.mrb[0].mxu0
      %2644 = vmatprep.mubr.f32.mxu0 0.0
      %2645 = vmatmul.mubr.f32.gmra.mrb[0].mxu0 %v2573
      %v2646 = vpop.f32.mrb[0].mxu0
      %v2647 = vadd.f32 0.0, %v2646
      %v2648 = vpop.f32.mrb[0].mxu0
      %2649 = vdwg.mxu0
      %2650 = vrot.lane.b32.xlu0 %v335, 48
      %v2651 = vpop.permute.xlu0 %2650
      %2652 = vrot.lane.b32.xlu0 %v340, 48
      %v2653 = vpop.permute.xlu0 %2652
      %v2657 = vsel %vm700, %v2387, 0
      %v2660 = vsel %vm700, %v2388, 0
      %2662 = vmatprep.subr.mxu0 0.0
      %2663 = vmatpush1.msra.mxu0 %v2651
      %2664 = vmatprep.subr.mxu0 0.0
      %2665 = vmatpush1.msra.mxu0 %v2653
      %2666 = vmatprep.subr.mxu0 0.0
      %2667 = vmatpush1.msra.mxu0 0.0
      %2668 = vmatprep.subr.mxu0 0.0
      %2669 = vmatpush1.msra.mxu0 0.0
      %2670 = vmatprep.subr.mxu0 0.0
      %2671 = vmatpush1.msra.mxu0 0.0
      %2672 = vmatprep.subr.mxu0 0.0
      %2673 = vmatpush1.msra.mxu0 0.0
      %2674 = vmatprep.subr.mxu0 0.0
      %2675 = vmatpush1.msra.mxu0 0.0
      %2676 = vmatprep.subr.mxu0 0.0
      %2677 = vmatpush1.msra.mxu0 0.0
      %2678 = vmatprep.subr.mxu0 0.0
      %2679 = vmatpush1.msra.mxu0 0.0
      %2680 = vmatprep.subr.mxu0 0.0
      %2681 = vmatpush1.msra.mxu0 0.0
      %2682 = vmatprep.subr.mxu0 0.0
      %2683 = vmatpush1.msra.mxu0 0.0
      %2684 = vmatprep.subr.mxu0 0.0
      %2685 = vmatpush1.msra.mxu0 0.0
      %2686 = vmatprep.subr.mxu0 0.0
      %2687 = vmatpush1.msra.mxu0 0.0
      %2688 = vmatprep.subr.mxu0 0.0
      %2689 = vmatpush1.msra.mxu0 0.0
      %2690 = vmatprep.subr.mxu0 0.0
      %2691 = vmatpush1.msra.mxu0 0.0
      %2692 = vmatprep.subr.mxu0 0.0
      %2693 = vmatpush1.msra.mxu0 0.0
      %2694 = vmatprep.subr.mxu0 0.0
      %2695 = vmatpush1.msra.mxu0 0.0
      %2696 = vmatprep.subr.mxu0 0.0
      %2697 = vmatpush1.msra.mxu0 0.0
      %2698 = vmatprep.subr.mxu0 0.0
      %2699 = vmatpush1.msra.mxu0 0.0
      %2700 = vmatprep.subr.mxu0 0.0
      %2701 = vmatpush1.msra.mxu0 0.0
      %2702 = vmatprep.subr.mxu0 0.0
      %2703 = vmatpush1.msra.mxu0 0.0
      %2704 = vmatprep.subr.mxu0 0.0
      %2705 = vmatpush1.msra.mxu0 0.0
      %2706 = vmatprep.subr.mxu0 0.0
      %2707 = vmatpush1.msra.mxu0 0.0
      %2708 = vmatprep.subr.mxu0 0.0
      %2709 = vmatpush1.msra.mxu0 0.0
      %2710 = vmatprep.subr.mxu0 0.0
      %2711 = vmatpush1.msra.mxu0 0.0
      %2712 = vmatprep.subr.mxu0 0.0
      %2713 = vmatpush1.msra.mxu0 0.0
      %2714 = vmatprep.subr.mxu0 0.0
      %2715 = vmatpush1.msra.mxu0 0.0
      %2716 = vmatprep.subr.mxu0 0.0
      %2717 = vmatpush1.msra.mxu0 0.0
      %2718 = vmatprep.subr.mxu0 0.0
      %2719 = vmatpush1.msra.mxu0 0.0
      %2720 = vmatprep.subr.mxu0 0.0
      %2721 = vmatpush1.msra.mxu0 0.0
      %2722 = vmatprep.subr.mxu0 0.0
      %2723 = vmatpush1.msra.mxu0 0.0
      %2724 = vmatprep.subr.mxu0 0.0
      %2725 = vmatpush1.msra.mxu0 0.0
      %2726 = vmatprep.mubr.f32.mxu0 0.0
      %2727 = vmatmul.mubr.f32.gmra.mrb[0].mxu0 %v2657
      %v2728 = vpop.f32.mrb[0].mxu0
      %v2729 = vadd.f32 0.0, %v2728
      %v2730 = vpop.f32.mrb[0].mxu0
      %2731 = vmatprep.mubr.f32.mxu0 0.0
      %2732 = vmatmul.mubr.f32.gmra.mrb[0].mxu0 %v2660
      %v2733 = vpop.f32.mrb[0].mxu0
      %v2734 = vadd.f32 0.0, %v2733
      %v2735 = vpop.f32.mrb[0].mxu0
      %2736 = vdwg.mxu0
      %2737 = vrot.lane.b32.xlu0 %v305, 104
      %v2738 = vpop.permute.xlu0 %2737
      %2739 = vrot.lane.b32.xlu0 %v310, 104
      %v2740 = vpop.permute.xlu0 %2739
      %2741 = vrot.lane.b32.xlu0 %v305, 72
      %v2742 = vpop.permute.xlu0 %2741
      %2743 = vrot.lane.b32.xlu0 %v310, 72
      %v2744 = vpop.permute.xlu0 %2743
      %v2745 = vsel %vm349, %v2738, 0
      %v2747 = vsel %vm349, %v2740, 0
      %v2749 = vsel %vm349, %v2742, 0
      %v2751 = vsel %vm349, %v2744, 0
      %2753 = vmatprep.subr.mxu0 0.0
      %2754 = vmatpush1.xpose.msra.mxu0 %v2749
      %2755 = vmatprep.subr.mxu0 0.0
      %2756 = vmatpush1.xpose.msra.mxu0 %v2751
      %2757 = vmatprep.subr.mxu0 0.0
      %2758 = vmatpush1.xpose.msra.mxu0 0.0
      %2759 = vmatprep.subr.mxu0 0.0
      %2760 = vmatpush1.xpose.msra.mxu0 0.0
      %2761 = vmatprep.subr.mxu0 0.0
      %2762 = vmatpush1.xpose.msra.mxu0 0.0
      %2763 = vmatprep.subr.mxu0 0.0
      %2764 = vmatpush1.xpose.msra.mxu0 0.0
      %2765 = vmatprep.subr.mxu0 0.0
      %2766 = vmatpush1.xpose.msra.mxu0 0.0
      %2767 = vmatprep.subr.mxu0 0.0
      %2768 = vmatpush1.xpose.msra.mxu0 0.0
      %2769 = vmatprep.subr.mxu0 0.0
      %2770 = vmatpush1.xpose.msra.mxu0 0.0
      %2771 = vmatprep.subr.mxu0 0.0
      %2772 = vmatpush1.xpose.msra.mxu0 0.0
      %2773 = vmatprep.subr.mxu0 0.0
      %2774 = vmatpush1.xpose.msra.mxu0 0.0
      %2775 = vmatprep.subr.mxu0 0.0
      %2776 = vmatpush1.xpose.msra.mxu0 0.0
      %2777 = vmatprep.subr.mxu0 0.0
      %2778 = vmatpush1.xpose.msra.mxu0 0.0
      %2779 = vmatprep.subr.mxu0 0.0
      %2780 = vmatpush1.xpose.msra.mxu0 0.0
      %2781 = vmatprep.subr.mxu0 0.0
      %2782 = vmatpush1.xpose.msra.mxu0 0.0
      %2783 = vmatprep.subr.mxu0 0.0
      %2784 = vmatpush1.xpose.msra.mxu0 0.0
      %2785 = vmatprep.subr.mxu0 0.0
      %2786 = vmatpush1.xpose.msra.mxu0 0.0
      %2787 = vmatprep.subr.mxu0 0.0
      %2788 = vmatpush1.xpose.msra.mxu0 0.0
      %2789 = vmatprep.subr.mxu0 0.0
      %2790 = vmatpush1.xpose.msra.mxu0 0.0
      %2791 = vmatprep.subr.mxu0 0.0
      %2792 = vmatpush1.xpose.msra.mxu0 0.0
      %2793 = vmatprep.subr.mxu0 0.0
      %2794 = vmatpush1.xpose.msra.mxu0 0.0
      %2795 = vmatprep.subr.mxu0 0.0
      %2796 = vmatpush1.xpose.msra.mxu0 0.0
      %2797 = vmatprep.subr.mxu0 0.0
      %2798 = vmatpush1.xpose.msra.mxu0 0.0
      %2799 = vmatprep.subr.mxu0 0.0
      %2800 = vmatpush1.xpose.msra.mxu0 0.0
      %2801 = vmatprep.subr.mxu0 0.0
      %2802 = vmatpush1.xpose.msra.mxu0 0.0
      %2803 = vmatprep.subr.mxu0 0.0
      %2804 = vmatpush1.xpose.msra.mxu0 0.0
      %2805 = vmatprep.subr.mxu0 0.0
      %2806 = vmatpush1.xpose.msra.mxu0 0.0
      %2807 = vmatprep.subr.mxu0 0.0
      %2808 = vmatpush1.xpose.msra.mxu0 0.0
      %2809 = vmatprep.subr.mxu0 0.0
      %2810 = vmatpush1.xpose.msra.mxu0 0.0
      %2811 = vmatprep.subr.mxu0 0.0
      %2812 = vmatpush1.xpose.msra.mxu0 0.0
      %2813 = vmatprep.subr.mxu0 0.0
      %2814 = vmatpush1.xpose.msra.mxu0 0.0
      %2815 = vmatprep.subr.mxu0 0.0
      %2816 = vmatpush1.xpose.msra.mxu0 0.0
      %2817 = vmatprep.mubr.f32.mxu0 0.0
      %2818 = vmatmul.mubr.f32.gmra.mrb[0].mxu0 %v2745
      %v2819 = vpop.f32.mrb[0].mxu0
      %v2820 = vadd.f32 0.0, %v2819
      %v2821 = vpop.f32.mrb[0].mxu0
      %2822 = vmatprep.mubr.f32.mxu0 0.0
      %2823 = vmatmul.mubr.f32.gmra.mrb[0].mxu0 %v2747
      %v2824 = vpop.f32.mrb[0].mxu0
      %v2825 = vadd.f32 0.0, %v2824
      %v2826 = vpop.f32.mrb[0].mxu0
      %2827 = vdwg.mxu0
      %2828 = vrot.lane.b32.xlu0 %v315, 104
      %v2829 = vpop.permute.xlu0 %2828
      %2830 = vrot.lane.b32.xlu0 %v320, 104
      %v2831 = vpop.permute.xlu0 %2830
      %2832 = vrot.lane.b32.xlu0 %v315, 72
      %v2833 = vpop.permute.xlu0 %2832
      %2834 = vrot.lane.b32.xlu0 %v320, 72
      %v2835 = vpop.permute.xlu0 %2834
      %v2836 = vsel %vm349, %v2829, 0
      %v2838 = vsel %vm349, %v2831, 0
      %v2840 = vsel %vm349, %v2833, 0
      %v2842 = vsel %vm349, %v2835, 0
      %2844 = vmatprep.subr.mxu0 0.0
      %2845 = vmatpush1.xpose.msra.mxu0 %v2840
      %2846 = vmatprep.subr.mxu0 0.0
      %2847 = vmatpush1.xpose.msra.mxu0 %v2842
      %2848 = vmatprep.subr.mxu0 0.0
      %2849 = vmatpush1.xpose.msra.mxu0 0.0
      %2850 = vmatprep.subr.mxu0 0.0
      %2851 = vmatpush1.xpose.msra.mxu0 0.0
      %2852 = vmatprep.subr.mxu0 0.0
      %2853 = vmatpush1.xpose.msra.mxu0 0.0
      %2854 = vmatprep.subr.mxu0 0.0
      %2855 = vmatpush1.xpose.msra.mxu0 0.0
      %2856 = vmatprep.subr.mxu0 0.0
      %2857 = vmatpush1.xpose.msra.mxu0 0.0
      %2858 = vmatprep.subr.mxu0 0.0
      %2859 = vmatpush1.xpose.msra.mxu0 0.0
      %2860 = vmatprep.subr.mxu0 0.0
      %2861 = vmatpush1.xpose.msra.mxu0 0.0
      %2862 = vmatprep.subr.mxu0 0.0
      %2863 = vmatpush1.xpose.msra.mxu0 0.0
      %2864 = vmatprep.subr.mxu0 0.0
      %2865 = vmatpush1.xpose.msra.mxu0 0.0
      %2866 = vmatprep.subr.mxu0 0.0
      %2867 = vmatpush1.xpose.msra.mxu0 0.0
      %2868 = vmatprep.subr.mxu0 0.0
      %2869 = vmatpush1.xpose.msra.mxu0 0.0
      %2870 = vmatprep.subr.mxu0 0.0
      %2871 = vmatpush1.xpose.msra.mxu0 0.0
      %2872 = vmatprep.subr.mxu0 0.0
      %2873 = vmatpush1.xpose.msra.mxu0 0.0
      %2874 = vmatprep.subr.mxu0 0.0
      %2875 = vmatpush1.xpose.msra.mxu0 0.0
      %2876 = vmatprep.subr.mxu0 0.0
      %2877 = vmatpush1.xpose.msra.mxu0 0.0
      %2878 = vmatprep.subr.mxu0 0.0
      %2879 = vmatpush1.xpose.msra.mxu0 0.0
      %2880 = vmatprep.subr.mxu0 0.0
      %2881 = vmatpush1.xpose.msra.mxu0 0.0
      %2882 = vmatprep.subr.mxu0 0.0
      %2883 = vmatpush1.xpose.msra.mxu0 0.0
      %2884 = vmatprep.subr.mxu0 0.0
      %2885 = vmatpush1.xpose.msra.mxu0 0.0
      %2886 = vmatprep.subr.mxu0 0.0
      %2887 = vmatpush1.xpose.msra.mxu0 0.0
      %2888 = vmatprep.subr.mxu0 0.0
      %2889 = vmatpush1.xpose.msra.mxu0 0.0
      %2890 = vmatprep.subr.mxu0 0.0
      %2891 = vmatpush1.xpose.msra.mxu0 0.0
      %2892 = vmatprep.subr.mxu0 0.0
      %2893 = vmatpush1.xpose.msra.mxu0 0.0
      %2894 = vmatprep.subr.mxu0 0.0
      %2895 = vmatpush1.xpose.msra.mxu0 0.0
      %2896 = vmatprep.subr.mxu0 0.0
      %2897 = vmatpush1.xpose.msra.mxu0 0.0
      %2898 = vmatprep.subr.mxu0 0.0
      %2899 = vmatpush1.xpose.msra.mxu0 0.0
      %2900 = vmatprep.subr.mxu0 0.0
      %2901 = vmatpush1.xpose.msra.mxu0 0.0
      %2902 = vmatprep.subr.mxu0 0.0
      %2903 = vmatpush1.xpose.msra.mxu0 0.0
      %2904 = vmatprep.subr.mxu0 0.0
      %2905 = vmatpush1.xpose.msra.mxu0 0.0
      %2906 = vmatprep.subr.mxu0 0.0
      %2907 = vmatpush1.xpose.msra.mxu0 0.0
      %2908 = vmatprep.mubr.f32.mxu0 0.0
      %2909 = vmatmul.mubr.f32.gmra.mrb[0].mxu0 %v2836
      %v2910 = vpop.f32.mrb[0].mxu0
      %v2911 = vadd.f32 0.0, %v2910
      %v2912 = vpop.f32.mrb[0].mxu0
      %2913 = vmatprep.mubr.f32.mxu0 0.0
      %2914 = vmatmul.mubr.f32.gmra.mrb[0].mxu0 %v2838
      %v2915 = vpop.f32.mrb[0].mxu0
      %v2916 = vadd.f32 0.0, %v2915
      %v2917 = vpop.f32.mrb[0].mxu0
      %2918 = vdwg.mxu0
      %2919 = vrot.lane.b32.xlu0 %v325, 104
      %v2920 = vpop.permute.xlu0 %2919
      %2921 = vrot.lane.b32.xlu0 %v330, 104
      %v2922 = vpop.permute.xlu0 %2921
      %2923 = vrot.lane.b32.xlu0 %v325, 72
      %v2924 = vpop.permute.xlu0 %2923
      %2925 = vrot.lane.b32.xlu0 %v330, 72
      %v2926 = vpop.permute.xlu0 %2925
      %v2927 = vsel %vm349, %v2920, 0
      %v2929 = vsel %vm349, %v2922, 0
      %v2931 = vsel %vm349, %v2924, 0
      %v2933 = vsel %vm349, %v2926, 0
      %2935 = vmatprep.subr.mxu0 0.0
      %2936 = vmatpush1.xpose.msra.mxu0 %v2931
      %2937 = vmatprep.subr.mxu0 0.0
      %2938 = vmatpush1.xpose.msra.mxu0 %v2933
      %2939 = vmatprep.subr.mxu0 0.0
      %2940 = vmatpush1.xpose.msra.mxu0 0.0
      %2941 = vmatprep.subr.mxu0 0.0
      %2942 = vmatpush1.xpose.msra.mxu0 0.0
      %2943 = vmatprep.subr.mxu0 0.0
      %2944 = vmatpush1.xpose.msra.mxu0 0.0
      %2945 = vmatprep.subr.mxu0 0.0
      %2946 = vmatpush1.xpose.msra.mxu0 0.0
      %2947 = vmatprep.subr.mxu0 0.0
      %2948 = vmatpush1.xpose.msra.mxu0 0.0
      %2949 = vmatprep.subr.mxu0 0.0
      %2950 = vmatpush1.xpose.msra.mxu0 0.0
      %2951 = vmatprep.subr.mxu0 0.0
      %2952 = vmatpush1.xpose.msra.mxu0 0.0
      %2953 = vmatprep.subr.mxu0 0.0
      %2954 = vmatpush1.xpose.msra.mxu0 0.0
      %2955 = vmatprep.subr.mxu0 0.0
      %2956 = vmatpush1.xpose.msra.mxu0 0.0
      %2957 = vmatprep.subr.mxu0 0.0
      %2958 = vmatpush1.xpose.msra.mxu0 0.0
      %2959 = vmatprep.subr.mxu0 0.0
      %2960 = vmatpush1.xpose.msra.mxu0 0.0
      %2961 = vmatprep.subr.mxu0 0.0
      %2962 = vmatpush1.xpose.msra.mxu0 0.0
      %2963 = vmatprep.subr.mxu0 0.0
      %2964 = vmatpush1.xpose.msra.mxu0 0.0
      %2965 = vmatprep.subr.mxu0 0.0
      %2966 = vmatpush1.xpose.msra.mxu0 0.0
      %2967 = vmatprep.subr.mxu0 0.0
      %2968 = vmatpush1.xpose.msra.mxu0 0.0
      %2969 = vmatprep.subr.mxu0 0.0
      %2970 = vmatpush1.xpose.msra.mxu0 0.0
      %2971 = vmatprep.subr.mxu0 0.0
      %2972 = vmatpush1.xpose.msra.mxu0 0.0
      %2973 = vmatprep.subr.mxu0 0.0
      %2974 = vmatpush1.xpose.msra.mxu0 0.0
      %2975 = vmatprep.subr.mxu0 0.0
      %2976 = vmatpush1.xpose.msra.mxu0 0.0
      %2977 = vmatprep.subr.mxu0 0.0
      %2978 = vmatpush1.xpose.msra.mxu0 0.0
      %2979 = vmatprep.subr.mxu0 0.0
      %2980 = vmatpush1.xpose.msra.mxu0 0.0
      %2981 = vmatprep.subr.mxu0 0.0
      %2982 = vmatpush1.xpose.msra.mxu0 0.0
      %2983 = vmatprep.subr.mxu0 0.0
      %2984 = vmatpush1.xpose.msra.mxu0 0.0
      %2985 = vmatprep.subr.mxu0 0.0
      %2986 = vmatpush1.xpose.msra.mxu0 0.0
      %2987 = vmatprep.subr.mxu0 0.0
      %2988 = vmatpush1.xpose.msra.mxu0 0.0
      %2989 = vmatprep.subr.mxu0 0.0
      %2990 = vmatpush1.xpose.msra.mxu0 0.0
      %2991 = vmatprep.subr.mxu0 0.0
      %2992 = vmatpush1.xpose.msra.mxu0 0.0
      %2993 = vmatprep.subr.mxu0 0.0
      %2994 = vmatpush1.xpose.msra.mxu0 0.0
      %2995 = vmatprep.subr.mxu0 0.0
      %2996 = vmatpush1.xpose.msra.mxu0 0.0
      %2997 = vmatprep.subr.mxu0 0.0
      %2998 = vmatpush1.xpose.msra.mxu0 0.0
      %2999 = vmatprep.mubr.f32.mxu0 0.0
      %3000 = vmatmul.mubr.f32.gmra.mrb[0].mxu0 %v2927
      %v3001 = vpop.f32.mrb[0].mxu0
      %v3002 = vadd.f32 0.0, %v3001
      %v3003 = vpop.f32.mrb[0].mxu0
      %3004 = vmatprep.mubr.f32.mxu0 0.0
      %3005 = vmatmul.mubr.f32.gmra.mrb[0].mxu0 %v2929
      %v3006 = vpop.f32.mrb[0].mxu0
      %v3007 = vadd.f32 0.0, %v3006
      %v3008 = vpop.f32.mrb[0].mxu0
      %3009 = vdwg.mxu0
      %3010 = vrot.lane.b32.xlu0 %v335, 104
      %v3011 = vpop.permute.xlu0 %3010
      %3012 = vrot.lane.b32.xlu0 %v340, 104
      %v3013 = vpop.permute.xlu0 %3012
      %3014 = vrot.lane.b32.xlu0 %v335, 72
      %v3015 = vpop.permute.xlu0 %3014
      %3016 = vrot.lane.b32.xlu0 %v340, 72
      %v3017 = vpop.permute.xlu0 %3016
      %v3018 = vsel %vm349, %v3011, 0
      %v3020 = vsel %vm349, %v3013, 0
      %v3022 = vsel %vm349, %v3015, 0
      %v3024 = vsel %vm349, %v3017, 0
      %3026 = vmatprep.subr.mxu0 0.0
      %3027 = vmatpush1.xpose.msra.mxu0 %v3022
      %3028 = vmatprep.subr.mxu0 0.0
      %3029 = vmatpush1.xpose.msra.mxu0 %v3024
      %3030 = vmatprep.subr.mxu0 0.0
      %3031 = vmatpush1.xpose.msra.mxu0 0.0
      %3032 = vmatprep.subr.mxu0 0.0
      %3033 = vmatpush1.xpose.msra.mxu0 0.0
      %3034 = vmatprep.subr.mxu0 0.0
      %3035 = vmatpush1.xpose.msra.mxu0 0.0
      %3036 = vmatprep.subr.mxu0 0.0
      %3037 = vmatpush1.xpose.msra.mxu0 0.0
      %3038 = vmatprep.subr.mxu0 0.0
      %3039 = vmatpush1.xpose.msra.mxu0 0.0
      %3040 = vmatprep.subr.mxu0 0.0
      %3041 = vmatpush1.xpose.msra.mxu0 0.0
      %3042 = vmatprep.subr.mxu0 0.0
      %3043 = vmatpush1.xpose.msra.mxu0 0.0
      %3044 = vmatprep.subr.mxu0 0.0
      %3045 = vmatpush1.xpose.msra.mxu0 0.0
      %3046 = vmatprep.subr.mxu0 0.0
      %3047 = vmatpush1.xpose.msra.mxu0 0.0
      %3048 = vmatprep.subr.mxu0 0.0
      %3049 = vmatpush1.xpose.msra.mxu0 0.0
      %3050 = vmatprep.subr.mxu0 0.0
      %3051 = vmatpush1.xpose.msra.mxu0 0.0
      %3052 = vmatprep.subr.mxu0 0.0
      %3053 = vmatpush1.xpose.msra.mxu0 0.0
      %3054 = vmatprep.subr.mxu0 0.0
      %3055 = vmatpush1.xpose.msra.mxu0 0.0
      %3056 = vmatprep.subr.mxu0 0.0
      %3057 = vmatpush1.xpose.msra.mxu0 0.0
      %3058 = vmatprep.subr.mxu0 0.0
      %3059 = vmatpush1.xpose.msra.mxu0 0.0
      %3060 = vmatprep.subr.mxu0 0.0
      %3061 = vmatpush1.xpose.msra.mxu0 0.0
      %3062 = vmatprep.subr.mxu0 0.0
      %3063 = vmatpush1.xpose.msra.mxu0 0.0
      %3064 = vmatprep.subr.mxu0 0.0
      %3065 = vmatpush1.xpose.msra.mxu0 0.0
      %3066 = vmatprep.subr.mxu0 0.0
      %3067 = vmatpush1.xpose.msra.mxu0 0.0
      %3068 = vmatprep.subr.mxu0 0.0
      %3069 = vmatpush1.xpose.msra.mxu0 0.0
      %3070 = vmatprep.subr.mxu0 0.0
      %3071 = vmatpush1.xpose.msra.mxu0 0.0
      %3072 = vmatprep.subr.mxu0 0.0
      %3073 = vmatpush1.xpose.msra.mxu0 0.0
      %3074 = vmatprep.subr.mxu0 0.0
      %3075 = vmatpush1.xpose.msra.mxu0 0.0
      %3076 = vmatprep.subr.mxu0 0.0
      %3077 = vmatpush1.xpose.msra.mxu0 0.0
      %3078 = vmatprep.subr.mxu0 0.0
      %3079 = vmatpush1.xpose.msra.mxu0 0.0
      %3080 = vmatprep.subr.mxu0 0.0
      %3081 = vmatpush1.xpose.msra.mxu0 0.0
      %3082 = vmatprep.subr.mxu0 0.0
      %3083 = vmatpush1.xpose.msra.mxu0 0.0
      %3084 = vmatprep.subr.mxu0 0.0
      %3085 = vmatpush1.xpose.msra.mxu0 0.0
      %3086 = vmatprep.subr.mxu0 0.0
      %3087 = vmatpush1.xpose.msra.mxu0 0.0
      %3088 = vmatprep.subr.mxu0 0.0
      %3089 = vmatpush1.xpose.msra.mxu0 0.0
      %3090 = vmatprep.mubr.f32.mxu0 0.0
      %3091 = vmatmul.mubr.f32.gmra.mrb[0].mxu0 %v3018
      %v3092 = vpop.f32.mrb[0].mxu0
      %v3093 = vadd.f32 0.0, %v3092
      %v3094 = vpop.f32.mrb[0].mxu0
      %3095 = vmatprep.mubr.f32.mxu0 0.0
      %3096 = vmatmul.mubr.f32.gmra.mrb[0].mxu0 %v3020
      %v3097 = vpop.f32.mrb[0].mxu0
      %v3098 = vadd.f32 0.0, %v3097
      %v3099 = vpop.f32.mrb[0].mxu0
      %3100 = vdwg.mxu0
      %v3101 = vsel %vm700, %v2820, -inf
      %3102 = vmax.xlane.f32.xlu0 %v3101
      %v3103 = vpop.xlane.xlu0 %3102
      %v3104 = vsel %vm700, %v2825, -inf
      %3105 = vmax.xlane.f32.xlu0 %v3104
      %v3106 = vpop.xlane.xlu0 %3105
      %v3107 = vsel %vm700, %v2911, -inf
      %3108 = vmax.xlane.f32.xlu0 %v3107
      %v3109 = vpop.xlane.xlu0 %3108
      %v3110 = vsel %vm700, %v2916, -inf
      %3111 = vmax.xlane.f32.xlu0 %v3110
      %v3112 = vpop.xlane.xlu0 %3111
      %v3113 = vsel %vm700, %v3002, -inf
      %3114 = vmax.xlane.f32.xlu0 %v3113
      %v3115 = vpop.xlane.xlu0 %3114
      %v3116 = vsel %vm700, %v3007, -inf
      %3117 = vmax.xlane.f32.xlu0 %v3116
      %v3118 = vpop.xlane.xlu0 %3117
      %v3119 = vsel %vm700, %v3093, -inf
      %3120 = vmax.xlane.f32.xlu0 %v3119
      %v3121 = vpop.xlane.xlu0 %3120
      %v3122 = vsel %vm700, %v3098, -inf
      %3123 = vmax.xlane.f32.xlu0 %v3122
      %v3124 = vpop.xlane.xlu0 %3123
      %v3125 = vsub.f32 %v2820, %v3103
      %v3126 = vsub.f32 %v2825, %v3106
      %v3127 = vsub.f32 %v2911, %v3109
      %v3128 = vsub.f32 %v2916, %v3112
      %v3129 = vsub.f32 %v3002, %v3115
      %v3130 = vsub.f32 %v3007, %v3118
      %v3131 = vsub.f32 %v3093, %v3121
      %v3132 = vsub.f32 %v3098, %v3124
      %v3133 = vmul.f32 %v3125, 1.442695
      %v3134 = vpow.pop %v3133
      %v3135 = vmul.f32 %v3126, 1.442695
      %v3136 = vpow.pop %v3135
      %v3137 = vmul.f32 %v3127, 1.442695
      %v3138 = vpow.pop %v3137
      %v3139 = vmul.f32 %v3128, 1.442695
      %v3140 = vpow.pop %v3139
      %v3141 = vmul.f32 %v3129, 1.442695
      %v3142 = vpow.pop %v3141
      %v3143 = vmul.f32 %v3130, 1.442695
      %v3144 = vpow.pop %v3143
      %v3145 = vmul.f32 %v3131, 1.442695
      %v3146 = vpow.pop %v3145
      %v3147 = vmul.f32 %v3132, 1.442695
      %v3148 = vpow.pop %v3147
      %v3149 = vsel %vm700, %v3134, 0.0
      %3150 = vadd.xlane.f32.xlu0 %v3149
      %v3151 = vpop.xlane.xlu0 %3150
      %v3152 = vsel %vm700, %v3136, 0.0
      %3153 = vadd.xlane.f32.xlu0 %v3152
      %v3154 = vpop.xlane.xlu0 %3153
      %v3155 = vsel %vm700, %v3138, 0.0
      %3156 = vadd.xlane.f32.xlu0 %v3155
      %v3157 = vpop.xlane.xlu0 %3156
      %v3158 = vsel %vm700, %v3140, 0.0
      %3159 = vadd.xlane.f32.xlu0 %v3158
      %v3160 = vpop.xlane.xlu0 %3159
      %v3161 = vsel %vm700, %v3142, 0.0
      %3162 = vadd.xlane.f32.xlu0 %v3161
      %v3163 = vpop.xlane.xlu0 %3162
      %v3164 = vsel %vm700, %v3144, 0.0
      %3165 = vadd.xlane.f32.xlu0 %v3164
      %v3166 = vpop.xlane.xlu0 %3165
      %v3167 = vsel %vm700, %v3146, 0.0
      %3168 = vadd.xlane.f32.xlu0 %v3167
      %v3169 = vpop.xlane.xlu0 %3168
      %v3170 = vsel %vm700, %v3148, 0.0
      %3171 = vadd.xlane.f32.xlu0 %v3170
      %v3172 = vpop.xlane.xlu0 %3171
      %v3173 = vrcp.pop %v3151
      %v3174 = vrcp.pop %v3154
      %v3175 = vrcp.pop %v3157
      %v3176 = vrcp.pop %v3160
      %v3177 = vrcp.pop %v3163
      %v3178 = vrcp.pop %v3166
      %v3179 = vrcp.pop %v3169
      %v3180 = vrcp.pop %v3172
      %v3181 = vmul.f32 %v3134, %v3173
      %v3182 = vmul.f32 %v3136, %v3174
      %v3183 = vmul.f32 %v3138, %v3175
      %v3184 = vmul.f32 %v3140, %v3176
      %v3185 = vmul.f32 %v3142, %v3177
      %v3186 = vmul.f32 %v3144, %v3178
      %v3187 = vmul.f32 %v3146, %v3179
      %v3188 = vmul.f32 %v3148, %v3180
      %3189 = vrot.lane.b32.xlu0 %v305, 40
      %v3190 = vpop.permute.xlu0 %3189
      %3191 = vrot.lane.b32.xlu0 %v310, 40
      %v3192 = vpop.permute.xlu0 %3191
      %v3196 = vsel %vm700, %v3181, 0
      %v3199 = vsel %vm700, %v3182, 0
      %3201 = vmatprep.subr.mxu0 0.0
      %3202 = vmatpush1.msra.mxu0 %v3190
      %3203 = vmatprep.subr.mxu0 0.0
      %3204 = vmatpush1.msra.mxu0 %v3192
      %3205 = vmatprep.subr.mxu0 0.0
      %3206 = vmatpush1.msra.mxu0 0.0
      %3207 = vmatprep.subr.mxu0 0.0
      %3208 = vmatpush1.msra.mxu0 0.0
      %3209 = vmatprep.subr.mxu0 0.0
      %3210 = vmatpush1.msra.mxu0 0.0
      %3211 = vmatprep.subr.mxu0 0.0
      %3212 = vmatpush1.msra.mxu0 0.0
      %3213 = vmatprep.subr.mxu0 0.0
      %3214 = vmatpush1.msra.mxu0 0.0
      %3215 = vmatprep.subr.mxu0 0.0
      %3216 = vmatpush1.msra.mxu0 0.0
      %3217 = vmatprep.subr.mxu0 0.0
      %3218 = vmatpush1.msra.mxu0 0.0
      %3219 = vmatprep.subr.mxu0 0.0
      %3220 = vmatpush1.msra.mxu0 0.0
      %3221 = vmatprep.subr.mxu0 0.0
      %3222 = vmatpush1.msra.mxu0 0.0
      %3223 = vmatprep.subr.mxu0 0.0
      %3224 = vmatpush1.msra.mxu0 0.0
      %3225 = vmatprep.subr.mxu0 0.0
      %3226 = vmatpush1.msra.mxu0 0.0
      %3227 = vmatprep.subr.mxu0 0.0
      %3228 = vmatpush1.msra.mxu0 0.0
      %3229 = vmatprep.subr.mxu0 0.0
      %3230 = vmatpush1.msra.mxu0 0.0
      %3231 = vmatprep.subr.mxu0 0.0
      %3232 = vmatpush1.msra.mxu0 0.0
      %3233 = vmatprep.subr.mxu0 0.0
      %3234 = vmatpush1.msra.mxu0 0.0
      %3235 = vmatprep.subr.mxu0 0.0
      %3236 = vmatpush1.msra.mxu0 0.0
      %3237 = vmatprep.subr.mxu0 0.0
      %3238 = vmatpush1.msra.mxu0 0.0
      %3239 = vmatprep.subr.mxu0 0.0
      %3240 = vmatpush1.msra.mxu0 0.0
      %3241 = vmatprep.subr.mxu0 0.0
      %3242 = vmatpush1.msra.mxu0 0.0
      %3243 = vmatprep.subr.mxu0 0.0
      %3244 = vmatpush1.msra.mxu0 0.0
      %3245 = vmatprep.subr.mxu0 0.0
      %3246 = vmatpush1.msra.mxu0 0.0
      %3247 = vmatprep.subr.mxu0 0.0
      %3248 = vmatpush1.msra.mxu0 0.0
      %3249 = vmatprep.subr.mxu0 0.0
      %3250 = vmatpush1.msra.mxu0 0.0
      %3251 = vmatprep.subr.mxu0 0.0
      %3252 = vmatpush1.msra.mxu0 0.0
      %3253 = vmatprep.subr.mxu0 0.0
      %3254 = vmatpush1.msra.mxu0 0.0
      %3255 = vmatprep.subr.mxu0 0.0
      %3256 = vmatpush1.msra.mxu0 0.0
      %3257 = vmatprep.subr.mxu0 0.0
      %3258 = vmatpush1.msra.mxu0 0.0
      %3259 = vmatprep.subr.mxu0 0.0
      %3260 = vmatpush1.msra.mxu0 0.0
      %3261 = vmatprep.subr.mxu0 0.0
      %3262 = vmatpush1.msra.mxu0 0.0
      %3263 = vmatprep.subr.mxu0 0.0
      %3264 = vmatpush1.msra.mxu0 0.0
      %3265 = vmatprep.mubr.f32.mxu0 0.0
      %3266 = vmatmul.mubr.f32.gmra.mrb[0].mxu0 %v3196
      %v3267 = vpop.f32.mrb[0].mxu0
      %v3268 = vadd.f32 0.0, %v3267
      %v3269 = vpop.f32.mrb[0].mxu0
      %3270 = vmatprep.mubr.f32.mxu0 0.0
      %3271 = vmatmul.mubr.f32.gmra.mrb[0].mxu0 %v3199
      %v3272 = vpop.f32.mrb[0].mxu0
      %v3273 = vadd.f32 0.0, %v3272
      %v3274 = vpop.f32.mrb[0].mxu0
      %3275 = vdwg.mxu0
      %3276 = vrot.lane.b32.xlu0 %v315, 40
      %v3277 = vpop.permute.xlu0 %3276
      %3278 = vrot.lane.b32.xlu0 %v320, 40
      %v3279 = vpop.permute.xlu0 %3278
      %v3283 = vsel %vm700, %v3183, 0
      %v3286 = vsel %vm700, %v3184, 0
      %3288 = vmatprep.subr.mxu0 0.0
      %3289 = vmatpush1.msra.mxu0 %v3277
      %3290 = vmatprep.subr.mxu0 0.0
      %3291 = vmatpush1.msra.mxu0 %v3279
      %3292 = vmatprep.subr.mxu0 0.0
      %3293 = vmatpush1.msra.mxu0 0.0
      %3294 = vmatprep.subr.mxu0 0.0
      %3295 = vmatpush1.msra.mxu0 0.0
      %3296 = vmatprep.subr.mxu0 0.0
      %3297 = vmatpush1.msra.mxu0 0.0
      %3298 = vmatprep.subr.mxu0 0.0
      %3299 = vmatpush1.msra.mxu0 0.0
      %3300 = vmatprep.subr.mxu0 0.0
      %3301 = vmatpush1.msra.mxu0 0.0
      %3302 = vmatprep.subr.mxu0 0.0
      %3303 = vmatpush1.msra.mxu0 0.0
      %3304 = vmatprep.subr.mxu0 0.0
      %3305 = vmatpush1.msra.mxu0 0.0
      %3306 = vmatprep.subr.mxu0 0.0
      %3307 = vmatpush1.msra.mxu0 0.0
      %3308 = vmatprep.subr.mxu0 0.0
      %3309 = vmatpush1.msra.mxu0 0.0
      %3310 = vmatprep.subr.mxu0 0.0
      %3311 = vmatpush1.msra.mxu0 0.0
      %3312 = vmatprep.subr.mxu0 0.0
      %3313 = vmatpush1.msra.mxu0 0.0
      %3314 = vmatprep.subr.mxu0 0.0
      %3315 = vmatpush1.msra.mxu0 0.0
      %3316 = vmatprep.subr.mxu0 0.0
      %3317 = vmatpush1.msra.mxu0 0.0
      %3318 = vmatprep.subr.mxu0 0.0
      %3319 = vmatpush1.msra.mxu0 0.0
      %3320 = vmatprep.subr.mxu0 0.0
      %3321 = vmatpush1.msra.mxu0 0.0
      %3322 = vmatprep.subr.mxu0 0.0
      %3323 = vmatpush1.msra.mxu0 0.0
      %3324 = vmatprep.subr.mxu0 0.0
      %3325 = vmatpush1.msra.mxu0 0.0
      %3326 = vmatprep.subr.mxu0 0.0
      %3327 = vmatpush1.msra.mxu0 0.0
      %3328 = vmatprep.subr.mxu0 0.0
      %3329 = vmatpush1.msra.mxu0 0.0
      %3330 = vmatprep.subr.mxu0 0.0
      %3331 = vmatpush1.msra.mxu0 0.0
      %3332 = vmatprep.subr.mxu0 0.0
      %3333 = vmatpush1.msra.mxu0 0.0
      %3334 = vmatprep.subr.mxu0 0.0
      %3335 = vmatpush1.msra.mxu0 0.0
      %3336 = vmatprep.subr.mxu0 0.0
      %3337 = vmatpush1.msra.mxu0 0.0
      %3338 = vmatprep.subr.mxu0 0.0
      %3339 = vmatpush1.msra.mxu0 0.0
      %3340 = vmatprep.subr.mxu0 0.0
      %3341 = vmatpush1.msra.mxu0 0.0
      %3342 = vmatprep.subr.mxu0 0.0
      %3343 = vmatpush1.msra.mxu0 0.0
      %3344 = vmatprep.subr.mxu0 0.0
      %3345 = vmatpush1.msra.mxu0 0.0
      %3346 = vmatprep.subr.mxu0 0.0
      %3347 = vmatpush1.msra.mxu0 0.0
      %3348 = vmatprep.subr.mxu0 0.0
      %3349 = vmatpush1.msra.mxu0 0.0
      %3350 = vmatprep.subr.mxu0 0.0
      %3351 = vmatpush1.msra.mxu0 0.0
      %3352 = vmatprep.mubr.f32.mxu0 0.0
      %3353 = vmatmul.mubr.f32.gmra.mrb[0].mxu0 %v3283
      %v3354 = vpop.f32.mrb[0].mxu0
      %v3355 = vadd.f32 0.0, %v3354
      %v3356 = vpop.f32.mrb[0].mxu0
      %3357 = vmatprep.mubr.f32.mxu0 0.0
      %3358 = vmatmul.mubr.f32.gmra.mrb[0].mxu0 %v3286
      %v3359 = vpop.f32.mrb[0].mxu0
      %v3360 = vadd.f32 0.0, %v3359
      %v3361 = vpop.f32.mrb[0].mxu0
      %3362 = vdwg.mxu0
      %3363 = vrot.lane.b32.xlu0 %v325, 40
      %v3364 = vpop.permute.xlu0 %3363
      %3365 = vrot.lane.b32.xlu0 %v330, 40
      %v3366 = vpop.permute.xlu0 %3365
      %v3370 = vsel %vm700, %v3185, 0
      %v3373 = vsel %vm700, %v3186, 0
      %3375 = vmatprep.subr.mxu0 0.0
      %3376 = vmatpush1.msra.mxu0 %v3364
      %3377 = vmatprep.subr.mxu0 0.0
      %3378 = vmatpush1.msra.mxu0 %v3366
      %3379 = vmatprep.subr.mxu0 0.0
      %3380 = vmatpush1.msra.mxu0 0.0
      %3381 = vmatprep.subr.mxu0 0.0
      %3382 = vmatpush1.msra.mxu0 0.0
      %3383 = vmatprep.subr.mxu0 0.0
      %3384 = vmatpush1.msra.mxu0 0.0
      %3385 = vmatprep.subr.mxu0 0.0
      %3386 = vmatpush1.msra.mxu0 0.0
      %3387 = vmatprep.subr.mxu0 0.0
      %3388 = vmatpush1.msra.mxu0 0.0
      %3389 = vmatprep.subr.mxu0 0.0
      %3390 = vmatpush1.msra.mxu0 0.0
      %3391 = vmatprep.subr.mxu0 0.0
      %3392 = vmatpush1.msra.mxu0 0.0
      %3393 = vmatprep.subr.mxu0 0.0
      %3394 = vmatpush1.msra.mxu0 0.0
      %3395 = vmatprep.subr.mxu0 0.0
      %3396 = vmatpush1.msra.mxu0 0.0
      %3397 = vmatprep.subr.mxu0 0.0
      %3398 = vmatpush1.msra.mxu0 0.0
      %3399 = vmatprep.subr.mxu0 0.0
      %3400 = vmatpush1.msra.mxu0 0.0
      %3401 = vmatprep.subr.mxu0 0.0
      %3402 = vmatpush1.msra.mxu0 0.0
      %3403 = vmatprep.subr.mxu0 0.0
      %3404 = vmatpush1.msra.mxu0 0.0
      %3405 = vmatprep.subr.mxu0 0.0
      %3406 = vmatpush1.msra.mxu0 0.0
      %3407 = vmatprep.subr.mxu0 0.0
      %3408 = vmatpush1.msra.mxu0 0.0
      %3409 = vmatprep.subr.mxu0 0.0
      %3410 = vmatpush1.msra.mxu0 0.0
      %3411 = vmatprep.subr.mxu0 0.0
      %3412 = vmatpush1.msra.mxu0 0.0
      %3413 = vmatprep.subr.mxu0 0.0
      %3414 = vmatpush1.msra.mxu0 0.0
      %3415 = vmatprep.subr.mxu0 0.0
      %3416 = vmatpush1.msra.mxu0 0.0
      %3417 = vmatprep.subr.mxu0 0.0
      %3418 = vmatpush1.msra.mxu0 0.0
      %3419 = vmatprep.subr.mxu0 0.0
      %3420 = vmatpush1.msra.mxu0 0.0
      %3421 = vmatprep.subr.mxu0 0.0
      %3422 = vmatpush1.msra.mxu0 0.0
      %3423 = vmatprep.subr.mxu0 0.0
      %3424 = vmatpush1.msra.mxu0 0.0
      %3425 = vmatprep.subr.mxu0 0.0
      %3426 = vmatpush1.msra.mxu0 0.0
      %3427 = vmatprep.subr.mxu0 0.0
      %3428 = vmatpush1.msra.mxu0 0.0
      %3429 = vmatprep.subr.mxu0 0.0
      %3430 = vmatpush1.msra.mxu0 0.0
      %3431 = vmatprep.subr.mxu0 0.0
      %3432 = vmatpush1.msra.mxu0 0.0
      %3433 = vmatprep.subr.mxu0 0.0
      %3434 = vmatpush1.msra.mxu0 0.0
      %3435 = vmatprep.subr.mxu0 0.0
      %3436 = vmatpush1.msra.mxu0 0.0
      %3437 = vmatprep.subr.mxu0 0.0
      %3438 = vmatpush1.msra.mxu0 0.0
      %3439 = vmatprep.mubr.f32.mxu0 0.0
      %3440 = vmatmul.mubr.f32.gmra.mrb[0].mxu0 %v3370
      %v3441 = vpop.f32.mrb[0].mxu0
      %v3442 = vadd.f32 0.0, %v3441
      %v3443 = vpop.f32.mrb[0].mxu0
      %3444 = vmatprep.mubr.f32.mxu0 0.0
      %3445 = vmatmul.mubr.f32.gmra.mrb[0].mxu0 %v3373
      %v3446 = vpop.f32.mrb[0].mxu0
      %v3447 = vadd.f32 0.0, %v3446
      %v3448 = vpop.f32.mrb[0].mxu0
      %3449 = vdwg.mxu0
      %3450 = vrot.lane.b32.xlu0 %v335, 40
      %v3451 = vpop.permute.xlu0 %3450
      %3452 = vrot.lane.b32.xlu0 %v340, 40
      %v3453 = vpop.permute.xlu0 %3452
      %v3457 = vsel %vm700, %v3187, 0
      %v3460 = vsel %vm700, %v3188, 0
      %3462 = vmatprep.subr.mxu0 0.0
      %3463 = vmatpush1.msra.mxu0 %v3451
      %3464 = vmatprep.subr.mxu0 0.0
      %3465 = vmatpush1.msra.mxu0 %v3453
      %3466 = vmatprep.subr.mxu0 0.0
      %3467 = vmatpush1.msra.mxu0 0.0
      %3468 = vmatprep.subr.mxu0 0.0
      %3469 = vmatpush1.msra.mxu0 0.0
      %3470 = vmatprep.subr.mxu0 0.0
      %3471 = vmatpush1.msra.mxu0 0.0
      %3472 = vmatprep.subr.mxu0 0.0
      %3473 = vmatpush1.msra.mxu0 0.0
      %3474 = vmatprep.subr.mxu0 0.0
      %3475 = vmatpush1.msra.mxu0 0.0
      %3476 = vmatprep.subr.mxu0 0.0
      %3477 = vmatpush1.msra.mxu0 0.0
      %3478 = vmatprep.subr.mxu0 0.0
      %3479 = vmatpush1.msra.mxu0 0.0
      %3480 = vmatprep.subr.mxu0 0.0
      %3481 = vmatpush1.msra.mxu0 0.0
      %3482 = vmatprep.subr.mxu0 0.0
      %3483 = vmatpush1.msra.mxu0 0.0
      %3484 = vmatprep.subr.mxu0 0.0
      %3485 = vmatpush1.msra.mxu0 0.0
      %3486 = vmatprep.subr.mxu0 0.0
      %3487 = vmatpush1.msra.mxu0 0.0
      %3488 = vmatprep.subr.mxu0 0.0
      %3489 = vmatpush1.msra.mxu0 0.0
      %3490 = vmatprep.subr.mxu0 0.0
      %3491 = vmatpush1.msra.mxu0 0.0
      %3492 = vmatprep.subr.mxu0 0.0
      %3493 = vmatpush1.msra.mxu0 0.0
      %3494 = vmatprep.subr.mxu0 0.0
      %3495 = vmatpush1.msra.mxu0 0.0
      %3496 = vmatprep.subr.mxu0 0.0
      %3497 = vmatpush1.msra.mxu0 0.0
      %3498 = vmatprep.subr.mxu0 0.0
      %3499 = vmatpush1.msra.mxu0 0.0
      %3500 = vmatprep.subr.mxu0 0.0
      %3501 = vmatpush1.msra.mxu0 0.0
      %3502 = vmatprep.subr.mxu0 0.0
      %3503 = vmatpush1.msra.mxu0 0.0
      %3504 = vmatprep.subr.mxu0 0.0
      %3505 = vmatpush1.msra.mxu0 0.0
      %3506 = vmatprep.subr.mxu0 0.0
      %3507 = vmatpush1.msra.mxu0 0.0
      %3508 = vmatprep.subr.mxu0 0.0
      %3509 = vmatpush1.msra.mxu0 0.0
      %3510 = vmatprep.subr.mxu0 0.0
      %3511 = vmatpush1.msra.mxu0 0.0
      %3512 = vmatprep.subr.mxu0 0.0
      %3513 = vmatpush1.msra.mxu0 0.0
      %3514 = vmatprep.subr.mxu0 0.0
      %3515 = vmatpush1.msra.mxu0 0.0
      %3516 = vmatprep.subr.mxu0 0.0
      %3517 = vmatpush1.msra.mxu0 0.0
      %3518 = vmatprep.subr.mxu0 0.0
      %3519 = vmatpush1.msra.mxu0 0.0
      %3520 = vmatprep.subr.mxu0 0.0
      %3521 = vmatpush1.msra.mxu0 0.0
      %3522 = vmatprep.subr.mxu0 0.0
      %3523 = vmatpush1.msra.mxu0 0.0
      %3524 = vmatprep.subr.mxu0 0.0
      %3525 = vmatpush1.msra.mxu0 0.0
      %3526 = vmatprep.mubr.f32.mxu0 0.0
      %3527 = vmatmul.mubr.f32.gmra.mrb[0].mxu0 %v3457
      %v3528 = vpop.f32.mrb[0].mxu0
      %v3529 = vadd.f32 0.0, %v3528
      %v3530 = vpop.f32.mrb[0].mxu0
      %3531 = vmatprep.mubr.f32.mxu0 0.0
      %3532 = vmatmul.mubr.f32.gmra.mrb[0].mxu0 %v3460
      %v3533 = vpop.f32.mrb[0].mxu0
      %v3534 = vadd.f32 0.0, %v3533
      %v3535 = vpop.f32.mrb[0].mxu0
      %3536 = vdwg.mxu0
      %3545 = vrot.lane.b32.xlu0 %v1668, 8
      %v3546 = vpop.permute.xlu0 %3545
      %3547 = vrot.lane.b32.xlu0 %v1673, 8
      %v3548 = vpop.permute.xlu0 %3547
      %3549 = vrot.lane.b32.xlu0 %v1755, 8
      %v3550 = vpop.permute.xlu0 %3549
      %3551 = vrot.lane.b32.xlu0 %v1760, 8
      %v3552 = vpop.permute.xlu0 %3551
      %3553 = vrot.lane.b32.xlu0 %v1842, 8
      %v3554 = vpop.permute.xlu0 %3553
      %3555 = vrot.lane.b32.xlu0 %v1847, 8
      %v3556 = vpop.permute.xlu0 %3555
      %3557 = vrot.lane.b32.xlu0 %v1929, 8
      %v3558 = vpop.permute.xlu0 %3557
      %3559 = vrot.lane.b32.xlu0 %v1934, 8
      %v3560 = vpop.permute.xlu0 %3559
      %3577 = vrot.lane.b32.xlu0 %v2468, 16
      %v3578 = vpop.permute.xlu0 %3577
      %3579 = vrot.lane.b32.xlu0 %v2473, 16
      %v3580 = vpop.permute.xlu0 %3579
      %3581 = vrot.lane.b32.xlu0 %v2555, 16
      %v3582 = vpop.permute.xlu0 %3581
      %3583 = vrot.lane.b32.xlu0 %v2560, 16
      %v3584 = vpop.permute.xlu0 %3583
      %3585 = vrot.lane.b32.xlu0 %v2642, 16
      %v3586 = vpop.permute.xlu0 %3585
      %3587 = vrot.lane.b32.xlu0 %v2647, 16
      %v3588 = vpop.permute.xlu0 %3587
      %3589 = vrot.lane.b32.xlu0 %v2729, 16
      %v3590 = vpop.permute.xlu0 %3589
      %3591 = vrot.lane.b32.xlu0 %v2734, 16
      %v3592 = vpop.permute.xlu0 %3591
      %3609 = vrot.lane.b32.xlu0 %v3268, 24
      %v3610 = vpop.permute.xlu0 %3609
      %3611 = vrot.lane.b32.xlu0 %v3273, 24
      %v3612 = vpop.permute.xlu0 %3611
      %3613 = vrot.lane.b32.xlu0 %v3355, 24
      %v3614 = vpop.permute.xlu0 %3613
      %3615 = vrot.lane.b32.xlu0 %v3360, 24
      %v3616 = vpop.permute.xlu0 %3615
      %3617 = vrot.lane.b32.xlu0 %v3442, 24
      %v3618 = vpop.permute.xlu0 %3617
      %3619 = vrot.lane.b32.xlu0 %v3447, 24
      %v3620 = vpop.permute.xlu0 %3619
      %3621 = vrot.lane.b32.xlu0 %v3529, 24
      %v3622 = vpop.permute.xlu0 %3621
      %3623 = vrot.lane.b32.xlu0 %v3534, 24
      %v3624 = vpop.permute.xlu0 %3623
      %v3633 = vsel %vm349, %v868, %v3546
      %v3634 = vsel %vm349, %v873, %v3548
      %v3635 = vsel %vm349, %v955, %v3550
      %v3636 = vsel %vm349, %v960, %v3552
      %v3637 = vsel %vm349, %v1042, %v3554
      %v3638 = vsel %vm349, %v1047, %v3556
      %v3639 = vsel %vm349, %v1129, %v3558
      %v3640 = vsel %vm349, %v1134, %v3560
      %v3641 = vsel %vm700, %v3633, %v3578
      %v3642 = vsel %vm700, %v3634, %v3580
      %v3643 = vsel %vm700, %v3635, %v3582
      %v3644 = vsel %vm700, %v3636, %v3584
      %v3645 = vsel %vm700, %v3637, %v3586
      %v3646 = vsel %vm700, %v3638, %v3588
      %v3647 = vsel %vm700, %v3639, %v3590
      %v3648 = vsel %vm700, %v3640, %v3592
      %vm3649 = vcmask 195584
      %v3650 = vsel %vm3649, %v3641, %v3610
      %v3651 = vsel %vm3649, %v3642, %v3612
      %v3652 = vsel %vm3649, %v3643, %v3614
      %v3653 = vsel %vm3649, %v3644, %v3616
      %v3654 = vsel %vm3649, %v3645, %v3618
      %v3655 = vsel %vm3649, %v3646, %v3620
      %v3656 = vsel %vm3649, %v3647, %v3622
      %v3657 = vsel %vm3649, %v3648, %v3624
      %v3658 = vld [vmem:[%s2] sm:$0xff]
      %v3659 = vld [vmem:[%s2 + $0x8] sm:$0xff]
      %v3660 = vld [vmem:[%s2 + $0x10] sm:$0xff]
      %v3661 = vld [vmem:[%s2 + $0x18] sm:$0xff]
      %v3662 = vld [vmem:[%s3] sm:$0x1]
      %v3664 = vlaneseq
      %v3665 = vshrl.u32 %v3664, 7
      %v3666 = vsub.s32 0, %v3665
      %v3667 = vrot.slane %v3662, %v3666
      %v3670 = vsel %vm213, %v3650, 0
      %v3673 = vsel %vm213, %v3651, 0
      %v3676 = vsel %vm213, %v3652, 0
      %v3679 = vsel %vm213, %v3653, 0
      %v3682 = vsel %vm213, %v3654, 0
      %v3685 = vsel %vm213, %v3655, 0
      %v3688 = vsel %vm213, %v3656, 0
      %v3691 = vsel %vm213, %v3657, 0
      %3693 = vmatprep.subr.mxu0 0.0
      %3694 = vmatpush1.msra.mxu0 %v3658
      %3695 = vmatprep.subr.mxu0 0.0
      %3696 = vmatpush1.msra.mxu0 %v3659
      %3697 = vmatprep.subr.mxu0 0.0
      %3698 = vmatpush1.msra.mxu0 %v3660
      %3699 = vmatprep.subr.mxu0 0.0
      %3700 = vmatpush1.msra.mxu0 %v3661
      %3701 = vmatprep.subr.mxu0 0.0
      %3702 = vmatpush1.msra.mxu0 0.0
      %3703 = vmatprep.subr.mxu0 0.0
      %3704 = vmatpush1.msra.mxu0 0.0
      %3705 = vmatprep.subr.mxu0 0.0
      %3706 = vmatpush1.msra.mxu0 0.0
      %3707 = vmatprep.subr.mxu0 0.0
      %3708 = vmatpush1.msra.mxu0 0.0
      %3709 = vmatprep.subr.mxu0 0.0
      %3710 = vmatpush1.msra.mxu0 0.0
      %3711 = vmatprep.subr.mxu0 0.0
      %3712 = vmatpush1.msra.mxu0 0.0
      %3713 = vmatprep.subr.mxu0 0.0
      %3714 = vmatpush1.msra.mxu0 0.0
      %3715 = vmatprep.subr.mxu0 0.0
      %3716 = vmatpush1.msra.mxu0 0.0
      %3717 = vmatprep.subr.mxu0 0.0
      %3718 = vmatpush1.msra.mxu0 0.0
      %3719 = vmatprep.subr.mxu0 0.0
      %3720 = vmatpush1.msra.mxu0 0.0
      %3721 = vmatprep.subr.mxu0 0.0
      %3722 = vmatpush1.msra.mxu0 0.0
      %3723 = vmatprep.subr.mxu0 0.0
      %3724 = vmatpush1.msra.mxu0 0.0
      %3725 = vmatprep.subr.mxu0 0.0
      %3726 = vmatpush1.msra.mxu0 0.0
      %3727 = vmatprep.subr.mxu0 0.0
      %3728 = vmatpush1.msra.mxu0 0.0
      %3729 = vmatprep.subr.mxu0 0.0
      %3730 = vmatpush1.msra.mxu0 0.0
      %3731 = vmatprep.subr.mxu0 0.0
      %3732 = vmatpush1.msra.mxu0 0.0
      %3733 = vmatprep.subr.mxu0 0.0
      %3734 = vmatpush1.msra.mxu0 0.0
      %3735 = vmatprep.subr.mxu0 0.0
      %3736 = vmatpush1.msra.mxu0 0.0
      %3737 = vmatprep.subr.mxu0 0.0
      %3738 = vmatpush1.msra.mxu0 0.0
      %3739 = vmatprep.subr.mxu0 0.0
      %3740 = vmatpush1.msra.mxu0 0.0
      %3741 = vmatprep.subr.mxu0 0.0
      %3742 = vmatpush1.msra.mxu0 0.0
      %3743 = vmatprep.subr.mxu0 0.0
      %3744 = vmatpush1.msra.mxu0 0.0
      %3745 = vmatprep.subr.mxu0 0.0
      %3746 = vmatpush1.msra.mxu0 0.0
      %3747 = vmatprep.subr.mxu0 0.0
      %3748 = vmatpush1.msra.mxu0 0.0
      %3749 = vmatprep.subr.mxu0 0.0
      %3750 = vmatpush1.msra.mxu0 0.0
      %3751 = vmatprep.subr.mxu0 0.0
      %3752 = vmatpush1.msra.mxu0 0.0
      %3753 = vmatprep.subr.mxu0 0.0
      %3754 = vmatpush1.msra.mxu0 0.0
      %3755 = vmatprep.subr.mxu0 0.0
      %3756 = vmatpush1.msra.mxu0 0.0
      %3757 = vmatprep.mubr.f32.mxu0 0.0
      %3758 = vmatmul.mubr.f32.gmra.mrb[0].mxu0 %v3670
      %v3759 = vpop.f32.mrb[0].mxu0
      %v3760 = vadd.f32 %v3667, %v3759
      %v3761 = vpop.f32.mrb[0].mxu0
      %3762 = vmatprep.mubr.f32.mxu0 0.0
      %3763 = vmatmul.mubr.f32.gmra.mrb[0].mxu0 %v3673
      %v3764 = vpop.f32.mrb[0].mxu0
      %v3765 = vadd.f32 %v3667, %v3764
      %v3766 = vpop.f32.mrb[0].mxu0
      %3767 = vmatprep.mubr.f32.mxu0 0.0
      %3768 = vmatmul.mubr.f32.gmra.mrb[0].mxu0 %v3676
      %v3769 = vpop.f32.mrb[0].mxu0
      %v3770 = vadd.f32 %v3667, %v3769
      %v3771 = vpop.f32.mrb[0].mxu0
      %3772 = vmatprep.mubr.f32.mxu0 0.0
      %3773 = vmatmul.mubr.f32.gmra.mrb[0].mxu0 %v3679
      %v3774 = vpop.f32.mrb[0].mxu0
      %v3775 = vadd.f32 %v3667, %v3774
      %v3776 = vpop.f32.mrb[0].mxu0
      %3777 = vmatprep.mubr.f32.mxu0 0.0
      %3778 = vmatmul.mubr.f32.gmra.mrb[0].mxu0 %v3682
      %v3779 = vpop.f32.mrb[0].mxu0
      %v3780 = vadd.f32 %v3667, %v3779
      %v3781 = vpop.f32.mrb[0].mxu0
      %3782 = vmatprep.mubr.f32.mxu0 0.0
      %3783 = vmatmul.mubr.f32.gmra.mrb[0].mxu0 %v3685
      %v3784 = vpop.f32.mrb[0].mxu0
      %v3785 = vadd.f32 %v3667, %v3784
      %v3786 = vpop.f32.mrb[0].mxu0
      %3787 = vmatprep.mubr.f32.mxu0 0.0
      %3788 = vmatmul.mubr.f32.gmra.mrb[0].mxu0 %v3688
      %v3789 = vpop.f32.mrb[0].mxu0
      %v3790 = vadd.f32 %v3667, %v3789
      %v3791 = vpop.f32.mrb[0].mxu0
      %3792 = vmatprep.mubr.f32.mxu0 0.0
      %3793 = vmatmul.mubr.f32.gmra.mrb[0].mxu0 %v3691
      %v3794 = vpop.f32.mrb[0].mxu0
      %v3795 = vadd.f32 %v3667, %v3794
      %v3796 = vpop.f32.mrb[0].mxu0
      %3797 = vdwg.mxu0
      %3798 = vst.msk [vmem:[%s199] sm:$0xff] %vm213, %v3760
      %3799 = vst.msk [vmem:[%s199 + $0x8] sm:$0xff] %vm213, %v3765
      %3800 = vst.msk [vmem:[%s199 + $0x10] sm:$0xff] %vm213, %v3770
      %3801 = vst.msk [vmem:[%s199 + $0x18] sm:$0xff] %vm213, %v3775
      %3802 = vst.msk [vmem:[%s199 + $0x20] sm:$0xff] %vm213, %v3780
      %3803 = vst.msk [vmem:[%s199 + $0x28] sm:$0xff] %vm213, %v3785
      %3804 = vst.msk [vmem:[%s199 + $0x30] sm:$0xff] %vm213, %v3790
      %3805 = vst.msk [vmem:[%s199 + $0x38] sm:$0xff] %vm213, %v3795
      %s3806 = smul.u32 8, %s15
      %p3807 = scmp.lt.s32.totalorder %s3806, 15
      %s3808 = scalar_select %p3807, %s3806, 15
      %s3809 = smul.addr %s3808, 8
      %s3810 = scalar_lea.vmem %s4, %s3809
      // Predicated region
      $region37: #{tpu_custom_call.1} parent=35 // pred_check
        %p3811 = pneg %p122
      $region38: #{tpu_custom_call.1} parent=35 // pred_check_branch
        %3813 = sbr.rel (%p3811) target = $region40
      $region39: #{tpu_custom_call.1} parent=35 // pred_region
        %s3814 = smul.u32 8, %s15
      $region40: #{tpu_custom_call.1} parent=35 // pred_fallthru
        _
    $region36: #{tpu_custom_call.1} parent=5 // pred_fallthru
      _
    %p3815 = scmp.le.s32.totalorder 2, %s10
    // Predicated region
    $region41: #{tpu_custom_call.1} parent=5 // pred_check
      %p3816 = pneg %p3815
    $region42: #{tpu_custom_call.1} parent=5 // pred_check_branch
      %3818 = sbr.rel (%p3816) target = $region44
    $region43: #{tpu_custom_call.1} parent=5 // pred_region
      %s3819 = ssub.s32 %s10, 2
      // Predicated region
      $region45: #{tpu_custom_call.1} parent=43 // pred_check
        %p3820 = pneg %p128
      $region46: #{tpu_custom_call.1} parent=43 // pred_check_branch
        %3822 = sbr.rel (%p3820) target = $region48
      $region47: #{tpu_custom_call.1} parent=43 // pred_region
        %s3823 = smul.u32 8, %s16
        %p3824 = scmp.lt.s32.totalorder %s3823, 15
        %s3825 = scalar_select %p3824, %s3823, 15
        %s3826 = smul.addr %s3825, 8
        %s3827 = scalar_lea.vmem %s4, %s3826
      $region48: #{tpu_custom_call.1} parent=43 // pred_fallthru
        _
    $region44: #{tpu_custom_call.1} parent=5 // pred_fallthru
      _
  $region6: #{tpu_custom_call.1} parent=0 // loop_footer
    %s14 = sadd.s32 1, %s10
  $region7: #{tpu_custom_call.1} parent=0 // loop_footer_branch
    %9 = sbr.rel target = $region3
  $region8: #{tpu_custom_call.1} parent=0 // loop_exit
    _

// kernel: tpu_custom_call.1
$region0: #{tpu_custom_call.1}
  #allocation0 [shape = 'u32[]', space=smem, size = 0x4, offset = 0x4, fixed_abs, tag = 'smem constant byte address 0x4 - core index']
  #allocation1 [shape = 'u32[144,128]{1,0:T(1,128)}', space=vmem, size = 0x12000, scoped, tag = 'internal scratch']
  %s0 = inlined_call_operand.vmem [shape: f32[128,32], index: 0, kind: input, shape index: {}]
  %s1 = inlined_call_operand.vmem [shape: f32[32,96], index: 1, kind: input, shape index: {}]
  %s2 = inlined_call_operand.vmem [shape: f32[32,32], index: 2, kind: input, shape index: {}]
  %s3 = inlined_call_operand.vmem [shape: f32[1,32], index: 3, kind: input, shape index: {}]
  %s4 = inlined_call_operand.vmem [shape: f32[128,32], index: 4, kind: output, shape index: {}]
  %s5 = sld [smem:[#allocation0]]
  $region49: #{tpu_custom_call.1} parent=0
    _
  %s7 = ssub.s32 1, %s5
  %s8 = scalar_select 0, %s7, %s5
  loop: start=0, step=1, limit=4
  $region2: #{tpu_custom_call.1} parent=0 // loop_pre_header
    _
  $region3: #{tpu_custom_call.1} parent=0 // loop_header
    %s10 = sphi 0, %s14
    %p11 = scmp.ge.s32.totalorder %s10, 4
    %s20 = sphi 0, %s22
    %s23 = sphi 0, %s20
    %s24 = sphi 0, %s23
    %s40 = sphi 0, %s24
    %s44 = sphi 0, %s44
    %s46 = sphi 0, %s44
    %s47 = sphi 0, %s46
    %s61 = sphi 0, %s47
    %s65 = sphi 0, %s65
    %s67 = sphi 0, %s65
    %s68 = sphi 0, %s67
    %s82 = sphi 0, %s68
    %s86 = sphi 0, %s86
    %s88 = sphi 0, %s86
    %s89 = sphi 0, %s88
    %s103 = sphi 0, %s89
    %s109 = sphi 0, %s111
    %s112 = sphi 0, %s109
    %s113 = sphi 0, %s112
    %s129 = sphi 0, %s113
  $region4: #{tpu_custom_call.1} parent=0 // loop_header_branch
    %13 = sbr.rel (%p11) target = $region8
  $region5: #{tpu_custom_call.1} parent=0 // loop_body
    %s15 = ssub.s32 %s10, 1
    %s16 = ssub.s32 %s10, 2
    %s17 = sadd.s32 %s10, 1
    %s18 = ssub.s32 %s10, %s17
    %p19 = scmp.eq.s32.totalorder %s18, 0
    %s21 = sadd.s32 %s20, 1
    %s22 = scalar_select %p19, %s20, %s21
    %p25 = pneg %p19
    %p26 = scmp.eq.s32.totalorder %s10, 1
    %p27 = por %p25, %p26
    %p28 = scmp.ne.s32.totalorder %s20, %s23
    %p29 = scmp.eq.s32.totalorder %s10, 0
    %p30 = por %p28, %p29
    %p31 = scmp.ne.s32.totalorder %s20, %s23
    %p32 = scmp.eq.s32.totalorder %s15, 1
    %p33 = por %p31, %p32
    %p34 = scmp.ne.s32.totalorder %s23, %s24
    %p35 = scmp.eq.s32.totalorder %s15, 0
    %p36 = por %p34, %p35
    %p37 = scmp.ne.s32.totalorder %s23, %s24
    %p38 = scmp.eq.s32.totalorder %s16, 1
    %p39 = por %p37, %p38
    %p41 = scmp.ne.s32.totalorder %s24, %s40
    %p42 = scmp.eq.s32.totalorder %s16, 0
    %p43 = por %p41, %p42
    %s45 = sadd.s32 %s44, 1
    %p48 = scmp.eq.s32.totalorder %s10, 1
    %p49 = scmp.ne.s32.totalorder %s44, %s46
    %p50 = scmp.eq.s32.totalorder %s10, 0
    %p51 = por %p49, %p50
    %p52 = scmp.ne.s32.totalorder %s44, %s46
    %p53 = scmp.eq.s32.totalorder %s15, 1
    %p54 = por %p52, %p53
    %p55 = scmp.ne.s32.totalorder %s46, %s47
    %p56 = scmp.eq.s32.totalorder %s15, 0
    %p57 = por %p55, %p56
    %p58 = scmp.ne.s32.totalorder %s46, %s47
    %p59 = scmp.eq.s32.totalorder %s16, 1
    %p60 = por %p58, %p59
    %p62 = scmp.ne.s32.totalorder %s47, %s61
    %p63 = scmp.eq.s32.totalorder %s16, 0
    %p64 = por %p62, %p63
    %s66 = sadd.s32 %s65, 1
    %p69 = scmp.eq.s32.totalorder %s10, 1
    %p70 = scmp.ne.s32.totalorder %s65, %s67
    %p71 = scmp.eq.s32.totalorder %s10, 0
    %p72 = por %p70, %p71
    %p73 = scmp.ne.s32.totalorder %s65, %s67
    %p74 = scmp.eq.s32.totalorder %s15, 1
    %p75 = por %p73, %p74
    %p76 = scmp.ne.s32.totalorder %s67, %s68
    %p77 = scmp.eq.s32.totalorder %s15, 0
    %p78 = por %p76, %p77
    %p79 = scmp.ne.s32.totalorder %s67, %s68
    %p80 = scmp.eq.s32.totalorder %s16, 1
    %p81 = por %p79, %p80
    %p83 = scmp.ne.s32.totalorder %s68, %s82
    %p84 = scmp.eq.s32.totalorder %s16, 0
    %p85 = por %p83, %p84
    %s87 = sadd.s32 %s86, 1
    %p90 = scmp.eq.s32.totalorder %s10, 1
    %p91 = scmp.ne.s32.totalorder %s86, %s88
    %p92 = scmp.eq.s32.totalorder %s10, 0
    %p93 = por %p91, %p92
    %p94 = scmp.ne.s32.totalorder %s86, %s88
    %p95 = scmp.eq.s32.totalorder %s15, 1
    %p96 = por %p94, %p95
    %p97 = scmp.ne.s32.totalorder %s88, %s89
    %p98 = scmp.eq.s32.totalorder %s15, 0
    %p99 = por %p97, %p98
    %p100 = scmp.ne.s32.totalorder %s88, %s89
    %p101 = scmp.eq.s32.totalorder %s16, 1
    %p102 = por %p100, %p101
    %p104 = scmp.ne.s32.totalorder %s89, %s103
    %p105 = scmp.eq.s32.totalorder %s16, 0
    %p106 = por %p104, %p105
    %s107 = ssub.s32 %s10, %s17
    %p108 = scmp.eq.s32.totalorder %s107, 0
    %s110 = sadd.s32 %s109, 1
    %s111 = scalar_select %p108, %s109, %s110
    %p114 = pneg %p108
    %p115 = scmp.eq.s32.totalorder %s10, 1
    %p116 = por %p114, %p115
    %p117 = scmp.ne.s32.totalorder %s109, %s112
    %p118 = scmp.eq.s32.totalorder %s10, 0
    %p119 = por %p117, %p118
    %p120 = scmp.ne.s32.totalorder %s109, %s112
    %p121 = scmp.eq.s32.totalorder %s15, 1
    %p122 = por %p120, %p121
    %p123 = scmp.ne.s32.totalorder %s112, %s113
    %p124 = scmp.eq.s32.totalorder %s15, 0
    %p125 = por %p123, %p124
    %p126 = scmp.ne.s32.totalorder %s112, %s113
    %p127 = scmp.eq.s32.totalorder %s16, 1
    %p128 = por %p126, %p127
    %p130 = scmp.ne.s32.totalorder %s113, %s129
    %p131 = scmp.eq.s32.totalorder %s16, 0
    %p132 = por %p130, %p131
    %p133 = scmp.le.s32.totalorder 1, %s10
    %p134 = scmp.lt.s32.totalorder %s10, 3
    %p135 = pnand %p133, %p134
    %p136 = pneg %p135
    // Predicated region
    $region9: #{tpu_custom_call.1} parent=5 // pred_check
      _
    $region10: #{tpu_custom_call.1} parent=5 // pred_check_branch
      %138 = sbr.rel (%p135) target = $region12
    $region11: #{tpu_custom_call.1} parent=5 // pred_region
      %s139 = ssub.s32 %s10, 1
      // Predicated region
      $region13: #{tpu_custom_call.1} parent=11 // pred_check
        %p140 = pneg %p57
      $region14: #{tpu_custom_call.1} parent=11 // pred_check_branch
        %142 = sbr.rel (%p140) target = $region16
      $region15: #{tpu_custom_call.1} parent=11 // pred_region
        _
      $region16: #{tpu_custom_call.1} parent=11 // pred_fallthru
        _
      // Predicated region
      $region17: #{tpu_custom_call.1} parent=11 // pred_check
        %p143 = pneg %p78
      $region18: #{tpu_custom_call.1} parent=11 // pred_check_branch
        %145 = sbr.rel (%p143) target = $region20
      $region19: #{tpu_custom_call.1} parent=11 // pred_region
        _
      $region20: #{tpu_custom_call.1} parent=11 // pred_fallthru
        _
      // Predicated region
      $region21: #{tpu_custom_call.1} parent=11 // pred_check
        %p146 = pneg %p99
      $region22: #{tpu_custom_call.1} parent=11 // pred_check_branch
        %148 = sbr.rel (%p146) target = $region24
      $region23: #{tpu_custom_call.1} parent=11 // pred_region
        _
      $region24: #{tpu_custom_call.1} parent=11 // pred_fallthru
        _
    $region12: #{tpu_custom_call.1} parent=5 // pred_fallthru
      _
    %p149 = scmp.lt.s32.totalorder %s10, 2
    // Predicated region
    $region25: #{tpu_custom_call.1} parent=5 // pred_check
      %p150 = pneg %p149
    $region26: #{tpu_custom_call.1} parent=5 // pred_check_branch
      %152 = sbr.rel (%p150) target = $region28
    $region27: #{tpu_custom_call.1} parent=5 // pred_region
      // Predicated region
      $region29: #{tpu_custom_call.1} parent=27 // pred_check
        %p153 = pneg %p30
      $region30: #{tpu_custom_call.1} parent=27 // pred_check_branch
        %155 = sbr.rel (%p153) target = $region32
      $region31: #{tpu_custom_call.1} parent=27 // pred_region
        %s156 = smul.u32 8, %s10
        %p157 = scmp.lt.s32.totalorder %s156, 15
        %s158 = scalar_select %p157, %s156, 15
        %s159 = smul.addr %s158, 8
        %s160 = scalar_lea.vmem %s0, %s159
        %s161 = smul.u32 8, %s10
      $region32: #{tpu_custom_call.1} parent=27 // pred_fallthru
        _
    $region28: #{tpu_custom_call.1} parent=5 // pred_fallthru
      _
    %p162 = scmp.le.s32.totalorder 1, %s10
    %p163 = scmp.lt.s32.totalorder %s10, 3
    %p164 = pnand %p162, %p163
    %p165 = pneg %p164
    // Predicated region
    $region33: #{tpu_custom_call.1} parent=5 // pred_check
      _
    $region34: #{tpu_custom_call.1} parent=5 // pred_check_branch
      %167 = sbr.rel (%p164) target = $region36
    $region35: #{tpu_custom_call.1} parent=5 // pred_region
      %s168 = ssub.s32 %s10, 1
      %s169 = smul.u32 8, %s15
      %p170 = scmp.lt.s32.totalorder %s169, 15
      %s171 = scalar_select %p170, %s169, 15
      %s172 = smul.addr %s171, 8
      %s173 = scalar_lea.vmem %s0, %s172
      %p174 = pneg %p36
      %p175 = pneg %p33
      %p176 = pneg %p57
      %p177 = pneg %p54
      %p178 = pneg %p78
      %p179 = pneg %p75
      %p180 = pneg %p99
      %p181 = pneg %p96
      %p182 = pneg %p125
      %p183 = pneg %p122
      %s184 = smul.u32 8, %s15
      %p185 = scmp.lt.s32.totalorder %s184, 15
      %s186 = scalar_select %p185, %s184, 15
      %s187 = smul.addr %s186, 8
      %s188 = scalar_lea.vmem %s4, %s187
      %s189 = smul.u32 8, %s15
      %p190 = scmp.lt.s32.totalorder %s189, 15
      %s191 = scalar_select %p190, %s189, 15
      %s192 = smul.addr %s191, 8
      %s193 = scalar_lea.vmem %s0, %s192
      %s194 = smul.u32 8, %s15
      %s195 = smul.u32 8, %s15
      %p196 = scmp.lt.s32.totalorder %s195, 15
      %s197 = scalar_select %p196, %s195, 15
      %s198 = smul.addr %s197, 8
      %s199 = scalar_lea.vmem %s4, %s198
      %s200 = smul.u32 8, %s15
      %v201 = vld [vmem:[%s193] sm:$0xff]
      %v202 = vld [vmem:[%s193 + $0x8] sm:$0xff]
      %v203 = vld [vmem:[%s193 + $0x10] sm:$0xff]
      %v204 = vld [vmem:[%s193 + $0x18] sm:$0xff]
      %v205 = vld [vmem:[%s193 + $0x20] sm:$0xff]
      %v206 = vld [vmem:[%s193 + $0x28] sm:$0xff]
      %v207 = vld [vmem:[%s193 + $0x30] sm:$0xff]
      %v208 = vld [vmem:[%s193 + $0x38] sm:$0xff]
      %v209 = vld [vmem:[%s1] sm:$0xff]
      %v210 = vld [vmem:[%s1 + $0x8] sm:$0xff]
      %v211 = vld [vmem:[%s1 + $0x10] sm:$0xff]
      %v212 = vld [vmem:[%s1 + $0x18] sm:$0xff]
      %vm213 = vcmask 261120
      %v215 = vsel %vm213, %v201, 0
      %v218 = vsel %vm213, %v202, 0
      %v221 = vsel %vm213, %v203, 0
      %v224 = vsel %vm213, %v204, 0
      %v227 = vsel %vm213, %v205, 0
      %v230 = vsel %vm213, %v206, 0
      %v233 = vsel %vm213, %v207, 0
      %v236 = vsel %vm213, %v208, 0
      %238 = vmatprep.subr.mxu0 0.0
      %239 = vmatpush1.msra.mxu0 %v209
      %240 = vmatprep.subr.mxu0 0.0
      %241 = vmatpush1.msra.mxu0 %v210
      %242 = vmatprep.subr.mxu0 0.0
      %243 = vmatpush1.msra.mxu0 %v211
      %244 = vmatprep.subr.mxu0 0.0
      %245 = vmatpush1.msra.mxu0 %v212
      %246 = vmatprep.subr.mxu0 0.0
      %247 = vmatpush1.msra.mxu0 0.0
      %248 = vmatprep.subr.mxu0 0.0
      %249 = vmatpush1.msra.mxu0 0.0
      %250 = vmatprep.subr.mxu0 0.0
      %251 = vmatpush1.msra.mxu0 0.0
      %252 = vmatprep.subr.mxu0 0.0
      %253 = vmatpush1.msra.mxu0 0.0
      %254 = vmatprep.subr.mxu0 0.0
      %255 = vmatpush1.msra.mxu0 0.0
      %256 = vmatprep.subr.mxu0 0.0
      %257 = vmatpush1.msra.mxu0 0.0
      %258 = vmatprep.subr.mxu0 0.0
      %259 = vmatpush1.msra.mxu0 0.0
      %260 = vmatprep.subr.mxu0 0.0
      %261 = vmatpush1.msra.mxu0 0.0
      %262 = vmatprep.subr.mxu0 0.0
      %263 = vmatpush1.msra.mxu0 0.0
      %264 = vmatprep.subr.mxu0 0.0
      %265 = vmatpush1.msra.mxu0 0.0
      %266 = vmatprep.subr.mxu0 0.0
      %267 = vmatpush1.msra.mxu0 0.0
      %268 = vmatprep.subr.mxu0 0.0
      %269 = vmatpush1.msra.mxu0 0.0
      %270 = vmatprep.subr.mxu0 0.0
      %271 = vmatpush1.msra.mxu0 0.0
      %272 = vmatprep.subr.mxu0 0.0
      %273 = vmatpush1.msra.mxu0 0.0
      %274 = vmatprep.subr.mxu0 0.0
      %275 = vmatpush1.msra.mxu0 0.0
      %276 = vmatprep.subr.mxu0 0.0
      %277 = vmatpush1.msra.mxu0 0.0
      %278 = vmatprep.subr.mxu0 0.0
      %279 = vmatpush1.msra.mxu0 0.0
      %280 = vmatprep.subr.mxu0 0.0
      %281 = vmatpush1.msra.mxu0 0.0
      %282 = vmatprep.subr.mxu0 0.0
      %283 = vmatpush1.msra.mxu0 0.0
      %284 = vmatprep.subr.mxu0 0.0
      %285 = vmatpush1.msra.mxu0 0.0
      %286 = vmatprep.subr.mxu0 0.0
      %287 = vmatpush1.msra.mxu0 0.0
      %288 = vmatprep.subr.mxu0 0.0
      %289 = vmatpush1.msra.mxu0 0.0
      %290 = vmatprep.subr.mxu0 0.0
      %291 = vmatpush1.msra.mxu0 0.0
      %292 = vmatprep.subr.mxu0 0.0
      %293 = vmatpush1.msra.mxu0 0.0
      %294 = vmatprep.subr.mxu0 0.0
      %295 = vmatpush1.msra.mxu0 0.0
      %296 = vmatprep.subr.mxu0 0.0
      %297 = vmatpush1.msra.mxu0 0.0
      %298 = vmatprep.subr.mxu0 0.0
      %299 = vmatpush1.msra.mxu0 0.0
      %300 = vmatprep.subr.mxu0 0.0
      %301 = vmatpush1.msra.mxu0 0.0
      %302 = vmatprep.mubr.f32.mxu0 0.0
      %303 = vmatmul.mubr.f32.gmra.mrb[0].mxu0 %v215
      %v304 = vpop.f32.mrb[0].mxu0
      %v305 = vadd.f32 0.0, %v304
      %v306 = vpop.f32.mrb[0].mxu0
      %307 = vmatprep.mubr.f32.mxu0 0.0
      %308 = vmatmul.mubr.f32.gmra.mrb[0].mxu0 %v218
      %v309 = vpop.f32.mrb[0].mxu0
      %v310 = vadd.f32 0.0, %v309
      %v311 = vpop.f32.mrb[0].mxu0
      %312 = vmatprep.mubr.f32.mxu0 0.0
      %313 = vmatmul.mubr.f32.gmra.mrb[0].mxu0 %v221
      %v314 = vpop.f32.mrb[0].mxu0
      %v315 = vadd.f32 0.0, %v314
      %v316 = vpop.f32.mrb[0].mxu0
      %317 = vmatprep.mubr.f32.mxu0 0.0
      %318 = vmatmul.mubr.f32.gmra.mrb[0].mxu0 %v224
      %v319 = vpop.f32.mrb[0].mxu0
      %v320 = vadd.f32 0.0, %v319
      %v321 = vpop.f32.mrb[0].mxu0
      %322 = vmatprep.mubr.f32.mxu0 0.0
      %323 = vmatmul.mubr.f32.gmra.mrb[0].mxu0 %v227
      %v324 = vpop.f32.mrb[0].mxu0
      %v325 = vadd.f32 0.0, %v324
      %v326 = vpop.f32.mrb[0].mxu0
      %327 = vmatprep.mubr.f32.mxu0 0.0
      %328 = vmatmul.mubr.f32.gmra.mrb[0].mxu0 %v230
      %v329 = vpop.f32.mrb[0].mxu0
      %v330 = vadd.f32 0.0, %v329
      %v331 = vpop.f32.mrb[0].mxu0
      %332 = vmatprep.mubr.f32.mxu0 0.0
      %333 = vmatmul.mubr.f32.gmra.mrb[0].mxu0 %v233
      %v334 = vpop.f32.mrb[0].mxu0
      %v335 = vadd.f32 0.0, %v334
      %v336 = vpop.f32.mrb[0].mxu0
      %337 = vmatprep.mubr.f32.mxu0 0.0
      %338 = vmatmul.mubr.f32.gmra.mrb[0].mxu0 %v236
      %v339 = vpop.f32.mrb[0].mxu0
      %v340 = vadd.f32 0.0, %v339
      %v341 = vpop.f32.mrb[0].mxu0
      %342 = vdwg.mxu0
      %345 = vrot.lane.b32.xlu0 %v305, 96
      %v346 = vpop.permute.xlu0 %345
      %347 = vrot.lane.b32.xlu0 %v310, 96
      %v348 = vpop.permute.xlu0 %347
      %vm349 = vcmask 64512
      %v350 = vsel %vm349, %v305, 0
      %v352 = vsel %vm349, %v310, 0
      %v354 = vsel %vm349, %v346, 0
      %v356 = vsel %vm349, %v348, 0
      %358 = vmatprep.subr.mxu0 0.0
      %359 = vmatpush1.xpose.msra.mxu0 %v354
      %360 = vmatprep.subr.mxu0 0.0
      %361 = vmatpush1.xpose.msra.mxu0 %v356
      %362 = vmatprep.subr.mxu0 0.0
      %363 = vmatpush1.xpose.msra.mxu0 0.0
      %364 = vmatprep.subr.mxu0 0.0
      %365 = vmatpush1.xpose.msra.mxu0 0.0
      %366 = vmatprep.subr.mxu0 0.0
      %367 = vmatpush1.xpose.msra.mxu0 0.0
      %368 = vmatprep.subr.mxu0 0.0
      %369 = vmatpush1.xpose.msra.mxu0 0.0
      %370 = vmatprep.subr.mxu0 0.0
      %371 = vmatpush1.xpose.msra.mxu0 0.0
      %372 = vmatprep.subr.mxu0 0.0
      %373 = vmatpush1.xpose.msra.mxu0 0.0
      %374 = vmatprep.subr.mxu0 0.0
      %375 = vmatpush1.xpose.msra.mxu0 0.0
      %376 = vmatprep.subr.mxu0 0.0
      %377 = vmatpush1.xpose.msra.mxu0 0.0
      %378 = vmatprep.subr.mxu0 0.0
      %379 = vmatpush1.xpose.msra.mxu0 0.0
      %380 = vmatprep.subr.mxu0 0.0
      %381 = vmatpush1.xpose.msra.mxu0 0.0
      %382 = vmatprep.subr.mxu0 0.0
      %383 = vmatpush1.xpose.msra.mxu0 0.0
      %384 = vmatprep.subr.mxu0 0.0
      %385 = vmatpush1.xpose.msra.mxu0 0.0
      %386 = vmatprep.subr.mxu0 0.0
      %387 = vmatpush1.xpose.msra.mxu0 0.0
      %388 = vmatprep.subr.mxu0 0.0
      %389 = vmatpush1.xpose.msra.mxu0 0.0
      %390 = vmatprep.subr.mxu0 0.0
      %391 = vmatpush1.xpose.msra.mxu0 0.0
      %392 = vmatprep.subr.mxu0 0.0
      %393 = vmatpush1.xpose.msra.mxu0 0.0
      %394 = vmatprep.subr.mxu0 0.0
      %395 = vmatpush1.xpose.msra.mxu0 0.0
      %396 = vmatprep.subr.mxu0 0.0
      %397 = vmatpush1.xpose.msra.mxu0 0.0
      %398 = vmatprep.subr.mxu0 0.0
      %399 = vmatpush1.xpose.msra.mxu0 0.0
      %400 = vmatprep.subr.mxu0 0.0
      %401 = vmatpush1.xpose.msra.mxu0 0.0
      %402 = vmatprep.subr.mxu0 0.0
      %403 = vmatpush1.xpose.msra.mxu0 0.0
      %404 = vmatprep.subr.mxu0 0.0
      %405 = vmatpush1.xpose.msra.mxu0 0.0
      %406 = vmatprep.subr.mxu0 0.0
      %407 = vmatpush1.xpose.msra.mxu0 0.0
      %408 = vmatprep.subr.mxu0 0.0
      %409 = vmatpush1.xpose.msra.mxu0 0.0
      %410 = vmatprep.subr.mxu0 0.0
      %411 = vmatpush1.xpose.msra.mxu0 0.0
      %412 = vmatprep.subr.mxu0 0.0
      %413 = vmatpush1.xpose.msra.mxu0 0.0
      %414 = vmatprep.subr.mxu0 0.0
      %415 = vmatpush1.xpose.msra.mxu0 0.0
      %416 = vmatprep.subr.mxu0 0.0
      %417 = vmatpush1.xpose.msra.mxu0 0.0
      %418 = vmatprep.subr.mxu0 0.0
      %419 = vmatpush1.xpose.msra.mxu0 0.0
      %420 = vmatprep.subr.mxu0 0.0
      %421 = vmatpush1.xpose.msra.mxu0 0.0
      %422 = vmatprep.mubr.f32.mxu0 0.0
      %423 = vmatmul.mubr.f32.gmra.mrb[0].mxu0 %v350
      %v424 = vpop.f32.mrb[0].mxu0
      %v425 = vadd.f32 0.0, %v424
      %v426 = vpop.f32.mrb[0].mxu0
      %427 = vmatprep.mubr.f32.mxu0 0.0
      %428 = vmatmul.mubr.f32.gmra.mrb[0].mxu0 %v352
      %v429 = vpop.f32.mrb[0].mxu0
      %v430 = vadd.f32 0.0, %v429
      %v431 = vpop.f32.mrb[0].mxu0
      %432 = vdwg.mxu0
      %435 = vrot.lane.b32.xlu0 %v315, 96
      %v436 = vpop.permute.xlu0 %435
      %437 = vrot.lane.b32.xlu0 %v320, 96
      %v438 = vpop.permute.xlu0 %437
      %v439 = vsel %vm349, %v315, 0
      %v441 = vsel %vm349, %v320, 0
      %v443 = vsel %vm349, %v436, 0
      %v445 = vsel %vm349, %v438, 0
      %447 = vmatprep.subr.mxu0 0.0
      %448 = vmatpush1.xpose.msra.mxu0 %v443
      %449 = vmatprep.subr.mxu0 0.0
      %450 = vmatpush1.xpose.msra.mxu0 %v445
      %451 = vmatprep.subr.mxu0 0.0
      %452 = vmatpush1.xpose.msra.mxu0 0.0
      %453 = vmatprep.subr.mxu0 0.0
      %454 = vmatpush1.xpose.msra.mxu0 0.0
      %455 = vmatprep.subr.mxu0 0.0
      %456 = vmatpush1.xpose.msra.mxu0 0.0
      %457 = vmatprep.subr.mxu0 0.0
      %458 = vmatpush1.xpose.msra.mxu0 0.0
      %459 = vmatprep.subr.mxu0 0.0
      %460 = vmatpush1.xpose.msra.mxu0 0.0
      %461 = vmatprep.subr.mxu0 0.0
      %462 = vmatpush1.xpose.msra.mxu0 0.0
      %463 = vmatprep.subr.mxu0 0.0
      %464 = vmatpush1.xpose.msra.mxu0 0.0
      %465 = vmatprep.subr.mxu0 0.0
      %466 = vmatpush1.xpose.msra.mxu0 0.0
      %467 = vmatprep.subr.mxu0 0.0
      %468 = vmatpush1.xpose.msra.mxu0 0.0
      %469 = vmatprep.subr.mxu0 0.0
      %470 = vmatpush1.xpose.msra.mxu0 0.0
      %471 = vmatprep.subr.mxu0 0.0
      %472 = vmatpush1.xpose.msra.mxu0 0.0
      %473 = vmatprep.subr.mxu0 0.0
      %474 = vmatpush1.xpose.msra.mxu0 0.0
      %475 = vmatprep.subr.mxu0 0.0
      %476 = vmatpush1.xpose.msra.mxu0 0.0
      %477 = vmatprep.subr.mxu0 0.0
      %478 = vmatpush1.xpose.msra.mxu0 0.0
      %479 = vmatprep.subr.mxu0 0.0
      %480 = vmatpush1.xpose.msra.mxu0 0.0
      %481 = vmatprep.subr.mxu0 0.0
      %482 = vmatpush1.xpose.msra.mxu0 0.0
      %483 = vmatprep.subr.mxu0 0.0
      %484 = vmatpush1.xpose.msra.mxu0 0.0
      %485 = vmatprep.subr.mxu0 0.0
      %486 = vmatpush1.xpose.msra.mxu0 0.0
      %487 = vmatprep.subr.mxu0 0.0
      %488 = vmatpush1.xpose.msra.mxu0 0.0
      %489 = vmatprep.subr.mxu0 0.0
      %490 = vmatpush1.xpose.msra.mxu0 0.0
      %491 = vmatprep.subr.mxu0 0.0
      %492 = vmatpush1.xpose.msra.mxu0 0.0
      %493 = vmatprep.subr.mxu0 0.0
      %494 = vmatpush1.xpose.msra.mxu0 0.0
      %495 = vmatprep.subr.mxu0 0.0
      %496 = vmatpush1.xpose.msra.mxu0 0.0
      %497 = vmatprep.subr.mxu0 0.0
      %498 = vmatpush1.xpose.msra.mxu0 0.0
      %499 = vmatprep.subr.mxu0 0.0
      %500 = vmatpush1.xpose.msra.mxu0 0.0
      %501 = vmatprep.subr.mxu0 0.0
      %502 = vmatpush1.xpose.msra.mxu0 0.0
      %503 = vmatprep.subr.mxu0 0.0
      %504 = vmatpush1.xpose.msra.mxu0 0.0
      %505 = vmatprep.subr.mxu0 0.0
      %506 = vmatpush1.xpose.msra.mxu0 0.0
      %507 = vmatprep.subr.mxu0 0.0
      %508 = vmatpush1.xpose.msra.mxu0 0.0
      %509 = vmatprep.subr.mxu0 0.0
      %510 = vmatpush1.xpose.msra.mxu0 0.0
      %511 = vmatprep.mubr.f32.mxu0 0.0
      %512 = vmatmul.mubr.f32.gmra.mrb[0].mxu0 %v439
      %v513 = vpop.f32.mrb[0].mxu0
      %v514 = vadd.f32 0.0, %v513
      %v515 = vpop.f32.mrb[0].mxu0
      %516 = vmatprep.mubr.f32.mxu0 0.0
      %517 = vmatmul.mubr.f32.gmra.mrb[0].mxu0 %v441
      %v518 = vpop.f32.mrb[0].mxu0
      %v519 = vadd.f32 0.0, %v518
      %v520 = vpop.f32.mrb[0].mxu0
      %521 = vdwg.mxu0
      %524 = vrot.lane.b32.xlu0 %v325, 96
      %v525 = vpop.permute.xlu0 %524
      %526 = vrot.lane.b32.xlu0 %v330, 96
      %v527 = vpop.permute.xlu0 %526
      %v528 = vsel %vm349, %v325, 0
      %v530 = vsel %vm349, %v330, 0
      %v532 = vsel %vm349, %v525, 0
      %v534 = vsel %vm349, %v527, 0
      %536 = vmatprep.subr.mxu0 0.0
      %537 = vmatpush1.xpose.msra.mxu0 %v532
      %538 = vmatprep.subr.mxu0 0.0
      %539 = vmatpush1.xpose.msra.mxu0 %v534
      %540 = vmatprep.subr.mxu0 0.0
      %541 = vmatpush1.xpose.msra.mxu0 0.0
      %542 = vmatprep.subr.mxu0 0.0
      %543 = vmatpush1.xpose.msra.mxu0 0.0
      %544 = vmatprep.subr.mxu0 0.0
      %545 = vmatpush1.xpose.msra.mxu0 0.0
      %546 = vmatprep.subr.mxu0 0.0
      %547 = vmatpush1.xpose.msra.mxu0 0.0
      %548 = vmatprep.subr.mxu0 0.0
      %549 = vmatpush1.xpose.msra.mxu0 0.0
      %550 = vmatprep.subr.mxu0 0.0
      %551 = vmatpush1.xpose.msra.mxu0 0.0
      %552 = vmatprep.subr.mxu0 0.0
      %553 = vmatpush1.xpose.msra.mxu0 0.0
      %554 = vmatprep.subr.mxu0 0.0
      %555 = vmatpush1.xpose.msra.mxu0 0.0
      %556 = vmatprep.subr.mxu0 0.0
      %557 = vmatpush1.xpose.msra.mxu0 0.0
      %558 = vmatprep.subr.mxu0 0.0
      %559 = vmatpush1.xpose.msra.mxu0 0.0
      %560 = vmatprep.subr.mxu0 0.0
      %561 = vmatpush1.xpose.msra.mxu0 0.0
      %562 = vmatprep.subr.mxu0 0.0
      %563 = vmatpush1.xpose.msra.mxu0 0.0
      %564 = vmatprep.subr.mxu0 0.0
      %565 = vmatpush1.xpose.msra.mxu0 0.0
      %566 = vmatprep.subr.mxu0 0.0
      %567 = vmatpush1.xpose.msra.mxu0 0.0
      %568 = vmatprep.subr.mxu0 0.0
      %569 = vmatpush1.xpose.msra.mxu0 0.0
      %570 = vmatprep.subr.mxu0 0.0
      %571 = vmatpush1.xpose.msra.mxu0 0.0
      %572 = vmatprep.subr.mxu0 0.0
      %573 = vmatpush1.xpose.msra.mxu0 0.0
      %574 = vmatprep.subr.mxu0 0.0
      %575 = vmatpush1.xpose.msra.mxu0 0.0
      %576 = vmatprep.subr.mxu0 0.0
      %577 = vmatpush1.xpose.msra.mxu0 0.0
      %578 = vmatprep.subr.mxu0 0.0
      %579 = vmatpush1.xpose.msra.mxu0 0.0
      %580 = vmatprep.subr.mxu0 0.0
      %581 = vmatpush1.xpose.msra.mxu0 0.0
      %582 = vmatprep.subr.mxu0 0.0
      %583 = vmatpush1.xpose.msra.mxu0 0.0
      %584 = vmatprep.subr.mxu0 0.0
      %585 = vmatpush1.xpose.msra.mxu0 0.0
      %586 = vmatprep.subr.mxu0 0.0
      %587 = vmatpush1.xpose.msra.mxu0 0.0
      %588 = vmatprep.subr.mxu0 0.0
      %589 = vmatpush1.xpose.msra.mxu0 0.0
      %590 = vmatprep.subr.mxu0 0.0
      %591 = vmatpush1.xpose.msra.mxu0 0.0
      %592 = vmatprep.subr.mxu0 0.0
      %593 = vmatpush1.xpose.msra.mxu0 0.0
      %594 = vmatprep.subr.mxu0 0.0
      %595 = vmatpush1.xpose.msra.mxu0 0.0
      %596 = vmatprep.subr.mxu0 0.0
      %597 = vmatpush1.xpose.msra.mxu0 0.0
      %598 = vmatprep.subr.mxu0 0.0
      %599 = vmatpush1.xpose.msra.mxu0 0.0
      %600 = vmatprep.mubr.f32.mxu0 0.0
      %601 = vmatmul.mubr.f32.gmra.mrb[0].mxu0 %v528
      %v602 = vpop.f32.mrb[0].mxu0
      %v603 = vadd.f32 0.0, %v602
      %v604 = vpop.f32.mrb[0].mxu0
      %605 = vmatprep.mubr.f32.mxu0 0.0
      %606 = vmatmul.mubr.f32.gmra.mrb[0].mxu0 %v530
      %v607 = vpop.f32.mrb[0].mxu0
      %v608 = vadd.f32 0.0, %v607
      %v609 = vpop.f32.mrb[0].mxu0
      %610 = vdwg.mxu0
      %613 = vrot.lane.b32.xlu0 %v335, 96
      %v614 = vpop.permute.xlu0 %613
      %615 = vrot.lane.b32.xlu0 %v340, 96
      %v616 = vpop.permute.xlu0 %615
      %v617 = vsel %vm349, %v335, 0
      %v619 = vsel %vm349, %v340, 0
      %v621 = vsel %vm349, %v614, 0
      %v623 = vsel %vm349, %v616, 0
      %625 = vmatprep.subr.mxu0 0.0
      %626 = vmatpush1.xpose.msra.mxu0 %v621
      %627 = vmatprep.subr.mxu0 0.0
      %628 = vmatpush1.xpose.msra.mxu0 %v623
      %629 = vmatprep.subr.mxu0 0.0
      %630 = vmatpush1.xpose.msra.mxu0 0.0
      %631 = vmatprep.subr.mxu0 0.0
      %632 = vmatpush1.xpose.msra.mxu0 0.0
      %633 = vmatprep.subr.mxu0 0.0
      %634 = vmatpush1.xpose.msra.mxu0 0.0
      %635 = vmatprep.subr.mxu0 0.0
      %636 = vmatpush1.xpose.msra.mxu0 0.0
      %637 = vmatprep.subr.mxu0 0.0
      %638 = vmatpush1.xpose.msra.mxu0 0.0
      %639 = vmatprep.subr.mxu0 0.0
      %640 = vmatpush1.xpose.msra.mxu0 0.0
      %641 = vmatprep.subr.mxu0 0.0
      %642 = vmatpush1.xpose.msra.mxu0 0.0
      %643 = vmatprep.subr.mxu0 0.0
      %644 = vmatpush1.xpose.msra.mxu0 0.0
      %645 = vmatprep.subr.mxu0 0.0
      %646 = vmatpush1.xpose.msra.mxu0 0.0
      %647 = vmatprep.subr.mxu0 0.0
      %648 = vmatpush1.xpose.msra.mxu0 0.0
      %649 = vmatprep.subr.mxu0 0.0
      %650 = vmatpush1.xpose.msra.mxu0 0.0
      %651 = vmatprep.subr.mxu0 0.0
      %652 = vmatpush1.xpose.msra.mxu0 0.0
      %653 = vmatprep.subr.mxu0 0.0
      %654 = vmatpush1.xpose.msra.mxu0 0.0
      %655 = vmatprep.subr.mxu0 0.0
      %656 = vmatpush1.xpose.msra.mxu0 0.0
      %657 = vmatprep.subr.mxu0 0.0
      %658 = vmatpush1.xpose.msra.mxu0 0.0
      %659 = vmatprep.subr.mxu0 0.0
      %660 = vmatpush1.xpose.msra.mxu0 0.0
      %661 = vmatprep.subr.mxu0 0.0
      %662 = vmatpush1.xpose.msra.mxu0 0.0
      %663 = vmatprep.subr.mxu0 0.0
      %664 = vmatpush1.xpose.msra.mxu0 0.0
      %665 = vmatprep.subr.mxu0 0.0
      %666 = vmatpush1.xpose.msra.mxu0 0.0
      %667 = vmatprep.subr.mxu0 0.0
      %668 = vmatpush1.xpose.msra.mxu0 0.0
      %669 = vmatprep.subr.mxu0 0.0
      %670 = vmatpush1.xpose.msra.mxu0 0.0
      %671 = vmatprep.subr.mxu0 0.0
      %672 = vmatpush1.xpose.msra.mxu0 0.0
      %673 = vmatprep.subr.mxu0 0.0
      %674 = vmatpush1.xpose.msra.mxu0 0.0
      %675 = vmatprep.subr.mxu0 0.0
      %676 = vmatpush1.xpose.msra.mxu0 0.0
      %677 = vmatprep.subr.mxu0 0.0
      %678 = vmatpush1.xpose.msra.mxu0 0.0
      %679 = vmatprep.subr.mxu0 0.0
      %680 = vmatpush1.xpose.msra.mxu0 0.0
      %681 = vmatprep.subr.mxu0 0.0
      %682 = vmatpush1.xpose.msra.mxu0 0.0
      %683 = vmatprep.subr.mxu0 0.0
      %684 = vmatpush1.xpose.msra.mxu0 0.0
      %685 = vmatprep.subr.mxu0 0.0
      %686 = vmatpush1.xpose.msra.mxu0 0.0
      %687 = vmatprep.subr.mxu0 0.0
      %688 = vmatpush1.xpose.msra.mxu0 0.0
      %689 = vmatprep.mubr.f32.mxu0 0.0
      %690 = vmatmul.mubr.f32.gmra.mrb[0].mxu0 %v617
      %v691 = vpop.f32.mrb[0].mxu0
      %v692 = vadd.f32 0.0, %v691
      %v693 = vpop.f32.mrb[0].mxu0
      %694 = vmatprep.mubr.f32.mxu0 0.0
      %695 = vmatmul.mubr.f32.gmra.mrb[0].mxu0 %v619
      %v696 = vpop.f32.mrb[0].mxu0
      %v697 = vadd.f32 0.0, %v696
      %v698 = vpop.f32.mrb[0].mxu0
      %699 = vdwg.mxu0
      %vm700 = vcmask 130048
      %v701 = vsel %vm700, %v425, -inf
      %702 = vmax.xlane.f32.xlu0 %v701
      %v703 = vpop.xlane.xlu0 %702
      %v704 = vsel %vm700, %v430, -inf
      %705 = vmax.xlane.f32.xlu0 %v704
      %v706 = vpop.xlane.xlu0 %705
      %v707 = vsel %vm700, %v514, -inf
      %708 = vmax.xlane.f32.xlu0 %v707
      %v709 = vpop.xlane.xlu0 %708
      %v710 = vsel %vm700, %v519, -inf
      %711 = vmax.xlane.f32.xlu0 %v710
      %v712 = vpop.xlane.xlu0 %711
      %v713 = vsel %vm700, %v603, -inf
      %714 = vmax.xlane.f32.xlu0 %v713
      %v715 = vpop.xlane.xlu0 %714
      %v716 = vsel %vm700, %v608, -inf
      %717 = vmax.xlane.f32.xlu0 %v716
      %v718 = vpop.xlane.xlu0 %717
      %v719 = vsel %vm700, %v692, -inf
      %720 = vmax.xlane.f32.xlu0 %v719
      %v721 = vpop.xlane.xlu0 %720
      %v722 = vsel %vm700, %v697, -inf
      %723 = vmax.xlane.f32.xlu0 %v722
      %v724 = vpop.xlane.xlu0 %723
      %v725 = vsub.f32 %v425, %v703
      %v726 = vsub.f32 %v430, %v706
      %v727 = vsub.f32 %v514, %v709
      %v728 = vsub.f32 %v519, %v712
      %v729 = vsub.f32 %v603, %v715
      %v730 = vsub.f32 %v608, %v718
      %v731 = vsub.f32 %v692, %v721
      %v732 = vsub.f32 %v697, %v724
      %v733 = vmul.f32 %v725, 1.442695
      %v734 = vpow.pop %v733
      %v735 = vmul.f32 %v726, 1.442695
      %v736 = vpow.pop %v735
      %v737 = vmul.f32 %v727, 1.442695
      %v738 = vpow.pop %v737
      %v739 = vmul.f32 %v728, 1.442695
      %v740 = vpow.pop %v739
      %v741 = vmul.f32 %v729, 1.442695
      %v742 = vpow.pop %v741
      %v743 = vmul.f32 %v730, 1.442695
      %v744 = vpow.pop %v743
      %v745 = vmul.f32 %v731, 1.442695
      %v746 = vpow.pop %v745
      %v747 = vmul.f32 %v732, 1.442695
      %v748 = vpow.pop %v747
      %v749 = vsel %vm700, %v734, 0.0
      %750 = vadd.xlane.f32.xlu0 %v749
      %v751 = vpop.xlane.xlu0 %750
      %v752 = vsel %vm700, %v736, 0.0
      %753 = vadd.xlane.f32.xlu0 %v752
      %v754 = vpop.xlane.xlu0 %753
      %v755 = vsel %vm700, %v738, 0.0
      %756 = vadd.xlane.f32.xlu0 %v755
      %v757 = vpop.xlane.xlu0 %756
      %v758 = vsel %vm700, %v740, 0.0
      %759 = vadd.xlane.f32.xlu0 %v758
      %v760 = vpop.xlane.xlu0 %759
      %v761 = vsel %vm700, %v742, 0.0
      %762 = vadd.xlane.f32.xlu0 %v761
      %v763 = vpop.xlane.xlu0 %762
      %v764 = vsel %vm700, %v744, 0.0
      %765 = vadd.xlane.f32.xlu0 %v764
      %v766 = vpop.xlane.xlu0 %765
      %v767 = vsel %vm700, %v746, 0.0
      %768 = vadd.xlane.f32.xlu0 %v767
      %v769 = vpop.xlane.xlu0 %768
      %v770 = vsel %vm700, %v748, 0.0
      %771 = vadd.xlane.f32.xlu0 %v770
      %v772 = vpop.xlane.xlu0 %771
      %v773 = vrcp.pop %v751
      %v774 = vrcp.pop %v754
      %v775 = vrcp.pop %v757
      %v776 = vrcp.pop %v760
      %v777 = vrcp.pop %v763
      %v778 = vrcp.pop %v766
      %v779 = vrcp.pop %v769
      %v780 = vrcp.pop %v772
      %v781 = vmul.f32 %v734, %v773
      %v782 = vmul.f32 %v736, %v774
      %v783 = vmul.f32 %v738, %v775
      %v784 = vmul.f32 %v740, %v776
      %v785 = vmul.f32 %v742, %v777
      %v786 = vmul.f32 %v744, %v778
      %v787 = vmul.f32 %v746, %v779
      %v788 = vmul.f32 %v748, %v780
      %789 = vrot.lane.b32.xlu0 %v305, 64
      %v790 = vpop.permute.xlu0 %789
      %791 = vrot.lane.b32.xlu0 %v310, 64
      %v792 = vpop.permute.xlu0 %791
      %v796 = vsel %vm700, %v781, 0
      %v799 = vsel %vm700, %v782, 0
      %801 = vmatprep.subr.mxu0 0.0
      %802 = vmatpush1.msra.mxu0 %v790
      %803 = vmatprep.subr.mxu0 0.0
      %804 = vmatpush1.msra.mxu0 %v792
      %805 = vmatprep.subr.mxu0 0.0
      %806 = vmatpush1.msra.mxu0 0.0
      %807 = vmatprep.subr.mxu0 0.0
      %808 = vmatpush1.msra.mxu0 0.0
      %809 = vmatprep.subr.mxu0 0.0
      %810 = vmatpush1.msra.mxu0 0.0
      %811 = vmatprep.subr.mxu0 0.0
      %812 = vmatpush1.msra.mxu0 0.0
      %813 = vmatprep.subr.mxu0 0.0
      %814 = vmatpush1.msra.mxu0 0.0
      %815 = vmatprep.subr.mxu0 0.0
      %816 = vmatpush1.msra.mxu0 0.0
      %817 = vmatprep.subr.mxu0 0.0
      %818 = vmatpush1.msra.mxu0 0.0
      %819 = vmatprep.subr.mxu0 0.0
      %820 = vmatpush1.msra.mxu0 0.0
      %821 = vmatprep.subr.mxu0 0.0
      %822 = vmatpush1.msra.mxu0 0.0
      %823 = vmatprep.subr.mxu0 0.0
      %824 = vmatpush1.msra.mxu0 0.0
      %825 = vmatprep.subr.mxu0 0.0
      %826 = vmatpush1.msra.mxu0 0.0
      %827 = vmatprep.subr.mxu0 0.0
      %828 = vmatpush1.msra.mxu0 0.0
      %829 = vmatprep.subr.mxu0 0.0
      %830 = vmatpush1.msra.mxu0 0.0
      %831 = vmatprep.subr.mxu0 0.0
      %832 = vmatpush1.msra.mxu0 0.0
      %833 = vmatprep.subr.mxu0 0.0
      %834 = vmatpush1.msra.mxu0 0.0
      %835 = vmatprep.subr.mxu0 0.0
      %836 = vmatpush1.msra.mxu0 0.0
      %837 = vmatprep.subr.mxu0 0.0
      %838 = vmatpush1.msra.mxu0 0.0
      %839 = vmatprep.subr.mxu0 0.0
      %840 = vmatpush1.msra.mxu0 0.0
      %841 = vmatprep.subr.mxu0 0.0
      %842 = vmatpush1.msra.mxu0 0.0
      %843 = vmatprep.subr.mxu0 0.0
      %844 = vmatpush1.msra.mxu0 0.0
      %845 = vmatprep.subr.mxu0 0.0
      %846 = vmatpush1.msra.mxu0 0.0
      %847 = vmatprep.subr.mxu0 0.0
      %848 = vmatpush1.msra.mxu0 0.0
      %849 = vmatprep.subr.mxu0 0.0
      %850 = vmatpush1.msra.mxu0 0.0
      %851 = vmatprep.subr.mxu0 0.0
      %852 = vmatpush1.msra.mxu0 0.0
      %853 = vmatprep.subr.mxu0 0.0
      %854 = vmatpush1.msra.mxu0 0.0
      %855 = vmatprep.subr.mxu0 0.0
      %856 = vmatpush1.msra.mxu0 0.0
      %857 = vmatprep.subr.mxu0 0.0
      %858 = vmatpush1.msra.mxu0 0.0
      %859 = vmatprep.subr.mxu0 0.0
      %860 = vmatpush1.msra.mxu0 0.0
      %861 = vmatprep.subr.mxu0 0.0
      %862 = vmatpush1.msra.mxu0 0.0
      %863 = vmatprep.subr.mxu0 0.0
      %864 = vmatpush1.msra.mxu0 0.0
      %865 = vmatprep.mubr.f32.mxu0 0.0
      %866 = vmatmul.mubr.f32.gmra.mrb[0].mxu0 %v796
      %v867 = vpop.f32.mrb[0].mxu0
      %v868 = vadd.f32 0.0, %v867
      %v869 = vpop.f32.mrb[0].mxu0
      %870 = vmatprep.mubr.f32.mxu0 0.0
      %871 = vmatmul.mubr.f32.gmra.mrb[0].mxu0 %v799
      %v872 = vpop.f32.mrb[0].mxu0
      %v873 = vadd.f32 0.0, %v872
      %v874 = vpop.f32.mrb[0].mxu0
      %875 = vdwg.mxu0
      %876 = vrot.lane.b32.xlu0 %v315, 64
      %v877 = vpop.permute.xlu0 %876
      %878 = vrot.lane.b32.xlu0 %v320, 64
      %v879 = vpop.permute.xlu0 %878
      %v883 = vsel %vm700, %v783, 0
      %v886 = vsel %vm700, %v784, 0
      %888 = vmatprep.subr.mxu0 0.0
      %889 = vmatpush1.msra.mxu0 %v877
      %890 = vmatprep.subr.mxu0 0.0
      %891 = vmatpush1.msra.mxu0 %v879
      %892 = vmatprep.subr.mxu0 0.0
      %893 = vmatpush1.msra.mxu0 0.0
      %894 = vmatprep.subr.mxu0 0.0
      %895 = vmatpush1.msra.mxu0 0.0
      %896 = vmatprep.subr.mxu0 0.0
      %897 = vmatpush1.msra.mxu0 0.0
      %898 = vmatprep.subr.mxu0 0.0
      %899 = vmatpush1.msra.mxu0 0.0
      %900 = vmatprep.subr.mxu0 0.0
      %901 = vmatpush1.msra.mxu0 0.0
      %902 = vmatprep.subr.mxu0 0.0
      %903 = vmatpush1.msra.mxu0 0.0
      %904 = vmatprep.subr.mxu0 0.0
      %905 = vmatpush1.msra.mxu0 0.0
      %906 = vmatprep.subr.mxu0 0.0
      %907 = vmatpush1.msra.mxu0 0.0
      %908 = vmatprep.subr.mxu0 0.0
      %909 = vmatpush1.msra.mxu0 0.0
      %910 = vmatprep.subr.mxu0 0.0
      %911 = vmatpush1.msra.mxu0 0.0
      %912 = vmatprep.subr.mxu0 0.0
      %913 = vmatpush1.msra.mxu0 0.0
      %914 = vmatprep.subr.mxu0 0.0
      %915 = vmatpush1.msra.mxu0 0.0
      %916 = vmatprep.subr.mxu0 0.0
      %917 = vmatpush1.msra.mxu0 0.0
      %918 = vmatprep.subr.mxu0 0.0
      %919 = vmatpush1.msra.mxu0 0.0
      %920 = vmatprep.subr.mxu0 0.0
      %921 = vmatpush1.msra.mxu0 0.0
      %922 = vmatprep.subr.mxu0 0.0
      %923 = vmatpush1.msra.mxu0 0.0
      %924 = vmatprep.subr.mxu0 0.0
      %925 = vmatpush1.msra.mxu0 0.0
      %926 = vmatprep.subr.mxu0 0.0
      %927 = vmatpush1.msra.mxu0 0.0
      %928 = vmatprep.subr.mxu0 0.0
      %929 = vmatpush1.msra.mxu0 0.0
      %930 = vmatprep.subr.mxu0 0.0
      %931 = vmatpush1.msra.mxu0 0.0
      %932 = vmatprep.subr.mxu0 0.0
      %933 = vmatpush1.msra.mxu0 0.0
      %934 = vmatprep.subr.mxu0 0.0
      %935 = vmatpush1.msra.mxu0 0.0
      %936 = vmatprep.subr.mxu0 0.0
      %937 = vmatpush1.msra.mxu0 0.0
      %938 = vmatprep.subr.mxu0 0.0
      %939 = vmatpush1.msra.mxu0 0.0
      %940 = vmatprep.subr.mxu0 0.0
      %941 = vmatpush1.msra.mxu0 0.0
      %942 = vmatprep.subr.mxu0 0.0
      %943 = vmatpush1.msra.mxu0 0.0
      %944 = vmatprep.subr.mxu0 0.0
      %945 = vmatpush1.msra.mxu0 0.0
      %946 = vmatprep.subr.mxu0 0.0
      %947 = vmatpush1.msra.mxu0 0.0
      %948 = vmatprep.subr.mxu0 0.0
      %949 = vmatpush1.msra.mxu0 0.0
      %950 = vmatprep.subr.mxu0 0.0
      %951 = vmatpush1.msra.mxu0 0.0
      %952 = vmatprep.mubr.f32.mxu0 0.0
      %953 = vmatmul.mubr.f32.gmra.mrb[0].mxu0 %v883
      %v954 = vpop.f32.mrb[0].mxu0
      %v955 = vadd.f32 0.0, %v954
      %v956 = vpop.f32.mrb[0].mxu0
      %957 = vmatprep.mubr.f32.mxu0 0.0
      %958 = vmatmul.mubr.f32.gmra.mrb[0].mxu0 %v886
      %v959 = vpop.f32.mrb[0].mxu0
      %v960 = vadd.f32 0.0, %v959
      %v961 = vpop.f32.mrb[0].mxu0
      %962 = vdwg.mxu0
      %963 = vrot.lane.b32.xlu0 %v325, 64
      %v964 = vpop.permute.xlu0 %963
      %965 = vrot.lane.b32.xlu0 %v330, 64
      %v966 = vpop.permute.xlu0 %965
      %v970 = vsel %vm700, %v785, 0
      %v973 = vsel %vm700, %v786, 0
      %975 = vmatprep.subr.mxu0 0.0
      %976 = vmatpush1.msra.mxu0 %v964
      %977 = vmatprep.subr.mxu0 0.0
      %978 = vmatpush1.msra.mxu0 %v966
      %979 = vmatprep.subr.mxu0 0.0
      %980 = vmatpush1.msra.mxu0 0.0
      %981 = vmatprep.subr.mxu0 0.0
      %982 = vmatpush1.msra.mxu0 0.0
      %983 = vmatprep.subr.mxu0 0.0
      %984 = vmatpush1.msra.mxu0 0.0
      %985 = vmatprep.subr.mxu0 0.0
      %986 = vmatpush1.msra.mxu0 0.0
      %987 = vmatprep.subr.mxu0 0.0
      %988 = vmatpush1.msra.mxu0 0.0
      %989 = vmatprep.subr.mxu0 0.0
      %990 = vmatpush1.msra.mxu0 0.0
      %991 = vmatprep.subr.mxu0 0.0
      %992 = vmatpush1.msra.mxu0 0.0
      %993 = vmatprep.subr.mxu0 0.0
      %994 = vmatpush1.msra.mxu0 0.0
      %995 = vmatprep.subr.mxu0 0.0
      %996 = vmatpush1.msra.mxu0 0.0
      %997 = vmatprep.subr.mxu0 0.0
      %998 = vmatpush1.msra.mxu0 0.0
      %999 = vmatprep.subr.mxu0 0.0
      %1000 = vmatpush1.msra.mxu0 0.0
      %1001 = vmatprep.subr.mxu0 0.0
      %1002 = vmatpush1.msra.mxu0 0.0
      %1003 = vmatprep.subr.mxu0 0.0
      %1004 = vmatpush1.msra.mxu0 0.0
      %1005 = vmatprep.subr.mxu0 0.0
      %1006 = vmatpush1.msra.mxu0 0.0
      %1007 = vmatprep.subr.mxu0 0.0
      %1008 = vmatpush1.msra.mxu0 0.0
      %1009 = vmatprep.subr.mxu0 0.0
      %1010 = vmatpush1.msra.mxu0 0.0
      %1011 = vmatprep.subr.mxu0 0.0
      %1012 = vmatpush1.msra.mxu0 0.0
      %1013 = vmatprep.subr.mxu0 0.0
      %1014 = vmatpush1.msra.mxu0 0.0
      %1015 = vmatprep.subr.mxu0 0.0
      %1016 = vmatpush1.msra.mxu0 0.0
      %1017 = vmatprep.subr.mxu0 0.0
      %1018 = vmatpush1.msra.mxu0 0.0
      %1019 = vmatprep.subr.mxu0 0.0
      %1020 = vmatpush1.msra.mxu0 0.0
      %1021 = vmatprep.subr.mxu0 0.0
      %1022 = vmatpush1.msra.mxu0 0.0
      %1023 = vmatprep.subr.mxu0 0.0
      %1024 = vmatpush1.msra.mxu0 0.0
      %1025 = vmatprep.subr.mxu0 0.0
      %1026 = vmatpush1.msra.mxu0 0.0
      %1027 = vmatprep.subr.mxu0 0.0
      %1028 = vmatpush1.msra.mxu0 0.0
      %1029 = vmatprep.subr.mxu0 0.0
      %1030 = vmatpush1.msra.mxu0 0.0
      %1031 = vmatprep.subr.mxu0 0.0
      %1032 = vmatpush1.msra.mxu0 0.0
      %1033 = vmatprep.subr.mxu0 0.0
      %1034 = vmatpush1.msra.mxu0 0.0
      %1035 = vmatprep.subr.mxu0 0.0
      %1036 = vmatpush1.msra.mxu0 0.0
      %1037 = vmatprep.subr.mxu0 0.0
      %1038 = vmatpush1.msra.mxu0 0.0
      %1039 = vmatprep.mubr.f32.mxu0 0.0
      %1040 = vmatmul.mubr.f32.gmra.mrb[0].mxu0 %v970
      %v1041 = vpop.f32.mrb[0].mxu0
      %v1042 = vadd.f32 0.0, %v1041
      %v1043 = vpop.f32.mrb[0].mxu0
      %1044 = vmatprep.mubr.f32.mxu0 0.0
      %1045 = vmatmul.mubr.f32.gmra.mrb[0].mxu0 %v973
      %v1046 = vpop.f32.mrb[0].mxu0
      %v1047 = vadd.f32 0.0, %v1046
      %v1048 = vpop.f32.mrb[0].mxu0
      %1049 = vdwg.mxu0
      %1050 = vrot.lane.b32.xlu0 %v335, 64
      %v1051 = vpop.permute.xlu0 %1050
      %1052 = vrot.lane.b32.xlu0 %v340, 64
      %v1053 = vpop.permute.xlu0 %1052
      %v1057 = vsel %vm700, %v787, 0
      %v1060 = vsel %vm700, %v788, 0
      %1062 = vmatprep.subr.mxu0 0.0
      %1063 = vmatpush1.msra.mxu0 %v1051
      %1064 = vmatprep.subr.mxu0 0.0
      %1065 = vmatpush1.msra.mxu0 %v1053
      %1066 = vmatprep.subr.mxu0 0.0
      %1067 = vmatpush1.msra.mxu0 0.0
      %1068 = vmatprep.subr.mxu0 0.0
      %1069 = vmatpush1.msra.mxu0 0.0
      %1070 = vmatprep.subr.mxu0 0.0
      %1071 = vmatpush1.msra.mxu0 0.0
      %1072 = vmatprep.subr.mxu0 0.0
      %1073 = vmatpush1.msra.mxu0 0.0
      %1074 = vmatprep.subr.mxu0 0.0
      %1075 = vmatpush1.msra.mxu0 0.0
      %1076 = vmatprep.subr.mxu0 0.0
      %1077 = vmatpush1.msra.mxu0 0.0
      %1078 = vmatprep.subr.mxu0 0.0
      %1079 = vmatpush1.msra.mxu0 0.0
      %1080 = vmatprep.subr.mxu0 0.0
      %1081 = vmatpush1.msra.mxu0 0.0
      %1082 = vmatprep.subr.mxu0 0.0
      %1083 = vmatpush1.msra.mxu0 0.0
      %1084 = vmatprep.subr.mxu0 0.0
      %1085 = vmatpush1.msra.mxu0 0.0
      %1086 = vmatprep.subr.mxu0 0.0
      %1087 = vmatpush1.msra.mxu0 0.0
      %1088 = vmatprep.subr.mxu0 0.0
      %1089 = vmatpush1.msra.mxu0 0.0
      %1090 = vmatprep.subr.mxu0 0.0
      %1091 = vmatpush1.msra.mxu0 0.0
      %1092 = vmatprep.subr.mxu0 0.0
      %1093 = vmatpush1.msra.mxu0 0.0
      %1094 = vmatprep.subr.mxu0 0.0
      %1095 = vmatpush1.msra.mxu0 0.0
      %1096 = vmatprep.subr.mxu0 0.0
      %1097 = vmatpush1.msra.mxu0 0.0
      %1098 = vmatprep.subr.mxu0 0.0
      %1099 = vmatpush1.msra.mxu0 0.0
      %1100 = vmatprep.subr.mxu0 0.0
      %1101 = vmatpush1.msra.mxu0 0.0
      %1102 = vmatprep.subr.mxu0 0.0
      %1103 = vmatpush1.msra.mxu0 0.0
      %1104 = vmatprep.subr.mxu0 0.0
      %1105 = vmatpush1.msra.mxu0 0.0
      %1106 = vmatprep.subr.mxu0 0.0
      %1107 = vmatpush1.msra.mxu0 0.0
      %1108 = vmatprep.subr.mxu0 0.0
      %1109 = vmatpush1.msra.mxu0 0.0
      %1110 = vmatprep.subr.mxu0 0.0
      %1111 = vmatpush1.msra.mxu0 0.0
      %1112 = vmatprep.subr.mxu0 0.0
      %1113 = vmatpush1.msra.mxu0 0.0
      %1114 = vmatprep.subr.mxu0 0.0
      %1115 = vmatpush1.msra.mxu0 0.0
      %1116 = vmatprep.subr.mxu0 0.0
      %1117 = vmatpush1.msra.mxu0 0.0
      %1118 = vmatprep.subr.mxu0 0.0
      %1119 = vmatpush1.msra.mxu0 0.0
      %1120 = vmatprep.subr.mxu0 0.0
      %1121 = vmatpush1.msra.mxu0 0.0
      %1122 = vmatprep.subr.mxu0 0.0
      %1123 = vmatpush1.msra.mxu0 0.0
      %1124 = vmatprep.subr.mxu0 0.0
      %1125 = vmatpush1.msra.mxu0 0.0
      %1126 = vmatprep.mubr.f32.mxu0 0.0
      %1127 = vmatmul.mubr.f32.gmra.mrb[0].mxu0 %v1057
      %v1128 = vpop.f32.mrb[0].mxu0
      %v1129 = vadd.f32 0.0, %v1128
      %v1130 = vpop.f32.mrb[0].mxu0
      %1131 = vmatprep.mubr.f32.mxu0 0.0
      %1132 = vmatmul.mubr.f32.gmra.mrb[0].mxu0 %v1060
      %v1133 = vpop.f32.mrb[0].mxu0
      %v1134 = vadd.f32 0.0, %v1133
      %v1135 = vpop.f32.mrb[0].mxu0
      %1136 = vdwg.mxu0
      %1137 = vrot.lane.b32.xlu0 %v305, 120
      %v1138 = vpop.permute.xlu0 %1137
      %1139 = vrot.lane.b32.xlu0 %v310, 120
      %v1140 = vpop.permute.xlu0 %1139
      %1141 = vrot.lane.b32.xlu0 %v305, 88
      %v1142 = vpop.permute.xlu0 %1141
      %1143 = vrot.lane.b32.xlu0 %v310, 88
      %v1144 = vpop.permute.xlu0 %1143
      %v1145 = vsel %vm349, %v1138, 0
      %v1147 = vsel %vm349, %v1140, 0
      %v1149 = vsel %vm349, %v1142, 0
      %v1151 = vsel %vm349, %v1144, 0
      %1153 = vmatprep.subr.mxu0 0.0
      %1154 = vmatpush1.xpose.msra.mxu0 %v1149
      %1155 = vmatprep.subr.mxu0 0.0
      %1156 = vmatpush1.xpose.msra.mxu0 %v1151
      %1157 = vmatprep.subr.mxu0 0.0
      %1158 = vmatpush1.xpose.msra.mxu0 0.0
      %1159 = vmatprep.subr.mxu0 0.0
      %1160 = vmatpush1.xpose.msra.mxu0 0.0
      %1161 = vmatprep.subr.mxu0 0.0
      %1162 = vmatpush1.xpose.msra.mxu0 0.0
      %1163 = vmatprep.subr.mxu0 0.0
      %1164 = vmatpush1.xpose.msra.mxu0 0.0
      %1165 = vmatprep.subr.mxu0 0.0
      %1166 = vmatpush1.xpose.msra.mxu0 0.0
      %1167 = vmatprep.subr.mxu0 0.0
      %1168 = vmatpush1.xpose.msra.mxu0 0.0
      %1169 = vmatprep.subr.mxu0 0.0
      %1170 = vmatpush1.xpose.msra.mxu0 0.0
      %1171 = vmatprep.subr.mxu0 0.0
      %1172 = vmatpush1.xpose.msra.mxu0 0.0
      %1173 = vmatprep.subr.mxu0 0.0
      %1174 = vmatpush1.xpose.msra.mxu0 0.0
      %1175 = vmatprep.subr.mxu0 0.0
      %1176 = vmatpush1.xpose.msra.mxu0 0.0
      %1177 = vmatprep.subr.mxu0 0.0
      %1178 = vmatpush1.xpose.msra.mxu0 0.0
      %1179 = vmatprep.subr.mxu0 0.0
      %1180 = vmatpush1.xpose.msra.mxu0 0.0
      %1181 = vmatprep.subr.mxu0 0.0
      %1182 = vmatpush1.xpose.msra.mxu0 0.0
      %1183 = vmatprep.subr.mxu0 0.0
      %1184 = vmatpush1.xpose.msra.mxu0 0.0
      %1185 = vmatprep.subr.mxu0 0.0
      %1186 = vmatpush1.xpose.msra.mxu0 0.0
      %1187 = vmatprep.subr.mxu0 0.0
      %1188 = vmatpush1.xpose.msra.mxu0 0.0
      %1189 = vmatprep.subr.mxu0 0.0
      %1190 = vmatpush1.xpose.msra.mxu0 0.0
      %1191 = vmatprep.subr.mxu0 0.0
      %1192 = vmatpush1.xpose.msra.mxu0 0.0
      %1193 = vmatprep.subr.mxu0 0.0
      %1194 = vmatpush1.xpose.msra.mxu0 0.0
      %1195 = vmatprep.subr.mxu0 0.0
      %1196 = vmatpush1.xpose.msra.mxu0 0.0
      %1197 = vmatprep.subr.mxu0 0.0
      %1198 = vmatpush1.xpose.msra.mxu0 0.0
      %1199 = vmatprep.subr.mxu0 0.0
      %1200 = vmatpush1.xpose.msra.mxu0 0.0
      %1201 = vmatprep.subr.mxu0 0.0
      %1202 = vmatpush1.xpose.msra.mxu0 0.0
      %1203 = vmatprep.subr.mxu0 0.0
      %1204 = vmatpush1.xpose.msra.mxu0 0.0
      %1205 = vmatprep.subr.mxu0 0.0
      %1206 = vmatpush1.xpose.msra.mxu0 0.0
      %1207 = vmatprep.subr.mxu0 0.0
      %1208 = vmatpush1.xpose.msra.mxu0 0.0
      %1209 = vmatprep.subr.mxu0 0.0
      %1210 = vmatpush1.xpose.msra.mxu0 0.0
      %1211 = vmatprep.subr.mxu0 0.0
      %1212 = vmatpush1.xpose.msra.mxu0 0.0
      %1213 = vmatprep.subr.mxu0 0.0
      %1214 = vmatpush1.xpose.msra.mxu0 0.0
      %1215 = vmatprep.subr.mxu0 0.0
      %1216 = vmatpush1.xpose.msra.mxu0 0.0
      %1217 = vmatprep.mubr.f32.mxu0 0.0
      %1218 = vmatmul.mubr.f32.gmra.mrb[0].mxu0 %v1145
      %v1219 = vpop.f32.mrb[0].mxu0
      %v1220 = vadd.f32 0.0, %v1219
      %v1221 = vpop.f32.mrb[0].mxu0
      %1222 = vmatprep.mubr.f32.mxu0 0.0
      %1223 = vmatmul.mubr.f32.gmra.mrb[0].mxu0 %v1147
      %v1224 = vpop.f32.mrb[0].mxu0
      %v1225 = vadd.f32 0.0, %v1224
      %v1226 = vpop.f32.mrb[0].mxu0
      %1227 = vdwg.mxu0
      %1228 = vrot.lane.b32.xlu0 %v315, 120
      %v1229 = vpop.permute.xlu0 %1228
      %1230 = vrot.lane.b32.xlu0 %v320, 120
      %v1231 = vpop.permute.xlu0 %1230
      %1232 = vrot.lane.b32.xlu0 %v315, 88
      %v1233 = vpop.permute.xlu0 %1232
      %1234 = vrot.lane.b32.xlu0 %v320, 88
      %v1235 = vpop.permute.xlu0 %1234
      %v1236 = vsel %vm349, %v1229, 0
      %v1238 = vsel %vm349, %v1231, 0
      %v1240 = vsel %vm349, %v1233, 0
      %v1242 = vsel %vm349, %v1235, 0
      %1244 = vmatprep.subr.mxu0 0.0
      %1245 = vmatpush1.xpose.msra.mxu0 %v1240
      %1246 = vmatprep.subr.mxu0 0.0
      %1247 = vmatpush1.xpose.msra.mxu0 %v1242
      %1248 = vmatprep.subr.mxu0 0.0
      %1249 = vmatpush1.xpose.msra.mxu0 0.0
      %1250 = vmatprep.subr.mxu0 0.0
      %1251 = vmatpush1.xpose.msra.mxu0 0.0
      %1252 = vmatprep.subr.mxu0 0.0
      %1253 = vmatpush1.xpose.msra.mxu0 0.0
      %1254 = vmatprep.subr.mxu0 0.0
      %1255 = vmatpush1.xpose.msra.mxu0 0.0
      %1256 = vmatprep.subr.mxu0 0.0
      %1257 = vmatpush1.xpose.msra.mxu0 0.0
      %1258 = vmatprep.subr.mxu0 0.0
      %1259 = vmatpush1.xpose.msra.mxu0 0.0
      %1260 = vmatprep.subr.mxu0 0.0
      %1261 = vmatpush1.xpose.msra.mxu0 0.0
      %1262 = vmatprep.subr.mxu0 0.0
      %1263 = vmatpush1.xpose.msra.mxu0 0.0
      %1264 = vmatprep.subr.mxu0 0.0
      %1265 = vmatpush1.xpose.msra.mxu0 0.0
      %1266 = vmatprep.subr.mxu0 0.0
      %1267 = vmatpush1.xpose.msra.mxu0 0.0
      %1268 = vmatprep.subr.mxu0 0.0
      %1269 = vmatpush1.xpose.msra.mxu0 0.0
      %1270 = vmatprep.subr.mxu0 0.0
      %1271 = vmatpush1.xpose.msra.mxu0 0.0
      %1272 = vmatprep.subr.mxu0 0.0
      %1273 = vmatpush1.xpose.msra.mxu0 0.0
      %1274 = vmatprep.subr.mxu0 0.0
      %1275 = vmatpush1.xpose.msra.mxu0 0.0
      %1276 = vmatprep.subr.mxu0 0.0
      %1277 = vmatpush1.xpose.msra.mxu0 0.0
      %1278 = vmatprep.subr.mxu0 0.0
      %1279 = vmatpush1.xpose.msra.mxu0 0.0
      %1280 = vmatprep.subr.mxu0 0.0
      %1281 = vmatpush1.xpose.msra.mxu0 0.0
      %1282 = vmatprep.subr.mxu0 0.0
      %1283 = vmatpush1.xpose.msra.mxu0 0.0
      %1284 = vmatprep.subr.mxu0 0.0
      %1285 = vmatpush1.xpose.msra.mxu0 0.0
      %1286 = vmatprep.subr.mxu0 0.0
      %1287 = vmatpush1.xpose.msra.mxu0 0.0
      %1288 = vmatprep.subr.mxu0 0.0
      %1289 = vmatpush1.xpose.msra.mxu0 0.0
      %1290 = vmatprep.subr.mxu0 0.0
      %1291 = vmatpush1.xpose.msra.mxu0 0.0
      %1292 = vmatprep.subr.mxu0 0.0
      %1293 = vmatpush1.xpose.msra.mxu0 0.0
      %1294 = vmatprep.subr.mxu0 0.0
      %1295 = vmatpush1.xpose.msra.mxu0 0.0
      %1296 = vmatprep.subr.mxu0 0.0
      %1297 = vmatpush1.xpose.msra.mxu0 0.0
      %1298 = vmatprep.subr.mxu0 0.0
      %1299 = vmatpush1.xpose.msra.mxu0 0.0
      %1300 = vmatprep.subr.mxu0 0.0
      %1301 = vmatpush1.xpose.msra.mxu0 0.0
      %1302 = vmatprep.subr.mxu0 0.0
      %1303 = vmatpush1.xpose.msra.mxu0 0.0
      %1304 = vmatprep.subr.mxu0 0.0
      %1305 = vmatpush1.xpose.msra.mxu0 0.0
      %1306 = vmatprep.subr.mxu0 0.0
      %1307 = vmatpush1.xpose.msra.mxu0 0.0
      %1308 = vmatprep.mubr.f32.mxu0 0.0
      %1309 = vmatmul.mubr.f32.gmra.mrb[0].mxu0 %v1236
      %v1310 = vpop.f32.mrb[0].mxu0
      %v1311 = vadd.f32 0.0, %v1310
      %v1312 = vpop.f32.mrb[0].mxu0
      %1313 = vmatprep.mubr.f32.mxu0 0.0
      %1314 = vmatmul.mubr.f32.gmra.mrb[0].mxu0 %v1238
      %v1315 = vpop.f32.mrb[0].mxu0
      %v1316 = vadd.f32 0.0, %v1315
      %v1317 = vpop.f32.mrb[0].mxu0
      %1318 = vdwg.mxu0
      %1319 = vrot.lane.b32.xlu0 %v325, 120
      %v1320 = vpop.permute.xlu0 %1319
      %1321 = vrot.lane.b32.xlu0 %v330, 120
      %v1322 = vpop.permute.xlu0 %1321
      %1323 = vrot.lane.b32.xlu0 %v325, 88
      %v1324 = vpop.permute.xlu0 %1323
      %1325 = vrot.lane.b32.xlu0 %v330, 88
      %v1326 = vpop.permute.xlu0 %1325
      %v1327 = vsel %vm349, %v1320, 0
      %v1329 = vsel %vm349, %v1322, 0
      %v1331 = vsel %vm349, %v1324, 0
      %v1333 = vsel %vm349, %v1326, 0
      %1335 = vmatprep.subr.mxu0 0.0
      %1336 = vmatpush1.xpose.msra.mxu0 %v1331
      %1337 = vmatprep.subr.mxu0 0.0
      %1338 = vmatpush1.xpose.msra.mxu0 %v1333
      %1339 = vmatprep.subr.mxu0 0.0
      %1340 = vmatpush1.xpose.msra.mxu0 0.0
      %1341 = vmatprep.subr.mxu0 0.0
      %1342 = vmatpush1.xpose.msra.mxu0 0.0
      %1343 = vmatprep.subr.mxu0 0.0
      %1344 = vmatpush1.xpose.msra.mxu0 0.0
      %1345 = vmatprep.subr.mxu0 0.0
      %1346 = vmatpush1.xpose.msra.mxu0 0.0
      %1347 = vmatprep.subr.mxu0 0.0
      %1348 = vmatpush1.xpose.msra.mxu0 0.0
      %1349 = vmatprep.subr.mxu0 0.0
      %1350 = vmatpush1.xpose.msra.mxu0 0.0
      %1351 = vmatprep.subr.mxu0 0.0
      %1352 = vmatpush1.xpose.msra.mxu0 0.0
      %1353 = vmatprep.subr.mxu0 0.0
      %1354 = vmatpush1.xpose.msra.mxu0 0.0
      %1355 = vmatprep.subr.mxu0 0.0
      %1356 = vmatpush1.xpose.msra.mxu0 0.0
      %1357 = vmatprep.subr.mxu0 0.0
      %1358 = vmatpush1.xpose.msra.mxu0 0.0
      %1359 = vmatprep.subr.mxu0 0.0
      %1360 = vmatpush1.xpose.msra.mxu0 0.0
      %1361 = vmatprep.subr.mxu0 0.0
      %1362 = vmatpush1.xpose.msra.mxu0 0.0
      %1363 = vmatprep.subr.mxu0 0.0
      %1364 = vmatpush1.xpose.msra.mxu0 0.0
      %1365 = vmatprep.subr.mxu0 0.0
      %1366 = vmatpush1.xpose.msra.mxu0 0.0
      %1367 = vmatprep.subr.mxu0 0.0
      %1368 = vmatpush1.xpose.msra.mxu0 0.0
      %1369 = vmatprep.subr.mxu0 0.0
      %1370 = vmatpush1.xpose.msra.mxu0 0.0
      %1371 = vmatprep.subr.mxu0 0.0
      %1372 = vmatpush1.xpose.msra.mxu0 0.0
      %1373 = vmatprep.subr.mxu0 0.0
      %1374 = vmatpush1.xpose.msra.mxu0 0.0
      %1375 = vmatprep.subr.mxu0 0.0
      %1376 = vmatpush1.xpose.msra.mxu0 0.0
      %1377 = vmatprep.subr.mxu0 0.0
      %1378 = vmatpush1.xpose.msra.mxu0 0.0
      %1379 = vmatprep.subr.mxu0 0.0
      %1380 = vmatpush1.xpose.msra.mxu0 0.0
      %1381 = vmatprep.subr.mxu0 0.0
      %1382 = vmatpush1.xpose.msra.mxu0 0.0
      %1383 = vmatprep.subr.mxu0 0.0
      %1384 = vmatpush1.xpose.msra.mxu0 0.0
      %1385 = vmatprep.subr.mxu0 0.0
      %1386 = vmatpush1.xpose.msra.mxu0 0.0
      %1387 = vmatprep.subr.mxu0 0.0
      %1388 = vmatpush1.xpose.msra.mxu0 0.0
      %1389 = vmatprep.subr.mxu0 0.0
      %1390 = vmatpush1.xpose.msra.mxu0 0.0
      %1391 = vmatprep.subr.mxu0 0.0
      %1392 = vmatpush1.xpose.msra.mxu0 0.0
      %1393 = vmatprep.subr.mxu0 0.0
      %1394 = vmatpush1.xpose.msra.mxu0 0.0
      %1395 = vmatprep.subr.mxu0 0.0
      %1396 = vmatpush1.xpose.msra.mxu0 0.0
      %1397 = vmatprep.subr.mxu0 0.0
      %1398 = vmatpush1.xpose.msra.mxu0 0.0
      %1399 = vmatprep.mubr.f32.mxu0 0.0
      %1400 = vmatmul.mubr.f32.gmra.mrb[0].mxu0 %v1327
      %v1401 = vpop.f32.mrb[0].mxu0
      %v1402 = vadd.f32 0.0, %v1401
      %v1403 = vpop.f32.mrb[0].mxu0
      %1404 = vmatprep.mubr.f32.mxu0 0.0
      %1405 = vmatmul.mubr.f32.gmra.mrb[0].mxu0 %v1329
      %v1406 = vpop.f32.mrb[0].mxu0
      %v1407 = vadd.f32 0.0, %v1406
      %v1408 = vpop.f32.mrb[0].mxu0
      %1409 = vdwg.mxu0
      %1410 = vrot.lane.b32.xlu0 %v335, 120
      %v1411 = vpop.permute.xlu0 %1410
      %1412 = vrot.lane.b32.xlu0 %v340, 120
      %v1413 = vpop.permute.xlu0 %1412
      %1414 = vrot.lane.b32.xlu0 %v335, 88
      %v1415 = vpop.permute.xlu0 %1414
      %1416 = vrot.lane.b32.xlu0 %v340, 88
      %v1417 = vpop.permute.xlu0 %1416
      %v1418 = vsel %vm349, %v1411, 0
      %v1420 = vsel %vm349, %v1413, 0
      %v1422 = vsel %vm349, %v1415, 0
      %v1424 = vsel %vm349, %v1417, 0
      %1426 = vmatprep.subr.mxu0 0.0
      %1427 = vmatpush1.xpose.msra.mxu0 %v1422
      %1428 = vmatprep.subr.mxu0 0.0
      %1429 = vmatpush1.xpose.msra.mxu0 %v1424
      %1430 = vmatprep.subr.mxu0 0.0
      %1431 = vmatpush1.xpose.msra.mxu0 0.0
      %1432 = vmatprep.subr.mxu0 0.0
      %1433 = vmatpush1.xpose.msra.mxu0 0.0
      %1434 = vmatprep.subr.mxu0 0.0
      %1435 = vmatpush1.xpose.msra.mxu0 0.0
      %1436 = vmatprep.subr.mxu0 0.0
      %1437 = vmatpush1.xpose.msra.mxu0 0.0
      %1438 = vmatprep.subr.mxu0 0.0
      %1439 = vmatpush1.xpose.msra.mxu0 0.0
      %1440 = vmatprep.subr.mxu0 0.0
      %1441 = vmatpush1.xpose.msra.mxu0 0.0
      %1442 = vmatprep.subr.mxu0 0.0
      %1443 = vmatpush1.xpose.msra.mxu0 0.0
      %1444 = vmatprep.subr.mxu0 0.0
      %1445 = vmatpush1.xpose.msra.mxu0 0.0
      %1446 = vmatprep.subr.mxu0 0.0
      %1447 = vmatpush1.xpose.msra.mxu0 0.0
      %1448 = vmatprep.subr.mxu0 0.0
      %1449 = vmatpush1.xpose.msra.mxu0 0.0
      %1450 = vmatprep.subr.mxu0 0.0
      %1451 = vmatpush1.xpose.msra.mxu0 0.0
      %1452 = vmatprep.subr.mxu0 0.0
      %1453 = vmatpush1.xpose.msra.mxu0 0.0
      %1454 = vmatprep.subr.mxu0 0.0
      %1455 = vmatpush1.xpose.msra.mxu0 0.0
      %1456 = vmatprep.subr.mxu0 0.0
      %1457 = vmatpush1.xpose.msra.mxu0 0.0
      %1458 = vmatprep.subr.mxu0 0.0
      %1459 = vmatpush1.xpose.msra.mxu0 0.0
      %1460 = vmatprep.subr.mxu0 0.0
      %1461 = vmatpush1.xpose.msra.mxu0 0.0
      %1462 = vmatprep.subr.mxu0 0.0
      %1463 = vmatpush1.xpose.msra.mxu0 0.0
      %1464 = vmatprep.subr.mxu0 0.0
      %1465 = vmatpush1.xpose.msra.mxu0 0.0
      %1466 = vmatprep.subr.mxu0 0.0
      %1467 = vmatpush1.xpose.msra.mxu0 0.0
      %1468 = vmatprep.subr.mxu0 0.0
      %1469 = vmatpush1.xpose.msra.mxu0 0.0
      %1470 = vmatprep.subr.mxu0 0.0
      %1471 = vmatpush1.xpose.msra.mxu0 0.0
      %1472 = vmatprep.subr.mxu0 0.0
      %1473 = vmatpush1.xpose.msra.mxu0 0.0
      %1474 = vmatprep.subr.mxu0 0.0
      %1475 = vmatpush1.xpose.msra.mxu0 0.0
      %1476 = vmatprep.subr.mxu0 0.0
      %1477 = vmatpush1.xpose.msra.mxu0 0.0
      %1478 = vmatprep.subr.mxu0 0.0
      %1479 = vmatpush1.xpose.msra.mxu0 0.0
      %1480 = vmatprep.subr.mxu0 0.0
      %1481 = vmatpush1.xpose.msra.mxu0 0.0
      %1482 = vmatprep.subr.mxu0 0.0
      %1483 = vmatpush1.xpose.msra.mxu0 0.0
      %1484 = vmatprep.subr.mxu0 0.0
      %1485 = vmatpush1.xpose.msra.mxu0 0.0
      %1486 = vmatprep.subr.mxu0 0.0
      %1487 = vmatpush1.xpose.msra.mxu0 0.0
      %1488 = vmatprep.subr.mxu0 0.0
      %1489 = vmatpush1.xpose.msra.mxu0 0.0
      %1490 = vmatprep.mubr.f32.mxu0 0.0
      %1491 = vmatmul.mubr.f32.gmra.mrb[0].mxu0 %v1418
      %v1492 = vpop.f32.mrb[0].mxu0
      %v1493 = vadd.f32 0.0, %v1492
      %v1494 = vpop.f32.mrb[0].mxu0
      %1495 = vmatprep.mubr.f32.mxu0 0.0
      %1496 = vmatmul.mubr.f32.gmra.mrb[0].mxu0 %v1420
      %v1497 = vpop.f32.mrb[0].mxu0
      %v1498 = vadd.f32 0.0, %v1497
      %v1499 = vpop.f32.mrb[0].mxu0
      %1500 = vdwg.mxu0
      %v1501 = vsel %vm700, %v1220, -inf
      %1502 = vmax.xlane.f32.xlu0 %v1501
      %v1503 = vpop.xlane.xlu0 %1502
      %v1504 = vsel %vm700, %v1225, -inf
      %1505 = vmax.xlane.f32.xlu0 %v1504
      %v1506 = vpop.xlane.xlu0 %1505
      %v1507 = vsel %vm700, %v1311, -inf
      %1508 = vmax.xlane.f32.xlu0 %v1507
      %v1509 = vpop.xlane.xlu0 %1508
      %v1510 = vsel %vm700, %v1316, -inf
      %1511 = vmax.xlane.f32.xlu0 %v1510
      %v1512 = vpop.xlane.xlu0 %1511
      %v1513 = vsel %vm700, %v1402, -inf
      %1514 = vmax.xlane.f32.xlu0 %v1513
      %v1515 = vpop.xlane.xlu0 %1514
      %v1516 = vsel %vm700, %v1407, -inf
      %1517 = vmax.xlane.f32.xlu0 %v1516
      %v1518 = vpop.xlane.xlu0 %1517
      %v1519 = vsel %vm700, %v1493, -inf
      %1520 = vmax.xlane.f32.xlu0 %v1519
      %v1521 = vpop.xlane.xlu0 %1520
      %v1522 = vsel %vm700, %v1498, -inf
      %1523 = vmax.xlane.f32.xlu0 %v1522
      %v1524 = vpop.xlane.xlu0 %1523
      %v1525 = vsub.f32 %v1220, %v1503
      %v1526 = vsub.f32 %v1225, %v1506
      %v1527 = vsub.f32 %v1311, %v1509
      %v1528 = vsub.f32 %v1316, %v1512
      %v1529 = vsub.f32 %v1402, %v1515
      %v1530 = vsub.f32 %v1407, %v1518
      %v1531 = vsub.f32 %v1493, %v1521
      %v1532 = vsub.f32 %v1498, %v1524
      %v1533 = vmul.f32 %v1525, 1.442695
      %v1534 = vpow.pop %v1533
      %v1535 = vmul.f32 %v1526, 1.442695
      %v1536 = vpow.pop %v1535
      %v1537 = vmul.f32 %v1527, 1.442695
      %v1538 = vpow.pop %v1537
      %v1539 = vmul.f32 %v1528, 1.442695
      %v1540 = vpow.pop %v1539
      %v1541 = vmul.f32 %v1529, 1.442695
      %v1542 = vpow.pop %v1541
      %v1543 = vmul.f32 %v1530, 1.442695
      %v1544 = vpow.pop %v1543
      %v1545 = vmul.f32 %v1531, 1.442695
      %v1546 = vpow.pop %v1545
      %v1547 = vmul.f32 %v1532, 1.442695
      %v1548 = vpow.pop %v1547
      %v1549 = vsel %vm700, %v1534, 0.0
      %1550 = vadd.xlane.f32.xlu0 %v1549
      %v1551 = vpop.xlane.xlu0 %1550
      %v1552 = vsel %vm700, %v1536, 0.0
      %1553 = vadd.xlane.f32.xlu0 %v1552
      %v1554 = vpop.xlane.xlu0 %1553
      %v1555 = vsel %vm700, %v1538, 0.0
      %1556 = vadd.xlane.f32.xlu0 %v1555
      %v1557 = vpop.xlane.xlu0 %1556
      %v1558 = vsel %vm700, %v1540, 0.0
      %1559 = vadd.xlane.f32.xlu0 %v1558
      %v1560 = vpop.xlane.xlu0 %1559
      %v1561 = vsel %vm700, %v1542, 0.0
      %1562 = vadd.xlane.f32.xlu0 %v1561
      %v1563 = vpop.xlane.xlu0 %1562
      %v1564 = vsel %vm700, %v1544, 0.0
      %1565 = vadd.xlane.f32.xlu0 %v1564
      %v1566 = vpop.xlane.xlu0 %1565
      %v1567 = vsel %vm700, %v1546, 0.0
      %1568 = vadd.xlane.f32.xlu0 %v1567
      %v1569 = vpop.xlane.xlu0 %1568
      %v1570 = vsel %vm700, %v1548, 0.0
      %1571 = vadd.xlane.f32.xlu0 %v1570
      %v1572 = vpop.xlane.xlu0 %1571
      %v1573 = vrcp.pop %v1551
      %v1574 = vrcp.pop %v1554
      %v1575 = vrcp.pop %v1557
      %v1576 = vrcp.pop %v1560
      %v1577 = vrcp.pop %v1563
      %v1578 = vrcp.pop %v1566
      %v1579 = vrcp.pop %v1569
      %v1580 = vrcp.pop %v1572
      %v1581 = vmul.f32 %v1534, %v1573
      %v1582 = vmul.f32 %v1536, %v1574
      %v1583 = vmul.f32 %v1538, %v1575
      %v1584 = vmul.f32 %v1540, %v1576
      %v1585 = vmul.f32 %v1542, %v1577
      %v1586 = vmul.f32 %v1544, %v1578
      %v1587 = vmul.f32 %v1546, %v1579
      %v1588 = vmul.f32 %v1548, %v1580
      %1589 = vrot.lane.b32.xlu0 %v305, 56
      %v1590 = vpop.permute.xlu0 %1589
      %1591 = vrot.lane.b32.xlu0 %v310, 56
      %v1592 = vpop.permute.xlu0 %1591
      %v1596 = vsel %vm700, %v1581, 0
      %v1599 = vsel %vm700, %v1582, 0
      %1601 = vmatprep.subr.mxu0 0.0
      %1602 = vmatpush1.msra.mxu0 %v1590
      %1603 = vmatprep.subr.mxu0 0.0
      %1604 = vmatpush1.msra.mxu0 %v1592
      %1605 = vmatprep.subr.mxu0 0.0
      %1606 = vmatpush1.msra.mxu0 0.0
      %1607 = vmatprep.subr.mxu0 0.0
      %1608 = vmatpush1.msra.mxu0 0.0
      %1609 = vmatprep.subr.mxu0 0.0
      %1610 = vmatpush1.msra.mxu0 0.0
      %1611 = vmatprep.subr.mxu0 0.0
      %1612 = vmatpush1.msra.mxu0 0.0
      %1613 = vmatprep.subr.mxu0 0.0
      %1614 = vmatpush1.msra.mxu0 0.0
      %1615 = vmatprep.subr.mxu0 0.0
      %1616 = vmatpush1.msra.mxu0 0.0
      %1617 = vmatprep.subr.mxu0 0.0
      %1618 = vmatpush1.msra.mxu0 0.0
      %1619 = vmatprep.subr.mxu0 0.0
      %1620 = vmatpush1.msra.mxu0 0.0
      %1621 = vmatprep.subr.mxu0 0.0
      %1622 = vmatpush1.msra.mxu0 0.0
      %1623 = vmatprep.subr.mxu0 0.0
      %1624 = vmatpush1.msra.mxu0 0.0
      %1625 = vmatprep.subr.mxu0 0.0
      %1626 = vmatpush1.msra.mxu0 0.0
      %1627 = vmatprep.subr.mxu0 0.0
      %1628 = vmatpush1.msra.mxu0 0.0
      %1629 = vmatprep.subr.mxu0 0.0
      %1630 = vmatpush1.msra.mxu0 0.0
      %1631 = vmatprep.subr.mxu0 0.0
      %1632 = vmatpush1.msra.mxu0 0.0
      %1633 = vmatprep.subr.mxu0 0.0
      %1634 = vmatpush1.msra.mxu0 0.0
      %1635 = vmatprep.subr.mxu0 0.0
      %1636 = vmatpush1.msra.mxu0 0.0
      %1637 = vmatprep.subr.mxu0 0.0
      %1638 = vmatpush1.msra.mxu0 0.0
      %1639 = vmatprep.subr.mxu0 0.0
      %1640 = vmatpush1.msra.mxu0 0.0
      %1641 = vmatprep.subr.mxu0 0.0
      %1642 = vmatpush1.msra.mxu0 0.0
      %1643 = vmatprep.subr.mxu0 0.0
      %1644 = vmatpush1.msra.mxu0 0.0
      %1645 = vmatprep.subr.mxu0 0.0
      %1646 = vmatpush1.msra.mxu0 0.0
      %1647 = vmatprep.subr.mxu0 0.0
      %1648 = vmatpush1.msra.mxu0 0.0
      %1649 = vmatprep.subr.mxu0 0.0
      %1650 = vmatpush1.msra.mxu0 0.0
      %1651 = vmatprep.subr.mxu0 0.0
      %1652 = vmatpush1.msra.mxu0 0.0
      %1653 = vmatprep.subr.mxu0 0.0
      %1654 = vmatpush1.msra.mxu0 0.0
      %1655 = vmatprep.subr.mxu0 0.0
      %1656 = vmatpush1.msra.mxu0 0.0
      %1657 = vmatprep.subr.mxu0 0.0
      %1658 = vmatpush1.msra.mxu0 0.0
      %1659 = vmatprep.subr.mxu0 0.0
      %1660 = vmatpush1.msra.mxu0 0.0
      %1661 = vmatprep.subr.mxu0 0.0
      %1662 = vmatpush1.msra.mxu0 0.0
      %1663 = vmatprep.subr.mxu0 0.0
      %1664 = vmatpush1.msra.mxu0 0.0
      %1665 = vmatprep.mubr.f32.mxu0 0.0
      %1666 = vmatmul.mubr.f32.gmra.mrb[0].mxu0 %v1596
      %v1667 = vpop.f32.mrb[0].mxu0
      %v1668 = vadd.f32 0.0, %v1667
      %v1669 = vpop.f32.mrb[0].mxu0
      %1670 = vmatprep.mubr.f32.mxu0 0.0
      %1671 = vmatmul.mubr.f32.gmra.mrb[0].mxu0 %v1599
      %v1672 = vpop.f32.mrb[0].mxu0
      %v1673 = vadd.f32 0.0, %v1672
      %v1674 = vpop.f32.mrb[0].mxu0
      %1675 = vdwg.mxu0
      %1676 = vrot.lane.b32.xlu0 %v315, 56
      %v1677 = vpop.permute.xlu0 %1676
      %1678 = vrot.lane.b32.xlu0 %v320, 56
      %v1679 = vpop.permute.xlu0 %1678
      %v1683 = vsel %vm700, %v1583, 0
      %v1686 = vsel %vm700, %v1584, 0
      %1688 = vmatprep.subr.mxu0 0.0
      %1689 = vmatpush1.msra.mxu0 %v1677
      %1690 = vmatprep.subr.mxu0 0.0
      %1691 = vmatpush1.msra.mxu0 %v1679
      %1692 = vmatprep.subr.mxu0 0.0
      %1693 = vmatpush1.msra.mxu0 0.0
      %1694 = vmatprep.subr.mxu0 0.0
      %1695 = vmatpush1.msra.mxu0 0.0
      %1696 = vmatprep.subr.mxu0 0.0
      %1697 = vmatpush1.msra.mxu0 0.0
      %1698 = vmatprep.subr.mxu0 0.0
      %1699 = vmatpush1.msra.mxu0 0.0
      %1700 = vmatprep.subr.mxu0 0.0
      %1701 = vmatpush1.msra.mxu0 0.0
      %1702 = vmatprep.subr.mxu0 0.0
      %1703 = vmatpush1.msra.mxu0 0.0
      %1704 = vmatprep.subr.mxu0 0.0
      %1705 = vmatpush1.msra.mxu0 0.0
      %1706 = vmatprep.subr.mxu0 0.0
      %1707 = vmatpush1.msra.mxu0 0.0
      %1708 = vmatprep.subr.mxu0 0.0
      %1709 = vmatpush1.msra.mxu0 0.0
      %1710 = vmatprep.subr.mxu0 0.0
      %1711 = vmatpush1.msra.mxu0 0.0
      %1712 = vmatprep.subr.mxu0 0.0
      %1713 = vmatpush1.msra.mxu0 0.0
      %1714 = vmatprep.subr.mxu0 0.0
      %1715 = vmatpush1.msra.mxu0 0.0
      %1716 = vmatprep.subr.mxu0 0.0
      %1717 = vmatpush1.msra.mxu0 0.0
      %1718 = vmatprep.subr.mxu0 0.0
      %1719 = vmatpush1.msra.mxu0 0.0
      %1720 = vmatprep.subr.mxu0 0.0
      %1721 = vmatpush1.msra.mxu0 0.0
      %1722 = vmatprep.subr.mxu0 0.0
      %1723 = vmatpush1.msra.mxu0 0.0
      %1724 = vmatprep.subr.mxu0 0.0
      %1725 = vmatpush1.msra.mxu0 0.0
      %1726 = vmatprep.subr.mxu0 0.0
      %1727 = vmatpush1.msra.mxu0 0.0
      %1728 = vmatprep.subr.mxu0 0.0
      %1729 = vmatpush1.msra.mxu0 0.0
      %1730 = vmatprep.subr.mxu0 0.0
      %1731 = vmatpush1.msra.mxu0 0.0
      %1732 = vmatprep.subr.mxu0 0.0
      %1733 = vmatpush1.msra.mxu0 0.0
      %1734 = vmatprep.subr.mxu0 0.0
      %1735 = vmatpush1.msra.mxu0 0.0
      %1736 = vmatprep.subr.mxu0 0.0
      %1737 = vmatpush1.msra.mxu0 0.0
      %1738 = vmatprep.subr.mxu0 0.0
      %1739 = vmatpush1.msra.mxu0 0.0
      %1740 = vmatprep.subr.mxu0 0.0
      %1741 = vmatpush1.msra.mxu0 0.0
      %1742 = vmatprep.subr.mxu0 0.0
      %1743 = vmatpush1.msra.mxu0 0.0
      %1744 = vmatprep.subr.mxu0 0.0
      %1745 = vmatpush1.msra.mxu0 0.0
      %1746 = vmatprep.subr.mxu0 0.0
      %1747 = vmatpush1.msra.mxu0 0.0
      %1748 = vmatprep.subr.mxu0 0.0
      %1749 = vmatpush1.msra.mxu0 0.0
      %1750 = vmatprep.subr.mxu0 0.0
      %1751 = vmatpush1.msra.mxu0 0.0
      %1752 = vmatprep.mubr.f32.mxu0 0.0
      %1753 = vmatmul.mubr.f32.gmra.mrb[0].mxu0 %v1683
      %v1754 = vpop.f32.mrb[0].mxu0
      %v1755 = vadd.f32 0.0, %v1754
      %v1756 = vpop.f32.mrb[0].mxu0
      %1757 = vmatprep.mubr.f32.mxu0 0.0
      %1758 = vmatmul.mubr.f32.gmra.mrb[0].mxu0 %v1686
      %v1759 = vpop.f32.mrb[0].mxu0
      %v1760 = vadd.f32 0.0, %v1759
      %v1761 = vpop.f32.mrb[0].mxu0
      %1762 = vdwg.mxu0
      %1763 = vrot.lane.b32.xlu0 %v325, 56
      %v1764 = vpop.permute.xlu0 %1763
      %1765 = vrot.lane.b32.xlu0 %v330, 56
      %v1766 = vpop.permute.xlu0 %1765
      %v1770 = vsel %vm700, %v1585, 0
      %v1773 = vsel %vm700, %v1586, 0
      %1775 = vmatprep.subr.mxu0 0.0
      %1776 = vmatpush1.msra.mxu0 %v1764
      %1777 = vmatprep.subr.mxu0 0.0
      %1778 = vmatpush1.msra.mxu0 %v1766
      %1779 = vmatprep.subr.mxu0 0.0
      %1780 = vmatpush1.msra.mxu0 0.0
      %1781 = vmatprep.subr.mxu0 0.0
      %1782 = vmatpush1.msra.mxu0 0.0
      %1783 = vmatprep.subr.mxu0 0.0
      %1784 = vmatpush1.msra.mxu0 0.0
      %1785 = vmatprep.subr.mxu0 0.0
      %1786 = vmatpush1.msra.mxu0 0.0
      %1787 = vmatprep.subr.mxu0 0.0
      %1788 = vmatpush1.msra.mxu0 0.0
      %1789 = vmatprep.subr.mxu0 0.0
      %1790 = vmatpush1.msra.mxu0 0.0
      %1791 = vmatprep.subr.mxu0 0.0
      %1792 = vmatpush1.msra.mxu0 0.0
      %1793 = vmatprep.subr.mxu0 0.0
      %1794 = vmatpush1.msra.mxu0 0.0
      %1795 = vmatprep.subr.mxu0 0.0
      %1796 = vmatpush1.msra.mxu0 0.0
      %1797 = vmatprep.subr.mxu0 0.0
      %1798 = vmatpush1.msra.mxu0 0.0
      %1799 = vmatprep.subr.mxu0 0.0
      %1800 = vmatpush1.msra.mxu0 0.0
      %1801 = vmatprep.subr.mxu0 0.0
      %1802 = vmatpush1.msra.mxu0 0.0
      %1803 = vmatprep.subr.mxu0 0.0
      %1804 = vmatpush1.msra.mxu0 0.0
      %1805 = vmatprep.subr.mxu0 0.0
      %1806 = vmatpush1.msra.mxu0 0.0
      %1807 = vmatprep.subr.mxu0 0.0
      %1808 = vmatpush1.msra.mxu0 0.0
      %1809 = vmatprep.subr.mxu0 0.0
      %1810 = vmatpush1.msra.mxu0 0.0
      %1811 = vmatprep.subr.mxu0 0.0
      %1812 = vmatpush1.msra.mxu0 0.0
      %1813 = vmatprep.subr.mxu0 0.0
      %1814 = vmatpush1.msra.mxu0 0.0
      %1815 = vmatprep.subr.mxu0 0.0
      %1816 = vmatpush1.msra.mxu0 0.0
      %1817 = vmatprep.subr.mxu0 0.0
      %1818 = vmatpush1.msra.mxu0 0.0
      %1819 = vmatprep.subr.mxu0 0.0
      %1820 = vmatpush1.msra.mxu0 0.0
      %1821 = vmatprep.subr.mxu0 0.0
      %1822 = vmatpush1.msra.mxu0 0.0
      %1823 = vmatprep.subr.mxu0 0.0
      %1824 = vmatpush1.msra.mxu0 0.0
      %1825 = vmatprep.subr.mxu0 0.0
      %1826 = vmatpush1.msra.mxu0 0.0
      %1827 = vmatprep.subr.mxu0 0.0
      %1828 = vmatpush1.msra.mxu0 0.0
      %1829 = vmatprep.subr.mxu0 0.0
      %1830 = vmatpush1.msra.mxu0 0.0
      %1831 = vmatprep.subr.mxu0 0.0
      %1832 = vmatpush1.msra.mxu0 0.0
      %1833 = vmatprep.subr.mxu0 0.0
      %1834 = vmatpush1.msra.mxu0 0.0
      %1835 = vmatprep.subr.mxu0 0.0
      %1836 = vmatpush1.msra.mxu0 0.0
      %1837 = vmatprep.subr.mxu0 0.0
      %1838 = vmatpush1.msra.mxu0 0.0
      %1839 = vmatprep.mubr.f32.mxu0 0.0
      %1840 = vmatmul.mubr.f32.gmra.mrb[0].mxu0 %v1770
      %v1841 = vpop.f32.mrb[0].mxu0
      %v1842 = vadd.f32 0.0, %v1841
      %v1843 = vpop.f32.mrb[0].mxu0
      %1844 = vmatprep.mubr.f32.mxu0 0.0
      %1845 = vmatmul.mubr.f32.gmra.mrb[0].mxu0 %v1773
      %v1846 = vpop.f32.mrb[0].mxu0
      %v1847 = vadd.f32 0.0, %v1846
      %v1848 = vpop.f32.mrb[0].mxu0
      %1849 = vdwg.mxu0
      %1850 = vrot.lane.b32.xlu0 %v335, 56
      %v1851 = vpop.permute.xlu0 %1850
      %1852 = vrot.lane.b32.xlu0 %v340, 56
      %v1853 = vpop.permute.xlu0 %1852
      %v1857 = vsel %vm700, %v1587, 0
      %v1860 = vsel %vm700, %v1588, 0
      %1862 = vmatprep.subr.mxu0 0.0
      %1863 = vmatpush1.msra.mxu0 %v1851
      %1864 = vmatprep.subr.mxu0 0.0
      %1865 = vmatpush1.msra.mxu0 %v1853
      %1866 = vmatprep.subr.mxu0 0.0
      %1867 = vmatpush1.msra.mxu0 0.0
      %1868 = vmatprep.subr.mxu0 0.0
      %1869 = vmatpush1.msra.mxu0 0.0
      %1870 = vmatprep.subr.mxu0 0.0
      %1871 = vmatpush1.msra.mxu0 0.0
      %1872 = vmatprep.subr.mxu0 0.0
      %1873 = vmatpush1.msra.mxu0 0.0
      %1874 = vmatprep.subr.mxu0 0.0
      %1875 = vmatpush1.msra.mxu0 0.0
      %1876 = vmatprep.subr.mxu0 0.0
      %1877 = vmatpush1.msra.mxu0 0.0
      %1878 = vmatprep.subr.mxu0 0.0
      %1879 = vmatpush1.msra.mxu0 0.0
      %1880 = vmatprep.subr.mxu0 0.0
      %1881 = vmatpush1.msra.mxu0 0.0
      %1882 = vmatprep.subr.mxu0 0.0
      %1883 = vmatpush1.msra.mxu0 0.0
      %1884 = vmatprep.subr.mxu0 0.0
      %1885 = vmatpush1.msra.mxu0 0.0
      %1886 = vmatprep.subr.mxu0 0.0
      %1887 = vmatpush1.msra.mxu0 0.0
      %1888 = vmatprep.subr.mxu0 0.0
      %1889 = vmatpush1.msra.mxu0 0.0
      %1890 = vmatprep.subr.mxu0 0.0
      %1891 = vmatpush1.msra.mxu0 0.0
      %1892 = vmatprep.subr.mxu0 0.0
      %1893 = vmatpush1.msra.mxu0 0.0
      %1894 = vmatprep.subr.mxu0 0.0
      %1895 = vmatpush1.msra.mxu0 0.0
      %1896 = vmatprep.subr.mxu0 0.0
      %1897 = vmatpush1.msra.mxu0 0.0
      %1898 = vmatprep.subr.mxu0 0.0
      %1899 = vmatpush1.msra.mxu0 0.0
      %1900 = vmatprep.subr.mxu0 0.0
      %1901 = vmatpush1.msra.mxu0 0.0
      %1902 = vmatprep.subr.mxu0 0.0
      %1903 = vmatpush1.msra.mxu0 0.0
      %1904 = vmatprep.subr.mxu0 0.0
      %1905 = vmatpush1.msra.mxu0 0.0
      %1906 = vmatprep.subr.mxu0 0.0
      %1907 = vmatpush1.msra.mxu0 0.0
      %1908 = vmatprep.subr.mxu0 0.0
      %1909 = vmatpush1.msra.mxu0 0.0
      %1910 = vmatprep.subr.mxu0 0.0
      %1911 = vmatpush1.msra.mxu0 0.0
      %1912 = vmatprep.subr.mxu0 0.0
      %1913 = vmatpush1.msra.mxu0 0.0
      %1914 = vmatprep.subr.mxu0 0.0
      %1915 = vmatpush1.msra.mxu0 0.0
      %1916 = vmatprep.subr.mxu0 0.0
      %1917 = vmatpush1.msra.mxu0 0.0
      %1918 = vmatprep.subr.mxu0 0.0
      %1919 = vmatpush1.msra.mxu0 0.0
      %1920 = vmatprep.subr.mxu0 0.0
      %1921 = vmatpush1.msra.mxu0 0.0
      %1922 = vmatprep.subr.mxu0 0.0
      %1923 = vmatpush1.msra.mxu0 0.0
      %1924 = vmatprep.subr.mxu0 0.0
      %1925 = vmatpush1.msra.mxu0 0.0
      %1926 = vmatprep.mubr.f32.mxu0 0.0
      %1927 = vmatmul.mubr.f32.gmra.mrb[0].mxu0 %v1857
      %v1928 = vpop.f32.mrb[0].mxu0
      %v1929 = vadd.f32 0.0, %v1928
      %v1930 = vpop.f32.mrb[0].mxu0
      %1931 = vmatprep.mubr.f32.mxu0 0.0
      %1932 = vmatmul.mubr.f32.gmra.mrb[0].mxu0 %v1860
      %v1933 = vpop.f32.mrb[0].mxu0
      %v1934 = vadd.f32 0.0, %v1933
      %v1935 = vpop.f32.mrb[0].mxu0
      %1936 = vdwg.mxu0
      %1937 = vrot.lane.b32.xlu0 %v305, 112
      %v1938 = vpop.permute.xlu0 %1937
      %1939 = vrot.lane.b32.xlu0 %v310, 112
      %v1940 = vpop.permute.xlu0 %1939
      %1941 = vrot.lane.b32.xlu0 %v305, 80
      %v1942 = vpop.permute.xlu0 %1941
      %1943 = vrot.lane.b32.xlu0 %v310, 80
      %v1944 = vpop.permute.xlu0 %1943
      %v1945 = vsel %vm349, %v1938, 0
      %v1947 = vsel %vm349, %v1940, 0
      %v1949 = vsel %vm349, %v1942, 0
      %v1951 = vsel %vm349, %v1944, 0
      %1953 = vmatprep.subr.mxu0 0.0
      %1954 = vmatpush1.xpose.msra.mxu0 %v1949
      %1955 = vmatprep.subr.mxu0 0.0
      %1956 = vmatpush1.xpose.msra.mxu0 %v1951
      %1957 = vmatprep.subr.mxu0 0.0
      %1958 = vmatpush1.xpose.msra.mxu0 0.0
      %1959 = vmatprep.subr.mxu0 0.0
      %1960 = vmatpush1.xpose.msra.mxu0 0.0
      %1961 = vmatprep.subr.mxu0 0.0
      %1962 = vmatpush1.xpose.msra.mxu0 0.0
      %1963 = vmatprep.subr.mxu0 0.0
      %1964 = vmatpush1.xpose.msra.mxu0 0.0
      %1965 = vmatprep.subr.mxu0 0.0
      %1966 = vmatpush1.xpose.msra.mxu0 0.0
      %1967 = vmatprep.subr.mxu0 0.0
      %1968 = vmatpush1.xpose.msra.mxu0 0.0
      %1969 = vmatprep.subr.mxu0 0.0
      %1970 = vmatpush1.xpose.msra.mxu0 0.0
      %1971 = vmatprep.subr.mxu0 0.0
      %1972 = vmatpush1.xpose.msra.mxu0 0.0
      %1973 = vmatprep.subr.mxu0 0.0
      %1974 = vmatpush1.xpose.msra.mxu0 0.0
      %1975 = vmatprep.subr.mxu0 0.0
      %1976 = vmatpush1.xpose.msra.mxu0 0.0
      %1977 = vmatprep.subr.mxu0 0.0
      %1978 = vmatpush1.xpose.msra.mxu0 0.0
      %1979 = vmatprep.subr.mxu0 0.0
      %1980 = vmatpush1.xpose.msra.mxu0 0.0
      %1981 = vmatprep.subr.mxu0 0.0
      %1982 = vmatpush1.xpose.msra.mxu0 0.0
      %1983 = vmatprep.subr.mxu0 0.0
      %1984 = vmatpush1.xpose.msra.mxu0 0.0
      %1985 = vmatprep.subr.mxu0 0.0
      %1986 = vmatpush1.xpose.msra.mxu0 0.0
      %1987 = vmatprep.subr.mxu0 0.0
      %1988 = vmatpush1.xpose.msra.mxu0 0.0
      %1989 = vmatprep.subr.mxu0 0.0
      %1990 = vmatpush1.xpose.msra.mxu0 0.0
      %1991 = vmatprep.subr.mxu0 0.0
      %1992 = vmatpush1.xpose.msra.mxu0 0.0
      %1993 = vmatprep.subr.mxu0 0.0
      %1994 = vmatpush1.xpose.msra.mxu0 0.0
      %1995 = vmatprep.subr.mxu0 0.0
      %1996 = vmatpush1.xpose.msra.mxu0 0.0
      %1997 = vmatprep.subr.mxu0 0.0
      %1998 = vmatpush1.xpose.msra.mxu0 0.0
      %1999 = vmatprep.subr.mxu0 0.0
      %2000 = vmatpush1.xpose.msra.mxu0 0.0
      %2001 = vmatprep.subr.mxu0 0.0
      %2002 = vmatpush1.xpose.msra.mxu0 0.0
      %2003 = vmatprep.subr.mxu0 0.0
      %2004 = vmatpush1.xpose.msra.mxu0 0.0
      %2005 = vmatprep.subr.mxu0 0.0
      %2006 = vmatpush1.xpose.msra.mxu0 0.0
      %2007 = vmatprep.subr.mxu0 0.0
      %2008 = vmatpush1.xpose.msra.mxu0 0.0
      %2009 = vmatprep.subr.mxu0 0.0
      %2010 = vmatpush1.xpose.msra.mxu0 0.0
      %2011 = vmatprep.subr.mxu0 0.0
      %2012 = vmatpush1.xpose.msra.mxu0 0.0
      %2013 = vmatprep.subr.mxu0 0.0
      %2014 = vmatpush1.xpose.msra.mxu0 0.0
      %2015 = vmatprep.subr.mxu0 0.0
      %2016 = vmatpush1.xpose.msra.mxu0 0.0
      %2017 = vmatprep.mubr.f32.mxu0 0.0
      %2018 = vmatmul.mubr.f32.gmra.mrb[0].mxu0 %v1945
      %v2019 = vpop.f32.mrb[0].mxu0
      %v2020 = vadd.f32 0.0, %v2019
      %v2021 = vpop.f32.mrb[0].mxu0
      %2022 = vmatprep.mubr.f32.mxu0 0.0
      %2023 = vmatmul.mubr.f32.gmra.mrb[0].mxu0 %v1947
      %v2024 = vpop.f32.mrb[0].mxu0
      %v2025 = vadd.f32 0.0, %v2024
      %v2026 = vpop.f32.mrb[0].mxu0
      %2027 = vdwg.mxu0
      %2028 = vrot.lane.b32.xlu0 %v315, 112
      %v2029 = vpop.permute.xlu0 %2028
      %2030 = vrot.lane.b32.xlu0 %v320, 112
      %v2031 = vpop.permute.xlu0 %2030
      %2032 = vrot.lane.b32.xlu0 %v315, 80
      %v2033 = vpop.permute.xlu0 %2032
      %2034 = vrot.lane.b32.xlu0 %v320, 80
      %v2035 = vpop.permute.xlu0 %2034
      %v2036 = vsel %vm349, %v2029, 0
      %v2038 = vsel %vm349, %v2031, 0
      %v2040 = vsel %vm349, %v2033, 0
      %v2042 = vsel %vm349, %v2035, 0
      %2044 = vmatprep.subr.mxu0 0.0
      %2045 = vmatpush1.xpose.msra.mxu0 %v2040
      %2046 = vmatprep.subr.mxu0 0.0
      %2047 = vmatpush1.xpose.msra.mxu0 %v2042
      %2048 = vmatprep.subr.mxu0 0.0
      %2049 = vmatpush1.xpose.msra.mxu0 0.0
      %2050 = vmatprep.subr.mxu0 0.0
      %2051 = vmatpush1.xpose.msra.mxu0 0.0
      %2052 = vmatprep.subr.mxu0 0.0
      %2053 = vmatpush1.xpose.msra.mxu0 0.0
      %2054 = vmatprep.subr.mxu0 0.0
      %2055 = vmatpush1.xpose.msra.mxu0 0.0
      %2056 = vmatprep.subr.mxu0 0.0
      %2057 = vmatpush1.xpose.msra.mxu0 0.0
      %2058 = vmatprep.subr.mxu0 0.0
      %2059 = vmatpush1.xpose.msra.mxu0 0.0
      %2060 = vmatprep.subr.mxu0 0.0
      %2061 = vmatpush1.xpose.msra.mxu0 0.0
      %2062 = vmatprep.subr.mxu0 0.0
      %2063 = vmatpush1.xpose.msra.mxu0 0.0
      %2064 = vmatprep.subr.mxu0 0.0
      %2065 = vmatpush1.xpose.msra.mxu0 0.0
      %2066 = vmatprep.subr.mxu0 0.0
      %2067 = vmatpush1.xpose.msra.mxu0 0.0
      %2068 = vmatprep.subr.mxu0 0.0
      %2069 = vmatpush1.xpose.msra.mxu0 0.0
      %2070 = vmatprep.subr.mxu0 0.0
      %2071 = vmatpush1.xpose.msra.mxu0 0.0
      %2072 = vmatprep.subr.mxu0 0.0
      %2073 = vmatpush1.xpose.msra.mxu0 0.0
      %2074 = vmatprep.subr.mxu0 0.0
      %2075 = vmatpush1.xpose.msra.mxu0 0.0
      %2076 = vmatprep.subr.mxu0 0.0
      %2077 = vmatpush1.xpose.msra.mxu0 0.0
      %2078 = vmatprep.subr.mxu0 0.0
      %2079 = vmatpush1.xpose.msra.mxu0 0.0
      %2080 = vmatprep.subr.mxu0 0.0
      %2081 = vmatpush1.xpose.msra.mxu0 0.0
      %2082 = vmatprep.subr.mxu0 0.0
      %2083 = vmatpush1.xpose.msra.mxu0 0.0
      %2084 = vmatprep.subr.mxu0 0.0
      %2085 = vmatpush1.xpose.msra.mxu0 0.0
      %2086 = vmatprep.subr.mxu0 0.0
      %2087 = vmatpush1.xpose.msra.mxu0 0.0
      %2088 = vmatprep.subr.mxu0 0.0
      %2089 = vmatpush1.xpose.msra.mxu0 0.0
      %2090 = vmatprep.subr.mxu0 0.0
      %2091 = vmatpush1.xpose.msra.mxu0 0.0
      %2092 = vmatprep.subr.mxu0 0.0
      %2093 = vmatpush1.xpose.msra.mxu0 0.0
      %2094 = vmatprep.subr.mxu0 0.0
      %2095 = vmatpush1.xpose.msra.mxu0 0.0
      %2096 = vmatprep.subr.mxu0 0.0
      %2097 = vmatpush1.xpose.msra.mxu0 0.0
      %2098 = vmatprep.subr.mxu0 0.0
      %2099 = vmatpush1.xpose.msra.mxu0 0.0
      %2100 = vmatprep.subr.mxu0 0.0
      %2101 = vmatpush1.xpose.msra.mxu0 0.0
      %2102 = vmatprep.subr.mxu0 0.0
      %2103 = vmatpush1.xpose.msra.mxu0 0.0
      %2104 = vmatprep.subr.mxu0 0.0
      %2105 = vmatpush1.xpose.msra.mxu0 0.0
      %2106 = vmatprep.subr.mxu0 0.0
      %2107 = vmatpush1.xpose.msra.mxu0 0.0
      %2108 = vmatprep.mubr.f32.mxu0 0.0
      %2109 = vmatmul.mubr.f32.gmra.mrb[0].mxu0 %v2036
      %v2110 = vpop.f32.mrb[0].mxu0
      %v2111 = vadd.f32 0.0, %v2110
      %v2112 = vpop.f32.mrb[0].mxu0
      %2113 = vmatprep.mubr.f32.mxu0 0.0
      %2114 = vmatmul.mubr.f32.gmra.mrb[0].mxu0 %v2038
      %v2115 = vpop.f32.mrb[0].mxu0
      %v2116 = vadd.f32 0.0, %v2115
      %v2117 = vpop.f32.mrb[0].mxu0
      %2118 = vdwg.mxu0
      %2119 = vrot.lane.b32.xlu0 %v325, 112
      %v2120 = vpop.permute.xlu0 %2119
      %2121 = vrot.lane.b32.xlu0 %v330, 112
      %v2122 = vpop.permute.xlu0 %2121
      %2123 = vrot.lane.b32.xlu0 %v325, 80
      %v2124 = vpop.permute.xlu0 %2123
      %2125 = vrot.lane.b32.xlu0 %v330, 80
      %v2126 = vpop.permute.xlu0 %2125
      %v2127 = vsel %vm349, %v2120, 0
      %v2129 = vsel %vm349, %v2122, 0
      %v2131 = vsel %vm349, %v2124, 0
      %v2133 = vsel %vm349, %v2126, 0
      %2135 = vmatprep.subr.mxu0 0.0
      %2136 = vmatpush1.xpose.msra.mxu0 %v2131
      %2137 = vmatprep.subr.mxu0 0.0
      %2138 = vmatpush1.xpose.msra.mxu0 %v2133
      %2139 = vmatprep.subr.mxu0 0.0
      %2140 = vmatpush1.xpose.msra.mxu0 0.0
      %2141 = vmatprep.subr.mxu0 0.0
      %2142 = vmatpush1.xpose.msra.mxu0 0.0
      %2143 = vmatprep.subr.mxu0 0.0
      %2144 = vmatpush1.xpose.msra.mxu0 0.0
      %2145 = vmatprep.subr.mxu0 0.0
      %2146 = vmatpush1.xpose.msra.mxu0 0.0
      %2147 = vmatprep.subr.mxu0 0.0
      %2148 = vmatpush1.xpose.msra.mxu0 0.0
      %2149 = vmatprep.subr.mxu0 0.0
      %2150 = vmatpush1.xpose.msra.mxu0 0.0
      %2151 = vmatprep.subr.mxu0 0.0
      %2152 = vmatpush1.xpose.msra.mxu0 0.0
      %2153 = vmatprep.subr.mxu0 0.0
      %2154 = vmatpush1.xpose.msra.mxu0 0.0
      %2155 = vmatprep.subr.mxu0 0.0
      %2156 = vmatpush1.xpose.msra.mxu0 0.0
      %2157 = vmatprep.subr.mxu0 0.0
      %2158 = vmatpush1.xpose.msra.mxu0 0.0
      %2159 = vmatprep.subr.mxu0 0.0
      %2160 = vmatpush1.xpose.msra.mxu0 0.0
      %2161 = vmatprep.subr.mxu0 0.0
      %2162 = vmatpush1.xpose.msra.mxu0 0.0
      %2163 = vmatprep.subr.mxu0 0.0
      %2164 = vmatpush1.xpose.msra.mxu0 0.0
      %2165 = vmatprep.subr.mxu0 0.0
      %2166 = vmatpush1.xpose.msra.mxu0 0.0
      %2167 = vmatprep.subr.mxu0 0.0
      %2168 = vmatpush1.xpose.msra.mxu0 0.0
      %2169 = vmatprep.subr.mxu0 0.0
      %2170 = vmatpush1.xpose.msra.mxu0 0.0
      %2171 = vmatprep.subr.mxu0 0.0
      %2172 = vmatpush1.xpose.msra.mxu0 0.0
      %2173 = vmatprep.subr.mxu0 0.0
      %2174 = vmatpush1.xpose.msra.mxu0 0.0
      %2175 = vmatprep.subr.mxu0 0.0
      %2176 = vmatpush1.xpose.msra.mxu0 0.0
      %2177 = vmatprep.subr.mxu0 0.0
      %2178 = vmatpush1.xpose.msra.mxu0 0.0
      %2179 = vmatprep.subr.mxu0 0.0
      %2180 = vmatpush1.xpose.msra.mxu0 0.0
      %2181 = vmatprep.subr.mxu0 0.0
      %2182 = vmatpush1.xpose.msra.mxu0 0.0
      %2183 = vmatprep.subr.mxu0 0.0
      %2184 = vmatpush1.xpose.msra.mxu0 0.0
      %2185 = vmatprep.subr.mxu0 0.0
      %2186 = vmatpush1.xpose.msra.mxu0 0.0
      %2187 = vmatprep.subr.mxu0 0.0
      %2188 = vmatpush1.xpose.msra.mxu0 0.0
      %2189 = vmatprep.subr.mxu0 0.0
      %2190 = vmatpush1.xpose.msra.mxu0 0.0
      %2191 = vmatprep.subr.mxu0 0.0
      %2192 = vmatpush1.xpose.msra.mxu0 0.0
      %2193 = vmatprep.subr.mxu0 0.0
      %2194 = vmatpush1.xpose.msra.mxu0 0.0
      %2195 = vmatprep.subr.mxu0 0.0
      %2196 = vmatpush1.xpose.msra.mxu0 0.0
      %2197 = vmatprep.subr.mxu0 0.0
      %2198 = vmatpush1.xpose.msra.mxu0 0.0
      %2199 = vmatprep.mubr.f32.mxu0 0.0
      %2200 = vmatmul.mubr.f32.gmra.mrb[0].mxu0 %v2127
      %v2201 = vpop.f32.mrb[0].mxu0
      %v2202 = vadd.f32 0.0, %v2201
      %v2203 = vpop.f32.mrb[0].mxu0
      %2204 = vmatprep.mubr.f32.mxu0 0.0
      %2205 = vmatmul.mubr.f32.gmra.mrb[0].mxu0 %v2129
      %v2206 = vpop.f32.mrb[0].mxu0
      %v2207 = vadd.f32 0.0, %v2206
      %v2208 = vpop.f32.mrb[0].mxu0
      %2209 = vdwg.mxu0
      %2210 = vrot.lane.b32.xlu0 %v335, 112
      %v2211 = vpop.permute.xlu0 %2210
      %2212 = vrot.lane.b32.xlu0 %v340, 112
      %v2213 = vpop.permute.xlu0 %2212
      %2214 = vrot.lane.b32.xlu0 %v335, 80
      %v2215 = vpop.permute.xlu0 %2214
      %2216 = vrot.lane.b32.xlu0 %v340, 80
      %v2217 = vpop.permute.xlu0 %2216
      %v2218 = vsel %vm349, %v2211, 0
      %v2220 = vsel %vm349, %v2213, 0
      %v2222 = vsel %vm349, %v2215, 0
      %v2224 = vsel %vm349, %v2217, 0
      %2226 = vmatprep.subr.mxu0 0.0
      %2227 = vmatpush1.xpose.msra.mxu0 %v2222
      %2228 = vmatprep.subr.mxu0 0.0
      %2229 = vmatpush1.xpose.msra.mxu0 %v2224
      %2230 = vmatprep.subr.mxu0 0.0
      %2231 = vmatpush1.xpose.msra.mxu0 0.0
      %2232 = vmatprep.subr.mxu0 0.0
      %2233 = vmatpush1.xpose.msra.mxu0 0.0
      %2234 = vmatprep.subr.mxu0 0.0
      %2235 = vmatpush1.xpose.msra.mxu0 0.0
      %2236 = vmatprep.subr.mxu0 0.0
      %2237 = vmatpush1.xpose.msra.mxu0 0.0
      %2238 = vmatprep.subr.mxu0 0.0
      %2239 = vmatpush1.xpose.msra.mxu0 0.0
      %2240 = vmatprep.subr.mxu0 0.0
      %2241 = vmatpush1.xpose.msra.mxu0 0.0
      %2242 = vmatprep.subr.mxu0 0.0
      %2243 = vmatpush1.xpose.msra.mxu0 0.0
      %2244 = vmatprep.subr.mxu0 0.0
      %2245 = vmatpush1.xpose.msra.mxu0 0.0
      %2246 = vmatprep.subr.mxu0 0.0
      %2247 = vmatpush1.xpose.msra.mxu0 0.0
      %2248 = vmatprep.subr.mxu0 0.0
      %2249 = vmatpush1.xpose.msra.mxu0 0.0
      %2250 = vmatprep.subr.mxu0 0.0
      %2251 = vmatpush1.xpose.msra.mxu0 0.0
      %2252 = vmatprep.subr.mxu0 0.0
      %2253 = vmatpush1.xpose.msra.mxu0 0.0
      %2254 = vmatprep.subr.mxu0 0.0
      %2255 = vmatpush1.xpose.msra.mxu0 0.0
      %2256 = vmatprep.subr.mxu0 0.0
      %2257 = vmatpush1.xpose.msra.mxu0 0.0
      %2258 = vmatprep.subr.mxu0 0.0
      %2259 = vmatpush1.xpose.msra.mxu0 0.0
      %2260 = vmatprep.subr.mxu0 0.0
      %2261 = vmatpush1.xpose.msra.mxu0 0.0
      %2262 = vmatprep.subr.mxu0 0.0
      %2263 = vmatpush1.xpose.msra.mxu0 0.0
      %2264 = vmatprep.subr.mxu0 0.0
      %2265 = vmatpush1.xpose.msra.mxu0 0.0
      %2266 = vmatprep.subr.mxu0 0.0
      %2267 = vmatpush1.xpose.msra.mxu0 0.0
      %2268 = vmatprep.subr.mxu0 0.0
      %2269 = vmatpush1.xpose.msra.mxu0 0.0
      %2270 = vmatprep.subr.mxu0 0.0
      %2271 = vmatpush1.xpose.msra.mxu0 0.0
      %2272 = vmatprep.subr.mxu0 0.0
      %2273 = vmatpush1.xpose.msra.mxu0 0.0
      %2274 = vmatprep.subr.mxu0 0.0
      %2275 = vmatpush1.xpose.msra.mxu0 0.0
      %2276 = vmatprep.subr.mxu0 0.0
      %2277 = vmatpush1.xpose.msra.mxu0 0.0
      %2278 = vmatprep.subr.mxu0 0.0
      %2279 = vmatpush1.xpose.msra.mxu0 0.0
      %2280 = vmatprep.subr.mxu0 0.0
      %2281 = vmatpush1.xpose.msra.mxu0 0.0
      %2282 = vmatprep.subr.mxu0 0.0
      %2283 = vmatpush1.xpose.msra.mxu0 0.0
      %2284 = vmatprep.subr.mxu0 0.0
      %2285 = vmatpush1.xpose.msra.mxu0 0.0
      %2286 = vmatprep.subr.mxu0 0.0
      %2287 = vmatpush1.xpose.msra.mxu0 0.0
      %2288 = vmatprep.subr.mxu0 0.0
      %2289 = vmatpush1.xpose.msra.mxu0 0.0
      %2290 = vmatprep.mubr.f32.mxu0 0.0
      %2291 = vmatmul.mubr.f32.gmra.mrb[0].mxu0 %v2218
      %v2292 = vpop.f32.mrb[0].mxu0
      %v2293 = vadd.f32 0.0, %v2292
      %v2294 = vpop.f32.mrb[0].mxu0
      %2295 = vmatprep.mubr.f32.mxu0 0.0
      %2296 = vmatmul.mubr.f32.gmra.mrb[0].mxu0 %v2220
      %v2297 = vpop.f32.mrb[0].mxu0
      %v2298 = vadd.f32 0.0, %v2297
      %v2299 = vpop.f32.mrb[0].mxu0
      %2300 = vdwg.mxu0
      %v2301 = vsel %vm700, %v2020, -inf
      %2302 = vmax.xlane.f32.xlu0 %v2301
      %v2303 = vpop.xlane.xlu0 %2302
      %v2304 = vsel %vm700, %v2025, -inf
      %2305 = vmax.xlane.f32.xlu0 %v2304
      %v2306 = vpop.xlane.xlu0 %2305
      %v2307 = vsel %vm700, %v2111, -inf
      %2308 = vmax.xlane.f32.xlu0 %v2307
      %v2309 = vpop.xlane.xlu0 %2308
      %v2310 = vsel %vm700, %v2116, -inf
      %2311 = vmax.xlane.f32.xlu0 %v2310
      %v2312 = vpop.xlane.xlu0 %2311
      %v2313 = vsel %vm700, %v2202, -inf
      %2314 = vmax.xlane.f32.xlu0 %v2313
      %v2315 = vpop.xlane.xlu0 %2314
      %v2316 = vsel %vm700, %v2207, -inf
      %2317 = vmax.xlane.f32.xlu0 %v2316
      %v2318 = vpop.xlane.xlu0 %2317
      %v2319 = vsel %vm700, %v2293, -inf
      %2320 = vmax.xlane.f32.xlu0 %v2319
      %v2321 = vpop.xlane.xlu0 %2320
      %v2322 = vsel %vm700, %v2298, -inf
      %2323 = vmax.xlane.f32.xlu0 %v2322
      %v2324 = vpop.xlane.xlu0 %2323
      %v2325 = vsub.f32 %v2020, %v2303
      %v2326 = vsub.f32 %v2025, %v2306
      %v2327 = vsub.f32 %v2111, %v2309
      %v2328 = vsub.f32 %v2116, %v2312
      %v2329 = vsub.f32 %v2202, %v2315
      %v2330 = vsub.f32 %v2207, %v2318
      %v2331 = vsub.f32 %v2293, %v2321
      %v2332 = vsub.f32 %v2298, %v2324
      %v2333 = vmul.f32 %v2325, 1.442695
      %v2334 = vpow.pop %v2333
      %v2335 = vmul.f32 %v2326, 1.442695
      %v2336 = vpow.pop %v2335
      %v2337 = vmul.f32 %v2327, 1.442695
      %v2338 = vpow.pop %v2337
      %v2339 = vmul.f32 %v2328, 1.442695
      %v2340 = vpow.pop %v2339
      %v2341 = vmul.f32 %v2329, 1.442695
      %v2342 = vpow.pop %v2341
      %v2343 = vmul.f32 %v2330, 1.442695
      %v2344 = vpow.pop %v2343
      %v2345 = vmul.f32 %v2331, 1.442695
      %v2346 = vpow.pop %v2345
      %v2347 = vmul.f32 %v2332, 1.442695
      %v2348 = vpow.pop %v2347
      %v2349 = vsel %vm700, %v2334, 0.0
      %2350 = vadd.xlane.f32.xlu0 %v2349
      %v2351 = vpop.xlane.xlu0 %2350
      %v2352 = vsel %vm700, %v2336, 0.0
      %2353 = vadd.xlane.f32.xlu0 %v2352
      %v2354 = vpop.xlane.xlu0 %2353
      %v2355 = vsel %vm700, %v2338, 0.0
      %2356 = vadd.xlane.f32.xlu0 %v2355
      %v2357 = vpop.xlane.xlu0 %2356
      %v2358 = vsel %vm700, %v2340, 0.0
      %2359 = vadd.xlane.f32.xlu0 %v2358
      %v2360 = vpop.xlane.xlu0 %2359
      %v2361 = vsel %vm700, %v2342, 0.0
      %2362 = vadd.xlane.f32.xlu0 %v2361
      %v2363 = vpop.xlane.xlu0 %2362
      %v2364 = vsel %vm700, %v2344, 0.0
      %2365 = vadd.xlane.f32.xlu0 %v2364
      %v2366 = vpop.xlane.xlu0 %2365
      %v2367 = vsel %vm700, %v2346, 0.0
      %2368 = vadd.xlane.f32.xlu0 %v2367
      %v2369 = vpop.xlane.xlu0 %2368
      %v2370 = vsel %vm700, %v2348, 0.0
      %2371 = vadd.xlane.f32.xlu0 %v2370
      %v2372 = vpop.xlane.xlu0 %2371
      %v2373 = vrcp.pop %v2351
      %v2374 = vrcp.pop %v2354
      %v2375 = vrcp.pop %v2357
      %v2376 = vrcp.pop %v2360
      %v2377 = vrcp.pop %v2363
      %v2378 = vrcp.pop %v2366
      %v2379 = vrcp.pop %v2369
      %v2380 = vrcp.pop %v2372
      %v2381 = vmul.f32 %v2334, %v2373
      %v2382 = vmul.f32 %v2336, %v2374
      %v2383 = vmul.f32 %v2338, %v2375
      %v2384 = vmul.f32 %v2340, %v2376
      %v2385 = vmul.f32 %v2342, %v2377
      %v2386 = vmul.f32 %v2344, %v2378
      %v2387 = vmul.f32 %v2346, %v2379
      %v2388 = vmul.f32 %v2348, %v2380
      %2389 = vrot.lane.b32.xlu0 %v305, 48
      %v2390 = vpop.permute.xlu0 %2389
      %2391 = vrot.lane.b32.xlu0 %v310, 48
      %v2392 = vpop.permute.xlu0 %2391
      %v2396 = vsel %vm700, %v2381, 0
      %v2399 = vsel %vm700, %v2382, 0
      %2401 = vmatprep.subr.mxu0 0.0
      %2402 = vmatpush1.msra.mxu0 %v2390
      %2403 = vmatprep.subr.mxu0 0.0
      %2404 = vmatpush1.msra.mxu0 %v2392
      %2405 = vmatprep.subr.mxu0 0.0
      %2406 = vmatpush1.msra.mxu0 0.0
      %2407 = vmatprep.subr.mxu0 0.0
      %2408 = vmatpush1.msra.mxu0 0.0
      %2409 = vmatprep.subr.mxu0 0.0
      %2410 = vmatpush1.msra.mxu0 0.0
      %2411 = vmatprep.subr.mxu0 0.0
      %2412 = vmatpush1.msra.mxu0 0.0
      %2413 = vmatprep.subr.mxu0 0.0
      %2414 = vmatpush1.msra.mxu0 0.0
      %2415 = vmatprep.subr.mxu0 0.0
      %2416 = vmatpush1.msra.mxu0 0.0
      %2417 = vmatprep.subr.mxu0 0.0
      %2418 = vmatpush1.msra.mxu0 0.0
      %2419 = vmatprep.subr.mxu0 0.0
      %2420 = vmatpush1.msra.mxu0 0.0
      %2421 = vmatprep.subr.mxu0 0.0
      %2422 = vmatpush1.msra.mxu0 0.0
      %2423 = vmatprep.subr.mxu0 0.0
      %2424 = vmatpush1.msra.mxu0 0.0
      %2425 = vmatprep.subr.mxu0 0.0
      %2426 = vmatpush1.msra.mxu0 0.0
      %2427 = vmatprep.subr.mxu0 0.0
      %2428 = vmatpush1.msra.mxu0 0.0
      %2429 = vmatprep.subr.mxu0 0.0
      %2430 = vmatpush1.msra.mxu0 0.0
      %2431 = vmatprep.subr.mxu0 0.0
      %2432 = vmatpush1.msra.mxu0 0.0
      %2433 = vmatprep.subr.mxu0 0.0
      %2434 = vmatpush1.msra.mxu0 0.0
      %2435 = vmatprep.subr.mxu0 0.0
      %2436 = vmatpush1.msra.mxu0 0.0
      %2437 = vmatprep.subr.mxu0 0.0
      %2438 = vmatpush1.msra.mxu0 0.0
      %2439 = vmatprep.subr.mxu0 0.0
      %2440 = vmatpush1.msra.mxu0 0.0
      %2441 = vmatprep.subr.mxu0 0.0
      %2442 = vmatpush1.msra.mxu0 0.0
      %2443 = vmatprep.subr.mxu0 0.0
      %2444 = vmatpush1.msra.mxu0 0.0
      %2445 = vmatprep.subr.mxu0 0.0
      %2446 = vmatpush1.msra.mxu0 0.0
      %2447 = vmatprep.subr.mxu0 0.0
      %2448 = vmatpush1.msra.mxu0 0.0
      %2449 = vmatprep.subr.mxu0 0.0
      %2450 = vmatpush1.msra.mxu0 0.0
      %2451 = vmatprep.subr.mxu0 0.0
      %2452 = vmatpush1.msra.mxu0 0.0
      %2453 = vmatprep.subr.mxu0 0.0
      %2454 = vmatpush1.msra.mxu0 0.0
      %2455 = vmatprep.subr.mxu0 0.0
      %2456 = vmatpush1.msra.mxu0 0.0
      %2457 = vmatprep.subr.mxu0 0.0
      %2458 = vmatpush1.msra.mxu0 0.0
      %2459 = vmatprep.subr.mxu0 0.0
      %2460 = vmatpush1.msra.mxu0 0.0
      %2461 = vmatprep.subr.mxu0 0.0
      %2462 = vmatpush1.msra.mxu0 0.0
      %2463 = vmatprep.subr.mxu0 0.0
      %2464 = vmatpush1.msra.mxu0 0.0
      %2465 = vmatprep.mubr.f32.mxu0 0.0
      %2466 = vmatmul.mubr.f32.gmra.mrb[0].mxu0 %v2396
      %v2467 = vpop.f32.mrb[0].mxu0
      %v2468 = vadd.f32 0.0, %v2467
      %v2469 = vpop.f32.mrb[0].mxu0
      %2470 = vmatprep.mubr.f32.mxu0 0.0
      %2471 = vmatmul.mubr.f32.gmra.mrb[0].mxu0 %v2399
      %v2472 = vpop.f32.mrb[0].mxu0
      %v2473 = vadd.f32 0.0, %v2472
      %v2474 = vpop.f32.mrb[0].mxu0
      %2475 = vdwg.mxu0
      %2476 = vrot.lane.b32.xlu0 %v315, 48
      %v2477 = vpop.permute.xlu0 %2476
      %2478 = vrot.lane.b32.xlu0 %v320, 48
      %v2479 = vpop.permute.xlu0 %2478
      %v2483 = vsel %vm700, %v2383, 0
      %v2486 = vsel %vm700, %v2384, 0
      %2488 = vmatprep.subr.mxu0 0.0
      %2489 = vmatpush1.msra.mxu0 %v2477
      %2490 = vmatprep.subr.mxu0 0.0
      %2491 = vmatpush1.msra.mxu0 %v2479
      %2492 = vmatprep.subr.mxu0 0.0
      %2493 = vmatpush1.msra.mxu0 0.0
      %2494 = vmatprep.subr.mxu0 0.0
      %2495 = vmatpush1.msra.mxu0 0.0
      %2496 = vmatprep.subr.mxu0 0.0
      %2497 = vmatpush1.msra.mxu0 0.0
      %2498 = vmatprep.subr.mxu0 0.0
      %2499 = vmatpush1.msra.mxu0 0.0
      %2500 = vmatprep.subr.mxu0 0.0
      %2501 = vmatpush1.msra.mxu0 0.0
      %2502 = vmatprep.subr.mxu0 0.0
      %2503 = vmatpush1.msra.mxu0 0.0
      %2504 = vmatprep.subr.mxu0 0.0
      %2505 = vmatpush1.msra.mxu0 0.0
      %2506 = vmatprep.subr.mxu0 0.0
      %2507 = vmatpush1.msra.mxu0 0.0
      %2508 = vmatprep.subr.mxu0 0.0
      %2509 = vmatpush1.msra.mxu0 0.0
      %2510 = vmatprep.subr.mxu0 0.0
      %2511 = vmatpush1.msra.mxu0 0.0
      %2512 = vmatprep.subr.mxu0 0.0
      %2513 = vmatpush1.msra.mxu0 0.0
      %2514 = vmatprep.subr.mxu0 0.0
      %2515 = vmatpush1.msra.mxu0 0.0
      %2516 = vmatprep.subr.mxu0 0.0
      %2517 = vmatpush1.msra.mxu0 0.0
      %2518 = vmatprep.subr.mxu0 0.0
      %2519 = vmatpush1.msra.mxu0 0.0
      %2520 = vmatprep.subr.mxu0 0.0
      %2521 = vmatpush1.msra.mxu0 0.0
      %2522 = vmatprep.subr.mxu0 0.0
      %2523 = vmatpush1.msra.mxu0 0.0
      %2524 = vmatprep.subr.mxu0 0.0
      %2525 = vmatpush1.msra.mxu0 0.0
      %2526 = vmatprep.subr.mxu0 0.0
      %2527 = vmatpush1.msra.mxu0 0.0
      %2528 = vmatprep.subr.mxu0 0.0
      %2529 = vmatpush1.msra.mxu0 0.0
      %2530 = vmatprep.subr.mxu0 0.0
      %2531 = vmatpush1.msra.mxu0 0.0
      %2532 = vmatprep.subr.mxu0 0.0
      %2533 = vmatpush1.msra.mxu0 0.0
      %2534 = vmatprep.subr.mxu0 0.0
      %2535 = vmatpush1.msra.mxu0 0.0
      %2536 = vmatprep.subr.mxu0 0.0
      %2537 = vmatpush1.msra.mxu0 0.0
      %2538 = vmatprep.subr.mxu0 0.0
      %2539 = vmatpush1.msra.mxu0 0.0
      %2540 = vmatprep.subr.mxu0 0.0
      %2541 = vmatpush1.msra.mxu0 0.0
      %2542 = vmatprep.subr.mxu0 0.0
      %2543 = vmatpush1.msra.mxu0 0.0
      %2544 = vmatprep.subr.mxu0 0.0
      %2545 = vmatpush1.msra.mxu0 0.0
      %2546 = vmatprep.subr.mxu0 0.0
      %2547 = vmatpush1.msra.mxu0 0.0
      %2548 = vmatprep.subr.mxu0 0.0
      %2549 = vmatpush1.msra.mxu0 0.0
      %2550 = vmatprep.subr.mxu0 0.0
      %2551 = vmatpush1.msra.mxu0 0.0
      %2552 = vmatprep.mubr.f32.mxu0 0.0
      %2553 = vmatmul.mubr.f32.gmra.mrb[0].mxu0 %v2483
      %v2554 = vpop.f32.mrb[0].mxu0
      %v2555 = vadd.f32 0.0, %v2554
      %v2556 = vpop.f32.mrb[0].mxu0
      %2557 = vmatprep.mubr.f32.mxu0 0.0
      %2558 = vmatmul.mubr.f32.gmra.mrb[0].mxu0 %v2486
      %v2559 = vpop.f32.mrb[0].mxu0
      %v2560 = vadd.f32 0.0, %v2559
      %v2561 = vpop.f32.mrb[0].mxu0
      %2562 = vdwg.mxu0
      %2563 = vrot.lane.b32.xlu0 %v325, 48
      %v2564 = vpop.permute.xlu0 %2563
      %2565 = vrot.lane.b32.xlu0 %v330, 48
      %v2566 = vpop.permute.xlu0 %2565
      %v2570 = vsel %vm700, %v2385, 0
      %v2573 = vsel %vm700, %v2386, 0
      %2575 = vmatprep.subr.mxu0 0.0
      %2576 = vmatpush1.msra.mxu0 %v2564
      %2577 = vmatprep.subr.mxu0 0.0
      %2578 = vmatpush1.msra.mxu0 %v2566
      %2579 = vmatprep.subr.mxu0 0.0
      %2580 = vmatpush1.msra.mxu0 0.0
      %2581 = vmatprep.subr.mxu0 0.0
      %2582 = vmatpush1.msra.mxu0 0.0
      %2583 = vmatprep.subr.mxu0 0.0
      %2584 = vmatpush1.msra.mxu0 0.0
      %2585 = vmatprep.subr.mxu0 0.0
      %2586 = vmatpush1.msra.mxu0 0.0
      %2587 = vmatprep.subr.mxu0 0.0
      %2588 = vmatpush1.msra.mxu0 0.0
      %2589 = vmatprep.subr.mxu0 0.0
      %2590 = vmatpush1.msra.mxu0 0.0
      %2591 = vmatprep.subr.mxu0 0.0
      %2592 = vmatpush1.msra.mxu0 0.0
      %2593 = vmatprep.subr.mxu0 0.0
      %2594 = vmatpush1.msra.mxu0 0.0
      %2595 = vmatprep.subr.mxu0 0.0
      %2596 = vmatpush1.msra.mxu0 0.0
      %2597 = vmatprep.subr.mxu0 0.0
      %2598 = vmatpush1.msra.mxu0 0.0
      %2599 = vmatprep.subr.mxu0 0.0
      %2600 = vmatpush1.msra.mxu0 0.0
      %2601 = vmatprep.subr.mxu0 0.0
      %2602 = vmatpush1.msra.mxu0 0.0
      %2603 = vmatprep.subr.mxu0 0.0
      %2604 = vmatpush1.msra.mxu0 0.0
      %2605 = vmatprep.subr.mxu0 0.0
      %2606 = vmatpush1.msra.mxu0 0.0
      %2607 = vmatprep.subr.mxu0 0.0
      %2608 = vmatpush1.msra.mxu0 0.0
      %2609 = vmatprep.subr.mxu0 0.0
      %2610 = vmatpush1.msra.mxu0 0.0
      %2611 = vmatprep.subr.mxu0 0.0
      %2612 = vmatpush1.msra.mxu0 0.0
      %2613 = vmatprep.subr.mxu0 0.0
      %2614 = vmatpush1.msra.mxu0 0.0
      %2615 = vmatprep.subr.mxu0 0.0
      %2616 = vmatpush1.msra.mxu0 0.0
      %2617 = vmatprep.subr.mxu0 0.0
      %2618 = vmatpush1.msra.mxu0 0.0
      %2619 = vmatprep.subr.mxu0 0.0
      %2620 = vmatpush1.msra.mxu0 0.0
      %2621 = vmatprep.subr.mxu0 0.0
      %2622 = vmatpush1.msra.mxu0 0.0
      %2623 = vmatprep.subr.mxu0 0.0
      %2624 = vmatpush1.msra.mxu0 0.0
      %2625 = vmatprep.subr.mxu0 0.0
      %2626 = vmatpush1.msra.mxu0 0.0
      %2627 = vmatprep.subr.mxu0 0.0
      %2628 = vmatpush1.msra.mxu0 0.0
      %2629 = vmatprep.subr.mxu0 0.0
      %2630 = vmatpush1.msra.mxu0 0.0
      %2631 = vmatprep.subr.mxu0 0.0
      %2632 = vmatpush1.msra.mxu0 0.0
      %2633 = vmatprep.subr.mxu0 0.0
      %2634 = vmatpush1.msra.mxu0 0.0
      %2635 = vmatprep.subr.mxu0 0.0
      %2636 = vmatpush1.msra.mxu0 0.0
      %2637 = vmatprep.subr.mxu0 0.0
      %2638 = vmatpush1.msra.mxu0 0.0
      %2639 = vmatprep.mubr.f32.mxu0 0.0
      %2640 = vmatmul.mubr.f32.gmra.mrb[0].mxu0 %v2570
      %v2641 = vpop.f32.mrb[0].mxu0
      %v2642 = vadd.f32 0.0, %v2641
      %v2643 = vpop.f32.mrb[0].mxu0
      %2644 = vmatprep.mubr.f32.mxu0 0.0
      %2645 = vmatmul.mubr.f32.gmra.mrb[0].mxu0 %v2573
      %v2646 = vpop.f32.mrb[0].mxu0
      %v2647 = vadd.f32 0.0, %v2646
      %v2648 = vpop.f32.mrb[0].mxu0
      %2649 = vdwg.mxu0
      %2650 = vrot.lane.b32.xlu0 %v335, 48
      %v2651 = vpop.permute.xlu0 %2650
      %2652 = vrot.lane.b32.xlu0 %v340, 48
      %v2653 = vpop.permute.xlu0 %2652
      %v2657 = vsel %vm700, %v2387, 0
      %v2660 = vsel %vm700, %v2388, 0
      %2662 = vmatprep.subr.mxu0 0.0
      %2663 = vmatpush1.msra.mxu0 %v2651
      %2664 = vmatprep.subr.mxu0 0.0
      %2665 = vmatpush1.msra.mxu0 %v2653
      %2666 = vmatprep.subr.mxu0 0.0
      %2667 = vmatpush1.msra.mxu0 0.0
      %2668 = vmatprep.subr.mxu0 0.0
      %2669 = vmatpush1.msra.mxu0 0.0
      %2670 = vmatprep.subr.mxu0 0.0
      %2671 = vmatpush1.msra.mxu0 0.0
      %2672 = vmatprep.subr.mxu0 0.0
      %2673 = vmatpush1.msra.mxu0 0.0
      %2674 = vmatprep.subr.mxu0 0.0
      %2675 = vmatpush1.msra.mxu0 0.0
      %2676 = vmatprep.subr.mxu0 0.0
      %2677 = vmatpush1.msra.mxu0 0.0
      %2678 = vmatprep.subr.mxu0 0.0
      %2679 = vmatpush1.msra.mxu0 0.0
      %2680 = vmatprep.subr.mxu0 0.0
      %2681 = vmatpush1.msra.mxu0 0.0
      %2682 = vmatprep.subr.mxu0 0.0
      %2683 = vmatpush1.msra.mxu0 0.0
      %2684 = vmatprep.subr.mxu0 0.0
      %2685 = vmatpush1.msra.mxu0 0.0
      %2686 = vmatprep.subr.mxu0 0.0
      %2687 = vmatpush1.msra.mxu0 0.0
      %2688 = vmatprep.subr.mxu0 0.0
      %2689 = vmatpush1.msra.mxu0 0.0
      %2690 = vmatprep.subr.mxu0 0.0
      %2691 = vmatpush1.msra.mxu0 0.0
      %2692 = vmatprep.subr.mxu0 0.0
      %2693 = vmatpush1.msra.mxu0 0.0
      %2694 = vmatprep.subr.mxu0 0.0
      %2695 = vmatpush1.msra.mxu0 0.0
      %2696 = vmatprep.subr.mxu0 0.0
      %2697 = vmatpush1.msra.mxu0 0.0
      %2698 = vmatprep.subr.mxu0 0.0
      %2699 = vmatpush1.msra.mxu0 0.0
      %2700 = vmatprep.subr.mxu0 0.0
      %2701 = vmatpush1.msra.mxu0 0.0
      %2702 = vmatprep.subr.mxu0 0.0
      %2703 = vmatpush1.msra.mxu0 0.0
      %2704 = vmatprep.subr.mxu0 0.0
      %2705 = vmatpush1.msra.mxu0 0.0
      %2706 = vmatprep.subr.mxu0 0.0
      %2707 = vmatpush1.msra.mxu0 0.0
      %2708 = vmatprep.subr.mxu0 0.0
      %2709 = vmatpush1.msra.mxu0 0.0
      %2710 = vmatprep.subr.mxu0 0.0
      %2711 = vmatpush1.msra.mxu0 0.0
      %2712 = vmatprep.subr.mxu0 0.0
      %2713 = vmatpush1.msra.mxu0 0.0
      %2714 = vmatprep.subr.mxu0 0.0
      %2715 = vmatpush1.msra.mxu0 0.0
      %2716 = vmatprep.subr.mxu0 0.0
      %2717 = vmatpush1.msra.mxu0 0.0
      %2718 = vmatprep.subr.mxu0 0.0
      %2719 = vmatpush1.msra.mxu0 0.0
      %2720 = vmatprep.subr.mxu0 0.0
      %2721 = vmatpush1.msra.mxu0 0.0
      %2722 = vmatprep.subr.mxu0 0.0
      %2723 = vmatpush1.msra.mxu0 0.0
      %2724 = vmatprep.subr.mxu0 0.0
      %2725 = vmatpush1.msra.mxu0 0.0
      %2726 = vmatprep.mubr.f32.mxu0 0.0
      %2727 = vmatmul.mubr.f32.gmra.mrb[0].mxu0 %v2657
      %v2728 = vpop.f32.mrb[0].mxu0
      %v2729 = vadd.f32 0.0, %v2728
      %v2730 = vpop.f32.mrb[0].mxu0
      %2731 = vmatprep.mubr.f32.mxu0 0.0
      %2732 = vmatmul.mubr.f32.gmra.mrb[0].mxu0 %v2660
      %v2733 = vpop.f32.mrb[0].mxu0
      %v2734 = vadd.f32 0.0, %v2733
      %v2735 = vpop.f32.mrb[0].mxu0
      %2736 = vdwg.mxu0
      %2737 = vrot.lane.b32.xlu0 %v305, 104
      %v2738 = vpop.permute.xlu0 %2737
      %2739 = vrot.lane.b32.xlu0 %v310, 104
      %v2740 = vpop.permute.xlu0 %2739
      %2741 = vrot.lane.b32.xlu0 %v305, 72
      %v2742 = vpop.permute.xlu0 %2741
      %2743 = vrot.lane.b32.xlu0 %v310, 72
      %v2744 = vpop.permute.xlu0 %2743
      %v2745 = vsel %vm349, %v2738, 0
      %v2747 = vsel %vm349, %v2740, 0
      %v2749 = vsel %vm349, %v2742, 0
      %v2751 = vsel %vm349, %v2744, 0
      %2753 = vmatprep.subr.mxu0 0.0
      %2754 = vmatpush1.xpose.msra.mxu0 %v2749
      %2755 = vmatprep.subr.mxu0 0.0
      %2756 = vmatpush1.xpose.msra.mxu0 %v2751
      %2757 = vmatprep.subr.mxu0 0.0
      %2758 = vmatpush1.xpose.msra.mxu0 0.0
      %2759 = vmatprep.subr.mxu0 0.0
      %2760 = vmatpush1.xpose.msra.mxu0 0.0
      %2761 = vmatprep.subr.mxu0 0.0
      %2762 = vmatpush1.xpose.msra.mxu0 0.0
      %2763 = vmatprep.subr.mxu0 0.0
      %2764 = vmatpush1.xpose.msra.mxu0 0.0
      %2765 = vmatprep.subr.mxu0 0.0
      %2766 = vmatpush1.xpose.msra.mxu0 0.0
      %2767 = vmatprep.subr.mxu0 0.0
      %2768 = vmatpush1.xpose.msra.mxu0 0.0
      %2769 = vmatprep.subr.mxu0 0.0
      %2770 = vmatpush1.xpose.msra.mxu0 0.0
      %2771 = vmatprep.subr.mxu0 0.0
      %2772 = vmatpush1.xpose.msra.mxu0 0.0
      %2773 = vmatprep.subr.mxu0 0.0
      %2774 = vmatpush1.xpose.msra.mxu0 0.0
      %2775 = vmatprep.subr.mxu0 0.0
      %2776 = vmatpush1.xpose.msra.mxu0 0.0
      %2777 = vmatprep.subr.mxu0 0.0
      %2778 = vmatpush1.xpose.msra.mxu0 0.0
      %2779 = vmatprep.subr.mxu0 0.0
      %2780 = vmatpush1.xpose.msra.mxu0 0.0
      %2781 = vmatprep.subr.mxu0 0.0
      %2782 = vmatpush1.xpose.msra.mxu0 0.0
      %2783 = vmatprep.subr.mxu0 0.0
      %2784 = vmatpush1.xpose.msra.mxu0 0.0
      %2785 = vmatprep.subr.mxu0 0.0
      %2786 = vmatpush1.xpose.msra.mxu0 0.0
      %2787 = vmatprep.subr.mxu0 0.0
      %2788 = vmatpush1.xpose.msra.mxu0 0.0
      %2789 = vmatprep.subr.mxu0 0.0
      %2790 = vmatpush1.xpose.msra.mxu0 0.0
      %2791 = vmatprep.subr.mxu0 0.0
      %2792 = vmatpush1.xpose.msra.mxu0 0.0
      %2793 = vmatprep.subr.mxu0 0.0
      %2794 = vmatpush1.xpose.msra.mxu0 0.0
      %2795 = vmatprep.subr.mxu0 0.0
      %2796 = vmatpush1.xpose.msra.mxu0 0.0
      %2797 = vmatprep.subr.mxu0 0.0
      %2798 = vmatpush1.xpose.msra.mxu0 0.0
      %2799 = vmatprep.subr.mxu0 0.0
      %2800 = vmatpush1.xpose.msra.mxu0 0.0
      %2801 = vmatprep.subr.mxu0 0.0
      %2802 = vmatpush1.xpose.msra.mxu0 0.0
      %2803 = vmatprep.subr.mxu0 0.0
      %2804 = vmatpush1.xpose.msra.mxu0 0.0
      %2805 = vmatprep.subr.mxu0 0.0
      %2806 = vmatpush1.xpose.msra.mxu0 0.0
      %2807 = vmatprep.subr.mxu0 0.0
      %2808 = vmatpush1.xpose.msra.mxu0 0.0
      %2809 = vmatprep.subr.mxu0 0.0
      %2810 = vmatpush1.xpose.msra.mxu0 0.0
      %2811 = vmatprep.subr.mxu0 0.0
      %2812 = vmatpush1.xpose.msra.mxu0 0.0
      %2813 = vmatprep.subr.mxu0 0.0
      %2814 = vmatpush1.xpose.msra.mxu0 0.0
      %2815 = vmatprep.subr.mxu0 0.0
      %2816 = vmatpush1.xpose.msra.mxu0 0.0
      %2817 = vmatprep.mubr.f32.mxu0 0.0
      %2818 = vmatmul.mubr.f32.gmra.mrb[0].mxu0 %v2745
      %v2819 = vpop.f32.mrb[0].mxu0
      %v2820 = vadd.f32 0.0, %v2819
      %v2821 = vpop.f32.mrb[0].mxu0
      %2822 = vmatprep.mubr.f32.mxu0 0.0
      %2823 = vmatmul.mubr.f32.gmra.mrb[0].mxu0 %v2747
      %v2824 = vpop.f32.mrb[0].mxu0
      %v2825 = vadd.f32 0.0, %v2824
      %v2826 = vpop.f32.mrb[0].mxu0
      %2827 = vdwg.mxu0
      %2828 = vrot.lane.b32.xlu0 %v315, 104
      %v2829 = vpop.permute.xlu0 %2828
      %2830 = vrot.lane.b32.xlu0 %v320, 104
      %v2831 = vpop.permute.xlu0 %2830
      %2832 = vrot.lane.b32.xlu0 %v315, 72
      %v2833 = vpop.permute.xlu0 %2832
      %2834 = vrot.lane.b32.xlu0 %v320, 72
      %v2835 = vpop.permute.xlu0 %2834
      %v2836 = vsel %vm349, %v2829, 0
      %v2838 = vsel %vm349, %v2831, 0
      %v2840 = vsel %vm349, %v2833, 0
      %v2842 = vsel %vm349, %v2835, 0
      %2844 = vmatprep.subr.mxu0 0.0
      %2845 = vmatpush1.xpose.msra.mxu0 %v2840
      %2846 = vmatprep.subr.mxu0 0.0
      %2847 = vmatpush1.xpose.msra.mxu0 %v2842
      %2848 = vmatprep.subr.mxu0 0.0
      %2849 = vmatpush1.xpose.msra.mxu0 0.0
      %2850 = vmatprep.subr.mxu0 0.0
      %2851 = vmatpush1.xpose.msra.mxu0 0.0
      %2852 = vmatprep.subr.mxu0 0.0
      %2853 = vmatpush1.xpose.msra.mxu0 0.0
      %2854 = vmatprep.subr.mxu0 0.0
      %2855 = vmatpush1.xpose.msra.mxu0 0.0
      %2856 = vmatprep.subr.mxu0 0.0
      %2857 = vmatpush1.xpose.msra.mxu0 0.0
      %2858 = vmatprep.subr.mxu0 0.0
      %2859 = vmatpush1.xpose.msra.mxu0 0.0
      %2860 = vmatprep.subr.mxu0 0.0
      %2861 = vmatpush1.xpose.msra.mxu0 0.0
      %2862 = vmatprep.subr.mxu0 0.0
      %2863 = vmatpush1.xpose.msra.mxu0 0.0
      %2864 = vmatprep.subr.mxu0 0.0
      %2865 = vmatpush1.xpose.msra.mxu0 0.0
      %2866 = vmatprep.subr.mxu0 0.0
      %2867 = vmatpush1.xpose.msra.mxu0 0.0
      %2868 = vmatprep.subr.mxu0 0.0
      %2869 = vmatpush1.xpose.msra.mxu0 0.0
      %2870 = vmatprep.subr.mxu0 0.0
      %2871 = vmatpush1.xpose.msra.mxu0 0.0
      %2872 = vmatprep.subr.mxu0 0.0
      %2873 = vmatpush1.xpose.msra.mxu0 0.0
      %2874 = vmatprep.subr.mxu0 0.0
      %2875 = vmatpush1.xpose.msra.mxu0 0.0
      %2876 = vmatprep.subr.mxu0 0.0
      %2877 = vmatpush1.xpose.msra.mxu0 0.0
      %2878 = vmatprep.subr.mxu0 0.0
      %2879 = vmatpush1.xpose.msra.mxu0 0.0
      %2880 = vmatprep.subr.mxu0 0.0
      %2881 = vmatpush1.xpose.msra.mxu0 0.0
      %2882 = vmatprep.subr.mxu0 0.0
      %2883 = vmatpush1.xpose.msra.mxu0 0.0
      %2884 = vmatprep.subr.mxu0 0.0
      %2885 = vmatpush1.xpose.msra.mxu0 0.0
      %2886 = vmatprep.subr.mxu0 0.0
      %2887 = vmatpush1.xpose.msra.mxu0 0.0
      %2888 = vmatprep.subr.mxu0 0.0
      %2889 = vmatpush1.xpose.msra.mxu0 0.0
      %2890 = vmatprep.subr.mxu0 0.0
      %2891 = vmatpush1.xpose.msra.mxu0 0.0
      %2892 = vmatprep.subr.mxu0 0.0
      %2893 = vmatpush1.xpose.msra.mxu0 0.0
      %2894 = vmatprep.subr.mxu0 0.0
      %2895 = vmatpush1.xpose.msra.mxu0 0.0
      %2896 = vmatprep.subr.mxu0 0.0
      %2897 = vmatpush1.xpose.msra.mxu0 0.0
      %2898 = vmatprep.subr.mxu0 0.0
      %2899 = vmatpush1.xpose.msra.mxu0 0.0
      %2900 = vmatprep.subr.mxu0 0.0
      %2901 = vmatpush1.xpose.msra.mxu0 0.0
      %2902 = vmatprep.subr.mxu0 0.0
      %2903 = vmatpush1.xpose.msra.mxu0 0.0
      %2904 = vmatprep.subr.mxu0 0.0
      %2905 = vmatpush1.xpose.msra.mxu0 0.0
      %2906 = vmatprep.subr.mxu0 0.0
      %2907 = vmatpush1.xpose.msra.mxu0 0.0
      %2908 = vmatprep.mubr.f32.mxu0 0.0
      %2909 = vmatmul.mubr.f32.gmra.mrb[0].mxu0 %v2836
      %v2910 = vpop.f32.mrb[0].mxu0
      %v2911 = vadd.f32 0.0, %v2910
      %v2912 = vpop.f32.mrb[0].mxu0
      %2913 = vmatprep.mubr.f32.mxu0 0.0
      %2914 = vmatmul.mubr.f32.gmra.mrb[0].mxu0 %v2838
      %v2915 = vpop.f32.mrb[0].mxu0
      %v2916 = vadd.f32 0.0, %v2915
      %v2917 = vpop.f32.mrb[0].mxu0
      %2918 = vdwg.mxu0
      %2919 = vrot.lane.b32.xlu0 %v325, 104
      %v2920 = vpop.permute.xlu0 %2919
      %2921 = vrot.lane.b32.xlu0 %v330, 104
      %v2922 = vpop.permute.xlu0 %2921
      %2923 = vrot.lane.b32.xlu0 %v325, 72
      %v2924 = vpop.permute.xlu0 %2923
      %2925 = vrot.lane.b32.xlu0 %v330, 72
      %v2926 = vpop.permute.xlu0 %2925
      %v2927 = vsel %vm349, %v2920, 0
      %v2929 = vsel %vm349, %v2922, 0
      %v2931 = vsel %vm349, %v2924, 0
      %v2933 = vsel %vm349, %v2926, 0
      %2935 = vmatprep.subr.mxu0 0.0
      %2936 = vmatpush1.xpose.msra.mxu0 %v2931
      %2937 = vmatprep.subr.mxu0 0.0
      %2938 = vmatpush1.xpose.msra.mxu0 %v2933
      %2939 = vmatprep.subr.mxu0 0.0
      %2940 = vmatpush1.xpose.msra.mxu0 0.0
      %2941 = vmatprep.subr.mxu0 0.0
      %2942 = vmatpush1.xpose.msra.mxu0 0.0
      %2943 = vmatprep.subr.mxu0 0.0
      %2944 = vmatpush1.xpose.msra.mxu0 0.0
      %2945 = vmatprep.subr.mxu0 0.0
      %2946 = vmatpush1.xpose.msra.mxu0 0.0
      %2947 = vmatprep.subr.mxu0 0.0
      %2948 = vmatpush1.xpose.msra.mxu0 0.0
      %2949 = vmatprep.subr.mxu0 0.0
      %2950 = vmatpush1.xpose.msra.mxu0 0.0
      %2951 = vmatprep.subr.mxu0 0.0
      %2952 = vmatpush1.xpose.msra.mxu0 0.0
      %2953 = vmatprep.subr.mxu0 0.0
      %2954 = vmatpush1.xpose.msra.mxu0 0.0
      %2955 = vmatprep.subr.mxu0 0.0
      %2956 = vmatpush1.xpose.msra.mxu0 0.0
      %2957 = vmatprep.subr.mxu0 0.0
      %2958 = vmatpush1.xpose.msra.mxu0 0.0
      %2959 = vmatprep.subr.mxu0 0.0
      %2960 = vmatpush1.xpose.msra.mxu0 0.0
      %2961 = vmatprep.subr.mxu0 0.0
      %2962 = vmatpush1.xpose.msra.mxu0 0.0
      %2963 = vmatprep.subr.mxu0 0.0
      %2964 = vmatpush1.xpose.msra.mxu0 0.0
      %2965 = vmatprep.subr.mxu0 0.0
      %2966 = vmatpush1.xpose.msra.mxu0 0.0
      %2967 = vmatprep.subr.mxu0 0.0
      %2968 = vmatpush1.xpose.msra.mxu0 0.0
      %2969 = vmatprep.subr.mxu0 0.0
      %2970 = vmatpush1.xpose.msra.mxu0 0.0
      %2971 = vmatprep.subr.mxu0 0.0
      %2972 = vmatpush1.xpose.msra.mxu0 0.0
      %2973 = vmatprep.subr.mxu0 0.0
      %2974 = vmatpush1.xpose.msra.mxu0 0.0
      %2975 = vmatprep.subr.mxu0 0.0
      %2976 = vmatpush1.xpose.msra.mxu0 0.0
      %2977 = vmatprep.subr.mxu0 0.0
      %2978 = vmatpush1.xpose.msra.mxu0 0.0
      %2979 = vmatprep.subr.mxu0 0.0
      %2980 = vmatpush1.xpose.msra.mxu0 0.0
      %2981 = vmatprep.subr.mxu0 0.0
      %2982 = vmatpush1.xpose.msra.mxu0 0.0
      %2983 = vmatprep.subr.mxu0 0.0
      %2984 = vmatpush1.xpose.msra.mxu0 0.0
      %2985 = vmatprep.subr.mxu0 0.0
      %2986 = vmatpush1.xpose.msra.mxu0 0.0
      %2987 = vmatprep.subr.mxu0 0.0
      %2988 = vmatpush1.xpose.msra.mxu0 0.0
      %2989 = vmatprep.subr.mxu0 0.0
      %2990 = vmatpush1.xpose.msra.mxu0 0.0
      %2991 = vmatprep.subr.mxu0 0.0
      %2992 = vmatpush1.xpose.msra.mxu0 0.0
      %2993 = vmatprep.subr.mxu0 0.0
      %2994 = vmatpush1.xpose.msra.mxu0 0.0
      %2995 = vmatprep.subr.mxu0 0.0
      %2996 = vmatpush1.xpose.msra.mxu0 0.0
      %2997 = vmatprep.subr.mxu0 0.0
      %2998 = vmatpush1.xpose.msra.mxu0 0.0
      %2999 = vmatprep.mubr.f32.mxu0 0.0
      %3000 = vmatmul.mubr.f32.gmra.mrb[0].mxu0 %v2927
      %v3001 = vpop.f32.mrb[0].mxu0
      %v3002 = vadd.f32 0.0, %v3001
      %v3003 = vpop.f32.mrb[0].mxu0
      %3004 = vmatprep.mubr.f32.mxu0 0.0
      %3005 = vmatmul.mubr.f32.gmra.mrb[0].mxu0 %v2929
      %v3006 = vpop.f32.mrb[0].mxu0
      %v3007 = vadd.f32 0.0, %v3006
      %v3008 = vpop.f32.mrb[0].mxu0
      %3009 = vdwg.mxu0
      %3010 = vrot.lane.b32.xlu0 %v335, 104
      %v3011 = vpop.permute.xlu0 %3010
      %3012 = vrot.lane.b32.xlu0 %v340, 104
      %v3013 = vpop.permute.xlu0 %3012
      %3014 = vrot.lane.b32.xlu0 %v335, 72
      %v3015 = vpop.permute.xlu0 %3014
      %3016 = vrot.lane.b32.xlu0 %v340, 72
      %v3017 = vpop.permute.xlu0 %3016
      %v3018 = vsel %vm349, %v3011, 0
      %v3020 = vsel %vm349, %v3013, 0
      %v3022 = vsel %vm349, %v3015, 0
      %v3024 = vsel %vm349, %v3017, 0
      %3026 = vmatprep.subr.mxu0 0.0
      %3027 = vmatpush1.xpose.msra.mxu0 %v3022
      %3028 = vmatprep.subr.mxu0 0.0
      %3029 = vmatpush1.xpose.msra.mxu0 %v3024
      %3030 = vmatprep.subr.mxu0 0.0
      %3031 = vmatpush1.xpose.msra.mxu0 0.0
      %3032 = vmatprep.subr.mxu0 0.0
      %3033 = vmatpush1.xpose.msra.mxu0 0.0
      %3034 = vmatprep.subr.mxu0 0.0
      %3035 = vmatpush1.xpose.msra.mxu0 0.0
      %3036 = vmatprep.subr.mxu0 0.0
      %3037 = vmatpush1.xpose.msra.mxu0 0.0
      %3038 = vmatprep.subr.mxu0 0.0
      %3039 = vmatpush1.xpose.msra.mxu0 0.0
      %3040 = vmatprep.subr.mxu0 0.0
      %3041 = vmatpush1.xpose.msra.mxu0 0.0
      %3042 = vmatprep.subr.mxu0 0.0
      %3043 = vmatpush1.xpose.msra.mxu0 0.0
      %3044 = vmatprep.subr.mxu0 0.0
      %3045 = vmatpush1.xpose.msra.mxu0 0.0
      %3046 = vmatprep.subr.mxu0 0.0
      %3047 = vmatpush1.xpose.msra.mxu0 0.0
      %3048 = vmatprep.subr.mxu0 0.0
      %3049 = vmatpush1.xpose.msra.mxu0 0.0
      %3050 = vmatprep.subr.mxu0 0.0
      %3051 = vmatpush1.xpose.msra.mxu0 0.0
      %3052 = vmatprep.subr.mxu0 0.0
      %3053 = vmatpush1.xpose.msra.mxu0 0.0
      %3054 = vmatprep.subr.mxu0 0.0
      %3055 = vmatpush1.xpose.msra.mxu0 0.0
      %3056 = vmatprep.subr.mxu0 0.0
      %3057 = vmatpush1.xpose.msra.mxu0 0.0
      %3058 = vmatprep.subr.mxu0 0.0
      %3059 = vmatpush1.xpose.msra.mxu0 0.0
      %3060 = vmatprep.subr.mxu0 0.0
      %3061 = vmatpush1.xpose.msra.mxu0 0.0
      %3062 = vmatprep.subr.mxu0 0.0
      %3063 = vmatpush1.xpose.msra.mxu0 0.0
      %3064 = vmatprep.subr.mxu0 0.0
      %3065 = vmatpush1.xpose.msra.mxu0 0.0
      %3066 = vmatprep.subr.mxu0 0.0
      %3067 = vmatpush1.xpose.msra.mxu0 0.0
      %3068 = vmatprep.subr.mxu0 0.0
      %3069 = vmatpush1.xpose.msra.mxu0 0.0
      %3070 = vmatprep.subr.mxu0 0.0
      %3071 = vmatpush1.xpose.msra.mxu0 0.0
      %3072 = vmatprep.subr.mxu0 0.0
      %3073 = vmatpush1.xpose.msra.mxu0 0.0
      %3074 = vmatprep.subr.mxu0 0.0
      %3075 = vmatpush1.xpose.msra.mxu0 0.0
      %3076 = vmatprep.subr.mxu0 0.0
      %3077 = vmatpush1.xpose.msra.mxu0 0.0
      %3078 = vmatprep.subr.mxu0 0.0
      %3079 = vmatpush1.xpose.msra.mxu0 0.0
      %3080 = vmatprep.subr.mxu0 0.0
      %3081 = vmatpush1.xpose.msra.mxu0 0.0
      %3082 = vmatprep.subr.mxu0 0.0
      %3083 = vmatpush1.xpose.msra.mxu0 0.0
      %3084 = vmatprep.subr.mxu0 0.0
      %3085 = vmatpush1.xpose.msra.mxu0 0.0
      %3086 = vmatprep.subr.mxu0 0.0
      %3087 = vmatpush1.xpose.msra.mxu0 0.0
      %3088 = vmatprep.subr.mxu0 0.0
      %3089 = vmatpush1.xpose.msra.mxu0 0.0
      %3090 = vmatprep.mubr.f32.mxu0 0.0
      %3091 = vmatmul.mubr.f32.gmra.mrb[0].mxu0 %v3018
      %v3092 = vpop.f32.mrb[0].mxu0
      %v3093 = vadd.f32 0.0, %v3092
      %v3094 = vpop.f32.mrb[0].mxu0
      %3095 = vmatprep.mubr.f32.mxu0 0.0
      %3096 = vmatmul.mubr.f32.gmra.mrb[0].mxu0 %v3020
      %v3097 = vpop.f32.mrb[0].mxu0
      %v3098 = vadd.f32 0.0, %v3097
      %v3099 = vpop.f32.mrb[0].mxu0
      %3100 = vdwg.mxu0
      %v3101 = vsel %vm700, %v2820, -inf
      %3102 = vmax.xlane.f32.xlu0 %v3101
      %v3103 = vpop.xlane.xlu0 %3102
      %v3104 = vsel %vm700, %v2825, -inf
      %3105 = vmax.xlane.f32.xlu0 %v3104
      %v3106 = vpop.xlane.xlu0 %3105
      %v3107 = vsel %vm700, %v2911, -inf
      %3108 = vmax.xlane.f32.xlu0 %v3107
      %v3109 = vpop.xlane.xlu0 %3108
      %v3110 = vsel %vm700, %v2916, -inf
      %3111 = vmax.xlane.f32.xlu0 %v3110
      %v3112 = vpop.xlane.xlu0 %3111
      %v3113 = vsel %vm700, %v3002, -inf
      %3114 = vmax.xlane.f32.xlu0 %v3113
      %v3115 = vpop.xlane.xlu0 %3114
      %v3116 = vsel %vm700, %v3007, -inf
      %3117 = vmax.xlane.f32.xlu0 %v3116
      %v3118 = vpop.xlane.xlu0 %3117
      %v3119 = vsel %vm700, %v3093, -inf
      %3120 = vmax.xlane.f32.xlu0 %v3119
      %v3121 = vpop.xlane.xlu0 %3120
      %v3122 = vsel %vm700, %v3098, -inf
      %3123 = vmax.xlane.f32.xlu0 %v3122
      %v3124 = vpop.xlane.xlu0 %3123
      %v3125 = vsub.f32 %v2820, %v3103
      %v3126 = vsub.f32 %v2825, %v3106
      %v3127 = vsub.f32 %v2911, %v3109
      %v3128 = vsub.f32 %v2916, %v3112
      %v3129 = vsub.f32 %v3002, %v3115
      %v3130 = vsub.f32 %v3007, %v3118
      %v3131 = vsub.f32 %v3093, %v3121
      %v3132 = vsub.f32 %v3098, %v3124
      %v3133 = vmul.f32 %v3125, 1.442695
      %v3134 = vpow.pop %v3133
      %v3135 = vmul.f32 %v3126, 1.442695
      %v3136 = vpow.pop %v3135
      %v3137 = vmul.f32 %v3127, 1.442695
      %v3138 = vpow.pop %v3137
      %v3139 = vmul.f32 %v3128, 1.442695
      %v3140 = vpow.pop %v3139
      %v3141 = vmul.f32 %v3129, 1.442695
      %v3142 = vpow.pop %v3141
      %v3143 = vmul.f32 %v3130, 1.442695
      %v3144 = vpow.pop %v3143
      %v3145 = vmul.f32 %v3131, 1.442695
      %v3146 = vpow.pop %v3145
      %v3147 = vmul.f32 %v3132, 1.442695
      %v3148 = vpow.pop %v3147
      %v3149 = vsel %vm700, %v3134, 0.0
      %3150 = vadd.xlane.f32.xlu0 %v3149
      %v3151 = vpop.xlane.xlu0 %3150
      %v3152 = vsel %vm700, %v3136, 0.0
      %3153 = vadd.xlane.f32.xlu0 %v3152
      %v3154 = vpop.xlane.xlu0 %3153
      %v3155 = vsel %vm700, %v3138, 0.0
      %3156 = vadd.xlane.f32.xlu0 %v3155
      %v3157 = vpop.xlane.xlu0 %3156
      %v3158 = vsel %vm700, %v3140, 0.0
      %3159 = vadd.xlane.f32.xlu0 %v3158
      %v3160 = vpop.xlane.xlu0 %3159
      %v3161 = vsel %vm700, %v3142, 0.0
      %3162 = vadd.xlane.f32.xlu0 %v3161
      %v3163 = vpop.xlane.xlu0 %3162
      %v3164 = vsel %vm700, %v3144, 0.0
      %3165 = vadd.xlane.f32.xlu0 %v3164
      %v3166 = vpop.xlane.xlu0 %3165
      %v3167 = vsel %vm700, %v3146, 0.0
      %3168 = vadd.xlane.f32.xlu0 %v3167
      %v3169 = vpop.xlane.xlu0 %3168
      %v3170 = vsel %vm700, %v3148, 0.0
      %3171 = vadd.xlane.f32.xlu0 %v3170
      %v3172 = vpop.xlane.xlu0 %3171
      %v3173 = vrcp.pop %v3151
      %v3174 = vrcp.pop %v3154
      %v3175 = vrcp.pop %v3157
      %v3176 = vrcp.pop %v3160
      %v3177 = vrcp.pop %v3163
      %v3178 = vrcp.pop %v3166
      %v3179 = vrcp.pop %v3169
      %v3180 = vrcp.pop %v3172
      %v3181 = vmul.f32 %v3134, %v3173
      %v3182 = vmul.f32 %v3136, %v3174
      %v3183 = vmul.f32 %v3138, %v3175
      %v3184 = vmul.f32 %v3140, %v3176
      %v3185 = vmul.f32 %v3142, %v3177
      %v3186 = vmul.f32 %v3144, %v3178
      %v3187 = vmul.f32 %v3146, %v3179
      %v3188 = vmul.f32 %v3148, %v3180
      %3189 = vrot.lane.b32.xlu0 %v305, 40
      %v3190 = vpop.permute.xlu0 %3189
      %3191 = vrot.lane.b32.xlu0 %v310, 40
      %v3192 = vpop.permute.xlu0 %3191
      %v3196 = vsel %vm700, %v3181, 0
      %v3199 = vsel %vm700, %v3182, 0
      %3201 = vmatprep.subr.mxu0 0.0
      %3202 = vmatpush1.msra.mxu0 %v3190
      %3203 = vmatprep.subr.mxu0 0.0
      %3204 = vmatpush1.msra.mxu0 %v3192
      %3205 = vmatprep.subr.mxu0 0.0
      %3206 = vmatpush1.msra.mxu0 0.0
      %3207 = vmatprep.subr.mxu0 0.0
      %3208 = vmatpush1.msra.mxu0 0.0
      %3209 = vmatprep.subr.mxu0 0.0
      %3210 = vmatpush1.msra.mxu0 0.0
      %3211 = vmatprep.subr.mxu0 0.0
      %3212 = vmatpush1.msra.mxu0 0.0
      %3213 = vmatprep.subr.mxu0 0.0
      %3214 = vmatpush1.msra.mxu0 0.0
      %3215 = vmatprep.subr.mxu0 0.0
      %3216 = vmatpush1.msra.mxu0 0.0
      %3217 = vmatprep.subr.mxu0 0.0
      %3218 = vmatpush1.msra.mxu0 0.0
      %3219 = vmatprep.subr.mxu0 0.0
      %3220 = vmatpush1.msra.mxu0 0.0
      %3221 = vmatprep.subr.mxu0 0.0
      %3222 = vmatpush1.msra.mxu0 0.0
      %3223 = vmatprep.subr.mxu0 0.0
      %3224 = vmatpush1.msra.mxu0 0.0
      %3225 = vmatprep.subr.mxu0 0.0
      %3226 = vmatpush1.msra.mxu0 0.0
      %3227 = vmatprep.subr.mxu0 0.0
      %3228 = vmatpush1.msra.mxu0 0.0
      %3229 = vmatprep.subr.mxu0 0.0
      %3230 = vmatpush1.msra.mxu0 0.0
      %3231 = vmatprep.subr.mxu0 0.0
      %3232 = vmatpush1.msra.mxu0 0.0
      %3233 = vmatprep.subr.mxu0 0.0
      %3234 = vmatpush1.msra.mxu0 0.0
      %3235 = vmatprep.subr.mxu0 0.0
      %3236 = vmatpush1.msra.mxu0 0.0
      %3237 = vmatprep.subr.mxu0 0.0
      %3238 = vmatpush1.msra.mxu0 0.0
      %3239 = vmatprep.subr.mxu0 0.0
      %3240 = vmatpush1.msra.mxu0 0.0
      %3241 = vmatprep.subr.mxu0 0.0
      %3242 = vmatpush1.msra.mxu0 0.0
      %3243 = vmatprep.subr.mxu0 0.0
      %3244 = vmatpush1.msra.mxu0 0.0
      %3245 = vmatprep.subr.mxu0 0.0
      %3246 = vmatpush1.msra.mxu0 0.0
      %3247 = vmatprep.subr.mxu0 0.0
      %3248 = vmatpush1.msra.mxu0 0.0
      %3249 = vmatprep.subr.mxu0 0.0
      %3250 = vmatpush1.msra.mxu0 0.0
      %3251 = vmatprep.subr.mxu0 0.0
      %3252 = vmatpush1.msra.mxu0 0.0
      %3253 = vmatprep.subr.mxu0 0.0
      %3254 = vmatpush1.msra.mxu0 0.0
      %3255 = vmatprep.subr.mxu0 0.0
      %3256 = vmatpush1.msra.mxu0 0.0
      %3257 = vmatprep.subr.mxu0 0.0
      %3258 = vmatpush1.msra.mxu0 0.0
      %3259 = vmatprep.subr.mxu0 0.0
      %3260 = vmatpush1.msra.mxu0 0.0
      %3261 = vmatprep.subr.mxu0 0.0
      %3262 = vmatpush1.msra.mxu0 0.0
      %3263 = vmatprep.subr.mxu0 0.0
      %3264 = vmatpush1.msra.mxu0 0.0
      %3265 = vmatprep.mubr.f32.mxu0 0.0
      %3266 = vmatmul.mubr.f32.gmra.mrb[0].mxu0 %v3196
      %v3267 = vpop.f32.mrb[0].mxu0
      %v3268 = vadd.f32 0.0, %v3267
      %v3269 = vpop.f32.mrb[0].mxu0
      %3270 = vmatprep.mubr.f32.mxu0 0.0
      %3271 = vmatmul.mubr.f32.gmra.mrb[0].mxu0 %v3199
      %v3272 = vpop.f32.mrb[0].mxu0
      %v3273 = vadd.f32 0.0, %v3272
      %v3274 = vpop.f32.mrb[0].mxu0
      %3275 = vdwg.mxu0
      %3276 = vrot.lane.b32.xlu0 %v315, 40
      %v3277 = vpop.permute.xlu0 %3276
      %3278 = vrot.lane.b32.xlu0 %v320, 40
      %v3279 = vpop.permute.xlu0 %3278
      %v3283 = vsel %vm700, %v3183, 0
      %v3286 = vsel %vm700, %v3184, 0
      %3288 = vmatprep.subr.mxu0 0.0
      %3289 = vmatpush1.msra.mxu0 %v3277
      %3290 = vmatprep.subr.mxu0 0.0
      %3291 = vmatpush1.msra.mxu0 %v3279
      %3292 = vmatprep.subr.mxu0 0.0
      %3293 = vmatpush1.msra.mxu0 0.0
      %3294 = vmatprep.subr.mxu0 0.0
      %3295 = vmatpush1.msra.mxu0 0.0
      %3296 = vmatprep.subr.mxu0 0.0
      %3297 = vmatpush1.msra.mxu0 0.0
      %3298 = vmatprep.subr.mxu0 0.0
      %3299 = vmatpush1.msra.mxu0 0.0
      %3300 = vmatprep.subr.mxu0 0.0
      %3301 = vmatpush1.msra.mxu0 0.0
      %3302 = vmatprep.subr.mxu0 0.0
      %3303 = vmatpush1.msra.mxu0 0.0
      %3304 = vmatprep.subr.mxu0 0.0
      %3305 = vmatpush1.msra.mxu0 0.0
      %3306 = vmatprep.subr.mxu0 0.0
      %3307 = vmatpush1.msra.mxu0 0.0
      %3308 = vmatprep.subr.mxu0 0.0
      %3309 = vmatpush1.msra.mxu0 0.0
      %3310 = vmatprep.subr.mxu0 0.0
      %3311 = vmatpush1.msra.mxu0 0.0
      %3312 = vmatprep.subr.mxu0 0.0
      %3313 = vmatpush1.msra.mxu0 0.0
      %3314 = vmatprep.subr.mxu0 0.0
      %3315 = vmatpush1.msra.mxu0 0.0
      %3316 = vmatprep.subr.mxu0 0.0
      %3317 = vmatpush1.msra.mxu0 0.0
      %3318 = vmatprep.subr.mxu0 0.0
      %3319 = vmatpush1.msra.mxu0 0.0
      %3320 = vmatprep.subr.mxu0 0.0
      %3321 = vmatpush1.msra.mxu0 0.0
      %3322 = vmatprep.subr.mxu0 0.0
      %3323 = vmatpush1.msra.mxu0 0.0
      %3324 = vmatprep.subr.mxu0 0.0
      %3325 = vmatpush1.msra.mxu0 0.0
      %3326 = vmatprep.subr.mxu0 0.0
      %3327 = vmatpush1.msra.mxu0 0.0
      %3328 = vmatprep.subr.mxu0 0.0
      %3329 = vmatpush1.msra.mxu0 0.0
      %3330 = vmatprep.subr.mxu0 0.0
      %3331 = vmatpush1.msra.mxu0 0.0
      %3332 = vmatprep.subr.mxu0 0.0
      %3333 = vmatpush1.msra.mxu0 0.0
      %3334 = vmatprep.subr.mxu0 0.0
      %3335 = vmatpush1.msra.mxu0 0.0
      %3336 = vmatprep.subr.mxu0 0.0
      %3337 = vmatpush1.msra.mxu0 0.0
      %3338 = vmatprep.subr.mxu0 0.0
      %3339 = vmatpush1.msra.mxu0 0.0
      %3340 = vmatprep.subr.mxu0 0.0
      %3341 = vmatpush1.msra.mxu0 0.0
      %3342 = vmatprep.subr.mxu0 0.0
      %3343 = vmatpush1.msra.mxu0 0.0
      %3344 = vmatprep.subr.mxu0 0.0
      %3345 = vmatpush1.msra.mxu0 0.0
      %3346 = vmatprep.subr.mxu0 0.0
      %3347 = vmatpush1.msra.mxu0 0.0
      %3348 = vmatprep.subr.mxu0 0.0
      %3349 = vmatpush1.msra.mxu0 0.0
      %3350 = vmatprep.subr.mxu0 0.0
      %3351 = vmatpush1.msra.mxu0 0.0
      %3352 = vmatprep.mubr.f32.mxu0 0.0
      %3353 = vmatmul.mubr.f32.gmra.mrb[0].mxu0 %v3283
      %v3354 = vpop.f32.mrb[0].mxu0
      %v3355 = vadd.f32 0.0, %v3354
      %v3356 = vpop.f32.mrb[0].mxu0
      %3357 = vmatprep.mubr.f32.mxu0 0.0
      %3358 = vmatmul.mubr.f32.gmra.mrb[0].mxu0 %v3286
      %v3359 = vpop.f32.mrb[0].mxu0
      %v3360 = vadd.f32 0.0, %v3359
      %v3361 = vpop.f32.mrb[0].mxu0
      %3362 = vdwg.mxu0
      %3363 = vrot.lane.b32.xlu0 %v325, 40
      %v3364 = vpop.permute.xlu0 %3363
      %3365 = vrot.lane.b32.xlu0 %v330, 40
      %v3366 = vpop.permute.xlu0 %3365
      %v3370 = vsel %vm700, %v3185, 0
      %v3373 = vsel %vm700, %v3186, 0
      %3375 = vmatprep.subr.mxu0 0.0
      %3376 = vmatpush1.msra.mxu0 %v3364
      %3377 = vmatprep.subr.mxu0 0.0
      %3378 = vmatpush1.msra.mxu0 %v3366
      %3379 = vmatprep.subr.mxu0 0.0
      %3380 = vmatpush1.msra.mxu0 0.0
      %3381 = vmatprep.subr.mxu0 0.0
      %3382 = vmatpush1.msra.mxu0 0.0
      %3383 = vmatprep.subr.mxu0 0.0
      %3384 = vmatpush1.msra.mxu0 0.0
      %3385 = vmatprep.subr.mxu0 0.0
      %3386 = vmatpush1.msra.mxu0 0.0
      %3387 = vmatprep.subr.mxu0 0.0
      %3388 = vmatpush1.msra.mxu0 0.0
      %3389 = vmatprep.subr.mxu0 0.0
      %3390 = vmatpush1.msra.mxu0 0.0
      %3391 = vmatprep.subr.mxu0 0.0
      %3392 = vmatpush1.msra.mxu0 0.0
      %3393 = vmatprep.subr.mxu0 0.0
      %3394 = vmatpush1.msra.mxu0 0.0
      %3395 = vmatprep.subr.mxu0 0.0
      %3396 = vmatpush1.msra.mxu0 0.0
      %3397 = vmatprep.subr.mxu0 0.0
      %3398 = vmatpush1.msra.mxu0 0.0
      %3399 = vmatprep.subr.mxu0 0.0
      %3400 = vmatpush1.msra.mxu0 0.0
      %3401 = vmatprep.subr.mxu0 0.0
      %3402 = vmatpush1.msra.mxu0 0.0
      %3403 = vmatprep.subr.mxu0 0.0
      %3404 = vmatpush1.msra.mxu0 0.0
      %3405 = vmatprep.subr.mxu0 0.0
      %3406 = vmatpush1.msra.mxu0 0.0
      %3407 = vmatprep.subr.mxu0 0.0
      %3408 = vmatpush1.msra.mxu0 0.0
      %3409 = vmatprep.subr.mxu0 0.0
      %3410 = vmatpush1.msra.mxu0 0.0
      %3411 = vmatprep.subr.mxu0 0.0
      %3412 = vmatpush1.msra.mxu0 0.0
      %3413 = vmatprep.subr.mxu0 0.0
      %3414 = vmatpush1.msra.mxu0 0.0
      %3415 = vmatprep.subr.mxu0 0.0
      %3416 = vmatpush1.msra.mxu0 0.0
      %3417 = vmatprep.subr.mxu0 0.0
      %3418 = vmatpush1.msra.mxu0 0.0
      %3419 = vmatprep.subr.mxu0 0.0
      %3420 = vmatpush1.msra.mxu0 0.0
      %3421 = vmatprep.subr.mxu0 0.0
      %3422 = vmatpush1.msra.mxu0 0.0
      %3423 = vmatprep.subr.mxu0 0.0
      %3424 = vmatpush1.msra.mxu0 0.0
      %3425 = vmatprep.subr.mxu0 0.0
      %3426 = vmatpush1.msra.mxu0 0.0
      %3427 = vmatprep.subr.mxu0 0.0
      %3428 = vmatpush1.msra.mxu0 0.0
      %3429 = vmatprep.subr.mxu0 0.0
      %3430 = vmatpush1.msra.mxu0 0.0
      %3431 = vmatprep.subr.mxu0 0.0
      %3432 = vmatpush1.msra.mxu0 0.0
      %3433 = vmatprep.subr.mxu0 0.0
      %3434 = vmatpush1.msra.mxu0 0.0
      %3435 = vmatprep.subr.mxu0 0.0
      %3436 = vmatpush1.msra.mxu0 0.0
      %3437 = vmatprep.subr.mxu0 0.0
      %3438 = vmatpush1.msra.mxu0 0.0
      %3439 = vmatprep.mubr.f32.mxu0 0.0
      %3440 = vmatmul.mubr.f32.gmra.mrb[0].mxu0 %v3370
      %v3441 = vpop.f32.mrb[0].mxu0
      %v3442 = vadd.f32 0.0, %v3441
      %v3443 = vpop.f32.mrb[0].mxu0
      %3444 = vmatprep.mubr.f32.mxu0 0.0
      %3445 = vmatmul.mubr.f32.gmra.mrb[0].mxu0 %v3373
      %v3446 = vpop.f32.mrb[0].mxu0
      %v3447 = vadd.f32 0.0, %v3446
      %v3448 = vpop.f32.mrb[0].mxu0
      %3449 = vdwg.mxu0
      %3450 = vrot.lane.b32.xlu0 %v335, 40
      %v3451 = vpop.permute.xlu0 %3450
      %3452 = vrot.lane.b32.xlu0 %v340, 40
      %v3453 = vpop.permute.xlu0 %3452
      %v3457 = vsel %vm700, %v3187, 0
      %v3460 = vsel %vm700, %v3188, 0
      %3462 = vmatprep.subr.mxu0 0.0
      %3463 = vmatpush1.msra.mxu0 %v3451
      %3464 = vmatprep.subr.mxu0 0.0
      %3465 = vmatpush1.msra.mxu0 %v3453
      %3466 = vmatprep.subr.mxu0 0.0
      %3467 = vmatpush1.msra.mxu0 0.0
      %3468 = vmatprep.subr.mxu0 0.0
      %3469 = vmatpush1.msra.mxu0 0.0
      %3470 = vmatprep.subr.mxu0 0.0
      %3471 = vmatpush1.msra.mxu0 0.0
      %3472 = vmatprep.subr.mxu0 0.0
      %3473 = vmatpush1.msra.mxu0 0.0
      %3474 = vmatprep.subr.mxu0 0.0
      %3475 = vmatpush1.msra.mxu0 0.0
      %3476 = vmatprep.subr.mxu0 0.0
      %3477 = vmatpush1.msra.mxu0 0.0
      %3478 = vmatprep.subr.mxu0 0.0
      %3479 = vmatpush1.msra.mxu0 0.0
      %3480 = vmatprep.subr.mxu0 0.0
      %3481 = vmatpush1.msra.mxu0 0.0
      %3482 = vmatprep.subr.mxu0 0.0
      %3483 = vmatpush1.msra.mxu0 0.0
      %3484 = vmatprep.subr.mxu0 0.0
      %3485 = vmatpush1.msra.mxu0 0.0
      %3486 = vmatprep.subr.mxu0 0.0
      %3487 = vmatpush1.msra.mxu0 0.0
      %3488 = vmatprep.subr.mxu0 0.0
      %3489 = vmatpush1.msra.mxu0 0.0
      %3490 = vmatprep.subr.mxu0 0.0
      %3491 = vmatpush1.msra.mxu0 0.0
      %3492 = vmatprep.subr.mxu0 0.0
      %3493 = vmatpush1.msra.mxu0 0.0
      %3494 = vmatprep.subr.mxu0 0.0
      %3495 = vmatpush1.msra.mxu0 0.0
      %3496 = vmatprep.subr.mxu0 0.0
      %3497 = vmatpush1.msra.mxu0 0.0
      %3498 = vmatprep.subr.mxu0 0.0
      %3499 = vmatpush1.msra.mxu0 0.0
      %3500 = vmatprep.subr.mxu0 0.0
      %3501 = vmatpush1.msra.mxu0 0.0
      %3502 = vmatprep.subr.mxu0 0.0
      %3503 = vmatpush1.msra.mxu0 0.0
      %3504 = vmatprep.subr.mxu0 0.0
      %3505 = vmatpush1.msra.mxu0 0.0
      %3506 = vmatprep.subr.mxu0 0.0
      %3507 = vmatpush1.msra.mxu0 0.0
      %3508 = vmatprep.subr.mxu0 0.0
      %3509 = vmatpush1.msra.mxu0 0.0
      %3510 = vmatprep.subr.mxu0 0.0
      %3511 = vmatpush1.msra.mxu0 0.0
      %3512 = vmatprep.subr.mxu0 0.0
      %3513 = vmatpush1.msra.mxu0 0.0
      %3514 = vmatprep.subr.mxu0 0.0
      %3515 = vmatpush1.msra.mxu0 0.0
      %3516 = vmatprep.subr.mxu0 0.0
      %3517 = vmatpush1.msra.mxu0 0.0
      %3518 = vmatprep.subr.mxu0 0.0
      %3519 = vmatpush1.msra.mxu0 0.0
      %3520 = vmatprep.subr.mxu0 0.0
      %3521 = vmatpush1.msra.mxu0 0.0
      %3522 = vmatprep.subr.mxu0 0.0
      %3523 = vmatpush1.msra.mxu0 0.0
      %3524 = vmatprep.subr.mxu0 0.0
      %3525 = vmatpush1.msra.mxu0 0.0
      %3526 = vmatprep.mubr.f32.mxu0 0.0
      %3527 = vmatmul.mubr.f32.gmra.mrb[0].mxu0 %v3457
      %v3528 = vpop.f32.mrb[0].mxu0
      %v3529 = vadd.f32 0.0, %v3528
      %v3530 = vpop.f32.mrb[0].mxu0
      %3531 = vmatprep.mubr.f32.mxu0 0.0
      %3532 = vmatmul.mubr.f32.gmra.mrb[0].mxu0 %v3460
      %v3533 = vpop.f32.mrb[0].mxu0
      %v3534 = vadd.f32 0.0, %v3533
      %v3535 = vpop.f32.mrb[0].mxu0
      %3536 = vdwg.mxu0
      %3545 = vrot.lane.b32.xlu0 %v1668, 8
      %v3546 = vpop.permute.xlu0 %3545
      %3547 = vrot.lane.b32.xlu0 %v1673, 8
      %v3548 = vpop.permute.xlu0 %3547
      %3549 = vrot.lane.b32.xlu0 %v1755, 8
      %v3550 = vpop.permute.xlu0 %3549
      %3551 = vrot.lane.b32.xlu0 %v1760, 8
      %v3552 = vpop.permute.xlu0 %3551
      %3553 = vrot.lane.b32.xlu0 %v1842, 8
      %v3554 = vpop.permute.xlu0 %3553
      %3555 = vrot.lane.b32.xlu0 %v1847, 8
      %v3556 = vpop.permute.xlu0 %3555
      %3557 = vrot.lane.b32.xlu0 %v1929, 8
      %v3558 = vpop.permute.xlu0 %3557
      %3559 = vrot.lane.b32.xlu0 %v1934, 8
      %v3560 = vpop.permute.xlu0 %3559
      %3577 = vrot.lane.b32.xlu0 %v2468, 16
      %v3578 = vpop.permute.xlu0 %3577
      %3579 = vrot.lane.b32.xlu0 %v2473, 16
      %v3580 = vpop.permute.xlu0 %3579
      %3581 = vrot.lane.b32.xlu0 %v2555, 16
      %v3582 = vpop.permute.xlu0 %3581
      %3583 = vrot.lane.b32.xlu0 %v2560, 16
      %v3584 = vpop.permute.xlu0 %3583
      %3585 = vrot.lane.b32.xlu0 %v2642, 16
      %v3586 = vpop.permute.xlu0 %3585
      %3587 = vrot.lane.b32.xlu0 %v2647, 16
      %v3588 = vpop.permute.xlu0 %3587
      %3589 = vrot.lane.b32.xlu0 %v2729, 16
      %v3590 = vpop.permute.xlu0 %3589
      %3591 = vrot.lane.b32.xlu0 %v2734, 16
      %v3592 = vpop.permute.xlu0 %3591
      %3609 = vrot.lane.b32.xlu0 %v3268, 24
      %v3610 = vpop.permute.xlu0 %3609
      %3611 = vrot.lane.b32.xlu0 %v3273, 24
      %v3612 = vpop.permute.xlu0 %3611
      %3613 = vrot.lane.b32.xlu0 %v3355, 24
      %v3614 = vpop.permute.xlu0 %3613
      %3615 = vrot.lane.b32.xlu0 %v3360, 24
      %v3616 = vpop.permute.xlu0 %3615
      %3617 = vrot.lane.b32.xlu0 %v3442, 24
      %v3618 = vpop.permute.xlu0 %3617
      %3619 = vrot.lane.b32.xlu0 %v3447, 24
      %v3620 = vpop.permute.xlu0 %3619
      %3621 = vrot.lane.b32.xlu0 %v3529, 24
      %v3622 = vpop.permute.xlu0 %3621
      %3623 = vrot.lane.b32.xlu0 %v3534, 24
      %v3624 = vpop.permute.xlu0 %3623
      %v3633 = vsel %vm349, %v868, %v3546
      %v3634 = vsel %vm349, %v873, %v3548
      %v3635 = vsel %vm349, %v955, %v3550
      %v3636 = vsel %vm349, %v960, %v3552
      %v3637 = vsel %vm349, %v1042, %v3554
      %v3638 = vsel %vm349, %v1047, %v3556
      %v3639 = vsel %vm349, %v1129, %v3558
      %v3640 = vsel %vm349, %v1134, %v3560
      %v3641 = vsel %vm700, %v3633, %v3578
      %v3642 = vsel %vm700, %v3634, %v3580
      %v3643 = vsel %vm700, %v3635, %v3582
      %v3644 = vsel %vm700, %v3636, %v3584
      %v3645 = vsel %vm700, %v3637, %v3586
      %v3646 = vsel %vm700, %v3638, %v3588
      %v3647 = vsel %vm700, %v3639, %v3590
      %v3648 = vsel %vm700, %v3640, %v3592
      %vm3649 = vcmask 195584
      %v3650 = vsel %vm3649, %v3641, %v3610
      %v3651 = vsel %vm3649, %v3642, %v3612
      %v3652 = vsel %vm3649, %v3643, %v3614
      %v3653 = vsel %vm3649, %v3644, %v3616
      %v3654 = vsel %vm3649, %v3645, %v3618
      %v3655 = vsel %vm3649, %v3646, %v3620
      %v3656 = vsel %vm3649, %v3647, %v3622
      %v3657 = vsel %vm3649, %v3648, %v3624
      %v3658 = vld [vmem:[%s2] sm:$0xff]
      %v3659 = vld [vmem:[%s2 + $0x8] sm:$0xff]
      %v3660 = vld [vmem:[%s2 + $0x10] sm:$0xff]
      %v3661 = vld [vmem:[%s2 + $0x18] sm:$0xff]
      %v3662 = vld [vmem:[%s3] sm:$0x1]
      %v3664 = vlaneseq
      %v3665 = vshrl.u32 %v3664, 7
      %v3666 = vsub.s32 0, %v3665
      %v3667 = vrot.slane %v3662, %v3666
      %v3670 = vsel %vm213, %v3650, 0
      %v3673 = vsel %vm213, %v3651, 0
      %v3676 = vsel %vm213, %v3652, 0
      %v3679 = vsel %vm213, %v3653, 0
      %v3682 = vsel %vm213, %v3654, 0
      %v3685 = vsel %vm213, %v3655, 0
      %v3688 = vsel %vm213, %v3656, 0
      %v3691 = vsel %vm213, %v3657, 0
      %3693 = vmatprep.subr.mxu0 0.0
      %3694 = vmatpush1.msra.mxu0 %v3658
      %3695 = vmatprep.subr.mxu0 0.0
      %3696 = vmatpush1.msra.mxu0 %v3659
      %3697 = vmatprep.subr.mxu0 0.0
      %3698 = vmatpush1.msra.mxu0 %v3660
      %3699 = vmatprep.subr.mxu0 0.0
      %3700 = vmatpush1.msra.mxu0 %v3661
      %3701 = vmatprep.subr.mxu0 0.0
      %3702 = vmatpush1.msra.mxu0 0.0
      %3703 = vmatprep.subr.mxu0 0.0
      %3704 = vmatpush1.msra.mxu0 0.0
      %3705 = vmatprep.subr.mxu0 0.0
      %3706 = vmatpush1.msra.mxu0 0.0
      %3707 = vmatprep.subr.mxu0 0.0
      %3708 = vmatpush1.msra.mxu0 0.0
      %3709 = vmatprep.subr.mxu0 0.0
      %3710 = vmatpush1.msra.mxu0 0.0
      %3711 = vmatprep.subr.mxu0 0.0
      %3712 = vmatpush1.msra.mxu0 0.0
      %3713 = vmatprep.subr.mxu0 0.0
      %3714 = vmatpush1.msra.mxu0 0.0
      %3715 = vmatprep.subr.mxu0 0.0
      %3716 = vmatpush1.msra.mxu0 0.0
      %3717 = vmatprep.subr.mxu0 0.0
      %3718 = vmatpush1.msra.mxu0 0.0
      %3719 = vmatprep.subr.mxu0 0.0
      %3720 = vmatpush1.msra.mxu0 0.0
      %3721 = vmatprep.subr.mxu0 0.0
      %3722 = vmatpush1.msra.mxu0 0.0
      %3723 = vmatprep.subr.mxu0 0.0
      %3724 = vmatpush1.msra.mxu0 0.0
      %3725 = vmatprep.subr.mxu0 0.0
      %3726 = vmatpush1.msra.mxu0 0.0
      %3727 = vmatprep.subr.mxu0 0.0
      %3728 = vmatpush1.msra.mxu0 0.0
      %3729 = vmatprep.subr.mxu0 0.0
      %3730 = vmatpush1.msra.mxu0 0.0
      %3731 = vmatprep.subr.mxu0 0.0
      %3732 = vmatpush1.msra.mxu0 0.0
      %3733 = vmatprep.subr.mxu0 0.0
      %3734 = vmatpush1.msra.mxu0 0.0
      %3735 = vmatprep.subr.mxu0 0.0
      %3736 = vmatpush1.msra.mxu0 0.0
      %3737 = vmatprep.subr.mxu0 0.0
      %3738 = vmatpush1.msra.mxu0 0.0
      %3739 = vmatprep.subr.mxu0 0.0
      %3740 = vmatpush1.msra.mxu0 0.0
      %3741 = vmatprep.subr.mxu0 0.0
      %3742 = vmatpush1.msra.mxu0 0.0
      %3743 = vmatprep.subr.mxu0 0.0
      %3744 = vmatpush1.msra.mxu0 0.0
      %3745 = vmatprep.subr.mxu0 0.0
      %3746 = vmatpush1.msra.mxu0 0.0
      %3747 = vmatprep.subr.mxu0 0.0
      %3748 = vmatpush1.msra.mxu0 0.0
      %3749 = vmatprep.subr.mxu0 0.0
      %3750 = vmatpush1.msra.mxu0 0.0
      %3751 = vmatprep.subr.mxu0 0.0
      %3752 = vmatpush1.msra.mxu0 0.0
      %3753 = vmatprep.subr.mxu0 0.0
      %3754 = vmatpush1.msra.mxu0 0.0
      %3755 = vmatprep.subr.mxu0 0.0
      %3756 = vmatpush1.msra.mxu0 0.0
      %3757 = vmatprep.mubr.f32.mxu0 0.0
      %3758 = vmatmul.mubr.f32.gmra.mrb[0].mxu0 %v3670
      %v3759 = vpop.f32.mrb[0].mxu0
      %v3760 = vadd.f32 %v3667, %v3759
      %v3761 = vpop.f32.mrb[0].mxu0
      %3762 = vmatprep.mubr.f32.mxu0 0.0
      %3763 = vmatmul.mubr.f32.gmra.mrb[0].mxu0 %v3673
      %v3764 = vpop.f32.mrb[0].mxu0
      %v3765 = vadd.f32 %v3667, %v3764
      %v3766 = vpop.f32.mrb[0].mxu0
      %3767 = vmatprep.mubr.f32.mxu0 0.0
      %3768 = vmatmul.mubr.f32.gmra.mrb[0].mxu0 %v3676
      %v3769 = vpop.f32.mrb[0].mxu0
      %v3770 = vadd.f32 %v3667, %v3769
      %v3771 = vpop.f32.mrb[0].mxu0
      %3772 = vmatprep.mubr.f32.mxu0 0.0
      %3773 = vmatmul.mubr.f32.gmra.mrb[0].mxu0 %v3679
      %v3774 = vpop.f32.mrb[0].mxu0
      %v3775 = vadd.f32 %v3667, %v3774
      %v3776 = vpop.f32.mrb[0].mxu0
      %3777 = vmatprep.mubr.f32.mxu0 0.0
      %3778 = vmatmul.mubr.f32.gmra.mrb[0].mxu0 %v3682
      %v3779 = vpop.f32.mrb[0].mxu0
      %v3780 = vadd.f32 %v3667, %v3779
      %v3781 = vpop.f32.mrb[0].mxu0
      %3782 = vmatprep.mubr.f32.mxu0 0.0
      %3783 = vmatmul.mubr.f32.gmra.mrb[0].mxu0 %v3685
      %v3784 = vpop.f32.mrb[0].mxu0
      %v3785 = vadd.f32 %v3667, %v3784
      %v3786 = vpop.f32.mrb[0].mxu0
      %3787 = vmatprep.mubr.f32.mxu0 0.0
      %3788 = vmatmul.mubr.f32.gmra.mrb[0].mxu0 %v3688
      %v3789 = vpop.f32.mrb[0].mxu0
      %v3790 = vadd.f32 %v3667, %v3789
      %v3791 = vpop.f32.mrb[0].mxu0
      %3792 = vmatprep.mubr.f32.mxu0 0.0
      %3793 = vmatmul.mubr.f32.gmra.mrb[0].mxu0 %v3691
      %v3794 = vpop.f32.mrb[0].mxu0
      %v3795 = vadd.f32 %v3667, %v3794
      %v3796 = vpop.f32.mrb[0].mxu0
      %3797 = vdwg.mxu0
      %3798 = vst.msk [vmem:[%s199] sm:$0xff] %vm213, %v3760
      %3799 = vst.msk [vmem:[%s199 + $0x8] sm:$0xff] %vm213, %v3765
      %3800 = vst.msk [vmem:[%s199 + $0x10] sm:$0xff] %vm213, %v3770
      %3801 = vst.msk [vmem:[%s199 + $0x18] sm:$0xff] %vm213, %v3775
      %3802 = vst.msk [vmem:[%s199 + $0x20] sm:$0xff] %vm213, %v3780
      %3803 = vst.msk [vmem:[%s199 + $0x28] sm:$0xff] %vm213, %v3785
      %3804 = vst.msk [vmem:[%s199 + $0x30] sm:$0xff] %vm213, %v3790
      %3805 = vst.msk [vmem:[%s199 + $0x38] sm:$0xff] %vm213, %v3795
      %s3806 = smul.u32 8, %s15
      %p3807 = scmp.lt.s32.totalorder %s3806, 15
      %s3808 = scalar_select %p3807, %s3806, 15
      %s3809 = smul.addr %s3808, 8
      %s3810 = scalar_lea.vmem %s4, %s3809
      // Predicated region
      $region37: #{tpu_custom_call.1} parent=35 // pred_check
        %p3811 = pneg %p122
      $region38: #{tpu_custom_call.1} parent=35 // pred_check_branch
        %3813 = sbr.rel (%p3811) target = $region40
      $region39: #{tpu_custom_call.1} parent=35 // pred_region
        %s3814 = smul.u32 8, %s15
      $region40: #{tpu_custom_call.1} parent=35 // pred_fallthru
        _
    $region36: #{tpu_custom_call.1} parent=5 // pred_fallthru
      _
    %p3815 = scmp.le.s32.totalorder 2, %s10
    // Predicated region
    $region41: #{tpu_custom_call.1} parent=5 // pred_check
      %p3816 = pneg %p3815
    $region42: #{tpu_custom_call.1} parent=5 // pred_check_branch
      %3818 = sbr.rel (%p3816) target = $region44
    $region43: #{tpu_custom_call.1} parent=5 // pred_region
      %s3819 = ssub.s32 %s10, 2
      // Predicated region
      $region45: #{tpu_custom_call.1} parent=43 // pred_check
        %p3820 = pneg %p128
      $region46: #{tpu_custom_call.1} parent=43 // pred_check_branch
        %3822 = sbr.rel (%p3820) target = $region48
      $region47: #{tpu_custom_call.1} parent=43 // pred_region
        %s3823 = smul.u32 8, %s16
        %p3824 = scmp.lt.s32.totalorder %s3823, 15
        %s3825 = scalar_select %p3824, %s3823, 15
        %s3826 = smul.addr %s3825, 8
        %s3827 = scalar_lea.vmem %s4, %s3826
      $region48: #{tpu_custom_call.1} parent=43 // pred_fallthru
        _
    $region44: #{tpu_custom_call.1} parent=5 // pred_fallthru
      _
  $region6: #{tpu_custom_call.1} parent=0 // loop_footer
    %s14 = sadd.s32 1, %s10
  $region7: #{tpu_custom_call.1} parent=0 // loop_footer_branch
    %9 = sbr.rel target = $region3
  $region8: #{tpu_custom_call.1} parent=0 // loop_exit
    _

</llo_original>
